<compile_context>
chip_gen: v6e
topology: v6e:2x2x1
jax: 0.10.0
libtpu: 0.0.40
codegen_flags: <defaults>
</compile_context>

<pallas_src>
import functools

import jax
import jax.numpy as jnp
from jax.experimental import pallas as pl
from jax.experimental.pallas import tpu as pltpu

CH = 19      # EEG electrodes
F1 = 8       # temporal filters
D = 2        # depth multiplier
F2 = 16      # pointwise filters (== F1 * D here)
K1 = 19      # conv1 temporal kernel width  (nn.Conv2d(1, F1, (1, 19)))
K3 = 16      # Conv3 depthwise kernel width = floor(half_sf / 4) = 16
PAD3 = 8     # Conv3 padding (0, 8)
HID = 10     # LSTM hidden size
NCLS = 2     # num_classes
B_BLK = 8    # examples per grid step (B*F2 = 128 -> one full MXU M pass)


def _avg_pool_matrix(length, k):
    """(length, n_out) matrix M such that  y @ M == AvgPool1d(k, stride=k)(y)."""
    n_out = (length - k) // k + 1
    t = jnp.arange(length)[:, None]
    j = jnp.arange(n_out)[None, :]
    return ((t >= j * k) & (t < j * k + k)).astype(jnp.float32) / float(k)


def _eegnet_kernel(B, T1, T3, P2,
                   x_ref, wbd_ref, bias2_ref, bn2sc_ref, bn2sh_ref, pool1_ref,
                   w3d_ref, w3pbd_ref, bn3sc_ref, bn3sh_ref, pool2_ref,
                   wihs_ref, whhs_ref, bls_ref, wfcbd_ref, bfcs_ref,
                   out_ref):
    f32 = jnp.float32
    bf16 = jnp.bfloat16
    BF2 = B * F2
    BH = B * HID

    def elu(a):
        return jnp.where(a > 0, a, jnp.exp(jnp.minimum(a, 0.0)) - 1.0)

    # ---- conv1 + BN1 + conv2 folded into 19 per-tap MXU matmuls ------------
    # z2[b*F2+c, t] = sum_k sum_ch Wk[c,ch] * x[b, ch, t+k]  (+ folded bias)
    acc = jnp.zeros((BF2, T1), f32)
    for k in range(K1):
        xs = x_ref[:, k:k + T1].astype(bf16)                    # (B*CH, T1)
        acc = acc + jnp.dot(wbd_ref[k], xs, preferred_element_type=f32)
    z2 = acc + bias2_ref[...]

    # ---- BN2 + ELU + AvgPool(1, 4) ------------------------------------------
    # pool1 is pre-padded with PAD3 zero columns each side, so y2p is already
    # the zero-padded input of the Conv3 depthwise conv (no scratch round trip).
    e2 = elu(z2 * bn2sc_ref[...] + bn2sh_ref[...])
    y2p = jnp.dot(e2.astype(bf16), pool1_ref[...],
                  preferred_element_type=f32)                   # (BF2, P1+2*PAD3)

    # ---- Conv3: depthwise temporal + pointwise 1x1 + BN3 + ELU + AvgPool(1,8)
    acc3 = jnp.zeros((BF2, T3), f32)
    for k in range(K3):
        acc3 = acc3 + w3d_ref[:, k:k + 1] * y2p[:, k:k + T3]
    z3 = jnp.dot(w3pbd_ref[...], acc3.astype(bf16),
                 preferred_element_type=f32)                    # (BF2, T3)
    e3 = elu(z3 * bn3sc_ref[...] + bn3sh_ref[...])
    y3 = jnp.dot(e3.astype(bf16), pool2_ref[...],
                 preferred_element_type=f32)                    # (BF2, P2)

    # ---- LSTM over P2 steps, batched over the block ------------------------
    # Input projection hoisted out of the recurrence; stacked (B*HID, 1) state
    # with gate-major row ordering so gate slices are contiguous.
    gates_in = jnp.dot(wihs_ref[...], y3, preferred_element_type=f32)  # (4*BH, P2)
    h = jnp.zeros((BH, 1), f32)
    cell = jnp.zeros((BH, 1), f32)
    for t in range(P2):
        gates = (gates_in[:, t:t + 1]
                 + jnp.dot(whhs_ref[...], h, preferred_element_type=f32)
                 + bls_ref[...])                                # (4*BH, 1)
        i_g = jax.nn.sigmoid(gates[0 * BH:1 * BH])
        f_g = jax.nn.sigmoid(gates[1 * BH:2 * BH])
        g_g = jnp.tanh(gates[2 * BH:3 * BH])
        o_g = jax.nn.sigmoid(gates[3 * BH:4 * BH])
        cell = f_g * cell + i_g * g_g
        h = o_g * jnp.tanh(cell)

    # ---- fc(HID -> NCLS): one dense per-block write -------------------------
    out_ref[...] = (jnp.dot(wfcbd_ref[...], h, preferred_element_type=f32)
                    + bfcs_ref[...])                            # (B*NCLS, 1)


def eegnet_forward(x, params, block_batch=B_BLK):
    N, cin, ch, T = x.shape
    assert cin == 1 and ch == CH
    B = block_batch
    f32 = jnp.float32
    bf16 = jnp.bfloat16

    T1 = T - K1 + 1                    # after conv1
    P1 = (T1 - 4) // 4 + 1             # after AvgPool(1,4)
    W3 = P1 + 2 * PAD3                 # padded width into Conv3 depthwise
    T3 = W3 - K3 + 1                   # after Conv3 depthwise
    P2 = (T3 - 8) // 8 + 1             # after AvgPool(1,8)  == LSTM seq len

    # ---- input: pad batch to a multiple of B and stack channels on sublanes
    x2 = x[:, 0, :, :].astype(f32)                      # (N, CH, T)
    n_blk = -(-N // B)
    N_pad = n_blk * B
    if N_pad != N:
        x2 = jnp.concatenate(
            [x2, jnp.zeros((N_pad - N, CH, T), f32)], axis=0)
    x_stack = x2.reshape(N_pad * CH, T)                 # row = n*CH + electrode

    def bn_fold(stats, eps=1e-5):
        gamma, beta, mean, var = stats
        scale = gamma / jnp.sqrt(var + eps)
        return scale, beta - mean * scale

    bn1_scale, bn1_shift = bn_fold(params["bn1"])
    bn2_scale, bn2_shift = bn_fold(params["bn2"])
    bn3_scale, bn3_shift = bn_fold(params["bn3"])

    w1 = params["conv1_w"].reshape(F1, K1)              # (8, 19)
    w2 = params["conv2_w"].reshape(F1 * D, CH)          # (16, 19)
    w3d = params["conv3_dw"].reshape(F1 * D, K3)        # (16, 16)
    w3p = params["conv3_pw"].reshape(F2, F1 * D)        # (16, 16)
    wih = params["lstm_wih"]                            # (40, 16)
    whh = params["lstm_whh"]                            # (40, 10)
    bl = params["lstm_bih"] + params["lstm_bhh"]        # (40,)
    wfc = params["fc_w"]                                # (2, 10)
    bfc = params["fc_b"]                                # (2,)

    eye = jnp.eye(B, dtype=f32)

    def bdiag(w):                                       # (r,c) -> (B*r, B*c)
        r, c = w.shape
        return jnp.einsum('bB,rc->brBc', eye, w).reshape(B * r, B * c)

    def tile_col(v):                                    # (c,) -> (B*c, 1)
        return jnp.tile(v, B).reshape(B * v.shape[0], 1).astype(f32)

    # Fold conv1 + BN1 into the depthwise-spatial conv2 (per tap k):
    #   Wk[c, ch] = w2[c, ch] * bn1_scale[g(c)] * w1[g(c), k]
    #   bias2[c]  = bn1_shift[g(c)] * sum_ch w2[c, ch]
    g_idx = jnp.arange(F1 * D) // D
    w2s = w2 * bn1_scale[g_idx][:, None]                # (F2, CH)
    wk = jnp.einsum('ck,cq->kcq', w1[g_idx], w2s)       # (K1, F2, CH)
    wbd = jnp.einsum('bB,kcq->kbcBq', eye, wk).reshape(
        K1, B * F2, B * CH).astype(bf16)                # block-diag per tap
    bias2 = bn1_shift[g_idx] * jnp.sum(w2, axis=1)      # (F2,)

    # AvgPool matrices (bf16 entries 0 / 0.25 / 0.125 are exact).  pool1 is
    # zero-padded with PAD3 columns so its output is the padded Conv3 input.
    pool1 = jnp.pad(_avg_pool_matrix(T1, 4),
                    ((0, 0), (PAD3, PAD3))).astype(bf16)        # (T1, W3)
    pool2 = _avg_pool_matrix(T3, 8).astype(bf16)                # (T3, P2)

    # Stacked / block-diagonal LSTM + fc weights (gate-major row order).
    wih4 = wih.reshape(4, HID, F2)
    whh4 = whh.reshape(4, HID, HID)
    wih_s = jnp.einsum('bB,gjf->gbjBf', eye, wih4).reshape(4 * B * HID, B * F2)
    whh_s = jnp.einsum('bB,gjh->gbjBh', eye, whh4).reshape(4 * B * HID, B * HID)
    bl_s = jnp.tile(bl.reshape(4, HID)[:, None, :],
                    (1, B, 1)).reshape(4 * B * HID, 1)

    kernel = functools.partial(_eegnet_kernel, B, T1, T3, P2)

    def vfull(shape):
        return pl.BlockSpec(shape, lambda *_: (0,) * len(shape))

    out = pl.pallas_call(
        kernel,
        out_shape=jax.ShapeDtypeStruct((N_pad * NCLS, 1), f32),
        grid=(n_blk,),
        in_specs=[
            pl.BlockSpec((B * CH, T), lambda i: (i, 0)),        # x slab (per block)
            vfull((K1, B * F2, B * CH)),                        # folded conv taps
            vfull((B * F2, 1)),                                 # folded conv bias
            vfull((B * F2, 1)),                                 # bn2 scale
            vfull((B * F2, 1)),                                 # bn2 shift
            vfull((T1, W3)),                                    # pool-4 (padded)
            vfull((B * F2, K3)),                                # conv3 depthwise
            vfull((B * F2, B * F2)),                            # conv3 pointwise
            vfull((B * F2, 1)),                                 # bn3 scale
            vfull((B * F2, 1)),                                 # bn3 shift
            vfull((T3, P2)),                                    # pool-8 matrix
            vfull((4 * B * HID, B * F2)),                       # lstm W_ih stacked
            vfull((4 * B * HID, B * HID)),                      # lstm W_hh stacked
            vfull((4 * B * HID, 1)),                            # lstm bias stacked
            vfull((B * NCLS, B * HID)),                         # fc weight (bdiag)
            vfull((B * NCLS, 1)),                               # fc bias stacked
        ],
        out_specs=pl.BlockSpec((B * NCLS, 1), lambda i: (i, 0)),
        compiler_params=pltpu.CompilerParams(
            dimension_semantics=("parallel",)),                 # disjoint out blocks
    )(
        x_stack, wbd, tile_col(bias2),
        tile_col(bn2_scale), tile_col(bn2_shift), pool1,
        jnp.tile(w3d, (B, 1)).astype(f32), bdiag(w3p).astype(bf16),
        tile_col(bn3_scale), tile_col(bn3_shift), pool2,
        wih_s.astype(f32), whh_s.astype(f32), bl_s.astype(f32),
        bdiag(wfc).astype(f32), tile_col(bfc),
    )
    return out.reshape(N_pad, NCLS)[:N]                 # (N, NCLS)


def eegnet_ref(x, params):
    """Pure-JAX f32 reference of the same interpretation (for tolerance test)."""
    N = x.shape[0]
    T = x.shape[-1]
    T1 = T - K1 + 1
    P1 = (T1 - 4) // 4 + 1
    T3 = P1 + 2 * PAD3 - K3 + 1
    P2 = (T3 - 8) // 8 + 1

    def bn_fold(stats, eps=1e-5):
        gamma, beta, mean, var = stats
        s = gamma / jnp.sqrt(var + eps)
        return s, beta - mean * s

    s1, b1 = bn_fold(params["bn1"])
    s2, b2 = bn_fold(params["bn2"])
    s3, b3 = bn_fold(params["bn3"])
    w1 = params["conv1_w"].reshape(F1, K1)
    w2 = params["conv2_w"].reshape(F1 * D, CH)
    w3d = params["conv3_dw"].reshape(F1 * D, K3)
    w3p = params["conv3_pw"].reshape(F2, F1 * D)

    x2 = x[:, 0].astype(jnp.float32)                             # (N, CH, T)
    y1 = jnp.zeros((N, F1, CH, T1), jnp.float32)
    for k in range(K1):
        y1 = y1 + w1[None, :, None, k:k + 1] * x2[:, None, :, k:k + T1]
    y1 = y1 * s1[None, :, None, None] + b1[None, :, None, None]

    g = jnp.arange(F1 * D) // D
    z2 = jnp.einsum('cq,ncqt->nct', w2, y1[:, g])                # (N, F2, T1)
    a2 = z2 * s2[None, :, None] + b2[None, :, None]
    e2 = jnp.where(a2 > 0, a2, jnp.exp(jnp.minimum(a2, 0.0)) - 1.0)
    y2 = e2[:, :, :P1 * 4].reshape(N, F2, P1, 4).mean(-1)

    pad = jnp.pad(y2, ((0, 0), (0, 0), (PAD3, PAD3)))
    acc3 = jnp.zeros((N, F2, T3), jnp.float32)
    for k in range(K3):
        acc3 = acc3 + w3d[None, :, k:k + 1] * pad[:, :, k:k + T3]
    z3 = jnp.einsum('fc,nct->nft', w3p, acc3)
    a3 = z3 * s3[None, :, None] + b3[None, :, None]
    e3 = jnp.where(a3 > 0, a3, jnp.exp(jnp.minimum(a3, 0.0)) - 1.0)
    y3 = e3[:, :, :P2 * 8].reshape(N, F2, P2, 8).mean(-1)        # (N, F2, P2)

    wih = params["lstm_wih"]
    whh = params["lstm_whh"]
    bl = params["lstm_bih"] + params["lstm_bhh"]
    h = jnp.zeros((N, HID), jnp.float32)
    c = jnp.zeros((N, HID), jnp.float32)
    for t in range(P2):
        gt = y3[:, :, t] @ wih.T + h @ whh.T + bl[None, :]
        i_g = jax.nn.sigmoid(gt[:, 0 * HID:1 * HID])
        f_g = jax.nn.sigmoid(gt[:, 1 * HID:2 * HID])
        g_g = jnp.tanh(gt[:, 2 * HID:3 * HID])
        o_g = jax.nn.sigmoid(gt[:, 3 * HID:4 * HID])
        c = f_g * c + i_g * g_g
        h = o_g * jnp.tanh(c)
    return h @ params["fc_w"].T + params["fc_b"][None, :]


def init_params(key):
    ks = jax.random.split(key, 13)

    def n(k, shape, s=0.2):
        return s * jax.random.normal(k, shape, jnp.float32)

    def bn(k, c):
        k1, k2, k3, k4 = jax.random.split(k, 4)
        gamma = 1.0 + 0.1 * jax.random.normal(k1, (c,), jnp.float32)
        beta = 0.1 * jax.random.normal(k2, (c,), jnp.float32)
        mean = 0.1 * jax.random.normal(k3, (c,), jnp.float32)
        var = 1.0 + 0.1 * jnp.abs(jax.random.normal(k4, (c,), jnp.float32))
        return gamma, beta, mean, var

    return {
        "conv1_w": n(ks[0], (F1, 1, 1, K1)),
        "bn1": bn(ks[1], F1),
        "conv2_w": n(ks[2], (F1 * D, 1, CH, 1)),
        "bn2": bn(ks[3], F1 * D),
        "conv3_dw": n(ks[4], (F1 * D, 1, 1, K3)),
        "conv3_pw": n(ks[5], (F2, F1 * D, 1, 1)),
        "bn3": bn(ks[6], F2),
        "lstm_wih": n(ks[7], (4 * HID, F2)),
        "lstm_whh": n(ks[8], (4 * HID, HID)),
        "lstm_bih": n(ks[9], (4 * HID,)),
        "lstm_bhh": n(ks[10], (4 * HID,)),
        "fc_w": n(ks[11], (NCLS, HID)),
        "fc_b": n(ks[12], (NCLS,)),
    }


if __name__ == "__main__":
    key = jax.random.PRNGKey(0)
    kp, kx = jax.random.split(key)
    params = init_params(kp)
    # (batch=2, 1, electrodes=19, time=128): one second of EEG at sf=128.
    x = jax.random.normal(kx, (2, 1, CH, 128), jnp.float32)

    out = eegnet_forward(x, params)
    out = jax.block_until_ready(out)
    assert out.shape == (2, NCLS)
    assert bool(jnp.all(jnp.isfinite(out)))

    # Tolerance check vs. pure-JAX f32 reference (kernel uses bf16 MXU inputs).
    ref = jax.jit(eegnet_ref)(x, params)
    ref = jax.block_until_ready(ref)
    assert bool(jnp.allclose(out, ref, atol=5e-2, rtol=5e-2)), (out, ref)

    print("KERNEL_OK")
</pallas_src>

<mosaic_0001>
module attributes {stable_mosaic.version = 11 : i64} {
  func.func @_eegnet_kernel(%arg0: i32, %arg1: memref<152x128xf32, #tpu.memory_space<vmem>>, %arg2: memref<19x128x152xbf16, #tpu.memory_space<vmem>>, %arg3: memref<128x1xf32, #tpu.memory_space<vmem>>, %arg4: memref<128x1xf32, #tpu.memory_space<vmem>>, %arg5: memref<128x1xf32, #tpu.memory_space<vmem>>, %arg6: memref<110x43xbf16, #tpu.memory_space<vmem>>, %arg7: memref<128x16xf32, #tpu.memory_space<vmem>>, %arg8: memref<128x128xbf16, #tpu.memory_space<vmem>>, %arg9: memref<128x1xf32, #tpu.memory_space<vmem>>, %arg10: memref<128x1xf32, #tpu.memory_space<vmem>>, %arg11: memref<28x3xbf16, #tpu.memory_space<vmem>>, %arg12: memref<320x128xf32, #tpu.memory_space<vmem>>, %arg13: memref<320x80xf32, #tpu.memory_space<vmem>>, %arg14: memref<320x1xf32, #tpu.memory_space<vmem>>, %arg15: memref<16x80xf32, #tpu.memory_space<vmem>>, %arg16: memref<16x1xf32, #tpu.memory_space<vmem>>, %arg17: memref<16x1xf32, #tpu.memory_space<vmem>>) attributes {dimension_semantics = [#tpu.dimension_semantics<parallel>], iteration_bounds = array<i64: 1>, scalar_prefetch = 0 : i64, scratch_operands = 0 : i64, tpu.core_type = #tpu.core_type<tc>, window_params = [{transform_indices = @transform_0, window_bounds = array<i64: 152, 128>}, {pipeline_mode = #tpu.pipeline_mode<synchronous>, transform_indices = @transform_1, window_bounds = array<i64: 19, 128, 152>}, {pipeline_mode = #tpu.pipeline_mode<synchronous>, transform_indices = @transform_2, window_bounds = array<i64: 128, 1>}, {pipeline_mode = #tpu.pipeline_mode<synchronous>, transform_indices = @transform_3, window_bounds = array<i64: 128, 1>}, {pipeline_mode = #tpu.pipeline_mode<synchronous>, transform_indices = @transform_4, window_bounds = array<i64: 128, 1>}, {pipeline_mode = #tpu.pipeline_mode<synchronous>, transform_indices = @transform_5, window_bounds = array<i64: 110, 43>}, {pipeline_mode = #tpu.pipeline_mode<synchronous>, transform_indices = @transform_6, window_bounds = array<i64: 128, 16>}, {pipeline_mode = #tpu.pipeline_mode<synchronous>, transform_indices = @transform_7, window_bounds = array<i64: 128, 128>}, {pipeline_mode = #tpu.pipeline_mode<synchronous>, transform_indices = @transform_8, window_bounds = array<i64: 128, 1>}, {pipeline_mode = #tpu.pipeline_mode<synchronous>, transform_indices = @transform_9, window_bounds = array<i64: 128, 1>}, {pipeline_mode = #tpu.pipeline_mode<synchronous>, transform_indices = @transform_10, window_bounds = array<i64: 28, 3>}, {pipeline_mode = #tpu.pipeline_mode<synchronous>, transform_indices = @transform_11, window_bounds = array<i64: 320, 128>}, {pipeline_mode = #tpu.pipeline_mode<synchronous>, transform_indices = @transform_12, window_bounds = array<i64: 320, 80>}, {pipeline_mode = #tpu.pipeline_mode<synchronous>, transform_indices = @transform_13, window_bounds = array<i64: 320, 1>}, {pipeline_mode = #tpu.pipeline_mode<synchronous>, transform_indices = @transform_14, window_bounds = array<i64: 16, 80>}, {pipeline_mode = #tpu.pipeline_mode<synchronous>, transform_indices = @transform_15, window_bounds = array<i64: 16, 1>}, {transform_indices = @transform_16, window_bounds = array<i64: 16, 1>}]} {
    %cst = arith.constant 0.000000e+00 : f32
    %0 = vector.broadcast %cst : f32 to vector<128x110xf32>
    %c0 = arith.constant 0 : index
    %c0_0 = arith.constant 0 : index
    %1 = vector.load %arg1[%c0, %c0_0] : memref<152x128xf32, #tpu.memory_space<vmem>>, vector<152x110xf32>
    %2 = arith.truncf %1 : vector<152x110xf32> to vector<152x110xbf16>
    %c0_1 = arith.constant 0 : index
    %c0_2 = arith.constant 0 : index
    %c0_3 = arith.constant 0 : index
    %3 = vector.load %arg2[%c0_1, %c0_2, %c0_3] : memref<19x128x152xbf16, #tpu.memory_space<vmem>>, vector<1x128x152xbf16>
    %4 = vector.shape_cast %3 : vector<1x128x152xbf16> to vector<128x152xbf16>
    %cst_4 = arith.constant dense<0.000000e+00> : vector<128x110xf32>
    %5 = tpu.matmul %4, %2, %cst_4 {dimension_numbers = #tpu.dot_dimension_numbers<[1], [0], [0], [1], [0, 0, 1, 1], [], []>} : vector<128x152xbf16>, vector<152x110xbf16>, vector<128x110xf32> -> vector<128x110xf32>
    %6 = arith.addf %0, %5 : vector<128x110xf32>
    %c0_5 = arith.constant 0 : index
    %c1 = arith.constant 1 : index
    %7 = vector.load %arg1[%c0_5, %c1] : memref<152x128xf32, #tpu.memory_space<vmem>>, vector<152x110xf32>
    %8 = arith.truncf %7 : vector<152x110xf32> to vector<152x110xbf16>
    %c1_6 = arith.constant 1 : index
    %c0_7 = arith.constant 0 : index
    %c0_8 = arith.constant 0 : index
    %9 = vector.load %arg2[%c1_6, %c0_7, %c0_8] : memref<19x128x152xbf16, #tpu.memory_space<vmem>>, vector<1x128x152xbf16>
    %10 = vector.shape_cast %9 : vector<1x128x152xbf16> to vector<128x152xbf16>
    %cst_9 = arith.constant dense<0.000000e+00> : vector<128x110xf32>
    %11 = tpu.matmul %10, %8, %cst_9 {dimension_numbers = #tpu.dot_dimension_numbers<[1], [0], [0], [1], [0, 0, 1, 1], [], []>} : vector<128x152xbf16>, vector<152x110xbf16>, vector<128x110xf32> -> vector<128x110xf32>
    %12 = arith.addf %6, %11 : vector<128x110xf32>
    %c0_10 = arith.constant 0 : index
    %c2 = arith.constant 2 : index
    %13 = vector.load %arg1[%c0_10, %c2] : memref<152x128xf32, #tpu.memory_space<vmem>>, vector<152x110xf32>
    %14 = arith.truncf %13 : vector<152x110xf32> to vector<152x110xbf16>
    %c2_11 = arith.constant 2 : index
    %c0_12 = arith.constant 0 : index
    %c0_13 = arith.constant 0 : index
    %15 = vector.load %arg2[%c2_11, %c0_12, %c0_13] : memref<19x128x152xbf16, #tpu.memory_space<vmem>>, vector<1x128x152xbf16>
    %16 = vector.shape_cast %15 : vector<1x128x152xbf16> to vector<128x152xbf16>
    %cst_14 = arith.constant dense<0.000000e+00> : vector<128x110xf32>
    %17 = tpu.matmul %16, %14, %cst_14 {dimension_numbers = #tpu.dot_dimension_numbers<[1], [0], [0], [1], [0, 0, 1, 1], [], []>} : vector<128x152xbf16>, vector<152x110xbf16>, vector<128x110xf32> -> vector<128x110xf32>
    %18 = arith.addf %12, %17 : vector<128x110xf32>
    %c0_15 = arith.constant 0 : index
    %c3 = arith.constant 3 : index
    %19 = vector.load %arg1[%c0_15, %c3] : memref<152x128xf32, #tpu.memory_space<vmem>>, vector<152x110xf32>
    %20 = arith.truncf %19 : vector<152x110xf32> to vector<152x110xbf16>
    %c3_16 = arith.constant 3 : index
    %c0_17 = arith.constant 0 : index
    %c0_18 = arith.constant 0 : index
    %21 = vector.load %arg2[%c3_16, %c0_17, %c0_18] : memref<19x128x152xbf16, #tpu.memory_space<vmem>>, vector<1x128x152xbf16>
    %22 = vector.shape_cast %21 : vector<1x128x152xbf16> to vector<128x152xbf16>
    %cst_19 = arith.constant dense<0.000000e+00> : vector<128x110xf32>
    %23 = tpu.matmul %22, %20, %cst_19 {dimension_numbers = #tpu.dot_dimension_numbers<[1], [0], [0], [1], [0, 0, 1, 1], [], []>} : vector<128x152xbf16>, vector<152x110xbf16>, vector<128x110xf32> -> vector<128x110xf32>
    %24 = arith.addf %18, %23 : vector<128x110xf32>
    %c0_20 = arith.constant 0 : index
    %c4 = arith.constant 4 : index
    %25 = vector.load %arg1[%c0_20, %c4] : memref<152x128xf32, #tpu.memory_space<vmem>>, vector<152x110xf32>
    %26 = arith.truncf %25 : vector<152x110xf32> to vector<152x110xbf16>
    %c4_21 = arith.constant 4 : index
    %c0_22 = arith.constant 0 : index
    %c0_23 = arith.constant 0 : index
    %27 = vector.load %arg2[%c4_21, %c0_22, %c0_23] : memref<19x128x152xbf16, #tpu.memory_space<vmem>>, vector<1x128x152xbf16>
    %28 = vector.shape_cast %27 : vector<1x128x152xbf16> to vector<128x152xbf16>
    %cst_24 = arith.constant dense<0.000000e+00> : vector<128x110xf32>
    %29 = tpu.matmul %28, %26, %cst_24 {dimension_numbers = #tpu.dot_dimension_numbers<[1], [0], [0], [1], [0, 0, 1, 1], [], []>} : vector<128x152xbf16>, vector<152x110xbf16>, vector<128x110xf32> -> vector<128x110xf32>
    %30 = arith.addf %24, %29 : vector<128x110xf32>
    %c0_25 = arith.constant 0 : index
    %c5 = arith.constant 5 : index
    %31 = vector.load %arg1[%c0_25, %c5] : memref<152x128xf32, #tpu.memory_space<vmem>>, vector<152x110xf32>
    %32 = arith.truncf %31 : vector<152x110xf32> to vector<152x110xbf16>
    %c5_26 = arith.constant 5 : index
    %c0_27 = arith.constant 0 : index
    %c0_28 = arith.constant 0 : index
    %33 = vector.load %arg2[%c5_26, %c0_27, %c0_28] : memref<19x128x152xbf16, #tpu.memory_space<vmem>>, vector<1x128x152xbf16>
    %34 = vector.shape_cast %33 : vector<1x128x152xbf16> to vector<128x152xbf16>
    %cst_29 = arith.constant dense<0.000000e+00> : vector<128x110xf32>
    %35 = tpu.matmul %34, %32, %cst_29 {dimension_numbers = #tpu.dot_dimension_numbers<[1], [0], [0], [1], [0, 0, 1, 1], [], []>} : vector<128x152xbf16>, vector<152x110xbf16>, vector<128x110xf32> -> vector<128x110xf32>
    %36 = arith.addf %30, %35 : vector<128x110xf32>
    %c0_30 = arith.constant 0 : index
    %c6 = arith.constant 6 : index
    %37 = vector.load %arg1[%c0_30, %c6] : memref<152x128xf32, #tpu.memory_space<vmem>>, vector<152x110xf32>
    %38 = arith.truncf %37 : vector<152x110xf32> to vector<152x110xbf16>
    %c6_31 = arith.constant 6 : index
    %c0_32 = arith.constant 0 : index
    %c0_33 = arith.constant 0 : index
    %39 = vector.load %arg2[%c6_31, %c0_32, %c0_33] : memref<19x128x152xbf16, #tpu.memory_space<vmem>>, vector<1x128x152xbf16>
    %40 = vector.shape_cast %39 : vector<1x128x152xbf16> to vector<128x152xbf16>
    %cst_34 = arith.constant dense<0.000000e+00> : vector<128x110xf32>
    %41 = tpu.matmul %40, %38, %cst_34 {dimension_numbers = #tpu.dot_dimension_numbers<[1], [0], [0], [1], [0, 0, 1, 1], [], []>} : vector<128x152xbf16>, vector<152x110xbf16>, vector<128x110xf32> -> vector<128x110xf32>
    %42 = arith.addf %36, %41 : vector<128x110xf32>
    %c0_35 = arith.constant 0 : index
    %c7 = arith.constant 7 : index
    %43 = vector.load %arg1[%c0_35, %c7] : memref<152x128xf32, #tpu.memory_space<vmem>>, vector<152x110xf32>
    %44 = arith.truncf %43 : vector<152x110xf32> to vector<152x110xbf16>
    %c7_36 = arith.constant 7 : index
    %c0_37 = arith.constant 0 : index
    %c0_38 = arith.constant 0 : index
    %45 = vector.load %arg2[%c7_36, %c0_37, %c0_38] : memref<19x128x152xbf16, #tpu.memory_space<vmem>>, vector<1x128x152xbf16>
    %46 = vector.shape_cast %45 : vector<1x128x152xbf16> to vector<128x152xbf16>
    %cst_39 = arith.constant dense<0.000000e+00> : vector<128x110xf32>
    %47 = tpu.matmul %46, %44, %cst_39 {dimension_numbers = #tpu.dot_dimension_numbers<[1], [0], [0], [1], [0, 0, 1, 1], [], []>} : vector<128x152xbf16>, vector<152x110xbf16>, vector<128x110xf32> -> vector<128x110xf32>
    %48 = arith.addf %42, %47 : vector<128x110xf32>
    %c0_40 = arith.constant 0 : index
    %c8 = arith.constant 8 : index
    %49 = vector.load %arg1[%c0_40, %c8] : memref<152x128xf32, #tpu.memory_space<vmem>>, vector<152x110xf32>
    %50 = arith.truncf %49 : vector<152x110xf32> to vector<152x110xbf16>
    %c8_41 = arith.constant 8 : index
    %c0_42 = arith.constant 0 : index
    %c0_43 = arith.constant 0 : index
    %51 = vector.load %arg2[%c8_41, %c0_42, %c0_43] : memref<19x128x152xbf16, #tpu.memory_space<vmem>>, vector<1x128x152xbf16>
    %52 = vector.shape_cast %51 : vector<1x128x152xbf16> to vector<128x152xbf16>
    %cst_44 = arith.constant dense<0.000000e+00> : vector<128x110xf32>
    %53 = tpu.matmul %52, %50, %cst_44 {dimension_numbers = #tpu.dot_dimension_numbers<[1], [0], [0], [1], [0, 0, 1, 1], [], []>} : vector<128x152xbf16>, vector<152x110xbf16>, vector<128x110xf32> -> vector<128x110xf32>
    %54 = arith.addf %48, %53 : vector<128x110xf32>
    %c0_45 = arith.constant 0 : index
    %c9 = arith.constant 9 : index
    %55 = vector.load %arg1[%c0_45, %c9] : memref<152x128xf32, #tpu.memory_space<vmem>>, vector<152x110xf32>
    %56 = arith.truncf %55 : vector<152x110xf32> to vector<152x110xbf16>
    %c9_46 = arith.constant 9 : index
    %c0_47 = arith.constant 0 : index
    %c0_48 = arith.constant 0 : index
    %57 = vector.load %arg2[%c9_46, %c0_47, %c0_48] : memref<19x128x152xbf16, #tpu.memory_space<vmem>>, vector<1x128x152xbf16>
    %58 = vector.shape_cast %57 : vector<1x128x152xbf16> to vector<128x152xbf16>
    %cst_49 = arith.constant dense<0.000000e+00> : vector<128x110xf32>
    %59 = tpu.matmul %58, %56, %cst_49 {dimension_numbers = #tpu.dot_dimension_numbers<[1], [0], [0], [1], [0, 0, 1, 1], [], []>} : vector<128x152xbf16>, vector<152x110xbf16>, vector<128x110xf32> -> vector<128x110xf32>
    %60 = arith.addf %54, %59 : vector<128x110xf32>
    %c0_50 = arith.constant 0 : index
    %c10 = arith.constant 10 : index
    %61 = vector.load %arg1[%c0_50, %c10] : memref<152x128xf32, #tpu.memory_space<vmem>>, vector<152x110xf32>
    %62 = arith.truncf %61 : vector<152x110xf32> to vector<152x110xbf16>
    %c10_51 = arith.constant 10 : index
    %c0_52 = arith.constant 0 : index
    %c0_53 = arith.constant 0 : index
    %63 = vector.load %arg2[%c10_51, %c0_52, %c0_53] : memref<19x128x152xbf16, #tpu.memory_space<vmem>>, vector<1x128x152xbf16>
    %64 = vector.shape_cast %63 : vector<1x128x152xbf16> to vector<128x152xbf16>
    %cst_54 = arith.constant dense<0.000000e+00> : vector<128x110xf32>
    %65 = tpu.matmul %64, %62, %cst_54 {dimension_numbers = #tpu.dot_dimension_numbers<[1], [0], [0], [1], [0, 0, 1, 1], [], []>} : vector<128x152xbf16>, vector<152x110xbf16>, vector<128x110xf32> -> vector<128x110xf32>
    %66 = arith.addf %60, %65 : vector<128x110xf32>
    %c0_55 = arith.constant 0 : index
    %c11 = arith.constant 11 : index
    %67 = vector.load %arg1[%c0_55, %c11] : memref<152x128xf32, #tpu.memory_space<vmem>>, vector<152x110xf32>
    %68 = arith.truncf %67 : vector<152x110xf32> to vector<152x110xbf16>
    %c11_56 = arith.constant 11 : index
    %c0_57 = arith.constant 0 : index
    %c0_58 = arith.constant 0 : index
    %69 = vector.load %arg2[%c11_56, %c0_57, %c0_58] : memref<19x128x152xbf16, #tpu.memory_space<vmem>>, vector<1x128x152xbf16>
    %70 = vector.shape_cast %69 : vector<1x128x152xbf16> to vector<128x152xbf16>
    %cst_59 = arith.constant dense<0.000000e+00> : vector<128x110xf32>
    %71 = tpu.matmul %70, %68, %cst_59 {dimension_numbers = #tpu.dot_dimension_numbers<[1], [0], [0], [1], [0, 0, 1, 1], [], []>} : vector<128x152xbf16>, vector<152x110xbf16>, vector<128x110xf32> -> vector<128x110xf32>
    %72 = arith.addf %66, %71 : vector<128x110xf32>
    %c0_60 = arith.constant 0 : index
    %c12 = arith.constant 12 : index
    %73 = vector.load %arg1[%c0_60, %c12] : memref<152x128xf32, #tpu.memory_space<vmem>>, vector<152x110xf32>
    %74 = arith.truncf %73 : vector<152x110xf32> to vector<152x110xbf16>
    %c12_61 = arith.constant 12 : index
    %c0_62 = arith.constant 0 : index
    %c0_63 = arith.constant 0 : index
    %75 = vector.load %arg2[%c12_61, %c0_62, %c0_63] : memref<19x128x152xbf16, #tpu.memory_space<vmem>>, vector<1x128x152xbf16>
    %76 = vector.shape_cast %75 : vector<1x128x152xbf16> to vector<128x152xbf16>
    %cst_64 = arith.constant dense<0.000000e+00> : vector<128x110xf32>
    %77 = tpu.matmul %76, %74, %cst_64 {dimension_numbers = #tpu.dot_dimension_numbers<[1], [0], [0], [1], [0, 0, 1, 1], [], []>} : vector<128x152xbf16>, vector<152x110xbf16>, vector<128x110xf32> -> vector<128x110xf32>
    %78 = arith.addf %72, %77 : vector<128x110xf32>
    %c0_65 = arith.constant 0 : index
    %c13 = arith.constant 13 : index
    %79 = vector.load %arg1[%c0_65, %c13] : memref<152x128xf32, #tpu.memory_space<vmem>>, vector<152x110xf32>
    %80 = arith.truncf %79 : vector<152x110xf32> to vector<152x110xbf16>
    %c13_66 = arith.constant 13 : index
    %c0_67 = arith.constant 0 : index
    %c0_68 = arith.constant 0 : index
    %81 = vector.load %arg2[%c13_66, %c0_67, %c0_68] : memref<19x128x152xbf16, #tpu.memory_space<vmem>>, vector<1x128x152xbf16>
    %82 = vector.shape_cast %81 : vector<1x128x152xbf16> to vector<128x152xbf16>
    %cst_69 = arith.constant dense<0.000000e+00> : vector<128x110xf32>
    %83 = tpu.matmul %82, %80, %cst_69 {dimension_numbers = #tpu.dot_dimension_numbers<[1], [0], [0], [1], [0, 0, 1, 1], [], []>} : vector<128x152xbf16>, vector<152x110xbf16>, vector<128x110xf32> -> vector<128x110xf32>
    %84 = arith.addf %78, %83 : vector<128x110xf32>
    %c0_70 = arith.constant 0 : index
    %c14 = arith.constant 14 : index
    %85 = vector.load %arg1[%c0_70, %c14] : memref<152x128xf32, #tpu.memory_space<vmem>>, vector<152x110xf32>
    %86 = arith.truncf %85 : vector<152x110xf32> to vector<152x110xbf16>
    %c14_71 = arith.constant 14 : index
    %c0_72 = arith.constant 0 : index
    %c0_73 = arith.constant 0 : index
    %87 = vector.load %arg2[%c14_71, %c0_72, %c0_73] : memref<19x128x152xbf16, #tpu.memory_space<vmem>>, vector<1x128x152xbf16>
    %88 = vector.shape_cast %87 : vector<1x128x152xbf16> to vector<128x152xbf16>
    %cst_74 = arith.constant dense<0.000000e+00> : vector<128x110xf32>
    %89 = tpu.matmul %88, %86, %cst_74 {dimension_numbers = #tpu.dot_dimension_numbers<[1], [0], [0], [1], [0, 0, 1, 1], [], []>} : vector<128x152xbf16>, vector<152x110xbf16>, vector<128x110xf32> -> vector<128x110xf32>
    %90 = arith.addf %84, %89 : vector<128x110xf32>
    %c0_75 = arith.constant 0 : index
    %c15 = arith.constant 15 : index
    %91 = vector.load %arg1[%c0_75, %c15] : memref<152x128xf32, #tpu.memory_space<vmem>>, vector<152x110xf32>
    %92 = arith.truncf %91 : vector<152x110xf32> to vector<152x110xbf16>
    %c15_76 = arith.constant 15 : index
    %c0_77 = arith.constant 0 : index
    %c0_78 = arith.constant 0 : index
    %93 = vector.load %arg2[%c15_76, %c0_77, %c0_78] : memref<19x128x152xbf16, #tpu.memory_space<vmem>>, vector<1x128x152xbf16>
    %94 = vector.shape_cast %93 : vector<1x128x152xbf16> to vector<128x152xbf16>
    %cst_79 = arith.constant dense<0.000000e+00> : vector<128x110xf32>
    %95 = tpu.matmul %94, %92, %cst_79 {dimension_numbers = #tpu.dot_dimension_numbers<[1], [0], [0], [1], [0, 0, 1, 1], [], []>} : vector<128x152xbf16>, vector<152x110xbf16>, vector<128x110xf32> -> vector<128x110xf32>
    %96 = arith.addf %90, %95 : vector<128x110xf32>
    %c0_80 = arith.constant 0 : index
    %c16 = arith.constant 16 : index
    %97 = vector.load %arg1[%c0_80, %c16] : memref<152x128xf32, #tpu.memory_space<vmem>>, vector<152x110xf32>
    %98 = arith.truncf %97 : vector<152x110xf32> to vector<152x110xbf16>
    %c16_81 = arith.constant 16 : index
    %c0_82 = arith.constant 0 : index
    %c0_83 = arith.constant 0 : index
    %99 = vector.load %arg2[%c16_81, %c0_82, %c0_83] : memref<19x128x152xbf16, #tpu.memory_space<vmem>>, vector<1x128x152xbf16>
    %100 = vector.shape_cast %99 : vector<1x128x152xbf16> to vector<128x152xbf16>
    %cst_84 = arith.constant dense<0.000000e+00> : vector<128x110xf32>
    %101 = tpu.matmul %100, %98, %cst_84 {dimension_numbers = #tpu.dot_dimension_numbers<[1], [0], [0], [1], [0, 0, 1, 1], [], []>} : vector<128x152xbf16>, vector<152x110xbf16>, vector<128x110xf32> -> vector<128x110xf32>
    %102 = arith.addf %96, %101 : vector<128x110xf32>
    %c0_85 = arith.constant 0 : index
    %c17 = arith.constant 17 : index
    %103 = vector.load %arg1[%c0_85, %c17] : memref<152x128xf32, #tpu.memory_space<vmem>>, vector<152x110xf32>
    %104 = arith.truncf %103 : vector<152x110xf32> to vector<152x110xbf16>
    %c17_86 = arith.constant 17 : index
    %c0_87 = arith.constant 0 : index
    %c0_88 = arith.constant 0 : index
    %105 = vector.load %arg2[%c17_86, %c0_87, %c0_88] : memref<19x128x152xbf16, #tpu.memory_space<vmem>>, vector<1x128x152xbf16>
    %106 = vector.shape_cast %105 : vector<1x128x152xbf16> to vector<128x152xbf16>
    %cst_89 = arith.constant dense<0.000000e+00> : vector<128x110xf32>
    %107 = tpu.matmul %106, %104, %cst_89 {dimension_numbers = #tpu.dot_dimension_numbers<[1], [0], [0], [1], [0, 0, 1, 1], [], []>} : vector<128x152xbf16>, vector<152x110xbf16>, vector<128x110xf32> -> vector<128x110xf32>
    %108 = arith.addf %102, %107 : vector<128x110xf32>
    %c0_90 = arith.constant 0 : index
    %c18 = arith.constant 18 : index
    %109 = vector.load %arg1[%c0_90, %c18] : memref<152x128xf32, #tpu.memory_space<vmem>>, vector<152x110xf32>
    %110 = arith.truncf %109 : vector<152x110xf32> to vector<152x110xbf16>
    %c18_91 = arith.constant 18 : index
    %c0_92 = arith.constant 0 : index
    %c0_93 = arith.constant 0 : index
    %111 = vector.load %arg2[%c18_91, %c0_92, %c0_93] : memref<19x128x152xbf16, #tpu.memory_space<vmem>>, vector<1x128x152xbf16>
    %112 = vector.shape_cast %111 : vector<1x128x152xbf16> to vector<128x152xbf16>
    %cst_94 = arith.constant dense<0.000000e+00> : vector<128x110xf32>
    %113 = tpu.matmul %112, %110, %cst_94 {dimension_numbers = #tpu.dot_dimension_numbers<[1], [0], [0], [1], [0, 0, 1, 1], [], []>} : vector<128x152xbf16>, vector<152x110xbf16>, vector<128x110xf32> -> vector<128x110xf32>
    %114 = arith.addf %108, %113 : vector<128x110xf32>
    %c0_95 = arith.constant 0 : index
    %c0_96 = arith.constant 0 : index
    %115 = vector.load %arg3[%c0_95, %c0_96] : memref<128x1xf32, #tpu.memory_space<vmem>>, vector<128x1xf32>
    %116 = vector.broadcast %115 : vector<128x1xf32> to vector<128x110xf32>
    %117 = arith.addf %114, %116 : vector<128x110xf32>
    %c0_97 = arith.constant 0 : index
    %c0_98 = arith.constant 0 : index
    %118 = vector.load %arg4[%c0_97, %c0_98] : memref<128x1xf32, #tpu.memory_space<vmem>>, vector<128x1xf32>
    %119 = vector.broadcast %118 : vector<128x1xf32> to vector<128x110xf32>
    %120 = arith.mulf %117, %119 : vector<128x110xf32>
    %c0_99 = arith.constant 0 : index
    %c0_100 = arith.constant 0 : index
    %121 = vector.load %arg5[%c0_99, %c0_100] : memref<128x1xf32, #tpu.memory_space<vmem>>, vector<128x1xf32>
    %122 = vector.broadcast %121 : vector<128x1xf32> to vector<128x110xf32>
    %123 = arith.addf %120, %122 : vector<128x110xf32>
    %cst_101 = arith.constant 0.000000e+00 : f32
    %124 = vector.broadcast %cst_101 : f32 to vector<128x110xf32>
    %125 = arith.cmpf ogt, %123, %124 : vector<128x110xf32>
    %cst_102 = arith.constant 0.000000e+00 : f32
    %126 = vector.broadcast %cst_102 : f32 to vector<128x110xf32>
    %127 = arith.minimumf %123, %126 : vector<128x110xf32>
    %128 = math.exp %127 : vector<128x110xf32>
    %cst_103 = arith.constant 1.000000e+00 : f32
    %129 = vector.broadcast %cst_103 : f32 to vector<128x110xf32>
    %130 = arith.subf %128, %129 : vector<128x110xf32>
    %131 = arith.select %125, %123, %130 : vector<128x110xi1>, vector<128x110xf32>
    %132 = arith.truncf %131 : vector<128x110xf32> to vector<128x110xbf16>
    %c0_104 = arith.constant 0 : index
    %c0_105 = arith.constant 0 : index
    %133 = vector.load %arg6[%c0_104, %c0_105] : memref<110x43xbf16, #tpu.memory_space<vmem>>, vector<110x43xbf16>
    %cst_106 = arith.constant dense<0.000000e+00> : vector<128x43xf32>
    %134 = tpu.matmul %132, %133, %cst_106 {dimension_numbers = #tpu.dot_dimension_numbers<[1], [0], [0], [1], [0, 0, 1, 1], [], []>} : vector<128x110xbf16>, vector<110x43xbf16>, vector<128x43xf32> -> vector<128x43xf32>
    %cst_107 = arith.constant 0.000000e+00 : f32
    %135 = vector.broadcast %cst_107 : f32 to vector<128x28xf32>
    %c0_108 = arith.constant 0 : index
    %c0_109 = arith.constant 0 : index
    %136 = vector.load %arg7[%c0_108, %c0_109] : memref<128x16xf32, #tpu.memory_space<vmem>>, vector<128x1xf32>
    %137 = vector.extract_strided_slice %134 {offsets = [0, 0], sizes = [128, 28], strides = [1, 1]} : vector<128x43xf32> to vector<128x28xf32>
    %138 = vector.broadcast %136 : vector<128x1xf32> to vector<128x28xf32>
    %139 = arith.mulf %138, %137 : vector<128x28xf32>
    %140 = arith.addf %135, %139 : vector<128x28xf32>
    %c0_110 = arith.constant 0 : index
    %c1_111 = arith.constant 1 : index
    %141 = vector.load %arg7[%c0_110, %c1_111] : memref<128x16xf32, #tpu.memory_space<vmem>>, vector<128x1xf32>
    %142 = vector.extract_strided_slice %134 {offsets = [0, 1], sizes = [128, 28], strides = [1, 1]} : vector<128x43xf32> to vector<128x28xf32>
    %143 = vector.broadcast %141 : vector<128x1xf32> to vector<128x28xf32>
    %144 = arith.mulf %143, %142 : vector<128x28xf32>
    %145 = arith.addf %140, %144 : vector<128x28xf32>
    %c0_112 = arith.constant 0 : index
    %c2_113 = arith.constant 2 : index
    %146 = vector.load %arg7[%c0_112, %c2_113] : memref<128x16xf32, #tpu.memory_space<vmem>>, vector<128x1xf32>
    %147 = vector.extract_strided_slice %134 {offsets = [0, 2], sizes = [128, 28], strides = [1, 1]} : vector<128x43xf32> to vector<128x28xf32>
    %148 = vector.broadcast %146 : vector<128x1xf32> to vector<128x28xf32>
    %149 = arith.mulf %148, %147 : vector<128x28xf32>
    %150 = arith.addf %145, %149 : vector<128x28xf32>
    %c0_114 = arith.constant 0 : index
    %c3_115 = arith.constant 3 : index
    %151 = vector.load %arg7[%c0_114, %c3_115] : memref<128x16xf32, #tpu.memory_space<vmem>>, vector<128x1xf32>
    %152 = vector.extract_strided_slice %134 {offsets = [0, 3], sizes = [128, 28], strides = [1, 1]} : vector<128x43xf32> to vector<128x28xf32>
    %153 = vector.broadcast %151 : vector<128x1xf32> to vector<128x28xf32>
    %154 = arith.mulf %153, %152 : vector<128x28xf32>
    %155 = arith.addf %150, %154 : vector<128x28xf32>
    %c0_116 = arith.constant 0 : index
    %c4_117 = arith.constant 4 : index
    %156 = vector.load %arg7[%c0_116, %c4_117] : memref<128x16xf32, #tpu.memory_space<vmem>>, vector<128x1xf32>
    %157 = vector.extract_strided_slice %134 {offsets = [0, 4], sizes = [128, 28], strides = [1, 1]} : vector<128x43xf32> to vector<128x28xf32>
    %158 = vector.broadcast %156 : vector<128x1xf32> to vector<128x28xf32>
    %159 = arith.mulf %158, %157 : vector<128x28xf32>
    %160 = arith.addf %155, %159 : vector<128x28xf32>
    %c0_118 = arith.constant 0 : index
    %c5_119 = arith.constant 5 : index
    %161 = vector.load %arg7[%c0_118, %c5_119] : memref<128x16xf32, #tpu.memory_space<vmem>>, vector<128x1xf32>
    %162 = vector.extract_strided_slice %134 {offsets = [0, 5], sizes = [128, 28], strides = [1, 1]} : vector<128x43xf32> to vector<128x28xf32>
    %163 = vector.broadcast %161 : vector<128x1xf32> to vector<128x28xf32>
    %164 = arith.mulf %163, %162 : vector<128x28xf32>
    %165 = arith.addf %160, %164 : vector<128x28xf32>
    %c0_120 = arith.constant 0 : index
    %c6_121 = arith.constant 6 : index
    %166 = vector.load %arg7[%c0_120, %c6_121] : memref<128x16xf32, #tpu.memory_space<vmem>>, vector<128x1xf32>
    %167 = vector.extract_strided_slice %134 {offsets = [0, 6], sizes = [128, 28], strides = [1, 1]} : vector<128x43xf32> to vector<128x28xf32>
    %168 = vector.broadcast %166 : vector<128x1xf32> to vector<128x28xf32>
    %169 = arith.mulf %168, %167 : vector<128x28xf32>
    %170 = arith.addf %165, %169 : vector<128x28xf32>
    %c0_122 = arith.constant 0 : index
    %c7_123 = arith.constant 7 : index
    %171 = vector.load %arg7[%c0_122, %c7_123] : memref<128x16xf32, #tpu.memory_space<vmem>>, vector<128x1xf32>
    %172 = vector.extract_strided_slice %134 {offsets = [0, 7], sizes = [128, 28], strides = [1, 1]} : vector<128x43xf32> to vector<128x28xf32>
    %173 = vector.broadcast %171 : vector<128x1xf32> to vector<128x28xf32>
    %174 = arith.mulf %173, %172 : vector<128x28xf32>
    %175 = arith.addf %170, %174 : vector<128x28xf32>
    %c0_124 = arith.constant 0 : index
    %c8_125 = arith.constant 8 : index
    %176 = vector.load %arg7[%c0_124, %c8_125] : memref<128x16xf32, #tpu.memory_space<vmem>>, vector<128x1xf32>
    %177 = vector.extract_strided_slice %134 {offsets = [0, 8], sizes = [128, 28], strides = [1, 1]} : vector<128x43xf32> to vector<128x28xf32>
    %178 = vector.broadcast %176 : vector<128x1xf32> to vector<128x28xf32>
    %179 = arith.mulf %178, %177 : vector<128x28xf32>
    %180 = arith.addf %175, %179 : vector<128x28xf32>
    %c0_126 = arith.constant 0 : index
    %c9_127 = arith.constant 9 : index
    %181 = vector.load %arg7[%c0_126, %c9_127] : memref<128x16xf32, #tpu.memory_space<vmem>>, vector<128x1xf32>
    %182 = vector.extract_strided_slice %134 {offsets = [0, 9], sizes = [128, 28], strides = [1, 1]} : vector<128x43xf32> to vector<128x28xf32>
    %183 = vector.broadcast %181 : vector<128x1xf32> to vector<128x28xf32>
    %184 = arith.mulf %183, %182 : vector<128x28xf32>
    %185 = arith.addf %180, %184 : vector<128x28xf32>
    %c0_128 = arith.constant 0 : index
    %c10_129 = arith.constant 10 : index
    %186 = vector.load %arg7[%c0_128, %c10_129] : memref<128x16xf32, #tpu.memory_space<vmem>>, vector<128x1xf32>
    %187 = vector.extract_strided_slice %134 {offsets = [0, 10], sizes = [128, 28], strides = [1, 1]} : vector<128x43xf32> to vector<128x28xf32>
    %188 = vector.broadcast %186 : vector<128x1xf32> to vector<128x28xf32>
    %189 = arith.mulf %188, %187 : vector<128x28xf32>
    %190 = arith.addf %185, %189 : vector<128x28xf32>
    %c0_130 = arith.constant 0 : index
    %c11_131 = arith.constant 11 : index
    %191 = vector.load %arg7[%c0_130, %c11_131] : memref<128x16xf32, #tpu.memory_space<vmem>>, vector<128x1xf32>
    %192 = vector.extract_strided_slice %134 {offsets = [0, 11], sizes = [128, 28], strides = [1, 1]} : vector<128x43xf32> to vector<128x28xf32>
    %193 = vector.broadcast %191 : vector<128x1xf32> to vector<128x28xf32>
    %194 = arith.mulf %193, %192 : vector<128x28xf32>
    %195 = arith.addf %190, %194 : vector<128x28xf32>
    %c0_132 = arith.constant 0 : index
    %c12_133 = arith.constant 12 : index
    %196 = vector.load %arg7[%c0_132, %c12_133] : memref<128x16xf32, #tpu.memory_space<vmem>>, vector<128x1xf32>
    %197 = vector.extract_strided_slice %134 {offsets = [0, 12], sizes = [128, 28], strides = [1, 1]} : vector<128x43xf32> to vector<128x28xf32>
    %198 = vector.broadcast %196 : vector<128x1xf32> to vector<128x28xf32>
    %199 = arith.mulf %198, %197 : vector<128x28xf32>
    %200 = arith.addf %195, %199 : vector<128x28xf32>
    %c0_134 = arith.constant 0 : index
    %c13_135 = arith.constant 13 : index
    %201 = vector.load %arg7[%c0_134, %c13_135] : memref<128x16xf32, #tpu.memory_space<vmem>>, vector<128x1xf32>
    %202 = vector.extract_strided_slice %134 {offsets = [0, 13], sizes = [128, 28], strides = [1, 1]} : vector<128x43xf32> to vector<128x28xf32>
    %203 = vector.broadcast %201 : vector<128x1xf32> to vector<128x28xf32>
    %204 = arith.mulf %203, %202 : vector<128x28xf32>
    %205 = arith.addf %200, %204 : vector<128x28xf32>
    %c0_136 = arith.constant 0 : index
    %c14_137 = arith.constant 14 : index
    %206 = vector.load %arg7[%c0_136, %c14_137] : memref<128x16xf32, #tpu.memory_space<vmem>>, vector<128x1xf32>
    %207 = vector.extract_strided_slice %134 {offsets = [0, 14], sizes = [128, 28], strides = [1, 1]} : vector<128x43xf32> to vector<128x28xf32>
    %208 = vector.broadcast %206 : vector<128x1xf32> to vector<128x28xf32>
    %209 = arith.mulf %208, %207 : vector<128x28xf32>
    %210 = arith.addf %205, %209 : vector<128x28xf32>
    %c0_138 = arith.constant 0 : index
    %c15_139 = arith.constant 15 : index
    %211 = vector.load %arg7[%c0_138, %c15_139] : memref<128x16xf32, #tpu.memory_space<vmem>>, vector<128x1xf32>
    %212 = vector.extract_strided_slice %134 {offsets = [0, 15], sizes = [128, 28], strides = [1, 1]} : vector<128x43xf32> to vector<128x28xf32>
    %213 = vector.broadcast %211 : vector<128x1xf32> to vector<128x28xf32>
    %214 = arith.mulf %213, %212 : vector<128x28xf32>
    %215 = arith.addf %210, %214 : vector<128x28xf32>
    %c0_140 = arith.constant 0 : index
    %c0_141 = arith.constant 0 : index
    %216 = vector.load %arg8[%c0_140, %c0_141] : memref<128x128xbf16, #tpu.memory_space<vmem>>, vector<128x128xbf16>
    %217 = arith.truncf %215 : vector<128x28xf32> to vector<128x28xbf16>
    %cst_142 = arith.constant dense<0.000000e+00> : vector<128x28xf32>
    %218 = tpu.matmul %216, %217, %cst_142 {dimension_numbers = #tpu.dot_dimension_numbers<[1], [0], [0], [1], [0, 0, 1, 1], [], []>} : vector<128x128xbf16>, vector<128x28xbf16>, vector<128x28xf32> -> vector<128x28xf32>
    %c0_143 = arith.constant 0 : index
    %c0_144 = arith.constant 0 : index
    %219 = vector.load %arg9[%c0_143, %c0_144] : memref<128x1xf32, #tpu.memory_space<vmem>>, vector<128x1xf32>
    %220 = vector.broadcast %219 : vector<128x1xf32> to vector<128x28xf32>
    %221 = arith.mulf %218, %220 : vector<128x28xf32>
    %c0_145 = arith.constant 0 : index
    %c0_146 = arith.constant 0 : index
    %222 = vector.load %arg10[%c0_145, %c0_146] : memref<128x1xf32, #tpu.memory_space<vmem>>, vector<128x1xf32>
    %223 = vector.broadcast %222 : vector<128x1xf32> to vector<128x28xf32>
    %224 = arith.addf %221, %223 : vector<128x28xf32>
    %cst_147 = arith.constant 0.000000e+00 : f32
    %225 = vector.broadcast %cst_147 : f32 to vector<128x28xf32>
    %226 = arith.cmpf ogt, %224, %225 : vector<128x28xf32>
    %cst_148 = arith.constant 0.000000e+00 : f32
    %227 = vector.broadcast %cst_148 : f32 to vector<128x28xf32>
    %228 = arith.minimumf %224, %227 : vector<128x28xf32>
    %229 = math.exp %228 : vector<128x28xf32>
    %cst_149 = arith.constant 1.000000e+00 : f32
    %230 = vector.broadcast %cst_149 : f32 to vector<128x28xf32>
    %231 = arith.subf %229, %230 : vector<128x28xf32>
    %232 = arith.select %226, %224, %231 : vector<128x28xi1>, vector<128x28xf32>
    %233 = arith.truncf %232 : vector<128x28xf32> to vector<128x28xbf16>
    %c0_150 = arith.constant 0 : index
    %c0_151 = arith.constant 0 : index
    %234 = vector.load %arg11[%c0_150, %c0_151] : memref<28x3xbf16, #tpu.memory_space<vmem>>, vector<28x3xbf16>
    %cst_152 = arith.constant dense<0.000000e+00> : vector<128x3xf32>
    %235 = tpu.matmul %233, %234, %cst_152 {dimension_numbers = #tpu.dot_dimension_numbers<[1], [0], [0], [1], [0, 0, 1, 1], [], []>} : vector<128x28xbf16>, vector<28x3xbf16>, vector<128x3xf32> -> vector<128x3xf32>
    %c0_153 = arith.constant 0 : index
    %c0_154 = arith.constant 0 : index
    %236 = vector.load %arg12[%c0_153, %c0_154] : memref<320x128xf32, #tpu.memory_space<vmem>>, vector<320x128xf32>
    %cst_155 = arith.constant dense<0.000000e+00> : vector<320x3xf32>
    %237 = tpu.matmul %236, %235, %cst_155 {dimension_numbers = #tpu.dot_dimension_numbers<[1], [0], [0], [1], [0, 0, 1, 1], [], []>} : vector<320x128xf32>, vector<128x3xf32>, vector<320x3xf32> -> vector<320x3xf32>
    %cst_156 = arith.constant 0.000000e+00 : f32
    %238 = vector.broadcast %cst_156 : f32 to vector<80x1xf32>
    %cst_157 = arith.constant 0.000000e+00 : f32
    %239 = vector.broadcast %cst_157 : f32 to vector<80x1xf32>
    %240 = vector.extract_strided_slice %237 {offsets = [0, 0], sizes = [320, 1], strides = [1, 1]} : vector<320x3xf32> to vector<320x1xf32>
    %c0_158 = arith.constant 0 : index
    %c0_159 = arith.constant 0 : index
    %241 = vector.load %arg13[%c0_158, %c0_159] : memref<320x80xf32, #tpu.memory_space<vmem>>, vector<320x80xf32>
    %cst_160 = arith.constant dense<0.000000e+00> : vector<320x1xf32>
    %242 = tpu.matmul %241, %238, %cst_160 {dimension_numbers = #tpu.dot_dimension_numbers<[1], [0], [0], [1], [0, 0, 1, 1], [], []>} : vector<320x80xf32>, vector<80x1xf32>, vector<320x1xf32> -> vector<320x1xf32>
    %243 = arith.addf %240, %242 : vector<320x1xf32>
    %c0_161 = arith.constant 0 : index
    %c0_162 = arith.constant 0 : index
    %244 = vector.load %arg14[%c0_161, %c0_162] : memref<320x1xf32, #tpu.memory_space<vmem>>, vector<320x1xf32>
    %245 = arith.addf %243, %244 : vector<320x1xf32>
    %246 = vector.extract_strided_slice %245 {offsets = [0, 0], sizes = [80, 1], strides = [1, 1]} : vector<320x1xf32> to vector<80x1xf32>
    %247 = arith.negf %246 : vector<80x1xf32>
    %248 = math.exp %247 : vector<80x1xf32>
    %cst_163 = arith.constant 1.000000e+00 : f32
    %249 = vector.broadcast %cst_163 : f32 to vector<80x1xf32>
    %250 = arith.addf %249, %248 : vector<80x1xf32>
    %251 = arith.divf %249, %250 : vector<80x1xf32>
    %252 = vector.extract_strided_slice %245 {offsets = [80, 0], sizes = [80, 1], strides = [1, 1]} : vector<320x1xf32> to vector<80x1xf32>
    %253 = arith.negf %252 : vector<80x1xf32>
    %254 = math.exp %253 : vector<80x1xf32>
    %cst_164 = arith.constant 1.000000e+00 : f32
    %255 = vector.broadcast %cst_164 : f32 to vector<80x1xf32>
    %256 = arith.addf %255, %254 : vector<80x1xf32>
    %257 = arith.divf %255, %256 : vector<80x1xf32>
    %258 = vector.extract_strided_slice %245 {offsets = [160, 0], sizes = [80, 1], strides = [1, 1]} : vector<320x1xf32> to vector<80x1xf32>
    %259 = math.tanh %258 : vector<80x1xf32>
    %260 = vector.extract_strided_slice %245 {offsets = [240, 0], sizes = [80, 1], strides = [1, 1]} : vector<320x1xf32> to vector<80x1xf32>
    %261 = arith.negf %260 : vector<80x1xf32>
    %262 = math.exp %261 : vector<80x1xf32>
    %cst_165 = arith.constant 1.000000e+00 : f32
    %263 = vector.broadcast %cst_165 : f32 to vector<80x1xf32>
    %264 = arith.addf %263, %262 : vector<80x1xf32>
    %265 = arith.divf %263, %264 : vector<80x1xf32>
    %266 = arith.mulf %257, %239 : vector<80x1xf32>
    %267 = arith.mulf %251, %259 : vector<80x1xf32>
    %268 = arith.addf %266, %267 : vector<80x1xf32>
    %269 = math.tanh %268 : vector<80x1xf32>
    %270 = arith.mulf %265, %269 : vector<80x1xf32>
    %271 = vector.extract_strided_slice %237 {offsets = [0, 1], sizes = [320, 1], strides = [1, 1]} : vector<320x3xf32> to vector<320x1xf32>
    %c0_166 = arith.constant 0 : index
    %c0_167 = arith.constant 0 : index
    %272 = vector.load %arg13[%c0_166, %c0_167] : memref<320x80xf32, #tpu.memory_space<vmem>>, vector<320x80xf32>
    %cst_168 = arith.constant dense<0.000000e+00> : vector<320x1xf32>
    %273 = tpu.matmul %272, %270, %cst_168 {dimension_numbers = #tpu.dot_dimension_numbers<[1], [0], [0], [1], [0, 0, 1, 1], [], []>} : vector<320x80xf32>, vector<80x1xf32>, vector<320x1xf32> -> vector<320x1xf32>
    %274 = arith.addf %271, %273 : vector<320x1xf32>
    %c0_169 = arith.constant 0 : index
    %c0_170 = arith.constant 0 : index
    %275 = vector.load %arg14[%c0_169, %c0_170] : memref<320x1xf32, #tpu.memory_space<vmem>>, vector<320x1xf32>
    %276 = arith.addf %274, %275 : vector<320x1xf32>
    %277 = vector.extract_strided_slice %276 {offsets = [0, 0], sizes = [80, 1], strides = [1, 1]} : vector<320x1xf32> to vector<80x1xf32>
    %278 = arith.negf %277 : vector<80x1xf32>
    %279 = math.exp %278 : vector<80x1xf32>
    %cst_171 = arith.constant 1.000000e+00 : f32
    %280 = vector.broadcast %cst_171 : f32 to vector<80x1xf32>
    %281 = arith.addf %280, %279 : vector<80x1xf32>
    %282 = arith.divf %280, %281 : vector<80x1xf32>
    %283 = vector.extract_strided_slice %276 {offsets = [80, 0], sizes = [80, 1], strides = [1, 1]} : vector<320x1xf32> to vector<80x1xf32>
    %284 = arith.negf %283 : vector<80x1xf32>
    %285 = math.exp %284 : vector<80x1xf32>
    %cst_172 = arith.constant 1.000000e+00 : f32
    %286 = vector.broadcast %cst_172 : f32 to vector<80x1xf32>
    %287 = arith.addf %286, %285 : vector<80x1xf32>
    %288 = arith.divf %286, %287 : vector<80x1xf32>
    %289 = vector.extract_strided_slice %276 {offsets = [160, 0], sizes = [80, 1], strides = [1, 1]} : vector<320x1xf32> to vector<80x1xf32>
    %290 = math.tanh %289 : vector<80x1xf32>
    %291 = vector.extract_strided_slice %276 {offsets = [240, 0], sizes = [80, 1], strides = [1, 1]} : vector<320x1xf32> to vector<80x1xf32>
    %292 = arith.negf %291 : vector<80x1xf32>
    %293 = math.exp %292 : vector<80x1xf32>
    %cst_173 = arith.constant 1.000000e+00 : f32
    %294 = vector.broadcast %cst_173 : f32 to vector<80x1xf32>
    %295 = arith.addf %294, %293 : vector<80x1xf32>
    %296 = arith.divf %294, %295 : vector<80x1xf32>
    %297 = arith.mulf %288, %268 : vector<80x1xf32>
    %298 = arith.mulf %282, %290 : vector<80x1xf32>
    %299 = arith.addf %297, %298 : vector<80x1xf32>
    %300 = math.tanh %299 : vector<80x1xf32>
    %301 = arith.mulf %296, %300 : vector<80x1xf32>
    %302 = vector.extract_strided_slice %237 {offsets = [0, 2], sizes = [320, 1], strides = [1, 1]} : vector<320x3xf32> to vector<320x1xf32>
    %c0_174 = arith.constant 0 : index
    %c0_175 = arith.constant 0 : index
    %303 = vector.load %arg13[%c0_174, %c0_175] : memref<320x80xf32, #tpu.memory_space<vmem>>, vector<320x80xf32>
    %cst_176 = arith.constant dense<0.000000e+00> : vector<320x1xf32>
    %304 = tpu.matmul %303, %301, %cst_176 {dimension_numbers = #tpu.dot_dimension_numbers<[1], [0], [0], [1], [0, 0, 1, 1], [], []>} : vector<320x80xf32>, vector<80x1xf32>, vector<320x1xf32> -> vector<320x1xf32>
    %305 = arith.addf %302, %304 : vector<320x1xf32>
    %c0_177 = arith.constant 0 : index
    %c0_178 = arith.constant 0 : index
    %306 = vector.load %arg14[%c0_177, %c0_178] : memref<320x1xf32, #tpu.memory_space<vmem>>, vector<320x1xf32>
    %307 = arith.addf %305, %306 : vector<320x1xf32>
    %308 = vector.extract_strided_slice %307 {offsets = [0, 0], sizes = [80, 1], strides = [1, 1]} : vector<320x1xf32> to vector<80x1xf32>
    %309 = arith.negf %308 : vector<80x1xf32>
    %310 = math.exp %309 : vector<80x1xf32>
    %cst_179 = arith.constant 1.000000e+00 : f32
    %311 = vector.broadcast %cst_179 : f32 to vector<80x1xf32>
    %312 = arith.addf %311, %310 : vector<80x1xf32>
    %313 = arith.divf %311, %312 : vector<80x1xf32>
    %314 = vector.extract_strided_slice %307 {offsets = [80, 0], sizes = [80, 1], strides = [1, 1]} : vector<320x1xf32> to vector<80x1xf32>
    %315 = arith.negf %314 : vector<80x1xf32>
    %316 = math.exp %315 : vector<80x1xf32>
    %cst_180 = arith.constant 1.000000e+00 : f32
    %317 = vector.broadcast %cst_180 : f32 to vector<80x1xf32>
    %318 = arith.addf %317, %316 : vector<80x1xf32>
    %319 = arith.divf %317, %318 : vector<80x1xf32>
    %320 = vector.extract_strided_slice %307 {offsets = [160, 0], sizes = [80, 1], strides = [1, 1]} : vector<320x1xf32> to vector<80x1xf32>
    %321 = math.tanh %320 : vector<80x1xf32>
    %322 = vector.extract_strided_slice %307 {offsets = [240, 0], sizes = [80, 1], strides = [1, 1]} : vector<320x1xf32> to vector<80x1xf32>
    %323 = arith.negf %322 : vector<80x1xf32>
    %324 = math.exp %323 : vector<80x1xf32>
    %cst_181 = arith.constant 1.000000e+00 : f32
    %325 = vector.broadcast %cst_181 : f32 to vector<80x1xf32>
    %326 = arith.addf %325, %324 : vector<80x1xf32>
    %327 = arith.divf %325, %326 : vector<80x1xf32>
    %328 = arith.mulf %319, %299 : vector<80x1xf32>
    %329 = arith.mulf %313, %321 : vector<80x1xf32>
    %330 = arith.addf %328, %329 : vector<80x1xf32>
    %331 = math.tanh %330 : vector<80x1xf32>
    %332 = arith.mulf %327, %331 : vector<80x1xf32>
    %c0_182 = arith.constant 0 : index
    %c0_183 = arith.constant 0 : index
    %333 = vector.load %arg15[%c0_182, %c0_183] : memref<16x80xf32, #tpu.memory_space<vmem>>, vector<16x80xf32>
    %cst_184 = arith.constant dense<0.000000e+00> : vector<16x1xf32>
    %334 = tpu.matmul %333, %332, %cst_184 {dimension_numbers = #tpu.dot_dimension_numbers<[1], [0], [0], [1], [0, 0, 1, 1], [], []>} : vector<16x80xf32>, vector<80x1xf32>, vector<16x1xf32> -> vector<16x1xf32>
    %c0_185 = arith.constant 0 : index
    %c0_186 = arith.constant 0 : index
    %335 = vector.load %arg16[%c0_185, %c0_186] : memref<16x1xf32, #tpu.memory_space<vmem>>, vector<16x1xf32>
    %336 = arith.addf %334, %335 : vector<16x1xf32>
    %c0_187 = arith.constant 0 : index
    %c0_188 = arith.constant 0 : index
    %337 = vector.load %arg17[%c0_187, %c0_188] : memref<16x1xf32, #tpu.memory_space<vmem>>, vector<16x1xf32>
    tpu.vector_store %arg17[%c0_187, %c0_188], %336 {strides = array<i32>} : memref<16x1xf32, #tpu.memory_space<vmem>>, vector<16x1xf32>,
    return
  }
  func.func @transform_0(%arg0: i32) -> (i32, i32) {
    %c0_i32 = arith.constant 0 : i32
    %c0_i32_0 = arith.constant 0 : i32
    return %arg0, %c0_i32 : i32, i32
  }
  func.func @transform_1(%arg0: i32) -> (i32, i32, i32) {
    %c0_i32 = arith.constant 0 : i32
    %c0_i32_0 = arith.constant 0 : i32
    %c0_i32_1 = arith.constant 0 : i32
    %c0_i32_2 = arith.constant 0 : i32
    return %c0_i32, %c0_i32_0, %c0_i32_1 : i32, i32, i32
  }
  func.func @transform_2(%arg0: i32) -> (i32, i32) {
    %c0_i32 = arith.constant 0 : i32
    %c0_i32_0 = arith.constant 0 : i32
    %c0_i32_1 = arith.constant 0 : i32
    return %c0_i32, %c0_i32_0 : i32, i32
  }
  func.func @transform_3(%arg0: i32) -> (i32, i32) {
    %c0_i32 = arith.constant 0 : i32
    %c0_i32_0 = arith.constant 0 : i32
    %c0_i32_1 = arith.constant 0 : i32
    return %c0_i32, %c0_i32_0 : i32, i32
  }
  func.func @transform_4(%arg0: i32) -> (i32, i32) {
    %c0_i32 = arith.constant 0 : i32
    %c0_i32_0 = arith.constant 0 : i32
    %c0_i32_1 = arith.constant 0 : i32
    return %c0_i32, %c0_i32_0 : i32, i32
  }
  func.func @transform_5(%arg0: i32) -> (i32, i32) {
    %c0_i32 = arith.constant 0 : i32
    %c0_i32_0 = arith.constant 0 : i32
    %c0_i32_1 = arith.constant 0 : i32
    return %c0_i32, %c0_i32_0 : i32, i32
  }
  func.func @transform_6(%arg0: i32) -> (i32, i32) {
    %c0_i32 = arith.constant 0 : i32
    %c0_i32_0 = arith.constant 0 : i32
    %c0_i32_1 = arith.constant 0 : i32
    return %c0_i32, %c0_i32_0 : i32, i32
  }
  func.func @transform_7(%arg0: i32) -> (i32, i32) {
    %c0_i32 = arith.constant 0 : i32
    %c0_i32_0 = arith.constant 0 : i32
    %c0_i32_1 = arith.constant 0 : i32
    return %c0_i32, %c0_i32_0 : i32, i32
  }
  func.func @transform_8(%arg0: i32) -> (i32, i32) {
    %c0_i32 = arith.constant 0 : i32
    %c0_i32_0 = arith.constant 0 : i32
    %c0_i32_1 = arith.constant 0 : i32
    return %c0_i32, %c0_i32_0 : i32, i32
  }
  func.func @transform_9(%arg0: i32) -> (i32, i32) {
    %c0_i32 = arith.constant 0 : i32
    %c0_i32_0 = arith.constant 0 : i32
    %c0_i32_1 = arith.constant 0 : i32
    return %c0_i32, %c0_i32_0 : i32, i32
  }
  func.func @transform_10(%arg0: i32) -> (i32, i32) {
    %c0_i32 = arith.constant 0 : i32
    %c0_i32_0 = arith.constant 0 : i32
    %c0_i32_1 = arith.constant 0 : i32
    return %c0_i32, %c0_i32_0 : i32, i32
  }
  func.func @transform_11(%arg0: i32) -> (i32, i32) {
    %c0_i32 = arith.constant 0 : i32
    %c0_i32_0 = arith.constant 0 : i32
    %c0_i32_1 = arith.constant 0 : i32
    return %c0_i32, %c0_i32_0 : i32, i32
  }
  func.func @transform_12(%arg0: i32) -> (i32, i32) {
    %c0_i32 = arith.constant 0 : i32
    %c0_i32_0 = arith.constant 0 : i32
    %c0_i32_1 = arith.constant 0 : i32
    return %c0_i32, %c0_i32_0 : i32, i32
  }
  func.func @transform_13(%arg0: i32) -> (i32, i32) {
    %c0_i32 = arith.constant 0 : i32
    %c0_i32_0 = arith.constant 0 : i32
    %c0_i32_1 = arith.constant 0 : i32
    return %c0_i32, %c0_i32_0 : i32, i32
  }
  func.func @transform_14(%arg0: i32) -> (i32, i32) {
    %c0_i32 = arith.constant 0 : i32
    %c0_i32_0 = arith.constant 0 : i32
    %c0_i32_1 = arith.constant 0 : i32
    return %c0_i32, %c0_i32_0 : i32, i32
  }
  func.func @transform_15(%arg0: i32) -> (i32, i32) {
    %c0_i32 = arith.constant 0 : i32
    %c0_i32_0 = arith.constant 0 : i32
    %c0_i32_1 = arith.constant 0 : i32
    return %c0_i32, %c0_i32_0 : i32, i32
  }
  func.func @transform_16(%arg0: i32) -> (i32, i32) {
    %c0_i32 = arith.constant 0 : i32
    %c0_i32_0 = arith.constant 0 : i32
    return %arg0, %c0_i32 : i32, i32
  }
}

</mosaic_0001>

<llo_original>
// kernel: tpu_custom_call.1
$region0: #{tpu_custom_call.1}
  #allocation0 [shape = 'u32[]', space=smem, size = 0x4, offset = 0x4, fixed_abs, tag = 'smem constant byte address 0x4 - core index']
  #allocation1 [shape = 'u32[144,128]{1,0:T(1,128)}', space=vmem, size = 0x12000, scoped, tag = 'internal scratch']
  %s0 = inlined_call_operand.vmem [shape: f32[152,128], index: 0, kind: input, shape index: {}]
  %s1 = inlined_call_operand.vmem [shape: bf16[19,128,152], index: 1, kind: input, shape index: {}]
  %s2 = inlined_call_operand.vmem [shape: f32[128,1], index: 2, kind: input, shape index: {}]
  %s3 = inlined_call_operand.vmem [shape: f32[128,1], index: 3, kind: input, shape index: {}]
  %s4 = inlined_call_operand.vmem [shape: f32[128,1], index: 4, kind: input, shape index: {}]
  %s5 = inlined_call_operand.vmem [shape: bf16[110,43], index: 5, kind: input, shape index: {}]
  %s6 = inlined_call_operand.vmem [shape: f32[128,16], index: 6, kind: input, shape index: {}]
  %s7 = inlined_call_operand.vmem [shape: bf16[128,128], index: 7, kind: input, shape index: {}]
  %s8 = inlined_call_operand.vmem [shape: f32[128,1], index: 8, kind: input, shape index: {}]
  %s9 = inlined_call_operand.vmem [shape: f32[128,1], index: 9, kind: input, shape index: {}]
  %s10 = inlined_call_operand.vmem [shape: bf16[28,3], index: 10, kind: input, shape index: {}]
  %s11 = inlined_call_operand.vmem [shape: f32[320,128], index: 11, kind: input, shape index: {}]
  %s12 = inlined_call_operand.vmem [shape: f32[320,80], index: 12, kind: input, shape index: {}]
  %s13 = inlined_call_operand.vmem [shape: f32[320,1], index: 13, kind: input, shape index: {}]
  %s14 = inlined_call_operand.vmem [shape: f32[16,80], index: 14, kind: input, shape index: {}]
  %s15 = inlined_call_operand.vmem [shape: f32[16,1], index: 15, kind: input, shape index: {}]
  %s16 = inlined_call_operand.vmem [shape: f32[16,1], index: 16, kind: output, shape index: {}]
  %s17 = sld [smem:[#allocation0]]
  $region74: #{tpu_custom_call.1} parent=0
    _
  %s19 = ssub.s32 1, %s17
  %s20 = scalar_select 0, %s19, %s17
  // Predicated region
  $region2: #{tpu_custom_call.1} parent=0 // pred_check
    _
  $region3: #{tpu_custom_call.1} parent=0 // pred_check_branch
    %22 = sbr.rel (0) target = $region5
  $region4: #{tpu_custom_call.1} parent=0 // pred_region
    _
  $region5: #{tpu_custom_call.1} parent=0 // pred_fallthru
    _
  // Predicated region
  $region6: #{tpu_custom_call.1} parent=0 // pred_check
    _
  $region7: #{tpu_custom_call.1} parent=0 // pred_check_branch
    %24 = sbr.rel (0) target = $region9
  $region8: #{tpu_custom_call.1} parent=0 // pred_region
    _
  $region9: #{tpu_custom_call.1} parent=0 // pred_fallthru
    _
  // Predicated region
  $region10: #{tpu_custom_call.1} parent=0 // pred_check
    _
  $region11: #{tpu_custom_call.1} parent=0 // pred_check_branch
    %26 = sbr.rel (0) target = $region13
  $region12: #{tpu_custom_call.1} parent=0 // pred_region
    _
  $region13: #{tpu_custom_call.1} parent=0 // pred_fallthru
    _
  // Predicated region
  $region14: #{tpu_custom_call.1} parent=0 // pred_check
    _
  $region15: #{tpu_custom_call.1} parent=0 // pred_check_branch
    %28 = sbr.rel (0) target = $region17
  $region16: #{tpu_custom_call.1} parent=0 // pred_region
    _
  $region17: #{tpu_custom_call.1} parent=0 // pred_fallthru
    _
  // Predicated region
  $region18: #{tpu_custom_call.1} parent=0 // pred_check
    _
  $region19: #{tpu_custom_call.1} parent=0 // pred_check_branch
    %30 = sbr.rel (0) target = $region21
  $region20: #{tpu_custom_call.1} parent=0 // pred_region
    _
  $region21: #{tpu_custom_call.1} parent=0 // pred_fallthru
    _
  // Predicated region
  $region22: #{tpu_custom_call.1} parent=0 // pred_check
    _
  $region23: #{tpu_custom_call.1} parent=0 // pred_check_branch
    %32 = sbr.rel (0) target = $region25
  $region24: #{tpu_custom_call.1} parent=0 // pred_region
    _
  $region25: #{tpu_custom_call.1} parent=0 // pred_fallthru
    _
  // Predicated region
  $region26: #{tpu_custom_call.1} parent=0 // pred_check
    _
  $region27: #{tpu_custom_call.1} parent=0 // pred_check_branch
    %34 = sbr.rel (0) target = $region29
  $region28: #{tpu_custom_call.1} parent=0 // pred_region
    _
  $region29: #{tpu_custom_call.1} parent=0 // pred_fallthru
    _
  // Predicated region
  $region30: #{tpu_custom_call.1} parent=0 // pred_check
    _
  $region31: #{tpu_custom_call.1} parent=0 // pred_check_branch
    %36 = sbr.rel (0) target = $region33
  $region32: #{tpu_custom_call.1} parent=0 // pred_region
    _
  $region33: #{tpu_custom_call.1} parent=0 // pred_fallthru
    _
  // Predicated region
  $region34: #{tpu_custom_call.1} parent=0 // pred_check
    _
  $region35: #{tpu_custom_call.1} parent=0 // pred_check_branch
    %38 = sbr.rel (0) target = $region37
  $region36: #{tpu_custom_call.1} parent=0 // pred_region
    _
  $region37: #{tpu_custom_call.1} parent=0 // pred_fallthru
    _
  // Predicated region
  $region38: #{tpu_custom_call.1} parent=0 // pred_check
    _
  $region39: #{tpu_custom_call.1} parent=0 // pred_check_branch
    %40 = sbr.rel (0) target = $region41
  $region40: #{tpu_custom_call.1} parent=0 // pred_region
    _
  $region41: #{tpu_custom_call.1} parent=0 // pred_fallthru
    _
  // Predicated region
  $region42: #{tpu_custom_call.1} parent=0 // pred_check
    _
  $region43: #{tpu_custom_call.1} parent=0 // pred_check_branch
    %42 = sbr.rel (0) target = $region45
  $region44: #{tpu_custom_call.1} parent=0 // pred_region
    _
  $region45: #{tpu_custom_call.1} parent=0 // pred_fallthru
    _
  // Predicated region
  $region46: #{tpu_custom_call.1} parent=0 // pred_check
    _
  $region47: #{tpu_custom_call.1} parent=0 // pred_check_branch
    %44 = sbr.rel (0) target = $region49
  $region48: #{tpu_custom_call.1} parent=0 // pred_region
    _
  $region49: #{tpu_custom_call.1} parent=0 // pred_fallthru
    _
  // Predicated region
  $region50: #{tpu_custom_call.1} parent=0 // pred_check
    _
  $region51: #{tpu_custom_call.1} parent=0 // pred_check_branch
    %46 = sbr.rel (0) target = $region53
  $region52: #{tpu_custom_call.1} parent=0 // pred_region
    _
  $region53: #{tpu_custom_call.1} parent=0 // pred_fallthru
    _
  // Predicated region
  $region54: #{tpu_custom_call.1} parent=0 // pred_check
    _
  $region55: #{tpu_custom_call.1} parent=0 // pred_check_branch
    %48 = sbr.rel (0) target = $region57
  $region56: #{tpu_custom_call.1} parent=0 // pred_region
    _
  $region57: #{tpu_custom_call.1} parent=0 // pred_fallthru
    _
  // Predicated region
  $region58: #{tpu_custom_call.1} parent=0 // pred_check
    _
  $region59: #{tpu_custom_call.1} parent=0 // pred_check_branch
    %50 = sbr.rel (0) target = $region61
  $region60: #{tpu_custom_call.1} parent=0 // pred_region
    _
  $region61: #{tpu_custom_call.1} parent=0 // pred_fallthru
    _
  // Predicated region
  $region62: #{tpu_custom_call.1} parent=0 // pred_check
    _
  $region63: #{tpu_custom_call.1} parent=0 // pred_check_branch
    %52 = sbr.rel (0) target = $region65
  $region64: #{tpu_custom_call.1} parent=0 // pred_region
    _
  $region65: #{tpu_custom_call.1} parent=0 // pred_fallthru
    _
  %v54 = vld [vmem:[%s0] sm:$0xff]
  %v55 = vld [vmem:[%s0 + $0x8] sm:$0xff]
  %v56 = vld [vmem:[%s0 + $0x10] sm:$0xff]
  %v57 = vld [vmem:[%s0 + $0x18] sm:$0xff]
  %v58 = vld [vmem:[%s0 + $0x20] sm:$0xff]
  %v59 = vld [vmem:[%s0 + $0x28] sm:$0xff]
  %v60 = vld [vmem:[%s0 + $0x30] sm:$0xff]
  %v61 = vld [vmem:[%s0 + $0x38] sm:$0xff]
  %v62 = vld [vmem:[%s0 + $0x40] sm:$0xff]
  %v63 = vld [vmem:[%s0 + $0x48] sm:$0xff]
  %v64 = vld [vmem:[%s0 + $0x50] sm:$0xff]
  %v65 = vld [vmem:[%s0 + $0x58] sm:$0xff]
  %v66 = vld [vmem:[%s0 + $0x60] sm:$0xff]
  %v67 = vld [vmem:[%s0 + $0x68] sm:$0xff]
  %v68 = vld [vmem:[%s0 + $0x70] sm:$0xff]
  %v69 = vld [vmem:[%s0 + $0x78] sm:$0xff]
  %v70 = vld [vmem:[%s0 + $0x80] sm:$0xff]
  %v71 = vld [vmem:[%s0 + $0x88] sm:$0xff]
  %v72 = vld [vmem:[%s0 + $0x90] sm:$0xff]
  %v73 = vpack.c.bf16 %v55, %v54
  %v74 = vpack.c.bf16 %v57, %v56
  %v75 = vpack.c.bf16 %v59, %v58
  %v76 = vpack.c.bf16 %v61, %v60
  %v77 = vpack.c.bf16 %v63, %v62
  %v78 = vpack.c.bf16 %v65, %v64
  %v79 = vpack.c.bf16 %v67, %v66
  %v80 = vpack.c.bf16 %v69, %v68
  %v81 = vpack.c.bf16 %v71, %v70
  %v82 = vpack.c.bf16 %v72, %v72
  %v83 = vld [vmem:[%s1] sm:$0xff]
  %v84 = vld [vmem:[%s1 + $0x8] sm:$0xff]
  %v85 = vld [vmem:[%s1 + $0x10] sm:$0xff]
  %v86 = vld [vmem:[%s1 + $0x18] sm:$0xff]
  %v87 = vld [vmem:[%s1 + $0x20] sm:$0xff]
  %v88 = vld [vmem:[%s1 + $0x28] sm:$0xff]
  %v89 = vld [vmem:[%s1 + $0x30] sm:$0xff]
  %v90 = vld [vmem:[%s1 + $0x38] sm:$0xff]
  %v91 = vld [vmem:[%s1 + $0x40] sm:$0xff]
  %v92 = vld [vmem:[%s1 + $0x48] sm:$0xff]
  %v93 = vld [vmem:[%s1 + $0x50] sm:$0xff]
  %v94 = vld [vmem:[%s1 + $0x58] sm:$0xff]
  %v95 = vld [vmem:[%s1 + $0x60] sm:$0xff]
  %v96 = vld [vmem:[%s1 + $0x68] sm:$0xff]
  %v97 = vld [vmem:[%s1 + $0x70] sm:$0xff]
  %v98 = vld [vmem:[%s1 + $0x78] sm:$0xff]
  %s99 = scalar_lea.vmem %s1, 128
  %v100 = vld [vmem:[%s99] sm:$0xff]
  %v101 = vld [vmem:[%s99 + $0x8] sm:$0xff]
  %v102 = vld [vmem:[%s99 + $0x10] sm:$0xff]
  %v103 = vld [vmem:[%s99 + $0x18] sm:$0xff]
  %v104 = vld [vmem:[%s99 + $0x20] sm:$0xff]
  %v105 = vld [vmem:[%s99 + $0x28] sm:$0xff]
  %v106 = vld [vmem:[%s99 + $0x30] sm:$0xff]
  %v107 = vld [vmem:[%s99 + $0x38] sm:$0xff]
  %v108 = vld [vmem:[%s99 + $0x40] sm:$0xff]
  %v109 = vld [vmem:[%s99 + $0x48] sm:$0xff]
  %v110 = vld [vmem:[%s99 + $0x50] sm:$0xff]
  %v111 = vld [vmem:[%s99 + $0x58] sm:$0xff]
  %v112 = vld [vmem:[%s99 + $0x60] sm:$0xff]
  %v113 = vld [vmem:[%s99 + $0x68] sm:$0xff]
  %v114 = vld [vmem:[%s99 + $0x70] sm:$0xff]
  %v115 = vld [vmem:[%s99 + $0x78] sm:$0xff]
  %v132 = vunpack.c.l.b16 %v100
  %v133 = vunpack.c.h.b16 %v100
  %v134 = vunpack.c.l.b16 %v101
  %v135 = vunpack.c.h.b16 %v101
  %v136 = vunpack.c.l.b16 %v102
  %v137 = vunpack.c.h.b16 %v102
  %v138 = vunpack.c.l.b16 %v103
  %v139 = vunpack.c.h.b16 %v103
  %v140 = vunpack.c.l.b16 %v104
  %v141 = vunpack.c.h.b16 %v104
  %v142 = vunpack.c.l.b16 %v105
  %v143 = vunpack.c.h.b16 %v105
  %v144 = vunpack.c.l.b16 %v106
  %v145 = vunpack.c.h.b16 %v106
  %v146 = vunpack.c.l.b16 %v107
  %v147 = vunpack.c.h.b16 %v107
  %v148 = vunpack.c.l.b16 %v108
  %v149 = vunpack.c.h.b16 %v108
  %v150 = vunpack.c.l.b16 %v109
  %v151 = vunpack.c.h.b16 %v109
  %v152 = vunpack.c.l.b16 %v110
  %v153 = vunpack.c.h.b16 %v110
  %v154 = vunpack.c.l.b16 %v111
  %v155 = vunpack.c.h.b16 %v111
  %v156 = vunpack.c.l.b16 %v112
  %v157 = vunpack.c.h.b16 %v112
  %v158 = vunpack.c.l.b16 %v113
  %v159 = vunpack.c.h.b16 %v113
  %v160 = vunpack.c.l.b16 %v114
  %v161 = vunpack.c.h.b16 %v114
  %v162 = vunpack.c.l.b16 %v115
  %v163 = vunpack.c.h.b16 %v115
  %v164 = vpack.c.b16 %v134, %v132
  %v165 = vpack.c.b16 %v135, %v133
  %v166 = vpack.c.b16 %v138, %v136
  %v167 = vpack.c.b16 %v139, %v137
  %v168 = vpack.c.b16 %v142, %v140
  %v169 = vpack.c.b16 %v143, %v141
  %v170 = vpack.c.b16 %v146, %v144
  %v171 = vpack.c.b16 %v147, %v145
  %v172 = vpack.c.b16 %v150, %v148
  %v173 = vpack.c.b16 %v151, %v149
  %v174 = vpack.c.b16 %v154, %v152
  %v175 = vpack.c.b16 %v155, %v153
  %v176 = vpack.c.b16 %v158, %v156
  %v177 = vpack.c.b16 %v159, %v157
  %v178 = vpack.c.b16 %v162, %v160
  %v179 = vpack.c.b16 %v163, %v161
  %198 = vrot.lane.b32.xlu0 %v73, 127
  %v199 = vpop.permute.xlu0 %198
  %200 = vrot.lane.b32.xlu0 %v74, 127
  %v201 = vpop.permute.xlu0 %200
  %202 = vrot.lane.b32.xlu0 %v75, 127
  %v203 = vpop.permute.xlu0 %202
  %204 = vrot.lane.b32.xlu0 %v76, 127
  %v205 = vpop.permute.xlu0 %204
  %206 = vrot.lane.b32.xlu0 %v77, 127
  %v207 = vpop.permute.xlu0 %206
  %208 = vrot.lane.b32.xlu0 %v78, 127
  %v209 = vpop.permute.xlu0 %208
  %210 = vrot.lane.b32.xlu0 %v79, 127
  %v211 = vpop.permute.xlu0 %210
  %212 = vrot.lane.b32.xlu0 %v80, 127
  %v213 = vpop.permute.xlu0 %212
  %214 = vrot.lane.b32.xlu0 %v81, 127
  %v215 = vpop.permute.xlu0 %214
  %216 = vrot.lane.b32.xlu0 %v82, 127
  %v217 = vpop.permute.xlu0 %216
  %vm227 = vcmask 195584
  %v229 = vsel %vm227, %v165, 0
  %v232 = vsel %vm227, %v167, 0
  %v235 = vsel %vm227, %v169, 0
  %v238 = vsel %vm227, %v171, 0
  %v241 = vsel %vm227, %v173, 0
  %v244 = vsel %vm227, %v175, 0
  %v247 = vsel %vm227, %v177, 0
  %v250 = vsel %vm227, %v179, 0
  %vm252 = vcmask 1043456
  %v254 = vsel %vm252, %v217, 0
  %256 = vmatprep.subr.bf16.mxu0 0
  %257 = vmatpush1.bf16.msra.mxu0 %v213
  %258 = vmatprep.subr.bf16.mxu0 0
  %259 = vmatpush1.bf16.msra.mxu0 %v211
  %260 = vmatprep.subr.bf16.mxu0 0
  %261 = vmatpush1.bf16.msra.mxu0 %v209
  %262 = vmatprep.subr.bf16.mxu0 0
  %263 = vmatpush1.bf16.msra.mxu0 %v207
  %264 = vmatprep.subr.bf16.mxu0 0
  %265 = vmatpush1.bf16.msra.mxu0 %v205
  %266 = vmatprep.subr.bf16.mxu0 0
  %267 = vmatpush1.bf16.msra.mxu0 %v203
  %268 = vmatprep.subr.bf16.mxu0 0
  %269 = vmatpush1.bf16.msra.mxu0 %v201
  %270 = vmatprep.subr.bf16.mxu0 0
  %271 = vmatpush1.bf16.msra.mxu0 %v199
  %272 = vmatprep.subr.bf16.mxu0 0
  %273 = vmatpush2.bf16.msra.mxu0 0
  %274 = vmatprep.subr.bf16.mxu0 0
  %275 = vmatpush2.bf16.msra.mxu0 0
  %276 = vmatprep.subr.bf16.mxu0 0
  %277 = vmatpush2.bf16.msra.mxu0 0
  %278 = vmatprep.subr.bf16.mxu0 0
  %279 = vmatpush2.bf16.msra.mxu0 0
  %280 = vmatprep.subr.bf16.mxu0 0
  %281 = vmatpush2.bf16.msra.mxu0 0
  %282 = vmatprep.subr.bf16.mxu0 0
  %283 = vmatpush2.bf16.msra.mxu0 0
  %284 = vmatprep.subr.bf16.mxu0 0
  %285 = vmatpush2.bf16.msra.mxu0 %v254
  %286 = vmatprep.subr.bf16.mxu0 0
  %287 = vmatpush2.bf16.msra.mxu0 %v215
  %288 = vmatprep.mubr.bf16.mxu0 %v229
  %289 = vmatmul.mubr.bf16.gmra.mxu0 %v164
  %v290 = vpop.f32.mrf.mxu0
  %v291 = vadd.f32 0.0, %v290
  %v292 = vpop.f32.mrf.mxu0
  %v293 = vpop.f32.mrf.mxu0
  %v294 = vadd.f32 0.0, %v293
  %v295 = vpop.f32.mrf.mxu0
  %296 = vmatprep.mubr.bf16.mxu0 %v232
  %297 = vmatmul.mubr.bf16.gmra.mxu0 %v166
  %v298 = vpop.f32.mrf.mxu0
  %v299 = vadd.f32 0.0, %v298
  %v300 = vpop.f32.mrf.mxu0
  %v301 = vpop.f32.mrf.mxu0
  %v302 = vadd.f32 0.0, %v301
  %v303 = vpop.f32.mrf.mxu0
  %304 = vmatprep.mubr.bf16.mxu0 %v235
  %305 = vmatmul.mubr.bf16.gmra.mxu0 %v168
  %v306 = vpop.f32.mrf.mxu0
  %v307 = vadd.f32 0.0, %v306
  %v308 = vpop.f32.mrf.mxu0
  %v309 = vpop.f32.mrf.mxu0
  %v310 = vadd.f32 0.0, %v309
  %v311 = vpop.f32.mrf.mxu0
  %312 = vmatprep.mubr.bf16.mxu0 %v238
  %313 = vmatmul.mubr.bf16.gmra.mxu0 %v170
  %v314 = vpop.f32.mrf.mxu0
  %v315 = vadd.f32 0.0, %v314
  %v316 = vpop.f32.mrf.mxu0
  %v317 = vpop.f32.mrf.mxu0
  %v318 = vadd.f32 0.0, %v317
  %v319 = vpop.f32.mrf.mxu0
  %320 = vmatprep.mubr.bf16.mxu0 %v241
  %321 = vmatmul.mubr.bf16.gmra.mxu0 %v172
  %v322 = vpop.f32.mrf.mxu0
  %v323 = vadd.f32 0.0, %v322
  %v324 = vpop.f32.mrf.mxu0
  %v325 = vpop.f32.mrf.mxu0
  %v326 = vadd.f32 0.0, %v325
  %v327 = vpop.f32.mrf.mxu0
  %328 = vmatprep.mubr.bf16.mxu0 %v244
  %329 = vmatmul.mubr.bf16.gmra.mxu0 %v174
  %v330 = vpop.f32.mrf.mxu0
  %v331 = vadd.f32 0.0, %v330
  %v332 = vpop.f32.mrf.mxu0
  %v333 = vpop.f32.mrf.mxu0
  %v334 = vadd.f32 0.0, %v333
  %v335 = vpop.f32.mrf.mxu0
  %336 = vmatprep.mubr.bf16.mxu0 %v247
  %337 = vmatmul.mubr.bf16.gmra.mxu0 %v176
  %v338 = vpop.f32.mrf.mxu0
  %v339 = vadd.f32 0.0, %v338
  %v340 = vpop.f32.mrf.mxu0
  %v341 = vpop.f32.mrf.mxu0
  %v342 = vadd.f32 0.0, %v341
  %v343 = vpop.f32.mrf.mxu0
  %344 = vmatprep.mubr.bf16.mxu0 %v250
  %345 = vmatmul.mubr.bf16.gmra.mxu0 %v178
  %v346 = vpop.f32.mrf.mxu0
  %v347 = vadd.f32 0.0, %v346
  %v348 = vpop.f32.mrf.mxu0
  %v349 = vpop.f32.mrf.mxu0
  %v350 = vadd.f32 0.0, %v349
  %v351 = vpop.f32.mrf.mxu0
  %352 = vdwg.mxu0
  %v369 = vunpack.c.l.b16 %v83
  %v370 = vunpack.c.h.b16 %v83
  %v371 = vunpack.c.l.b16 %v84
  %v372 = vunpack.c.h.b16 %v84
  %v373 = vunpack.c.l.b16 %v85
  %v374 = vunpack.c.h.b16 %v85
  %v375 = vunpack.c.l.b16 %v86
  %v376 = vunpack.c.h.b16 %v86
  %v377 = vunpack.c.l.b16 %v87
  %v378 = vunpack.c.h.b16 %v87
  %v379 = vunpack.c.l.b16 %v88
  %v380 = vunpack.c.h.b16 %v88
  %v381 = vunpack.c.l.b16 %v89
  %v382 = vunpack.c.h.b16 %v89
  %v383 = vunpack.c.l.b16 %v90
  %v384 = vunpack.c.h.b16 %v90
  %v385 = vunpack.c.l.b16 %v91
  %v386 = vunpack.c.h.b16 %v91
  %v387 = vunpack.c.l.b16 %v92
  %v388 = vunpack.c.h.b16 %v92
  %v389 = vunpack.c.l.b16 %v93
  %v390 = vunpack.c.h.b16 %v93
  %v391 = vunpack.c.l.b16 %v94
  %v392 = vunpack.c.h.b16 %v94
  %v393 = vunpack.c.l.b16 %v95
  %v394 = vunpack.c.h.b16 %v95
  %v395 = vunpack.c.l.b16 %v96
  %v396 = vunpack.c.h.b16 %v96
  %v397 = vunpack.c.l.b16 %v97
  %v398 = vunpack.c.h.b16 %v97
  %v399 = vunpack.c.l.b16 %v98
  %v400 = vunpack.c.h.b16 %v98
  %v401 = vpack.c.b16 %v371, %v369
  %v402 = vpack.c.b16 %v372, %v370
  %v403 = vpack.c.b16 %v375, %v373
  %v404 = vpack.c.b16 %v376, %v374
  %v405 = vpack.c.b16 %v379, %v377
  %v406 = vpack.c.b16 %v380, %v378
  %v407 = vpack.c.b16 %v383, %v381
  %v408 = vpack.c.b16 %v384, %v382
  %v409 = vpack.c.b16 %v387, %v385
  %v410 = vpack.c.b16 %v388, %v386
  %v411 = vpack.c.b16 %v391, %v389
  %v412 = vpack.c.b16 %v392, %v390
  %v413 = vpack.c.b16 %v395, %v393
  %v414 = vpack.c.b16 %v396, %v394
  %v415 = vpack.c.b16 %v399, %v397
  %v416 = vpack.c.b16 %v400, %v398
  %v426 = vsel %vm227, %v402, 0
  %v429 = vsel %vm227, %v404, 0
  %v432 = vsel %vm227, %v406, 0
  %v435 = vsel %vm227, %v408, 0
  %v438 = vsel %vm227, %v410, 0
  %v441 = vsel %vm227, %v412, 0
  %v444 = vsel %vm227, %v414, 0
  %v447 = vsel %vm227, %v416, 0
  %v450 = vsel %vm252, %v82, 0
  %452 = vmatprep.subr.bf16.mxu0 0
  %453 = vmatpush1.bf16.msra.mxu0 %v80
  %454 = vmatprep.subr.bf16.mxu0 0
  %455 = vmatpush1.bf16.msra.mxu0 %v79
  %456 = vmatprep.subr.bf16.mxu0 0
  %457 = vmatpush1.bf16.msra.mxu0 %v78
  %458 = vmatprep.subr.bf16.mxu0 0
  %459 = vmatpush1.bf16.msra.mxu0 %v77
  %460 = vmatprep.subr.bf16.mxu0 0
  %461 = vmatpush1.bf16.msra.mxu0 %v76
  %462 = vmatprep.subr.bf16.mxu0 0
  %463 = vmatpush1.bf16.msra.mxu0 %v75
  %464 = vmatprep.subr.bf16.mxu0 0
  %465 = vmatpush1.bf16.msra.mxu0 %v74
  %466 = vmatprep.subr.bf16.mxu0 0
  %467 = vmatpush1.bf16.msra.mxu0 %v73
  %468 = vmatprep.subr.bf16.mxu0 0
  %469 = vmatpush2.bf16.msra.mxu0 0
  %470 = vmatprep.subr.bf16.mxu0 0
  %471 = vmatpush2.bf16.msra.mxu0 0
  %472 = vmatprep.subr.bf16.mxu0 0
  %473 = vmatpush2.bf16.msra.mxu0 0
  %474 = vmatprep.subr.bf16.mxu0 0
  %475 = vmatpush2.bf16.msra.mxu0 0
  %476 = vmatprep.subr.bf16.mxu0 0
  %477 = vmatpush2.bf16.msra.mxu0 0
  %478 = vmatprep.subr.bf16.mxu0 0
  %479 = vmatpush2.bf16.msra.mxu0 0
  %480 = vmatprep.subr.bf16.mxu0 0
  %481 = vmatpush2.bf16.msra.mxu0 %v450
  %482 = vmatprep.subr.bf16.mxu0 0
  %483 = vmatpush2.bf16.msra.mxu0 %v81
  %484 = vmatprep.mubr.bf16.mxu0 %v426
  %485 = vmatmul.mubr.bf16.gmra.mxu0 %v401
  %v486 = vpop.f32.mrf.mxu0
  %v487 = vadd.f32 %v291, %v486
  %v488 = vpop.f32.mrf.mxu0
  %v489 = vpop.f32.mrf.mxu0
  %v490 = vadd.f32 %v294, %v489
  %v491 = vpop.f32.mrf.mxu0
  %492 = vmatprep.mubr.bf16.mxu0 %v429
  %493 = vmatmul.mubr.bf16.gmra.mxu0 %v403
  %v494 = vpop.f32.mrf.mxu0
  %v495 = vadd.f32 %v299, %v494
  %v496 = vpop.f32.mrf.mxu0
  %v497 = vpop.f32.mrf.mxu0
  %v498 = vadd.f32 %v302, %v497
  %v499 = vpop.f32.mrf.mxu0
  %500 = vmatprep.mubr.bf16.mxu0 %v432
  %501 = vmatmul.mubr.bf16.gmra.mxu0 %v405
  %v502 = vpop.f32.mrf.mxu0
  %v503 = vadd.f32 %v307, %v502
  %v504 = vpop.f32.mrf.mxu0
  %v505 = vpop.f32.mrf.mxu0
  %v506 = vadd.f32 %v310, %v505
  %v507 = vpop.f32.mrf.mxu0
  %508 = vmatprep.mubr.bf16.mxu0 %v435
  %509 = vmatmul.mubr.bf16.gmra.mxu0 %v407
  %v510 = vpop.f32.mrf.mxu0
  %v511 = vadd.f32 %v315, %v510
  %v512 = vpop.f32.mrf.mxu0
  %v513 = vpop.f32.mrf.mxu0
  %v514 = vadd.f32 %v318, %v513
  %v515 = vpop.f32.mrf.mxu0
  %516 = vmatprep.mubr.bf16.mxu0 %v438
  %517 = vmatmul.mubr.bf16.gmra.mxu0 %v409
  %v518 = vpop.f32.mrf.mxu0
  %v519 = vadd.f32 %v323, %v518
  %v520 = vpop.f32.mrf.mxu0
  %v521 = vpop.f32.mrf.mxu0
  %v522 = vadd.f32 %v326, %v521
  %v523 = vpop.f32.mrf.mxu0
  %524 = vmatprep.mubr.bf16.mxu0 %v441
  %525 = vmatmul.mubr.bf16.gmra.mxu0 %v411
  %v526 = vpop.f32.mrf.mxu0
  %v527 = vadd.f32 %v331, %v526
  %v528 = vpop.f32.mrf.mxu0
  %v529 = vpop.f32.mrf.mxu0
  %v530 = vadd.f32 %v334, %v529
  %v531 = vpop.f32.mrf.mxu0
  %532 = vmatprep.mubr.bf16.mxu0 %v444
  %533 = vmatmul.mubr.bf16.gmra.mxu0 %v413
  %v534 = vpop.f32.mrf.mxu0
  %v535 = vadd.f32 %v339, %v534
  %v536 = vpop.f32.mrf.mxu0
  %v537 = vpop.f32.mrf.mxu0
  %v538 = vadd.f32 %v342, %v537
  %v539 = vpop.f32.mrf.mxu0
  %540 = vmatprep.mubr.bf16.mxu0 %v447
  %541 = vmatmul.mubr.bf16.gmra.mxu0 %v415
  %v542 = vpop.f32.mrf.mxu0
  %v543 = vadd.f32 %v347, %v542
  %v544 = vpop.f32.mrf.mxu0
  %v545 = vpop.f32.mrf.mxu0
  %v546 = vadd.f32 %v350, %v545
  %v547 = vpop.f32.mrf.mxu0
  %548 = vdwg.mxu0
  %s549 = scalar_lea.vmem %s1, 256
  %v550 = vld [vmem:[%s549] sm:$0xff]
  %v551 = vld [vmem:[%s549 + $0x8] sm:$0xff]
  %v552 = vld [vmem:[%s549 + $0x10] sm:$0xff]
  %v553 = vld [vmem:[%s549 + $0x18] sm:$0xff]
  %v554 = vld [vmem:[%s549 + $0x20] sm:$0xff]
  %v555 = vld [vmem:[%s549 + $0x28] sm:$0xff]
  %v556 = vld [vmem:[%s549 + $0x30] sm:$0xff]
  %v557 = vld [vmem:[%s549 + $0x38] sm:$0xff]
  %v558 = vld [vmem:[%s549 + $0x40] sm:$0xff]
  %v559 = vld [vmem:[%s549 + $0x48] sm:$0xff]
  %v560 = vld [vmem:[%s549 + $0x50] sm:$0xff]
  %v561 = vld [vmem:[%s549 + $0x58] sm:$0xff]
  %v562 = vld [vmem:[%s549 + $0x60] sm:$0xff]
  %v563 = vld [vmem:[%s549 + $0x68] sm:$0xff]
  %v564 = vld [vmem:[%s549 + $0x70] sm:$0xff]
  %v565 = vld [vmem:[%s549 + $0x78] sm:$0xff]
  %v582 = vunpack.c.l.b16 %v550
  %v583 = vunpack.c.h.b16 %v550
  %v584 = vunpack.c.l.b16 %v551
  %v585 = vunpack.c.h.b16 %v551
  %v586 = vunpack.c.l.b16 %v552
  %v587 = vunpack.c.h.b16 %v552
  %v588 = vunpack.c.l.b16 %v553
  %v589 = vunpack.c.h.b16 %v553
  %v590 = vunpack.c.l.b16 %v554
  %v591 = vunpack.c.h.b16 %v554
  %v592 = vunpack.c.l.b16 %v555
  %v593 = vunpack.c.h.b16 %v555
  %v594 = vunpack.c.l.b16 %v556
  %v595 = vunpack.c.h.b16 %v556
  %v596 = vunpack.c.l.b16 %v557
  %v597 = vunpack.c.h.b16 %v557
  %v598 = vunpack.c.l.b16 %v558
  %v599 = vunpack.c.h.b16 %v558
  %v600 = vunpack.c.l.b16 %v559
  %v601 = vunpack.c.h.b16 %v559
  %v602 = vunpack.c.l.b16 %v560
  %v603 = vunpack.c.h.b16 %v560
  %v604 = vunpack.c.l.b16 %v561
  %v605 = vunpack.c.h.b16 %v561
  %v606 = vunpack.c.l.b16 %v562
  %v607 = vunpack.c.h.b16 %v562
  %v608 = vunpack.c.l.b16 %v563
  %v609 = vunpack.c.h.b16 %v563
  %v610 = vunpack.c.l.b16 %v564
  %v611 = vunpack.c.h.b16 %v564
  %v612 = vunpack.c.l.b16 %v565
  %v613 = vunpack.c.h.b16 %v565
  %v614 = vpack.c.b16 %v584, %v582
  %v615 = vpack.c.b16 %v585, %v583
  %v616 = vpack.c.b16 %v588, %v586
  %v617 = vpack.c.b16 %v589, %v587
  %v618 = vpack.c.b16 %v592, %v590
  %v619 = vpack.c.b16 %v593, %v591
  %v620 = vpack.c.b16 %v596, %v594
  %v621 = vpack.c.b16 %v597, %v595
  %v622 = vpack.c.b16 %v600, %v598
  %v623 = vpack.c.b16 %v601, %v599
  %v624 = vpack.c.b16 %v604, %v602
  %v625 = vpack.c.b16 %v605, %v603
  %v626 = vpack.c.b16 %v608, %v606
  %v627 = vpack.c.b16 %v609, %v607
  %v628 = vpack.c.b16 %v612, %v610
  %v629 = vpack.c.b16 %v613, %v611
  %638 = vrot.lane.b32.xlu0 %v73, 126
  %v639 = vpop.permute.xlu0 %638
  %640 = vrot.lane.b32.xlu0 %v74, 126
  %v641 = vpop.permute.xlu0 %640
  %642 = vrot.lane.b32.xlu0 %v75, 126
  %v643 = vpop.permute.xlu0 %642
  %644 = vrot.lane.b32.xlu0 %v76, 126
  %v645 = vpop.permute.xlu0 %644
  %646 = vrot.lane.b32.xlu0 %v77, 126
  %v647 = vpop.permute.xlu0 %646
  %648 = vrot.lane.b32.xlu0 %v78, 126
  %v649 = vpop.permute.xlu0 %648
  %650 = vrot.lane.b32.xlu0 %v79, 126
  %v651 = vpop.permute.xlu0 %650
  %652 = vrot.lane.b32.xlu0 %v80, 126
  %v653 = vpop.permute.xlu0 %652
  %654 = vrot.lane.b32.xlu0 %v81, 126
  %v655 = vpop.permute.xlu0 %654
  %656 = vrot.lane.b32.xlu0 %v82, 126
  %v657 = vpop.permute.xlu0 %656
  %v668 = vsel %vm227, %v615, 0
  %v671 = vsel %vm227, %v617, 0
  %v674 = vsel %vm227, %v619, 0
  %v677 = vsel %vm227, %v621, 0
  %v680 = vsel %vm227, %v623, 0
  %v683 = vsel %vm227, %v625, 0
  %v686 = vsel %vm227, %v627, 0
  %v689 = vsel %vm227, %v629, 0
  %v692 = vsel %vm252, %v657, 0
  %694 = vmatprep.subr.bf16.mxu0 0
  %695 = vmatpush1.bf16.msra.mxu0 %v653
  %696 = vmatprep.subr.bf16.mxu0 0
  %697 = vmatpush1.bf16.msra.mxu0 %v651
  %698 = vmatprep.subr.bf16.mxu0 0
  %699 = vmatpush1.bf16.msra.mxu0 %v649
  %700 = vmatprep.subr.bf16.mxu0 0
  %701 = vmatpush1.bf16.msra.mxu0 %v647
  %702 = vmatprep.subr.bf16.mxu0 0
  %703 = vmatpush1.bf16.msra.mxu0 %v645
  %704 = vmatprep.subr.bf16.mxu0 0
  %705 = vmatpush1.bf16.msra.mxu0 %v643
  %706 = vmatprep.subr.bf16.mxu0 0
  %707 = vmatpush1.bf16.msra.mxu0 %v641
  %708 = vmatprep.subr.bf16.mxu0 0
  %709 = vmatpush1.bf16.msra.mxu0 %v639
  %710 = vmatprep.subr.bf16.mxu0 0
  %711 = vmatpush2.bf16.msra.mxu0 0
  %712 = vmatprep.subr.bf16.mxu0 0
  %713 = vmatpush2.bf16.msra.mxu0 0
  %714 = vmatprep.subr.bf16.mxu0 0
  %715 = vmatpush2.bf16.msra.mxu0 0
  %716 = vmatprep.subr.bf16.mxu0 0
  %717 = vmatpush2.bf16.msra.mxu0 0
  %718 = vmatprep.subr.bf16.mxu0 0
  %719 = vmatpush2.bf16.msra.mxu0 0
  %720 = vmatprep.subr.bf16.mxu0 0
  %721 = vmatpush2.bf16.msra.mxu0 0
  %722 = vmatprep.subr.bf16.mxu0 0
  %723 = vmatpush2.bf16.msra.mxu0 %v692
  %724 = vmatprep.subr.bf16.mxu0 0
  %725 = vmatpush2.bf16.msra.mxu0 %v655
  %726 = vmatprep.mubr.bf16.mxu0 %v668
  %727 = vmatmul.mubr.bf16.gmra.mxu0 %v614
  %v728 = vpop.f32.mrf.mxu0
  %v729 = vadd.f32 0.0, %v728
  %v730 = vpop.f32.mrf.mxu0
  %v731 = vpop.f32.mrf.mxu0
  %v732 = vadd.f32 0.0, %v731
  %v733 = vpop.f32.mrf.mxu0
  %734 = vmatprep.mubr.bf16.mxu0 %v671
  %735 = vmatmul.mubr.bf16.gmra.mxu0 %v616
  %v736 = vpop.f32.mrf.mxu0
  %v737 = vadd.f32 0.0, %v736
  %v738 = vpop.f32.mrf.mxu0
  %v739 = vpop.f32.mrf.mxu0
  %v740 = vadd.f32 0.0, %v739
  %v741 = vpop.f32.mrf.mxu0
  %742 = vmatprep.mubr.bf16.mxu0 %v674
  %743 = vmatmul.mubr.bf16.gmra.mxu0 %v618
  %v744 = vpop.f32.mrf.mxu0
  %v745 = vadd.f32 0.0, %v744
  %v746 = vpop.f32.mrf.mxu0
  %v747 = vpop.f32.mrf.mxu0
  %v748 = vadd.f32 0.0, %v747
  %v749 = vpop.f32.mrf.mxu0
  %750 = vmatprep.mubr.bf16.mxu0 %v677
  %751 = vmatmul.mubr.bf16.gmra.mxu0 %v620
  %v752 = vpop.f32.mrf.mxu0
  %v753 = vadd.f32 0.0, %v752
  %v754 = vpop.f32.mrf.mxu0
  %v755 = vpop.f32.mrf.mxu0
  %v756 = vadd.f32 0.0, %v755
  %v757 = vpop.f32.mrf.mxu0
  %758 = vmatprep.mubr.bf16.mxu0 %v680
  %759 = vmatmul.mubr.bf16.gmra.mxu0 %v622
  %v760 = vpop.f32.mrf.mxu0
  %v761 = vadd.f32 0.0, %v760
  %v762 = vpop.f32.mrf.mxu0
  %v763 = vpop.f32.mrf.mxu0
  %v764 = vadd.f32 0.0, %v763
  %v765 = vpop.f32.mrf.mxu0
  %766 = vmatprep.mubr.bf16.mxu0 %v683
  %767 = vmatmul.mubr.bf16.gmra.mxu0 %v624
  %v768 = vpop.f32.mrf.mxu0
  %v769 = vadd.f32 0.0, %v768
  %v770 = vpop.f32.mrf.mxu0
  %v771 = vpop.f32.mrf.mxu0
  %v772 = vadd.f32 0.0, %v771
  %v773 = vpop.f32.mrf.mxu0
  %774 = vmatprep.mubr.bf16.mxu0 %v686
  %775 = vmatmul.mubr.bf16.gmra.mxu0 %v626
  %v776 = vpop.f32.mrf.mxu0
  %v777 = vadd.f32 0.0, %v776
  %v778 = vpop.f32.mrf.mxu0
  %v779 = vpop.f32.mrf.mxu0
  %v780 = vadd.f32 0.0, %v779
  %v781 = vpop.f32.mrf.mxu0
  %782 = vmatprep.mubr.bf16.mxu0 %v689
  %783 = vmatmul.mubr.bf16.gmra.mxu0 %v628
  %v784 = vpop.f32.mrf.mxu0
  %v785 = vadd.f32 0.0, %v784
  %v786 = vpop.f32.mrf.mxu0
  %v787 = vpop.f32.mrf.mxu0
  %v788 = vadd.f32 0.0, %v787
  %v789 = vpop.f32.mrf.mxu0
  %790 = vdwg.mxu0
  %v791 = vadd.f32 %v487, %v729
  %v792 = vadd.f32 %v490, %v732
  %v793 = vadd.f32 %v495, %v737
  %v794 = vadd.f32 %v498, %v740
  %v795 = vadd.f32 %v503, %v745
  %v796 = vadd.f32 %v506, %v748
  %v797 = vadd.f32 %v511, %v753
  %v798 = vadd.f32 %v514, %v756
  %v799 = vadd.f32 %v519, %v761
  %v800 = vadd.f32 %v522, %v764
  %v801 = vadd.f32 %v527, %v769
  %v802 = vadd.f32 %v530, %v772
  %v803 = vadd.f32 %v535, %v777
  %v804 = vadd.f32 %v538, %v780
  %v805 = vadd.f32 %v543, %v785
  %v806 = vadd.f32 %v546, %v788
  %s807 = scalar_lea.vmem %s1, 384
  %v808 = vld [vmem:[%s807] sm:$0xff]
  %v809 = vld [vmem:[%s807 + $0x8] sm:$0xff]
  %v810 = vld [vmem:[%s807 + $0x10] sm:$0xff]
  %v811 = vld [vmem:[%s807 + $0x18] sm:$0xff]
  %v812 = vld [vmem:[%s807 + $0x20] sm:$0xff]
  %v813 = vld [vmem:[%s807 + $0x28] sm:$0xff]
  %v814 = vld [vmem:[%s807 + $0x30] sm:$0xff]
  %v815 = vld [vmem:[%s807 + $0x38] sm:$0xff]
  %v816 = vld [vmem:[%s807 + $0x40] sm:$0xff]
  %v817 = vld [vmem:[%s807 + $0x48] sm:$0xff]
  %v818 = vld [vmem:[%s807 + $0x50] sm:$0xff]
  %v819 = vld [vmem:[%s807 + $0x58] sm:$0xff]
  %v820 = vld [vmem:[%s807 + $0x60] sm:$0xff]
  %v821 = vld [vmem:[%s807 + $0x68] sm:$0xff]
  %v822 = vld [vmem:[%s807 + $0x70] sm:$0xff]
  %v823 = vld [vmem:[%s807 + $0x78] sm:$0xff]
  %v840 = vunpack.c.l.b16 %v808
  %v841 = vunpack.c.h.b16 %v808
  %v842 = vunpack.c.l.b16 %v809
  %v843 = vunpack.c.h.b16 %v809
  %v844 = vunpack.c.l.b16 %v810
  %v845 = vunpack.c.h.b16 %v810
  %v846 = vunpack.c.l.b16 %v811
  %v847 = vunpack.c.h.b16 %v811
  %v848 = vunpack.c.l.b16 %v812
  %v849 = vunpack.c.h.b16 %v812
  %v850 = vunpack.c.l.b16 %v813
  %v851 = vunpack.c.h.b16 %v813
  %v852 = vunpack.c.l.b16 %v814
  %v853 = vunpack.c.h.b16 %v814
  %v854 = vunpack.c.l.b16 %v815
  %v855 = vunpack.c.h.b16 %v815
  %v856 = vunpack.c.l.b16 %v816
  %v857 = vunpack.c.h.b16 %v816
  %v858 = vunpack.c.l.b16 %v817
  %v859 = vunpack.c.h.b16 %v817
  %v860 = vunpack.c.l.b16 %v818
  %v861 = vunpack.c.h.b16 %v818
  %v862 = vunpack.c.l.b16 %v819
  %v863 = vunpack.c.h.b16 %v819
  %v864 = vunpack.c.l.b16 %v820
  %v865 = vunpack.c.h.b16 %v820
  %v866 = vunpack.c.l.b16 %v821
  %v867 = vunpack.c.h.b16 %v821
  %v868 = vunpack.c.l.b16 %v822
  %v869 = vunpack.c.h.b16 %v822
  %v870 = vunpack.c.l.b16 %v823
  %v871 = vunpack.c.h.b16 %v823
  %v872 = vpack.c.b16 %v842, %v840
  %v873 = vpack.c.b16 %v843, %v841
  %v874 = vpack.c.b16 %v846, %v844
  %v875 = vpack.c.b16 %v847, %v845
  %v876 = vpack.c.b16 %v850, %v848
  %v877 = vpack.c.b16 %v851, %v849
  %v878 = vpack.c.b16 %v854, %v852
  %v879 = vpack.c.b16 %v855, %v853
  %v880 = vpack.c.b16 %v858, %v856
  %v881 = vpack.c.b16 %v859, %v857
  %v882 = vpack.c.b16 %v862, %v860
  %v883 = vpack.c.b16 %v863, %v861
  %v884 = vpack.c.b16 %v866, %v864
  %v885 = vpack.c.b16 %v867, %v865
  %v886 = vpack.c.b16 %v870, %v868
  %v887 = vpack.c.b16 %v871, %v869
  %896 = vrot.lane.b32.xlu0 %v73, 125
  %v897 = vpop.permute.xlu0 %896
  %898 = vrot.lane.b32.xlu0 %v74, 125
  %v899 = vpop.permute.xlu0 %898
  %900 = vrot.lane.b32.xlu0 %v75, 125
  %v901 = vpop.permute.xlu0 %900
  %902 = vrot.lane.b32.xlu0 %v76, 125
  %v903 = vpop.permute.xlu0 %902
  %904 = vrot.lane.b32.xlu0 %v77, 125
  %v905 = vpop.permute.xlu0 %904
  %906 = vrot.lane.b32.xlu0 %v78, 125
  %v907 = vpop.permute.xlu0 %906
  %908 = vrot.lane.b32.xlu0 %v79, 125
  %v909 = vpop.permute.xlu0 %908
  %910 = vrot.lane.b32.xlu0 %v80, 125
  %v911 = vpop.permute.xlu0 %910
  %912 = vrot.lane.b32.xlu0 %v81, 125
  %v913 = vpop.permute.xlu0 %912
  %914 = vrot.lane.b32.xlu0 %v82, 125
  %v915 = vpop.permute.xlu0 %914
  %v926 = vsel %vm227, %v873, 0
  %v929 = vsel %vm227, %v875, 0
  %v932 = vsel %vm227, %v877, 0
  %v935 = vsel %vm227, %v879, 0
  %v938 = vsel %vm227, %v881, 0
  %v941 = vsel %vm227, %v883, 0
  %v944 = vsel %vm227, %v885, 0
  %v947 = vsel %vm227, %v887, 0
  %v950 = vsel %vm252, %v915, 0
  %952 = vmatprep.subr.bf16.mxu0 0
  %953 = vmatpush1.bf16.msra.mxu0 %v911
  %954 = vmatprep.subr.bf16.mxu0 0
  %955 = vmatpush1.bf16.msra.mxu0 %v909
  %956 = vmatprep.subr.bf16.mxu0 0
  %957 = vmatpush1.bf16.msra.mxu0 %v907
  %958 = vmatprep.subr.bf16.mxu0 0
  %959 = vmatpush1.bf16.msra.mxu0 %v905
  %960 = vmatprep.subr.bf16.mxu0 0
  %961 = vmatpush1.bf16.msra.mxu0 %v903
  %962 = vmatprep.subr.bf16.mxu0 0
  %963 = vmatpush1.bf16.msra.mxu0 %v901
  %964 = vmatprep.subr.bf16.mxu0 0
  %965 = vmatpush1.bf16.msra.mxu0 %v899
  %966 = vmatprep.subr.bf16.mxu0 0
  %967 = vmatpush1.bf16.msra.mxu0 %v897
  %968 = vmatprep.subr.bf16.mxu0 0
  %969 = vmatpush2.bf16.msra.mxu0 0
  %970 = vmatprep.subr.bf16.mxu0 0
  %971 = vmatpush2.bf16.msra.mxu0 0
  %972 = vmatprep.subr.bf16.mxu0 0
  %973 = vmatpush2.bf16.msra.mxu0 0
  %974 = vmatprep.subr.bf16.mxu0 0
  %975 = vmatpush2.bf16.msra.mxu0 0
  %976 = vmatprep.subr.bf16.mxu0 0
  %977 = vmatpush2.bf16.msra.mxu0 0
  %978 = vmatprep.subr.bf16.mxu0 0
  %979 = vmatpush2.bf16.msra.mxu0 0
  %980 = vmatprep.subr.bf16.mxu0 0
  %981 = vmatpush2.bf16.msra.mxu0 %v950
  %982 = vmatprep.subr.bf16.mxu0 0
  %983 = vmatpush2.bf16.msra.mxu0 %v913
  %984 = vmatprep.mubr.bf16.mxu0 %v926
  %985 = vmatmul.mubr.bf16.gmra.mxu0 %v872
  %v986 = vpop.f32.mrf.mxu0
  %v987 = vadd.f32 0.0, %v986
  %v988 = vpop.f32.mrf.mxu0
  %v989 = vpop.f32.mrf.mxu0
  %v990 = vadd.f32 0.0, %v989
  %v991 = vpop.f32.mrf.mxu0
  %992 = vmatprep.mubr.bf16.mxu0 %v929
  %993 = vmatmul.mubr.bf16.gmra.mxu0 %v874
  %v994 = vpop.f32.mrf.mxu0
  %v995 = vadd.f32 0.0, %v994
  %v996 = vpop.f32.mrf.mxu0
  %v997 = vpop.f32.mrf.mxu0
  %v998 = vadd.f32 0.0, %v997
  %v999 = vpop.f32.mrf.mxu0
  %1000 = vmatprep.mubr.bf16.mxu0 %v932
  %1001 = vmatmul.mubr.bf16.gmra.mxu0 %v876
  %v1002 = vpop.f32.mrf.mxu0
  %v1003 = vadd.f32 0.0, %v1002
  %v1004 = vpop.f32.mrf.mxu0
  %v1005 = vpop.f32.mrf.mxu0
  %v1006 = vadd.f32 0.0, %v1005
  %v1007 = vpop.f32.mrf.mxu0
  %1008 = vmatprep.mubr.bf16.mxu0 %v935
  %1009 = vmatmul.mubr.bf16.gmra.mxu0 %v878
  %v1010 = vpop.f32.mrf.mxu0
  %v1011 = vadd.f32 0.0, %v1010
  %v1012 = vpop.f32.mrf.mxu0
  %v1013 = vpop.f32.mrf.mxu0
  %v1014 = vadd.f32 0.0, %v1013
  %v1015 = vpop.f32.mrf.mxu0
  %1016 = vmatprep.mubr.bf16.mxu0 %v938
  %1017 = vmatmul.mubr.bf16.gmra.mxu0 %v880
  %v1018 = vpop.f32.mrf.mxu0
  %v1019 = vadd.f32 0.0, %v1018
  %v1020 = vpop.f32.mrf.mxu0
  %v1021 = vpop.f32.mrf.mxu0
  %v1022 = vadd.f32 0.0, %v1021
  %v1023 = vpop.f32.mrf.mxu0
  %1024 = vmatprep.mubr.bf16.mxu0 %v941
  %1025 = vmatmul.mubr.bf16.gmra.mxu0 %v882
  %v1026 = vpop.f32.mrf.mxu0
  %v1027 = vadd.f32 0.0, %v1026
  %v1028 = vpop.f32.mrf.mxu0
  %v1029 = vpop.f32.mrf.mxu0
  %v1030 = vadd.f32 0.0, %v1029
  %v1031 = vpop.f32.mrf.mxu0
  %1032 = vmatprep.mubr.bf16.mxu0 %v944
  %1033 = vmatmul.mubr.bf16.gmra.mxu0 %v884
  %v1034 = vpop.f32.mrf.mxu0
  %v1035 = vadd.f32 0.0, %v1034
  %v1036 = vpop.f32.mrf.mxu0
  %v1037 = vpop.f32.mrf.mxu0
  %v1038 = vadd.f32 0.0, %v1037
  %v1039 = vpop.f32.mrf.mxu0
  %1040 = vmatprep.mubr.bf16.mxu0 %v947
  %1041 = vmatmul.mubr.bf16.gmra.mxu0 %v886
  %v1042 = vpop.f32.mrf.mxu0
  %v1043 = vadd.f32 0.0, %v1042
  %v1044 = vpop.f32.mrf.mxu0
  %v1045 = vpop.f32.mrf.mxu0
  %v1046 = vadd.f32 0.0, %v1045
  %v1047 = vpop.f32.mrf.mxu0
  %1048 = vdwg.mxu0
  %v1049 = vadd.f32 %v791, %v987
  %v1050 = vadd.f32 %v792, %v990
  %v1051 = vadd.f32 %v793, %v995
  %v1052 = vadd.f32 %v794, %v998
  %v1053 = vadd.f32 %v795, %v1003
  %v1054 = vadd.f32 %v796, %v1006
  %v1055 = vadd.f32 %v797, %v1011
  %v1056 = vadd.f32 %v798, %v1014
  %v1057 = vadd.f32 %v799, %v1019
  %v1058 = vadd.f32 %v800, %v1022
  %v1059 = vadd.f32 %v801, %v1027
  %v1060 = vadd.f32 %v802, %v1030
  %v1061 = vadd.f32 %v803, %v1035
  %v1062 = vadd.f32 %v804, %v1038
  %v1063 = vadd.f32 %v805, %v1043
  %v1064 = vadd.f32 %v806, %v1046
  %s1065 = scalar_lea.vmem %s1, 512
  %v1066 = vld [vmem:[%s1065] sm:$0xff]
  %v1067 = vld [vmem:[%s1065 + $0x8] sm:$0xff]
  %v1068 = vld [vmem:[%s1065 + $0x10] sm:$0xff]
  %v1069 = vld [vmem:[%s1065 + $0x18] sm:$0xff]
  %v1070 = vld [vmem:[%s1065 + $0x20] sm:$0xff]
  %v1071 = vld [vmem:[%s1065 + $0x28] sm:$0xff]
  %v1072 = vld [vmem:[%s1065 + $0x30] sm:$0xff]
  %v1073 = vld [vmem:[%s1065 + $0x38] sm:$0xff]
  %v1074 = vld [vmem:[%s1065 + $0x40] sm:$0xff]
  %v1075 = vld [vmem:[%s1065 + $0x48] sm:$0xff]
  %v1076 = vld [vmem:[%s1065 + $0x50] sm:$0xff]
  %v1077 = vld [vmem:[%s1065 + $0x58] sm:$0xff]
  %v1078 = vld [vmem:[%s1065 + $0x60] sm:$0xff]
  %v1079 = vld [vmem:[%s1065 + $0x68] sm:$0xff]
  %v1080 = vld [vmem:[%s1065 + $0x70] sm:$0xff]
  %v1081 = vld [vmem:[%s1065 + $0x78] sm:$0xff]
  %v1098 = vunpack.c.l.b16 %v1066
  %v1099 = vunpack.c.h.b16 %v1066
  %v1100 = vunpack.c.l.b16 %v1067
  %v1101 = vunpack.c.h.b16 %v1067
  %v1102 = vunpack.c.l.b16 %v1068
  %v1103 = vunpack.c.h.b16 %v1068
  %v1104 = vunpack.c.l.b16 %v1069
  %v1105 = vunpack.c.h.b16 %v1069
  %v1106 = vunpack.c.l.b16 %v1070
  %v1107 = vunpack.c.h.b16 %v1070
  %v1108 = vunpack.c.l.b16 %v1071
  %v1109 = vunpack.c.h.b16 %v1071
  %v1110 = vunpack.c.l.b16 %v1072
  %v1111 = vunpack.c.h.b16 %v1072
  %v1112 = vunpack.c.l.b16 %v1073
  %v1113 = vunpack.c.h.b16 %v1073
  %v1114 = vunpack.c.l.b16 %v1074
  %v1115 = vunpack.c.h.b16 %v1074
  %v1116 = vunpack.c.l.b16 %v1075
  %v1117 = vunpack.c.h.b16 %v1075
  %v1118 = vunpack.c.l.b16 %v1076
  %v1119 = vunpack.c.h.b16 %v1076
  %v1120 = vunpack.c.l.b16 %v1077
  %v1121 = vunpack.c.h.b16 %v1077
  %v1122 = vunpack.c.l.b16 %v1078
  %v1123 = vunpack.c.h.b16 %v1078
  %v1124 = vunpack.c.l.b16 %v1079
  %v1125 = vunpack.c.h.b16 %v1079
  %v1126 = vunpack.c.l.b16 %v1080
  %v1127 = vunpack.c.h.b16 %v1080
  %v1128 = vunpack.c.l.b16 %v1081
  %v1129 = vunpack.c.h.b16 %v1081
  %v1130 = vpack.c.b16 %v1100, %v1098
  %v1131 = vpack.c.b16 %v1101, %v1099
  %v1132 = vpack.c.b16 %v1104, %v1102
  %v1133 = vpack.c.b16 %v1105, %v1103
  %v1134 = vpack.c.b16 %v1108, %v1106
  %v1135 = vpack.c.b16 %v1109, %v1107
  %v1136 = vpack.c.b16 %v1112, %v1110
  %v1137 = vpack.c.b16 %v1113, %v1111
  %v1138 = vpack.c.b16 %v1116, %v1114
  %v1139 = vpack.c.b16 %v1117, %v1115
  %v1140 = vpack.c.b16 %v1120, %v1118
  %v1141 = vpack.c.b16 %v1121, %v1119
  %v1142 = vpack.c.b16 %v1124, %v1122
  %v1143 = vpack.c.b16 %v1125, %v1123
  %v1144 = vpack.c.b16 %v1128, %v1126
  %v1145 = vpack.c.b16 %v1129, %v1127
  %1154 = vrot.lane.b32.xlu0 %v73, 124
  %v1155 = vpop.permute.xlu0 %1154
  %1156 = vrot.lane.b32.xlu0 %v74, 124
  %v1157 = vpop.permute.xlu0 %1156
  %1158 = vrot.lane.b32.xlu0 %v75, 124
  %v1159 = vpop.permute.xlu0 %1158
  %1160 = vrot.lane.b32.xlu0 %v76, 124
  %v1161 = vpop.permute.xlu0 %1160
  %1162 = vrot.lane.b32.xlu0 %v77, 124
  %v1163 = vpop.permute.xlu0 %1162
  %1164 = vrot.lane.b32.xlu0 %v78, 124
  %v1165 = vpop.permute.xlu0 %1164
  %1166 = vrot.lane.b32.xlu0 %v79, 124
  %v1167 = vpop.permute.xlu0 %1166
  %1168 = vrot.lane.b32.xlu0 %v80, 124
  %v1169 = vpop.permute.xlu0 %1168
  %1170 = vrot.lane.b32.xlu0 %v81, 124
  %v1171 = vpop.permute.xlu0 %1170
  %1172 = vrot.lane.b32.xlu0 %v82, 124
  %v1173 = vpop.permute.xlu0 %1172
  %v1184 = vsel %vm227, %v1131, 0
  %v1187 = vsel %vm227, %v1133, 0
  %v1190 = vsel %vm227, %v1135, 0
  %v1193 = vsel %vm227, %v1137, 0
  %v1196 = vsel %vm227, %v1139, 0
  %v1199 = vsel %vm227, %v1141, 0
  %v1202 = vsel %vm227, %v1143, 0
  %v1205 = vsel %vm227, %v1145, 0
  %v1208 = vsel %vm252, %v1173, 0
  %1210 = vmatprep.subr.bf16.mxu0 0
  %1211 = vmatpush1.bf16.msra.mxu0 %v1169
  %1212 = vmatprep.subr.bf16.mxu0 0
  %1213 = vmatpush1.bf16.msra.mxu0 %v1167
  %1214 = vmatprep.subr.bf16.mxu0 0
  %1215 = vmatpush1.bf16.msra.mxu0 %v1165
  %1216 = vmatprep.subr.bf16.mxu0 0
  %1217 = vmatpush1.bf16.msra.mxu0 %v1163
  %1218 = vmatprep.subr.bf16.mxu0 0
  %1219 = vmatpush1.bf16.msra.mxu0 %v1161
  %1220 = vmatprep.subr.bf16.mxu0 0
  %1221 = vmatpush1.bf16.msra.mxu0 %v1159
  %1222 = vmatprep.subr.bf16.mxu0 0
  %1223 = vmatpush1.bf16.msra.mxu0 %v1157
  %1224 = vmatprep.subr.bf16.mxu0 0
  %1225 = vmatpush1.bf16.msra.mxu0 %v1155
  %1226 = vmatprep.subr.bf16.mxu0 0
  %1227 = vmatpush2.bf16.msra.mxu0 0
  %1228 = vmatprep.subr.bf16.mxu0 0
  %1229 = vmatpush2.bf16.msra.mxu0 0
  %1230 = vmatprep.subr.bf16.mxu0 0
  %1231 = vmatpush2.bf16.msra.mxu0 0
  %1232 = vmatprep.subr.bf16.mxu0 0
  %1233 = vmatpush2.bf16.msra.mxu0 0
  %1234 = vmatprep.subr.bf16.mxu0 0
  %1235 = vmatpush2.bf16.msra.mxu0 0
  %1236 = vmatprep.subr.bf16.mxu0 0
  %1237 = vmatpush2.bf16.msra.mxu0 0
  %1238 = vmatprep.subr.bf16.mxu0 0
  %1239 = vmatpush2.bf16.msra.mxu0 %v1208
  %1240 = vmatprep.subr.bf16.mxu0 0
  %1241 = vmatpush2.bf16.msra.mxu0 %v1171
  %1242 = vmatprep.mubr.bf16.mxu0 %v1184
  %1243 = vmatmul.mubr.bf16.gmra.mxu0 %v1130
  %v1244 = vpop.f32.mrf.mxu0
  %v1245 = vadd.f32 0.0, %v1244
  %v1246 = vpop.f32.mrf.mxu0
  %v1247 = vpop.f32.mrf.mxu0
  %v1248 = vadd.f32 0.0, %v1247
  %v1249 = vpop.f32.mrf.mxu0
  %1250 = vmatprep.mubr.bf16.mxu0 %v1187
  %1251 = vmatmul.mubr.bf16.gmra.mxu0 %v1132
  %v1252 = vpop.f32.mrf.mxu0
  %v1253 = vadd.f32 0.0, %v1252
  %v1254 = vpop.f32.mrf.mxu0
  %v1255 = vpop.f32.mrf.mxu0
  %v1256 = vadd.f32 0.0, %v1255
  %v1257 = vpop.f32.mrf.mxu0
  %1258 = vmatprep.mubr.bf16.mxu0 %v1190
  %1259 = vmatmul.mubr.bf16.gmra.mxu0 %v1134
  %v1260 = vpop.f32.mrf.mxu0
  %v1261 = vadd.f32 0.0, %v1260
  %v1262 = vpop.f32.mrf.mxu0
  %v1263 = vpop.f32.mrf.mxu0
  %v1264 = vadd.f32 0.0, %v1263
  %v1265 = vpop.f32.mrf.mxu0
  %1266 = vmatprep.mubr.bf16.mxu0 %v1193
  %1267 = vmatmul.mubr.bf16.gmra.mxu0 %v1136
  %v1268 = vpop.f32.mrf.mxu0
  %v1269 = vadd.f32 0.0, %v1268
  %v1270 = vpop.f32.mrf.mxu0
  %v1271 = vpop.f32.mrf.mxu0
  %v1272 = vadd.f32 0.0, %v1271
  %v1273 = vpop.f32.mrf.mxu0
  %1274 = vmatprep.mubr.bf16.mxu0 %v1196
  %1275 = vmatmul.mubr.bf16.gmra.mxu0 %v1138
  %v1276 = vpop.f32.mrf.mxu0
  %v1277 = vadd.f32 0.0, %v1276
  %v1278 = vpop.f32.mrf.mxu0
  %v1279 = vpop.f32.mrf.mxu0
  %v1280 = vadd.f32 0.0, %v1279
  %v1281 = vpop.f32.mrf.mxu0
  %1282 = vmatprep.mubr.bf16.mxu0 %v1199
  %1283 = vmatmul.mubr.bf16.gmra.mxu0 %v1140
  %v1284 = vpop.f32.mrf.mxu0
  %v1285 = vadd.f32 0.0, %v1284
  %v1286 = vpop.f32.mrf.mxu0
  %v1287 = vpop.f32.mrf.mxu0
  %v1288 = vadd.f32 0.0, %v1287
  %v1289 = vpop.f32.mrf.mxu0
  %1290 = vmatprep.mubr.bf16.mxu0 %v1202
  %1291 = vmatmul.mubr.bf16.gmra.mxu0 %v1142
  %v1292 = vpop.f32.mrf.mxu0
  %v1293 = vadd.f32 0.0, %v1292
  %v1294 = vpop.f32.mrf.mxu0
  %v1295 = vpop.f32.mrf.mxu0
  %v1296 = vadd.f32 0.0, %v1295
  %v1297 = vpop.f32.mrf.mxu0
  %1298 = vmatprep.mubr.bf16.mxu0 %v1205
  %1299 = vmatmul.mubr.bf16.gmra.mxu0 %v1144
  %v1300 = vpop.f32.mrf.mxu0
  %v1301 = vadd.f32 0.0, %v1300
  %v1302 = vpop.f32.mrf.mxu0
  %v1303 = vpop.f32.mrf.mxu0
  %v1304 = vadd.f32 0.0, %v1303
  %v1305 = vpop.f32.mrf.mxu0
  %1306 = vdwg.mxu0
  %v1307 = vadd.f32 %v1049, %v1245
  %v1308 = vadd.f32 %v1050, %v1248
  %v1309 = vadd.f32 %v1051, %v1253
  %v1310 = vadd.f32 %v1052, %v1256
  %v1311 = vadd.f32 %v1053, %v1261
  %v1312 = vadd.f32 %v1054, %v1264
  %v1313 = vadd.f32 %v1055, %v1269
  %v1314 = vadd.f32 %v1056, %v1272
  %v1315 = vadd.f32 %v1057, %v1277
  %v1316 = vadd.f32 %v1058, %v1280
  %v1317 = vadd.f32 %v1059, %v1285
  %v1318 = vadd.f32 %v1060, %v1288
  %v1319 = vadd.f32 %v1061, %v1293
  %v1320 = vadd.f32 %v1062, %v1296
  %v1321 = vadd.f32 %v1063, %v1301
  %v1322 = vadd.f32 %v1064, %v1304
  %s1323 = scalar_lea.vmem %s1, 640
  %v1324 = vld [vmem:[%s1323] sm:$0xff]
  %v1325 = vld [vmem:[%s1323 + $0x8] sm:$0xff]
  %v1326 = vld [vmem:[%s1323 + $0x10] sm:$0xff]
  %v1327 = vld [vmem:[%s1323 + $0x18] sm:$0xff]
  %v1328 = vld [vmem:[%s1323 + $0x20] sm:$0xff]
  %v1329 = vld [vmem:[%s1323 + $0x28] sm:$0xff]
  %v1330 = vld [vmem:[%s1323 + $0x30] sm:$0xff]
  %v1331 = vld [vmem:[%s1323 + $0x38] sm:$0xff]
  %v1332 = vld [vmem:[%s1323 + $0x40] sm:$0xff]
  %v1333 = vld [vmem:[%s1323 + $0x48] sm:$0xff]
  %v1334 = vld [vmem:[%s1323 + $0x50] sm:$0xff]
  %v1335 = vld [vmem:[%s1323 + $0x58] sm:$0xff]
  %v1336 = vld [vmem:[%s1323 + $0x60] sm:$0xff]
  %v1337 = vld [vmem:[%s1323 + $0x68] sm:$0xff]
  %v1338 = vld [vmem:[%s1323 + $0x70] sm:$0xff]
  %v1339 = vld [vmem:[%s1323 + $0x78] sm:$0xff]
  %v1356 = vunpack.c.l.b16 %v1324
  %v1357 = vunpack.c.h.b16 %v1324
  %v1358 = vunpack.c.l.b16 %v1325
  %v1359 = vunpack.c.h.b16 %v1325
  %v1360 = vunpack.c.l.b16 %v1326
  %v1361 = vunpack.c.h.b16 %v1326
  %v1362 = vunpack.c.l.b16 %v1327
  %v1363 = vunpack.c.h.b16 %v1327
  %v1364 = vunpack.c.l.b16 %v1328
  %v1365 = vunpack.c.h.b16 %v1328
  %v1366 = vunpack.c.l.b16 %v1329
  %v1367 = vunpack.c.h.b16 %v1329
  %v1368 = vunpack.c.l.b16 %v1330
  %v1369 = vunpack.c.h.b16 %v1330
  %v1370 = vunpack.c.l.b16 %v1331
  %v1371 = vunpack.c.h.b16 %v1331
  %v1372 = vunpack.c.l.b16 %v1332
  %v1373 = vunpack.c.h.b16 %v1332
  %v1374 = vunpack.c.l.b16 %v1333
  %v1375 = vunpack.c.h.b16 %v1333
  %v1376 = vunpack.c.l.b16 %v1334
  %v1377 = vunpack.c.h.b16 %v1334
  %v1378 = vunpack.c.l.b16 %v1335
  %v1379 = vunpack.c.h.b16 %v1335
  %v1380 = vunpack.c.l.b16 %v1336
  %v1381 = vunpack.c.h.b16 %v1336
  %v1382 = vunpack.c.l.b16 %v1337
  %v1383 = vunpack.c.h.b16 %v1337
  %v1384 = vunpack.c.l.b16 %v1338
  %v1385 = vunpack.c.h.b16 %v1338
  %v1386 = vunpack.c.l.b16 %v1339
  %v1387 = vunpack.c.h.b16 %v1339
  %v1388 = vpack.c.b16 %v1358, %v1356
  %v1389 = vpack.c.b16 %v1359, %v1357
  %v1390 = vpack.c.b16 %v1362, %v1360
  %v1391 = vpack.c.b16 %v1363, %v1361
  %v1392 = vpack.c.b16 %v1366, %v1364
  %v1393 = vpack.c.b16 %v1367, %v1365
  %v1394 = vpack.c.b16 %v1370, %v1368
  %v1395 = vpack.c.b16 %v1371, %v1369
  %v1396 = vpack.c.b16 %v1374, %v1372
  %v1397 = vpack.c.b16 %v1375, %v1373
  %v1398 = vpack.c.b16 %v1378, %v1376
  %v1399 = vpack.c.b16 %v1379, %v1377
  %v1400 = vpack.c.b16 %v1382, %v1380
  %v1401 = vpack.c.b16 %v1383, %v1381
  %v1402 = vpack.c.b16 %v1386, %v1384
  %v1403 = vpack.c.b16 %v1387, %v1385
  %1412 = vrot.lane.b32.xlu0 %v73, 123
  %v1413 = vpop.permute.xlu0 %1412
  %1414 = vrot.lane.b32.xlu0 %v74, 123
  %v1415 = vpop.permute.xlu0 %1414
  %1416 = vrot.lane.b32.xlu0 %v75, 123
  %v1417 = vpop.permute.xlu0 %1416
  %1418 = vrot.lane.b32.xlu0 %v76, 123
  %v1419 = vpop.permute.xlu0 %1418
  %1420 = vrot.lane.b32.xlu0 %v77, 123
  %v1421 = vpop.permute.xlu0 %1420
  %1422 = vrot.lane.b32.xlu0 %v78, 123
  %v1423 = vpop.permute.xlu0 %1422
  %1424 = vrot.lane.b32.xlu0 %v79, 123
  %v1425 = vpop.permute.xlu0 %1424
  %1426 = vrot.lane.b32.xlu0 %v80, 123
  %v1427 = vpop.permute.xlu0 %1426
  %1428 = vrot.lane.b32.xlu0 %v81, 123
  %v1429 = vpop.permute.xlu0 %1428
  %1430 = vrot.lane.b32.xlu0 %v82, 123
  %v1431 = vpop.permute.xlu0 %1430
  %v1442 = vsel %vm227, %v1389, 0
  %v1445 = vsel %vm227, %v1391, 0
  %v1448 = vsel %vm227, %v1393, 0
  %v1451 = vsel %vm227, %v1395, 0
  %v1454 = vsel %vm227, %v1397, 0
  %v1457 = vsel %vm227, %v1399, 0
  %v1460 = vsel %vm227, %v1401, 0
  %v1463 = vsel %vm227, %v1403, 0
  %v1466 = vsel %vm252, %v1431, 0
  %1468 = vmatprep.subr.bf16.mxu0 0
  %1469 = vmatpush1.bf16.msra.mxu0 %v1427
  %1470 = vmatprep.subr.bf16.mxu0 0
  %1471 = vmatpush1.bf16.msra.mxu0 %v1425
  %1472 = vmatprep.subr.bf16.mxu0 0
  %1473 = vmatpush1.bf16.msra.mxu0 %v1423
  %1474 = vmatprep.subr.bf16.mxu0 0
  %1475 = vmatpush1.bf16.msra.mxu0 %v1421
  %1476 = vmatprep.subr.bf16.mxu0 0
  %1477 = vmatpush1.bf16.msra.mxu0 %v1419
  %1478 = vmatprep.subr.bf16.mxu0 0
  %1479 = vmatpush1.bf16.msra.mxu0 %v1417
  %1480 = vmatprep.subr.bf16.mxu0 0
  %1481 = vmatpush1.bf16.msra.mxu0 %v1415
  %1482 = vmatprep.subr.bf16.mxu0 0
  %1483 = vmatpush1.bf16.msra.mxu0 %v1413
  %1484 = vmatprep.subr.bf16.mxu0 0
  %1485 = vmatpush2.bf16.msra.mxu0 0
  %1486 = vmatprep.subr.bf16.mxu0 0
  %1487 = vmatpush2.bf16.msra.mxu0 0
  %1488 = vmatprep.subr.bf16.mxu0 0
  %1489 = vmatpush2.bf16.msra.mxu0 0
  %1490 = vmatprep.subr.bf16.mxu0 0
  %1491 = vmatpush2.bf16.msra.mxu0 0
  %1492 = vmatprep.subr.bf16.mxu0 0
  %1493 = vmatpush2.bf16.msra.mxu0 0
  %1494 = vmatprep.subr.bf16.mxu0 0
  %1495 = vmatpush2.bf16.msra.mxu0 0
  %1496 = vmatprep.subr.bf16.mxu0 0
  %1497 = vmatpush2.bf16.msra.mxu0 %v1466
  %1498 = vmatprep.subr.bf16.mxu0 0
  %1499 = vmatpush2.bf16.msra.mxu0 %v1429
  %1500 = vmatprep.mubr.bf16.mxu0 %v1442
  %1501 = vmatmul.mubr.bf16.gmra.mxu0 %v1388
  %v1502 = vpop.f32.mrf.mxu0
  %v1503 = vadd.f32 0.0, %v1502
  %v1504 = vpop.f32.mrf.mxu0
  %v1505 = vpop.f32.mrf.mxu0
  %v1506 = vadd.f32 0.0, %v1505
  %v1507 = vpop.f32.mrf.mxu0
  %1508 = vmatprep.mubr.bf16.mxu0 %v1445
  %1509 = vmatmul.mubr.bf16.gmra.mxu0 %v1390
  %v1510 = vpop.f32.mrf.mxu0
  %v1511 = vadd.f32 0.0, %v1510
  %v1512 = vpop.f32.mrf.mxu0
  %v1513 = vpop.f32.mrf.mxu0
  %v1514 = vadd.f32 0.0, %v1513
  %v1515 = vpop.f32.mrf.mxu0
  %1516 = vmatprep.mubr.bf16.mxu0 %v1448
  %1517 = vmatmul.mubr.bf16.gmra.mxu0 %v1392
  %v1518 = vpop.f32.mrf.mxu0
  %v1519 = vadd.f32 0.0, %v1518
  %v1520 = vpop.f32.mrf.mxu0
  %v1521 = vpop.f32.mrf.mxu0
  %v1522 = vadd.f32 0.0, %v1521
  %v1523 = vpop.f32.mrf.mxu0
  %1524 = vmatprep.mubr.bf16.mxu0 %v1451
  %1525 = vmatmul.mubr.bf16.gmra.mxu0 %v1394
  %v1526 = vpop.f32.mrf.mxu0
  %v1527 = vadd.f32 0.0, %v1526
  %v1528 = vpop.f32.mrf.mxu0
  %v1529 = vpop.f32.mrf.mxu0
  %v1530 = vadd.f32 0.0, %v1529
  %v1531 = vpop.f32.mrf.mxu0
  %1532 = vmatprep.mubr.bf16.mxu0 %v1454
  %1533 = vmatmul.mubr.bf16.gmra.mxu0 %v1396
  %v1534 = vpop.f32.mrf.mxu0
  %v1535 = vadd.f32 0.0, %v1534
  %v1536 = vpop.f32.mrf.mxu0
  %v1537 = vpop.f32.mrf.mxu0
  %v1538 = vadd.f32 0.0, %v1537
  %v1539 = vpop.f32.mrf.mxu0
  %1540 = vmatprep.mubr.bf16.mxu0 %v1457
  %1541 = vmatmul.mubr.bf16.gmra.mxu0 %v1398
  %v1542 = vpop.f32.mrf.mxu0
  %v1543 = vadd.f32 0.0, %v1542
  %v1544 = vpop.f32.mrf.mxu0
  %v1545 = vpop.f32.mrf.mxu0
  %v1546 = vadd.f32 0.0, %v1545
  %v1547 = vpop.f32.mrf.mxu0
  %1548 = vmatprep.mubr.bf16.mxu0 %v1460
  %1549 = vmatmul.mubr.bf16.gmra.mxu0 %v1400
  %v1550 = vpop.f32.mrf.mxu0
  %v1551 = vadd.f32 0.0, %v1550
  %v1552 = vpop.f32.mrf.mxu0
  %v1553 = vpop.f32.mrf.mxu0
  %v1554 = vadd.f32 0.0, %v1553
  %v1555 = vpop.f32.mrf.mxu0
  %1556 = vmatprep.mubr.bf16.mxu0 %v1463
  %1557 = vmatmul.mubr.bf16.gmra.mxu0 %v1402
  %v1558 = vpop.f32.mrf.mxu0
  %v1559 = vadd.f32 0.0, %v1558
  %v1560 = vpop.f32.mrf.mxu0
  %v1561 = vpop.f32.mrf.mxu0
  %v1562 = vadd.f32 0.0, %v1561
  %v1563 = vpop.f32.mrf.mxu0
  %1564 = vdwg.mxu0
  %v1565 = vadd.f32 %v1307, %v1503
  %v1566 = vadd.f32 %v1308, %v1506
  %v1567 = vadd.f32 %v1309, %v1511
  %v1568 = vadd.f32 %v1310, %v1514
  %v1569 = vadd.f32 %v1311, %v1519
  %v1570 = vadd.f32 %v1312, %v1522
  %v1571 = vadd.f32 %v1313, %v1527
  %v1572 = vadd.f32 %v1314, %v1530
  %v1573 = vadd.f32 %v1315, %v1535
  %v1574 = vadd.f32 %v1316, %v1538
  %v1575 = vadd.f32 %v1317, %v1543
  %v1576 = vadd.f32 %v1318, %v1546
  %v1577 = vadd.f32 %v1319, %v1551
  %v1578 = vadd.f32 %v1320, %v1554
  %v1579 = vadd.f32 %v1321, %v1559
  %v1580 = vadd.f32 %v1322, %v1562
  %s1581 = scalar_lea.vmem %s1, 768
  %v1582 = vld [vmem:[%s1581] sm:$0xff]
  %v1583 = vld [vmem:[%s1581 + $0x8] sm:$0xff]
  %v1584 = vld [vmem:[%s1581 + $0x10] sm:$0xff]
  %v1585 = vld [vmem:[%s1581 + $0x18] sm:$0xff]
  %v1586 = vld [vmem:[%s1581 + $0x20] sm:$0xff]
  %v1587 = vld [vmem:[%s1581 + $0x28] sm:$0xff]
  %v1588 = vld [vmem:[%s1581 + $0x30] sm:$0xff]
  %v1589 = vld [vmem:[%s1581 + $0x38] sm:$0xff]
  %v1590 = vld [vmem:[%s1581 + $0x40] sm:$0xff]
  %v1591 = vld [vmem:[%s1581 + $0x48] sm:$0xff]
  %v1592 = vld [vmem:[%s1581 + $0x50] sm:$0xff]
  %v1593 = vld [vmem:[%s1581 + $0x58] sm:$0xff]
  %v1594 = vld [vmem:[%s1581 + $0x60] sm:$0xff]
  %v1595 = vld [vmem:[%s1581 + $0x68] sm:$0xff]
  %v1596 = vld [vmem:[%s1581 + $0x70] sm:$0xff]
  %v1597 = vld [vmem:[%s1581 + $0x78] sm:$0xff]
  %v1614 = vunpack.c.l.b16 %v1582
  %v1615 = vunpack.c.h.b16 %v1582
  %v1616 = vunpack.c.l.b16 %v1583
  %v1617 = vunpack.c.h.b16 %v1583
  %v1618 = vunpack.c.l.b16 %v1584
  %v1619 = vunpack.c.h.b16 %v1584
  %v1620 = vunpack.c.l.b16 %v1585
  %v1621 = vunpack.c.h.b16 %v1585
  %v1622 = vunpack.c.l.b16 %v1586
  %v1623 = vunpack.c.h.b16 %v1586
  %v1624 = vunpack.c.l.b16 %v1587
  %v1625 = vunpack.c.h.b16 %v1587
  %v1626 = vunpack.c.l.b16 %v1588
  %v1627 = vunpack.c.h.b16 %v1588
  %v1628 = vunpack.c.l.b16 %v1589
  %v1629 = vunpack.c.h.b16 %v1589
  %v1630 = vunpack.c.l.b16 %v1590
  %v1631 = vunpack.c.h.b16 %v1590
  %v1632 = vunpack.c.l.b16 %v1591
  %v1633 = vunpack.c.h.b16 %v1591
  %v1634 = vunpack.c.l.b16 %v1592
  %v1635 = vunpack.c.h.b16 %v1592
  %v1636 = vunpack.c.l.b16 %v1593
  %v1637 = vunpack.c.h.b16 %v1593
  %v1638 = vunpack.c.l.b16 %v1594
  %v1639 = vunpack.c.h.b16 %v1594
  %v1640 = vunpack.c.l.b16 %v1595
  %v1641 = vunpack.c.h.b16 %v1595
  %v1642 = vunpack.c.l.b16 %v1596
  %v1643 = vunpack.c.h.b16 %v1596
  %v1644 = vunpack.c.l.b16 %v1597
  %v1645 = vunpack.c.h.b16 %v1597
  %v1646 = vpack.c.b16 %v1616, %v1614
  %v1647 = vpack.c.b16 %v1617, %v1615
  %v1648 = vpack.c.b16 %v1620, %v1618
  %v1649 = vpack.c.b16 %v1621, %v1619
  %v1650 = vpack.c.b16 %v1624, %v1622
  %v1651 = vpack.c.b16 %v1625, %v1623
  %v1652 = vpack.c.b16 %v1628, %v1626
  %v1653 = vpack.c.b16 %v1629, %v1627
  %v1654 = vpack.c.b16 %v1632, %v1630
  %v1655 = vpack.c.b16 %v1633, %v1631
  %v1656 = vpack.c.b16 %v1636, %v1634
  %v1657 = vpack.c.b16 %v1637, %v1635
  %v1658 = vpack.c.b16 %v1640, %v1638
  %v1659 = vpack.c.b16 %v1641, %v1639
  %v1660 = vpack.c.b16 %v1644, %v1642
  %v1661 = vpack.c.b16 %v1645, %v1643
  %1670 = vrot.lane.b32.xlu0 %v73, 122
  %v1671 = vpop.permute.xlu0 %1670
  %1672 = vrot.lane.b32.xlu0 %v74, 122
  %v1673 = vpop.permute.xlu0 %1672
  %1674 = vrot.lane.b32.xlu0 %v75, 122
  %v1675 = vpop.permute.xlu0 %1674
  %1676 = vrot.lane.b32.xlu0 %v76, 122
  %v1677 = vpop.permute.xlu0 %1676
  %1678 = vrot.lane.b32.xlu0 %v77, 122
  %v1679 = vpop.permute.xlu0 %1678
  %1680 = vrot.lane.b32.xlu0 %v78, 122
  %v1681 = vpop.permute.xlu0 %1680
  %1682 = vrot.lane.b32.xlu0 %v79, 122
  %v1683 = vpop.permute.xlu0 %1682
  %1684 = vrot.lane.b32.xlu0 %v80, 122
  %v1685 = vpop.permute.xlu0 %1684
  %1686 = vrot.lane.b32.xlu0 %v81, 122
  %v1687 = vpop.permute.xlu0 %1686
  %1688 = vrot.lane.b32.xlu0 %v82, 122
  %v1689 = vpop.permute.xlu0 %1688
  %v1700 = vsel %vm227, %v1647, 0
  %v1703 = vsel %vm227, %v1649, 0
  %v1706 = vsel %vm227, %v1651, 0
  %v1709 = vsel %vm227, %v1653, 0
  %v1712 = vsel %vm227, %v1655, 0
  %v1715 = vsel %vm227, %v1657, 0
  %v1718 = vsel %vm227, %v1659, 0
  %v1721 = vsel %vm227, %v1661, 0
  %v1724 = vsel %vm252, %v1689, 0
  %1726 = vmatprep.subr.bf16.mxu0 0
  %1727 = vmatpush1.bf16.msra.mxu0 %v1685
  %1728 = vmatprep.subr.bf16.mxu0 0
  %1729 = vmatpush1.bf16.msra.mxu0 %v1683
  %1730 = vmatprep.subr.bf16.mxu0 0
  %1731 = vmatpush1.bf16.msra.mxu0 %v1681
  %1732 = vmatprep.subr.bf16.mxu0 0
  %1733 = vmatpush1.bf16.msra.mxu0 %v1679
  %1734 = vmatprep.subr.bf16.mxu0 0
  %1735 = vmatpush1.bf16.msra.mxu0 %v1677
  %1736 = vmatprep.subr.bf16.mxu0 0
  %1737 = vmatpush1.bf16.msra.mxu0 %v1675
  %1738 = vmatprep.subr.bf16.mxu0 0
  %1739 = vmatpush1.bf16.msra.mxu0 %v1673
  %1740 = vmatprep.subr.bf16.mxu0 0
  %1741 = vmatpush1.bf16.msra.mxu0 %v1671
  %1742 = vmatprep.subr.bf16.mxu0 0
  %1743 = vmatpush2.bf16.msra.mxu0 0
  %1744 = vmatprep.subr.bf16.mxu0 0
  %1745 = vmatpush2.bf16.msra.mxu0 0
  %1746 = vmatprep.subr.bf16.mxu0 0
  %1747 = vmatpush2.bf16.msra.mxu0 0
  %1748 = vmatprep.subr.bf16.mxu0 0
  %1749 = vmatpush2.bf16.msra.mxu0 0
  %1750 = vmatprep.subr.bf16.mxu0 0
  %1751 = vmatpush2.bf16.msra.mxu0 0
  %1752 = vmatprep.subr.bf16.mxu0 0
  %1753 = vmatpush2.bf16.msra.mxu0 0
  %1754 = vmatprep.subr.bf16.mxu0 0
  %1755 = vmatpush2.bf16.msra.mxu0 %v1724
  %1756 = vmatprep.subr.bf16.mxu0 0
  %1757 = vmatpush2.bf16.msra.mxu0 %v1687
  %1758 = vmatprep.mubr.bf16.mxu0 %v1700
  %1759 = vmatmul.mubr.bf16.gmra.mxu0 %v1646
  %v1760 = vpop.f32.mrf.mxu0
  %v1761 = vadd.f32 0.0, %v1760
  %v1762 = vpop.f32.mrf.mxu0
  %v1763 = vpop.f32.mrf.mxu0
  %v1764 = vadd.f32 0.0, %v1763
  %v1765 = vpop.f32.mrf.mxu0
  %1766 = vmatprep.mubr.bf16.mxu0 %v1703
  %1767 = vmatmul.mubr.bf16.gmra.mxu0 %v1648
  %v1768 = vpop.f32.mrf.mxu0
  %v1769 = vadd.f32 0.0, %v1768
  %v1770 = vpop.f32.mrf.mxu0
  %v1771 = vpop.f32.mrf.mxu0
  %v1772 = vadd.f32 0.0, %v1771
  %v1773 = vpop.f32.mrf.mxu0
  %1774 = vmatprep.mubr.bf16.mxu0 %v1706
  %1775 = vmatmul.mubr.bf16.gmra.mxu0 %v1650
  %v1776 = vpop.f32.mrf.mxu0
  %v1777 = vadd.f32 0.0, %v1776
  %v1778 = vpop.f32.mrf.mxu0
  %v1779 = vpop.f32.mrf.mxu0
  %v1780 = vadd.f32 0.0, %v1779
  %v1781 = vpop.f32.mrf.mxu0
  %1782 = vmatprep.mubr.bf16.mxu0 %v1709
  %1783 = vmatmul.mubr.bf16.gmra.mxu0 %v1652
  %v1784 = vpop.f32.mrf.mxu0
  %v1785 = vadd.f32 0.0, %v1784
  %v1786 = vpop.f32.mrf.mxu0
  %v1787 = vpop.f32.mrf.mxu0
  %v1788 = vadd.f32 0.0, %v1787
  %v1789 = vpop.f32.mrf.mxu0
  %1790 = vmatprep.mubr.bf16.mxu0 %v1712
  %1791 = vmatmul.mubr.bf16.gmra.mxu0 %v1654
  %v1792 = vpop.f32.mrf.mxu0
  %v1793 = vadd.f32 0.0, %v1792
  %v1794 = vpop.f32.mrf.mxu0
  %v1795 = vpop.f32.mrf.mxu0
  %v1796 = vadd.f32 0.0, %v1795
  %v1797 = vpop.f32.mrf.mxu0
  %1798 = vmatprep.mubr.bf16.mxu0 %v1715
  %1799 = vmatmul.mubr.bf16.gmra.mxu0 %v1656
  %v1800 = vpop.f32.mrf.mxu0
  %v1801 = vadd.f32 0.0, %v1800
  %v1802 = vpop.f32.mrf.mxu0
  %v1803 = vpop.f32.mrf.mxu0
  %v1804 = vadd.f32 0.0, %v1803
  %v1805 = vpop.f32.mrf.mxu0
  %1806 = vmatprep.mubr.bf16.mxu0 %v1718
  %1807 = vmatmul.mubr.bf16.gmra.mxu0 %v1658
  %v1808 = vpop.f32.mrf.mxu0
  %v1809 = vadd.f32 0.0, %v1808
  %v1810 = vpop.f32.mrf.mxu0
  %v1811 = vpop.f32.mrf.mxu0
  %v1812 = vadd.f32 0.0, %v1811
  %v1813 = vpop.f32.mrf.mxu0
  %1814 = vmatprep.mubr.bf16.mxu0 %v1721
  %1815 = vmatmul.mubr.bf16.gmra.mxu0 %v1660
  %v1816 = vpop.f32.mrf.mxu0
  %v1817 = vadd.f32 0.0, %v1816
  %v1818 = vpop.f32.mrf.mxu0
  %v1819 = vpop.f32.mrf.mxu0
  %v1820 = vadd.f32 0.0, %v1819
  %v1821 = vpop.f32.mrf.mxu0
  %1822 = vdwg.mxu0
  %v1823 = vadd.f32 %v1565, %v1761
  %v1824 = vadd.f32 %v1566, %v1764
  %v1825 = vadd.f32 %v1567, %v1769
  %v1826 = vadd.f32 %v1568, %v1772
  %v1827 = vadd.f32 %v1569, %v1777
  %v1828 = vadd.f32 %v1570, %v1780
  %v1829 = vadd.f32 %v1571, %v1785
  %v1830 = vadd.f32 %v1572, %v1788
  %v1831 = vadd.f32 %v1573, %v1793
  %v1832 = vadd.f32 %v1574, %v1796
  %v1833 = vadd.f32 %v1575, %v1801
  %v1834 = vadd.f32 %v1576, %v1804
  %v1835 = vadd.f32 %v1577, %v1809
  %v1836 = vadd.f32 %v1578, %v1812
  %v1837 = vadd.f32 %v1579, %v1817
  %v1838 = vadd.f32 %v1580, %v1820
  %s1839 = scalar_lea.vmem %s1, 896
  %v1840 = vld [vmem:[%s1839] sm:$0xff]
  %v1841 = vld [vmem:[%s1839 + $0x8] sm:$0xff]
  %v1842 = vld [vmem:[%s1839 + $0x10] sm:$0xff]
  %v1843 = vld [vmem:[%s1839 + $0x18] sm:$0xff]
  %v1844 = vld [vmem:[%s1839 + $0x20] sm:$0xff]
  %v1845 = vld [vmem:[%s1839 + $0x28] sm:$0xff]
  %v1846 = vld [vmem:[%s1839 + $0x30] sm:$0xff]
  %v1847 = vld [vmem:[%s1839 + $0x38] sm:$0xff]
  %v1848 = vld [vmem:[%s1839 + $0x40] sm:$0xff]
  %v1849 = vld [vmem:[%s1839 + $0x48] sm:$0xff]
  %v1850 = vld [vmem:[%s1839 + $0x50] sm:$0xff]
  %v1851 = vld [vmem:[%s1839 + $0x58] sm:$0xff]
  %v1852 = vld [vmem:[%s1839 + $0x60] sm:$0xff]
  %v1853 = vld [vmem:[%s1839 + $0x68] sm:$0xff]
  %v1854 = vld [vmem:[%s1839 + $0x70] sm:$0xff]
  %v1855 = vld [vmem:[%s1839 + $0x78] sm:$0xff]
  %v1872 = vunpack.c.l.b16 %v1840
  %v1873 = vunpack.c.h.b16 %v1840
  %v1874 = vunpack.c.l.b16 %v1841
  %v1875 = vunpack.c.h.b16 %v1841
  %v1876 = vunpack.c.l.b16 %v1842
  %v1877 = vunpack.c.h.b16 %v1842
  %v1878 = vunpack.c.l.b16 %v1843
  %v1879 = vunpack.c.h.b16 %v1843
  %v1880 = vunpack.c.l.b16 %v1844
  %v1881 = vunpack.c.h.b16 %v1844
  %v1882 = vunpack.c.l.b16 %v1845
  %v1883 = vunpack.c.h.b16 %v1845
  %v1884 = vunpack.c.l.b16 %v1846
  %v1885 = vunpack.c.h.b16 %v1846
  %v1886 = vunpack.c.l.b16 %v1847
  %v1887 = vunpack.c.h.b16 %v1847
  %v1888 = vunpack.c.l.b16 %v1848
  %v1889 = vunpack.c.h.b16 %v1848
  %v1890 = vunpack.c.l.b16 %v1849
  %v1891 = vunpack.c.h.b16 %v1849
  %v1892 = vunpack.c.l.b16 %v1850
  %v1893 = vunpack.c.h.b16 %v1850
  %v1894 = vunpack.c.l.b16 %v1851
  %v1895 = vunpack.c.h.b16 %v1851
  %v1896 = vunpack.c.l.b16 %v1852
  %v1897 = vunpack.c.h.b16 %v1852
  %v1898 = vunpack.c.l.b16 %v1853
  %v1899 = vunpack.c.h.b16 %v1853
  %v1900 = vunpack.c.l.b16 %v1854
  %v1901 = vunpack.c.h.b16 %v1854
  %v1902 = vunpack.c.l.b16 %v1855
  %v1903 = vunpack.c.h.b16 %v1855
  %v1904 = vpack.c.b16 %v1874, %v1872
  %v1905 = vpack.c.b16 %v1875, %v1873
  %v1906 = vpack.c.b16 %v1878, %v1876
  %v1907 = vpack.c.b16 %v1879, %v1877
  %v1908 = vpack.c.b16 %v1882, %v1880
  %v1909 = vpack.c.b16 %v1883, %v1881
  %v1910 = vpack.c.b16 %v1886, %v1884
  %v1911 = vpack.c.b16 %v1887, %v1885
  %v1912 = vpack.c.b16 %v1890, %v1888
  %v1913 = vpack.c.b16 %v1891, %v1889
  %v1914 = vpack.c.b16 %v1894, %v1892
  %v1915 = vpack.c.b16 %v1895, %v1893
  %v1916 = vpack.c.b16 %v1898, %v1896
  %v1917 = vpack.c.b16 %v1899, %v1897
  %v1918 = vpack.c.b16 %v1902, %v1900
  %v1919 = vpack.c.b16 %v1903, %v1901
  %1928 = vrot.lane.b32.xlu0 %v73, 121
  %v1929 = vpop.permute.xlu0 %1928
  %1930 = vrot.lane.b32.xlu0 %v74, 121
  %v1931 = vpop.permute.xlu0 %1930
  %1932 = vrot.lane.b32.xlu0 %v75, 121
  %v1933 = vpop.permute.xlu0 %1932
  %1934 = vrot.lane.b32.xlu0 %v76, 121
  %v1935 = vpop.permute.xlu0 %1934
  %1936 = vrot.lane.b32.xlu0 %v77, 121
  %v1937 = vpop.permute.xlu0 %1936
  %1938 = vrot.lane.b32.xlu0 %v78, 121
  %v1939 = vpop.permute.xlu0 %1938
  %1940 = vrot.lane.b32.xlu0 %v79, 121
  %v1941 = vpop.permute.xlu0 %1940
  %1942 = vrot.lane.b32.xlu0 %v80, 121
  %v1943 = vpop.permute.xlu0 %1942
  %1944 = vrot.lane.b32.xlu0 %v81, 121
  %v1945 = vpop.permute.xlu0 %1944
  %1946 = vrot.lane.b32.xlu0 %v82, 121
  %v1947 = vpop.permute.xlu0 %1946
  %v1958 = vsel %vm227, %v1905, 0
  %v1961 = vsel %vm227, %v1907, 0
  %v1964 = vsel %vm227, %v1909, 0
  %v1967 = vsel %vm227, %v1911, 0
  %v1970 = vsel %vm227, %v1913, 0
  %v1973 = vsel %vm227, %v1915, 0
  %v1976 = vsel %vm227, %v1917, 0
  %v1979 = vsel %vm227, %v1919, 0
  %v1982 = vsel %vm252, %v1947, 0
  %1984 = vmatprep.subr.bf16.mxu0 0
  %1985 = vmatpush1.bf16.msra.mxu0 %v1943
  %1986 = vmatprep.subr.bf16.mxu0 0
  %1987 = vmatpush1.bf16.msra.mxu0 %v1941
  %1988 = vmatprep.subr.bf16.mxu0 0
  %1989 = vmatpush1.bf16.msra.mxu0 %v1939
  %1990 = vmatprep.subr.bf16.mxu0 0
  %1991 = vmatpush1.bf16.msra.mxu0 %v1937
  %1992 = vmatprep.subr.bf16.mxu0 0
  %1993 = vmatpush1.bf16.msra.mxu0 %v1935
  %1994 = vmatprep.subr.bf16.mxu0 0
  %1995 = vmatpush1.bf16.msra.mxu0 %v1933
  %1996 = vmatprep.subr.bf16.mxu0 0
  %1997 = vmatpush1.bf16.msra.mxu0 %v1931
  %1998 = vmatprep.subr.bf16.mxu0 0
  %1999 = vmatpush1.bf16.msra.mxu0 %v1929
  %2000 = vmatprep.subr.bf16.mxu0 0
  %2001 = vmatpush2.bf16.msra.mxu0 0
  %2002 = vmatprep.subr.bf16.mxu0 0
  %2003 = vmatpush2.bf16.msra.mxu0 0
  %2004 = vmatprep.subr.bf16.mxu0 0
  %2005 = vmatpush2.bf16.msra.mxu0 0
  %2006 = vmatprep.subr.bf16.mxu0 0
  %2007 = vmatpush2.bf16.msra.mxu0 0
  %2008 = vmatprep.subr.bf16.mxu0 0
  %2009 = vmatpush2.bf16.msra.mxu0 0
  %2010 = vmatprep.subr.bf16.mxu0 0
  %2011 = vmatpush2.bf16.msra.mxu0 0
  %2012 = vmatprep.subr.bf16.mxu0 0
  %2013 = vmatpush2.bf16.msra.mxu0 %v1982
  %2014 = vmatprep.subr.bf16.mxu0 0
  %2015 = vmatpush2.bf16.msra.mxu0 %v1945
  %2016 = vmatprep.mubr.bf16.mxu0 %v1958
  %2017 = vmatmul.mubr.bf16.gmra.mxu0 %v1904
  %v2018 = vpop.f32.mrf.mxu0
  %v2019 = vadd.f32 0.0, %v2018
  %v2020 = vpop.f32.mrf.mxu0
  %v2021 = vpop.f32.mrf.mxu0
  %v2022 = vadd.f32 0.0, %v2021
  %v2023 = vpop.f32.mrf.mxu0
  %2024 = vmatprep.mubr.bf16.mxu0 %v1961
  %2025 = vmatmul.mubr.bf16.gmra.mxu0 %v1906
  %v2026 = vpop.f32.mrf.mxu0
  %v2027 = vadd.f32 0.0, %v2026
  %v2028 = vpop.f32.mrf.mxu0
  %v2029 = vpop.f32.mrf.mxu0
  %v2030 = vadd.f32 0.0, %v2029
  %v2031 = vpop.f32.mrf.mxu0
  %2032 = vmatprep.mubr.bf16.mxu0 %v1964
  %2033 = vmatmul.mubr.bf16.gmra.mxu0 %v1908
  %v2034 = vpop.f32.mrf.mxu0
  %v2035 = vadd.f32 0.0, %v2034
  %v2036 = vpop.f32.mrf.mxu0
  %v2037 = vpop.f32.mrf.mxu0
  %v2038 = vadd.f32 0.0, %v2037
  %v2039 = vpop.f32.mrf.mxu0
  %2040 = vmatprep.mubr.bf16.mxu0 %v1967
  %2041 = vmatmul.mubr.bf16.gmra.mxu0 %v1910
  %v2042 = vpop.f32.mrf.mxu0
  %v2043 = vadd.f32 0.0, %v2042
  %v2044 = vpop.f32.mrf.mxu0
  %v2045 = vpop.f32.mrf.mxu0
  %v2046 = vadd.f32 0.0, %v2045
  %v2047 = vpop.f32.mrf.mxu0
  %2048 = vmatprep.mubr.bf16.mxu0 %v1970
  %2049 = vmatmul.mubr.bf16.gmra.mxu0 %v1912
  %v2050 = vpop.f32.mrf.mxu0
  %v2051 = vadd.f32 0.0, %v2050
  %v2052 = vpop.f32.mrf.mxu0
  %v2053 = vpop.f32.mrf.mxu0
  %v2054 = vadd.f32 0.0, %v2053
  %v2055 = vpop.f32.mrf.mxu0
  %2056 = vmatprep.mubr.bf16.mxu0 %v1973
  %2057 = vmatmul.mubr.bf16.gmra.mxu0 %v1914
  %v2058 = vpop.f32.mrf.mxu0
  %v2059 = vadd.f32 0.0, %v2058
  %v2060 = vpop.f32.mrf.mxu0
  %v2061 = vpop.f32.mrf.mxu0
  %v2062 = vadd.f32 0.0, %v2061
  %v2063 = vpop.f32.mrf.mxu0
  %2064 = vmatprep.mubr.bf16.mxu0 %v1976
  %2065 = vmatmul.mubr.bf16.gmra.mxu0 %v1916
  %v2066 = vpop.f32.mrf.mxu0
  %v2067 = vadd.f32 0.0, %v2066
  %v2068 = vpop.f32.mrf.mxu0
  %v2069 = vpop.f32.mrf.mxu0
  %v2070 = vadd.f32 0.0, %v2069
  %v2071 = vpop.f32.mrf.mxu0
  %2072 = vmatprep.mubr.bf16.mxu0 %v1979
  %2073 = vmatmul.mubr.bf16.gmra.mxu0 %v1918
  %v2074 = vpop.f32.mrf.mxu0
  %v2075 = vadd.f32 0.0, %v2074
  %v2076 = vpop.f32.mrf.mxu0
  %v2077 = vpop.f32.mrf.mxu0
  %v2078 = vadd.f32 0.0, %v2077
  %v2079 = vpop.f32.mrf.mxu0
  %2080 = vdwg.mxu0
  %v2081 = vadd.f32 %v1823, %v2019
  %v2082 = vadd.f32 %v1824, %v2022
  %v2083 = vadd.f32 %v1825, %v2027
  %v2084 = vadd.f32 %v1826, %v2030
  %v2085 = vadd.f32 %v1827, %v2035
  %v2086 = vadd.f32 %v1828, %v2038
  %v2087 = vadd.f32 %v1829, %v2043
  %v2088 = vadd.f32 %v1830, %v2046
  %v2089 = vadd.f32 %v1831, %v2051
  %v2090 = vadd.f32 %v1832, %v2054
  %v2091 = vadd.f32 %v1833, %v2059
  %v2092 = vadd.f32 %v1834, %v2062
  %v2093 = vadd.f32 %v1835, %v2067
  %v2094 = vadd.f32 %v1836, %v2070
  %v2095 = vadd.f32 %v1837, %v2075
  %v2096 = vadd.f32 %v1838, %v2078
  %s2097 = scalar_lea.vmem %s1, 1024
  %v2098 = vld [vmem:[%s2097] sm:$0xff]
  %v2099 = vld [vmem:[%s2097 + $0x8] sm:$0xff]
  %v2100 = vld [vmem:[%s2097 + $0x10] sm:$0xff]
  %v2101 = vld [vmem:[%s2097 + $0x18] sm:$0xff]
  %v2102 = vld [vmem:[%s2097 + $0x20] sm:$0xff]
  %v2103 = vld [vmem:[%s2097 + $0x28] sm:$0xff]
  %v2104 = vld [vmem:[%s2097 + $0x30] sm:$0xff]
  %v2105 = vld [vmem:[%s2097 + $0x38] sm:$0xff]
  %v2106 = vld [vmem:[%s2097 + $0x40] sm:$0xff]
  %v2107 = vld [vmem:[%s2097 + $0x48] sm:$0xff]
  %v2108 = vld [vmem:[%s2097 + $0x50] sm:$0xff]
  %v2109 = vld [vmem:[%s2097 + $0x58] sm:$0xff]
  %v2110 = vld [vmem:[%s2097 + $0x60] sm:$0xff]
  %v2111 = vld [vmem:[%s2097 + $0x68] sm:$0xff]
  %v2112 = vld [vmem:[%s2097 + $0x70] sm:$0xff]
  %v2113 = vld [vmem:[%s2097 + $0x78] sm:$0xff]
  %v2130 = vunpack.c.l.b16 %v2098
  %v2131 = vunpack.c.h.b16 %v2098
  %v2132 = vunpack.c.l.b16 %v2099
  %v2133 = vunpack.c.h.b16 %v2099
  %v2134 = vunpack.c.l.b16 %v2100
  %v2135 = vunpack.c.h.b16 %v2100
  %v2136 = vunpack.c.l.b16 %v2101
  %v2137 = vunpack.c.h.b16 %v2101
  %v2138 = vunpack.c.l.b16 %v2102
  %v2139 = vunpack.c.h.b16 %v2102
  %v2140 = vunpack.c.l.b16 %v2103
  %v2141 = vunpack.c.h.b16 %v2103
  %v2142 = vunpack.c.l.b16 %v2104
  %v2143 = vunpack.c.h.b16 %v2104
  %v2144 = vunpack.c.l.b16 %v2105
  %v2145 = vunpack.c.h.b16 %v2105
  %v2146 = vunpack.c.l.b16 %v2106
  %v2147 = vunpack.c.h.b16 %v2106
  %v2148 = vunpack.c.l.b16 %v2107
  %v2149 = vunpack.c.h.b16 %v2107
  %v2150 = vunpack.c.l.b16 %v2108
  %v2151 = vunpack.c.h.b16 %v2108
  %v2152 = vunpack.c.l.b16 %v2109
  %v2153 = vunpack.c.h.b16 %v2109
  %v2154 = vunpack.c.l.b16 %v2110
  %v2155 = vunpack.c.h.b16 %v2110
  %v2156 = vunpack.c.l.b16 %v2111
  %v2157 = vunpack.c.h.b16 %v2111
  %v2158 = vunpack.c.l.b16 %v2112
  %v2159 = vunpack.c.h.b16 %v2112
  %v2160 = vunpack.c.l.b16 %v2113
  %v2161 = vunpack.c.h.b16 %v2113
  %v2162 = vpack.c.b16 %v2132, %v2130
  %v2163 = vpack.c.b16 %v2133, %v2131
  %v2164 = vpack.c.b16 %v2136, %v2134
  %v2165 = vpack.c.b16 %v2137, %v2135
  %v2166 = vpack.c.b16 %v2140, %v2138
  %v2167 = vpack.c.b16 %v2141, %v2139
  %v2168 = vpack.c.b16 %v2144, %v2142
  %v2169 = vpack.c.b16 %v2145, %v2143
  %v2170 = vpack.c.b16 %v2148, %v2146
  %v2171 = vpack.c.b16 %v2149, %v2147
  %v2172 = vpack.c.b16 %v2152, %v2150
  %v2173 = vpack.c.b16 %v2153, %v2151
  %v2174 = vpack.c.b16 %v2156, %v2154
  %v2175 = vpack.c.b16 %v2157, %v2155
  %v2176 = vpack.c.b16 %v2160, %v2158
  %v2177 = vpack.c.b16 %v2161, %v2159
  %2186 = vrot.lane.b32.xlu0 %v73, 120
  %v2187 = vpop.permute.xlu0 %2186
  %2188 = vrot.lane.b32.xlu0 %v74, 120
  %v2189 = vpop.permute.xlu0 %2188
  %2190 = vrot.lane.b32.xlu0 %v75, 120
  %v2191 = vpop.permute.xlu0 %2190
  %2192 = vrot.lane.b32.xlu0 %v76, 120
  %v2193 = vpop.permute.xlu0 %2192
  %2194 = vrot.lane.b32.xlu0 %v77, 120
  %v2195 = vpop.permute.xlu0 %2194
  %2196 = vrot.lane.b32.xlu0 %v78, 120
  %v2197 = vpop.permute.xlu0 %2196
  %2198 = vrot.lane.b32.xlu0 %v79, 120
  %v2199 = vpop.permute.xlu0 %2198
  %2200 = vrot.lane.b32.xlu0 %v80, 120
  %v2201 = vpop.permute.xlu0 %2200
  %2202 = vrot.lane.b32.xlu0 %v81, 120
  %v2203 = vpop.permute.xlu0 %2202
  %2204 = vrot.lane.b32.xlu0 %v82, 120
  %v2205 = vpop.permute.xlu0 %2204
  %v2216 = vsel %vm227, %v2163, 0
  %v2219 = vsel %vm227, %v2165, 0
  %v2222 = vsel %vm227, %v2167, 0
  %v2225 = vsel %vm227, %v2169, 0
  %v2228 = vsel %vm227, %v2171, 0
  %v2231 = vsel %vm227, %v2173, 0
  %v2234 = vsel %vm227, %v2175, 0
  %v2237 = vsel %vm227, %v2177, 0
  %v2240 = vsel %vm252, %v2205, 0
  %2242 = vmatprep.subr.bf16.mxu0 0
  %2243 = vmatpush1.bf16.msra.mxu0 %v2201
  %2244 = vmatprep.subr.bf16.mxu0 0
  %2245 = vmatpush1.bf16.msra.mxu0 %v2199
  %2246 = vmatprep.subr.bf16.mxu0 0
  %2247 = vmatpush1.bf16.msra.mxu0 %v2197
  %2248 = vmatprep.subr.bf16.mxu0 0
  %2249 = vmatpush1.bf16.msra.mxu0 %v2195
  %2250 = vmatprep.subr.bf16.mxu0 0
  %2251 = vmatpush1.bf16.msra.mxu0 %v2193
  %2252 = vmatprep.subr.bf16.mxu0 0
  %2253 = vmatpush1.bf16.msra.mxu0 %v2191
  %2254 = vmatprep.subr.bf16.mxu0 0
  %2255 = vmatpush1.bf16.msra.mxu0 %v2189
  %2256 = vmatprep.subr.bf16.mxu0 0
  %2257 = vmatpush1.bf16.msra.mxu0 %v2187
  %2258 = vmatprep.subr.bf16.mxu0 0
  %2259 = vmatpush2.bf16.msra.mxu0 0
  %2260 = vmatprep.subr.bf16.mxu0 0
  %2261 = vmatpush2.bf16.msra.mxu0 0
  %2262 = vmatprep.subr.bf16.mxu0 0
  %2263 = vmatpush2.bf16.msra.mxu0 0
  %2264 = vmatprep.subr.bf16.mxu0 0
  %2265 = vmatpush2.bf16.msra.mxu0 0
  %2266 = vmatprep.subr.bf16.mxu0 0
  %2267 = vmatpush2.bf16.msra.mxu0 0
  %2268 = vmatprep.subr.bf16.mxu0 0
  %2269 = vmatpush2.bf16.msra.mxu0 0
  %2270 = vmatprep.subr.bf16.mxu0 0
  %2271 = vmatpush2.bf16.msra.mxu0 %v2240
  %2272 = vmatprep.subr.bf16.mxu0 0
  %2273 = vmatpush2.bf16.msra.mxu0 %v2203
  %2274 = vmatprep.mubr.bf16.mxu0 %v2216
  %2275 = vmatmul.mubr.bf16.gmra.mxu0 %v2162
  %v2276 = vpop.f32.mrf.mxu0
  %v2277 = vadd.f32 0.0, %v2276
  %v2278 = vpop.f32.mrf.mxu0
  %v2279 = vpop.f32.mrf.mxu0
  %v2280 = vadd.f32 0.0, %v2279
  %v2281 = vpop.f32.mrf.mxu0
  %2282 = vmatprep.mubr.bf16.mxu0 %v2219
  %2283 = vmatmul.mubr.bf16.gmra.mxu0 %v2164
  %v2284 = vpop.f32.mrf.mxu0
  %v2285 = vadd.f32 0.0, %v2284
  %v2286 = vpop.f32.mrf.mxu0
  %v2287 = vpop.f32.mrf.mxu0
  %v2288 = vadd.f32 0.0, %v2287
  %v2289 = vpop.f32.mrf.mxu0
  %2290 = vmatprep.mubr.bf16.mxu0 %v2222
  %2291 = vmatmul.mubr.bf16.gmra.mxu0 %v2166
  %v2292 = vpop.f32.mrf.mxu0
  %v2293 = vadd.f32 0.0, %v2292
  %v2294 = vpop.f32.mrf.mxu0
  %v2295 = vpop.f32.mrf.mxu0
  %v2296 = vadd.f32 0.0, %v2295
  %v2297 = vpop.f32.mrf.mxu0
  %2298 = vmatprep.mubr.bf16.mxu0 %v2225
  %2299 = vmatmul.mubr.bf16.gmra.mxu0 %v2168
  %v2300 = vpop.f32.mrf.mxu0
  %v2301 = vadd.f32 0.0, %v2300
  %v2302 = vpop.f32.mrf.mxu0
  %v2303 = vpop.f32.mrf.mxu0
  %v2304 = vadd.f32 0.0, %v2303
  %v2305 = vpop.f32.mrf.mxu0
  %2306 = vmatprep.mubr.bf16.mxu0 %v2228
  %2307 = vmatmul.mubr.bf16.gmra.mxu0 %v2170
  %v2308 = vpop.f32.mrf.mxu0
  %v2309 = vadd.f32 0.0, %v2308
  %v2310 = vpop.f32.mrf.mxu0
  %v2311 = vpop.f32.mrf.mxu0
  %v2312 = vadd.f32 0.0, %v2311
  %v2313 = vpop.f32.mrf.mxu0
  %2314 = vmatprep.mubr.bf16.mxu0 %v2231
  %2315 = vmatmul.mubr.bf16.gmra.mxu0 %v2172
  %v2316 = vpop.f32.mrf.mxu0
  %v2317 = vadd.f32 0.0, %v2316
  %v2318 = vpop.f32.mrf.mxu0
  %v2319 = vpop.f32.mrf.mxu0
  %v2320 = vadd.f32 0.0, %v2319
  %v2321 = vpop.f32.mrf.mxu0
  %2322 = vmatprep.mubr.bf16.mxu0 %v2234
  %2323 = vmatmul.mubr.bf16.gmra.mxu0 %v2174
  %v2324 = vpop.f32.mrf.mxu0
  %v2325 = vadd.f32 0.0, %v2324
  %v2326 = vpop.f32.mrf.mxu0
  %v2327 = vpop.f32.mrf.mxu0
  %v2328 = vadd.f32 0.0, %v2327
  %v2329 = vpop.f32.mrf.mxu0
  %2330 = vmatprep.mubr.bf16.mxu0 %v2237
  %2331 = vmatmul.mubr.bf16.gmra.mxu0 %v2176
  %v2332 = vpop.f32.mrf.mxu0
  %v2333 = vadd.f32 0.0, %v2332
  %v2334 = vpop.f32.mrf.mxu0
  %v2335 = vpop.f32.mrf.mxu0
  %v2336 = vadd.f32 0.0, %v2335
  %v2337 = vpop.f32.mrf.mxu0
  %2338 = vdwg.mxu0
  %v2339 = vadd.f32 %v2081, %v2277
  %v2340 = vadd.f32 %v2082, %v2280
  %v2341 = vadd.f32 %v2083, %v2285
  %v2342 = vadd.f32 %v2084, %v2288
  %v2343 = vadd.f32 %v2085, %v2293
  %v2344 = vadd.f32 %v2086, %v2296
  %v2345 = vadd.f32 %v2087, %v2301
  %v2346 = vadd.f32 %v2088, %v2304
  %v2347 = vadd.f32 %v2089, %v2309
  %v2348 = vadd.f32 %v2090, %v2312
  %v2349 = vadd.f32 %v2091, %v2317
  %v2350 = vadd.f32 %v2092, %v2320
  %v2351 = vadd.f32 %v2093, %v2325
  %v2352 = vadd.f32 %v2094, %v2328
  %v2353 = vadd.f32 %v2095, %v2333
  %v2354 = vadd.f32 %v2096, %v2336
  %s2355 = scalar_lea.vmem %s1, 1152
  %v2356 = vld [vmem:[%s2355] sm:$0xff]
  %v2357 = vld [vmem:[%s2355 + $0x8] sm:$0xff]
  %v2358 = vld [vmem:[%s2355 + $0x10] sm:$0xff]
  %v2359 = vld [vmem:[%s2355 + $0x18] sm:$0xff]
  %v2360 = vld [vmem:[%s2355 + $0x20] sm:$0xff]
  %v2361 = vld [vmem:[%s2355 + $0x28] sm:$0xff]
  %v2362 = vld [vmem:[%s2355 + $0x30] sm:$0xff]
  %v2363 = vld [vmem:[%s2355 + $0x38] sm:$0xff]
  %v2364 = vld [vmem:[%s2355 + $0x40] sm:$0xff]
  %v2365 = vld [vmem:[%s2355 + $0x48] sm:$0xff]
  %v2366 = vld [vmem:[%s2355 + $0x50] sm:$0xff]
  %v2367 = vld [vmem:[%s2355 + $0x58] sm:$0xff]
  %v2368 = vld [vmem:[%s2355 + $0x60] sm:$0xff]
  %v2369 = vld [vmem:[%s2355 + $0x68] sm:$0xff]
  %v2370 = vld [vmem:[%s2355 + $0x70] sm:$0xff]
  %v2371 = vld [vmem:[%s2355 + $0x78] sm:$0xff]
  %v2388 = vunpack.c.l.b16 %v2356
  %v2389 = vunpack.c.h.b16 %v2356
  %v2390 = vunpack.c.l.b16 %v2357
  %v2391 = vunpack.c.h.b16 %v2357
  %v2392 = vunpack.c.l.b16 %v2358
  %v2393 = vunpack.c.h.b16 %v2358
  %v2394 = vunpack.c.l.b16 %v2359
  %v2395 = vunpack.c.h.b16 %v2359
  %v2396 = vunpack.c.l.b16 %v2360
  %v2397 = vunpack.c.h.b16 %v2360
  %v2398 = vunpack.c.l.b16 %v2361
  %v2399 = vunpack.c.h.b16 %v2361
  %v2400 = vunpack.c.l.b16 %v2362
  %v2401 = vunpack.c.h.b16 %v2362
  %v2402 = vunpack.c.l.b16 %v2363
  %v2403 = vunpack.c.h.b16 %v2363
  %v2404 = vunpack.c.l.b16 %v2364
  %v2405 = vunpack.c.h.b16 %v2364
  %v2406 = vunpack.c.l.b16 %v2365
  %v2407 = vunpack.c.h.b16 %v2365
  %v2408 = vunpack.c.l.b16 %v2366
  %v2409 = vunpack.c.h.b16 %v2366
  %v2410 = vunpack.c.l.b16 %v2367
  %v2411 = vunpack.c.h.b16 %v2367
  %v2412 = vunpack.c.l.b16 %v2368
  %v2413 = vunpack.c.h.b16 %v2368
  %v2414 = vunpack.c.l.b16 %v2369
  %v2415 = vunpack.c.h.b16 %v2369
  %v2416 = vunpack.c.l.b16 %v2370
  %v2417 = vunpack.c.h.b16 %v2370
  %v2418 = vunpack.c.l.b16 %v2371
  %v2419 = vunpack.c.h.b16 %v2371
  %v2420 = vpack.c.b16 %v2390, %v2388
  %v2421 = vpack.c.b16 %v2391, %v2389
  %v2422 = vpack.c.b16 %v2394, %v2392
  %v2423 = vpack.c.b16 %v2395, %v2393
  %v2424 = vpack.c.b16 %v2398, %v2396
  %v2425 = vpack.c.b16 %v2399, %v2397
  %v2426 = vpack.c.b16 %v2402, %v2400
  %v2427 = vpack.c.b16 %v2403, %v2401
  %v2428 = vpack.c.b16 %v2406, %v2404
  %v2429 = vpack.c.b16 %v2407, %v2405
  %v2430 = vpack.c.b16 %v2410, %v2408
  %v2431 = vpack.c.b16 %v2411, %v2409
  %v2432 = vpack.c.b16 %v2414, %v2412
  %v2433 = vpack.c.b16 %v2415, %v2413
  %v2434 = vpack.c.b16 %v2418, %v2416
  %v2435 = vpack.c.b16 %v2419, %v2417
  %2444 = vrot.lane.b32.xlu0 %v73, 119
  %v2445 = vpop.permute.xlu0 %2444
  %2446 = vrot.lane.b32.xlu0 %v74, 119
  %v2447 = vpop.permute.xlu0 %2446
  %2448 = vrot.lane.b32.xlu0 %v75, 119
  %v2449 = vpop.permute.xlu0 %2448
  %2450 = vrot.lane.b32.xlu0 %v76, 119
  %v2451 = vpop.permute.xlu0 %2450
  %2452 = vrot.lane.b32.xlu0 %v77, 119
  %v2453 = vpop.permute.xlu0 %2452
  %2454 = vrot.lane.b32.xlu0 %v78, 119
  %v2455 = vpop.permute.xlu0 %2454
  %2456 = vrot.lane.b32.xlu0 %v79, 119
  %v2457 = vpop.permute.xlu0 %2456
  %2458 = vrot.lane.b32.xlu0 %v80, 119
  %v2459 = vpop.permute.xlu0 %2458
  %2460 = vrot.lane.b32.xlu0 %v81, 119
  %v2461 = vpop.permute.xlu0 %2460
  %2462 = vrot.lane.b32.xlu0 %v82, 119
  %v2463 = vpop.permute.xlu0 %2462
  %v2474 = vsel %vm227, %v2421, 0
  %v2477 = vsel %vm227, %v2423, 0
  %v2480 = vsel %vm227, %v2425, 0
  %v2483 = vsel %vm227, %v2427, 0
  %v2486 = vsel %vm227, %v2429, 0
  %v2489 = vsel %vm227, %v2431, 0
  %v2492 = vsel %vm227, %v2433, 0
  %v2495 = vsel %vm227, %v2435, 0
  %v2498 = vsel %vm252, %v2463, 0
  %2500 = vmatprep.subr.bf16.mxu0 0
  %2501 = vmatpush1.bf16.msra.mxu0 %v2459
  %2502 = vmatprep.subr.bf16.mxu0 0
  %2503 = vmatpush1.bf16.msra.mxu0 %v2457
  %2504 = vmatprep.subr.bf16.mxu0 0
  %2505 = vmatpush1.bf16.msra.mxu0 %v2455
  %2506 = vmatprep.subr.bf16.mxu0 0
  %2507 = vmatpush1.bf16.msra.mxu0 %v2453
  %2508 = vmatprep.subr.bf16.mxu0 0
  %2509 = vmatpush1.bf16.msra.mxu0 %v2451
  %2510 = vmatprep.subr.bf16.mxu0 0
  %2511 = vmatpush1.bf16.msra.mxu0 %v2449
  %2512 = vmatprep.subr.bf16.mxu0 0
  %2513 = vmatpush1.bf16.msra.mxu0 %v2447
  %2514 = vmatprep.subr.bf16.mxu0 0
  %2515 = vmatpush1.bf16.msra.mxu0 %v2445
  %2516 = vmatprep.subr.bf16.mxu0 0
  %2517 = vmatpush2.bf16.msra.mxu0 0
  %2518 = vmatprep.subr.bf16.mxu0 0
  %2519 = vmatpush2.bf16.msra.mxu0 0
  %2520 = vmatprep.subr.bf16.mxu0 0
  %2521 = vmatpush2.bf16.msra.mxu0 0
  %2522 = vmatprep.subr.bf16.mxu0 0
  %2523 = vmatpush2.bf16.msra.mxu0 0
  %2524 = vmatprep.subr.bf16.mxu0 0
  %2525 = vmatpush2.bf16.msra.mxu0 0
  %2526 = vmatprep.subr.bf16.mxu0 0
  %2527 = vmatpush2.bf16.msra.mxu0 0
  %2528 = vmatprep.subr.bf16.mxu0 0
  %2529 = vmatpush2.bf16.msra.mxu0 %v2498
  %2530 = vmatprep.subr.bf16.mxu0 0
  %2531 = vmatpush2.bf16.msra.mxu0 %v2461
  %2532 = vmatprep.mubr.bf16.mxu0 %v2474
  %2533 = vmatmul.mubr.bf16.gmra.mxu0 %v2420
  %v2534 = vpop.f32.mrf.mxu0
  %v2535 = vadd.f32 0.0, %v2534
  %v2536 = vpop.f32.mrf.mxu0
  %v2537 = vpop.f32.mrf.mxu0
  %v2538 = vadd.f32 0.0, %v2537
  %v2539 = vpop.f32.mrf.mxu0
  %2540 = vmatprep.mubr.bf16.mxu0 %v2477
  %2541 = vmatmul.mubr.bf16.gmra.mxu0 %v2422
  %v2542 = vpop.f32.mrf.mxu0
  %v2543 = vadd.f32 0.0, %v2542
  %v2544 = vpop.f32.mrf.mxu0
  %v2545 = vpop.f32.mrf.mxu0
  %v2546 = vadd.f32 0.0, %v2545
  %v2547 = vpop.f32.mrf.mxu0
  %2548 = vmatprep.mubr.bf16.mxu0 %v2480
  %2549 = vmatmul.mubr.bf16.gmra.mxu0 %v2424
  %v2550 = vpop.f32.mrf.mxu0
  %v2551 = vadd.f32 0.0, %v2550
  %v2552 = vpop.f32.mrf.mxu0
  %v2553 = vpop.f32.mrf.mxu0
  %v2554 = vadd.f32 0.0, %v2553
  %v2555 = vpop.f32.mrf.mxu0
  %2556 = vmatprep.mubr.bf16.mxu0 %v2483
  %2557 = vmatmul.mubr.bf16.gmra.mxu0 %v2426
  %v2558 = vpop.f32.mrf.mxu0
  %v2559 = vadd.f32 0.0, %v2558
  %v2560 = vpop.f32.mrf.mxu0
  %v2561 = vpop.f32.mrf.mxu0
  %v2562 = vadd.f32 0.0, %v2561
  %v2563 = vpop.f32.mrf.mxu0
  %2564 = vmatprep.mubr.bf16.mxu0 %v2486
  %2565 = vmatmul.mubr.bf16.gmra.mxu0 %v2428
  %v2566 = vpop.f32.mrf.mxu0
  %v2567 = vadd.f32 0.0, %v2566
  %v2568 = vpop.f32.mrf.mxu0
  %v2569 = vpop.f32.mrf.mxu0
  %v2570 = vadd.f32 0.0, %v2569
  %v2571 = vpop.f32.mrf.mxu0
  %2572 = vmatprep.mubr.bf16.mxu0 %v2489
  %2573 = vmatmul.mubr.bf16.gmra.mxu0 %v2430
  %v2574 = vpop.f32.mrf.mxu0
  %v2575 = vadd.f32 0.0, %v2574
  %v2576 = vpop.f32.mrf.mxu0
  %v2577 = vpop.f32.mrf.mxu0
  %v2578 = vadd.f32 0.0, %v2577
  %v2579 = vpop.f32.mrf.mxu0
  %2580 = vmatprep.mubr.bf16.mxu0 %v2492
  %2581 = vmatmul.mubr.bf16.gmra.mxu0 %v2432
  %v2582 = vpop.f32.mrf.mxu0
  %v2583 = vadd.f32 0.0, %v2582
  %v2584 = vpop.f32.mrf.mxu0
  %v2585 = vpop.f32.mrf.mxu0
  %v2586 = vadd.f32 0.0, %v2585
  %v2587 = vpop.f32.mrf.mxu0
  %2588 = vmatprep.mubr.bf16.mxu0 %v2495
  %2589 = vmatmul.mubr.bf16.gmra.mxu0 %v2434
  %v2590 = vpop.f32.mrf.mxu0
  %v2591 = vadd.f32 0.0, %v2590
  %v2592 = vpop.f32.mrf.mxu0
  %v2593 = vpop.f32.mrf.mxu0
  %v2594 = vadd.f32 0.0, %v2593
  %v2595 = vpop.f32.mrf.mxu0
  %2596 = vdwg.mxu0
  %v2597 = vadd.f32 %v2339, %v2535
  %v2598 = vadd.f32 %v2340, %v2538
  %v2599 = vadd.f32 %v2341, %v2543
  %v2600 = vadd.f32 %v2342, %v2546
  %v2601 = vadd.f32 %v2343, %v2551
  %v2602 = vadd.f32 %v2344, %v2554
  %v2603 = vadd.f32 %v2345, %v2559
  %v2604 = vadd.f32 %v2346, %v2562
  %v2605 = vadd.f32 %v2347, %v2567
  %v2606 = vadd.f32 %v2348, %v2570
  %v2607 = vadd.f32 %v2349, %v2575
  %v2608 = vadd.f32 %v2350, %v2578
  %v2609 = vadd.f32 %v2351, %v2583
  %v2610 = vadd.f32 %v2352, %v2586
  %v2611 = vadd.f32 %v2353, %v2591
  %v2612 = vadd.f32 %v2354, %v2594
  %s2613 = scalar_lea.vmem %s1, 1280
  %v2614 = vld [vmem:[%s2613] sm:$0xff]
  %v2615 = vld [vmem:[%s2613 + $0x8] sm:$0xff]
  %v2616 = vld [vmem:[%s2613 + $0x10] sm:$0xff]
  %v2617 = vld [vmem:[%s2613 + $0x18] sm:$0xff]
  %v2618 = vld [vmem:[%s2613 + $0x20] sm:$0xff]
  %v2619 = vld [vmem:[%s2613 + $0x28] sm:$0xff]
  %v2620 = vld [vmem:[%s2613 + $0x30] sm:$0xff]
  %v2621 = vld [vmem:[%s2613 + $0x38] sm:$0xff]
  %v2622 = vld [vmem:[%s2613 + $0x40] sm:$0xff]
  %v2623 = vld [vmem:[%s2613 + $0x48] sm:$0xff]
  %v2624 = vld [vmem:[%s2613 + $0x50] sm:$0xff]
  %v2625 = vld [vmem:[%s2613 + $0x58] sm:$0xff]
  %v2626 = vld [vmem:[%s2613 + $0x60] sm:$0xff]
  %v2627 = vld [vmem:[%s2613 + $0x68] sm:$0xff]
  %v2628 = vld [vmem:[%s2613 + $0x70] sm:$0xff]
  %v2629 = vld [vmem:[%s2613 + $0x78] sm:$0xff]
  %v2646 = vunpack.c.l.b16 %v2614
  %v2647 = vunpack.c.h.b16 %v2614
  %v2648 = vunpack.c.l.b16 %v2615
  %v2649 = vunpack.c.h.b16 %v2615
  %v2650 = vunpack.c.l.b16 %v2616
  %v2651 = vunpack.c.h.b16 %v2616
  %v2652 = vunpack.c.l.b16 %v2617
  %v2653 = vunpack.c.h.b16 %v2617
  %v2654 = vunpack.c.l.b16 %v2618
  %v2655 = vunpack.c.h.b16 %v2618
  %v2656 = vunpack.c.l.b16 %v2619
  %v2657 = vunpack.c.h.b16 %v2619
  %v2658 = vunpack.c.l.b16 %v2620
  %v2659 = vunpack.c.h.b16 %v2620
  %v2660 = vunpack.c.l.b16 %v2621
  %v2661 = vunpack.c.h.b16 %v2621
  %v2662 = vunpack.c.l.b16 %v2622
  %v2663 = vunpack.c.h.b16 %v2622
  %v2664 = vunpack.c.l.b16 %v2623
  %v2665 = vunpack.c.h.b16 %v2623
  %v2666 = vunpack.c.l.b16 %v2624
  %v2667 = vunpack.c.h.b16 %v2624
  %v2668 = vunpack.c.l.b16 %v2625
  %v2669 = vunpack.c.h.b16 %v2625
  %v2670 = vunpack.c.l.b16 %v2626
  %v2671 = vunpack.c.h.b16 %v2626
  %v2672 = vunpack.c.l.b16 %v2627
  %v2673 = vunpack.c.h.b16 %v2627
  %v2674 = vunpack.c.l.b16 %v2628
  %v2675 = vunpack.c.h.b16 %v2628
  %v2676 = vunpack.c.l.b16 %v2629
  %v2677 = vunpack.c.h.b16 %v2629
  %v2678 = vpack.c.b16 %v2648, %v2646
  %v2679 = vpack.c.b16 %v2649, %v2647
  %v2680 = vpack.c.b16 %v2652, %v2650
  %v2681 = vpack.c.b16 %v2653, %v2651
  %v2682 = vpack.c.b16 %v2656, %v2654
  %v2683 = vpack.c.b16 %v2657, %v2655
  %v2684 = vpack.c.b16 %v2660, %v2658
  %v2685 = vpack.c.b16 %v2661, %v2659
  %v2686 = vpack.c.b16 %v2664, %v2662
  %v2687 = vpack.c.b16 %v2665, %v2663
  %v2688 = vpack.c.b16 %v2668, %v2666
  %v2689 = vpack.c.b16 %v2669, %v2667
  %v2690 = vpack.c.b16 %v2672, %v2670
  %v2691 = vpack.c.b16 %v2673, %v2671
  %v2692 = vpack.c.b16 %v2676, %v2674
  %v2693 = vpack.c.b16 %v2677, %v2675
  %2702 = vrot.lane.b32.xlu0 %v73, 118
  %v2703 = vpop.permute.xlu0 %2702
  %2704 = vrot.lane.b32.xlu0 %v74, 118
  %v2705 = vpop.permute.xlu0 %2704
  %2706 = vrot.lane.b32.xlu0 %v75, 118
  %v2707 = vpop.permute.xlu0 %2706
  %2708 = vrot.lane.b32.xlu0 %v76, 118
  %v2709 = vpop.permute.xlu0 %2708
  %2710 = vrot.lane.b32.xlu0 %v77, 118
  %v2711 = vpop.permute.xlu0 %2710
  %2712 = vrot.lane.b32.xlu0 %v78, 118
  %v2713 = vpop.permute.xlu0 %2712
  %2714 = vrot.lane.b32.xlu0 %v79, 118
  %v2715 = vpop.permute.xlu0 %2714
  %2716 = vrot.lane.b32.xlu0 %v80, 118
  %v2717 = vpop.permute.xlu0 %2716
  %2718 = vrot.lane.b32.xlu0 %v81, 118
  %v2719 = vpop.permute.xlu0 %2718
  %2720 = vrot.lane.b32.xlu0 %v82, 118
  %v2721 = vpop.permute.xlu0 %2720
  %v2732 = vsel %vm227, %v2679, 0
  %v2735 = vsel %vm227, %v2681, 0
  %v2738 = vsel %vm227, %v2683, 0
  %v2741 = vsel %vm227, %v2685, 0
  %v2744 = vsel %vm227, %v2687, 0
  %v2747 = vsel %vm227, %v2689, 0
  %v2750 = vsel %vm227, %v2691, 0
  %v2753 = vsel %vm227, %v2693, 0
  %v2756 = vsel %vm252, %v2721, 0
  %2758 = vmatprep.subr.bf16.mxu0 0
  %2759 = vmatpush1.bf16.msra.mxu0 %v2717
  %2760 = vmatprep.subr.bf16.mxu0 0
  %2761 = vmatpush1.bf16.msra.mxu0 %v2715
  %2762 = vmatprep.subr.bf16.mxu0 0
  %2763 = vmatpush1.bf16.msra.mxu0 %v2713
  %2764 = vmatprep.subr.bf16.mxu0 0
  %2765 = vmatpush1.bf16.msra.mxu0 %v2711
  %2766 = vmatprep.subr.bf16.mxu0 0
  %2767 = vmatpush1.bf16.msra.mxu0 %v2709
  %2768 = vmatprep.subr.bf16.mxu0 0
  %2769 = vmatpush1.bf16.msra.mxu0 %v2707
  %2770 = vmatprep.subr.bf16.mxu0 0
  %2771 = vmatpush1.bf16.msra.mxu0 %v2705
  %2772 = vmatprep.subr.bf16.mxu0 0
  %2773 = vmatpush1.bf16.msra.mxu0 %v2703
  %2774 = vmatprep.subr.bf16.mxu0 0
  %2775 = vmatpush2.bf16.msra.mxu0 0
  %2776 = vmatprep.subr.bf16.mxu0 0
  %2777 = vmatpush2.bf16.msra.mxu0 0
  %2778 = vmatprep.subr.bf16.mxu0 0
  %2779 = vmatpush2.bf16.msra.mxu0 0
  %2780 = vmatprep.subr.bf16.mxu0 0
  %2781 = vmatpush2.bf16.msra.mxu0 0
  %2782 = vmatprep.subr.bf16.mxu0 0
  %2783 = vmatpush2.bf16.msra.mxu0 0
  %2784 = vmatprep.subr.bf16.mxu0 0
  %2785 = vmatpush2.bf16.msra.mxu0 0
  %2786 = vmatprep.subr.bf16.mxu0 0
  %2787 = vmatpush2.bf16.msra.mxu0 %v2756
  %2788 = vmatprep.subr.bf16.mxu0 0
  %2789 = vmatpush2.bf16.msra.mxu0 %v2719
  %2790 = vmatprep.mubr.bf16.mxu0 %v2732
  %2791 = vmatmul.mubr.bf16.gmra.mxu0 %v2678
  %v2792 = vpop.f32.mrf.mxu0
  %v2793 = vadd.f32 0.0, %v2792
  %v2794 = vpop.f32.mrf.mxu0
  %v2795 = vpop.f32.mrf.mxu0
  %v2796 = vadd.f32 0.0, %v2795
  %v2797 = vpop.f32.mrf.mxu0
  %2798 = vmatprep.mubr.bf16.mxu0 %v2735
  %2799 = vmatmul.mubr.bf16.gmra.mxu0 %v2680
  %v2800 = vpop.f32.mrf.mxu0
  %v2801 = vadd.f32 0.0, %v2800
  %v2802 = vpop.f32.mrf.mxu0
  %v2803 = vpop.f32.mrf.mxu0
  %v2804 = vadd.f32 0.0, %v2803
  %v2805 = vpop.f32.mrf.mxu0
  %2806 = vmatprep.mubr.bf16.mxu0 %v2738
  %2807 = vmatmul.mubr.bf16.gmra.mxu0 %v2682
  %v2808 = vpop.f32.mrf.mxu0
  %v2809 = vadd.f32 0.0, %v2808
  %v2810 = vpop.f32.mrf.mxu0
  %v2811 = vpop.f32.mrf.mxu0
  %v2812 = vadd.f32 0.0, %v2811
  %v2813 = vpop.f32.mrf.mxu0
  %2814 = vmatprep.mubr.bf16.mxu0 %v2741
  %2815 = vmatmul.mubr.bf16.gmra.mxu0 %v2684
  %v2816 = vpop.f32.mrf.mxu0
  %v2817 = vadd.f32 0.0, %v2816
  %v2818 = vpop.f32.mrf.mxu0
  %v2819 = vpop.f32.mrf.mxu0
  %v2820 = vadd.f32 0.0, %v2819
  %v2821 = vpop.f32.mrf.mxu0
  %2822 = vmatprep.mubr.bf16.mxu0 %v2744
  %2823 = vmatmul.mubr.bf16.gmra.mxu0 %v2686
  %v2824 = vpop.f32.mrf.mxu0
  %v2825 = vadd.f32 0.0, %v2824
  %v2826 = vpop.f32.mrf.mxu0
  %v2827 = vpop.f32.mrf.mxu0
  %v2828 = vadd.f32 0.0, %v2827
  %v2829 = vpop.f32.mrf.mxu0
  %2830 = vmatprep.mubr.bf16.mxu0 %v2747
  %2831 = vmatmul.mubr.bf16.gmra.mxu0 %v2688
  %v2832 = vpop.f32.mrf.mxu0
  %v2833 = vadd.f32 0.0, %v2832
  %v2834 = vpop.f32.mrf.mxu0
  %v2835 = vpop.f32.mrf.mxu0
  %v2836 = vadd.f32 0.0, %v2835
  %v2837 = vpop.f32.mrf.mxu0
  %2838 = vmatprep.mubr.bf16.mxu0 %v2750
  %2839 = vmatmul.mubr.bf16.gmra.mxu0 %v2690
  %v2840 = vpop.f32.mrf.mxu0
  %v2841 = vadd.f32 0.0, %v2840
  %v2842 = vpop.f32.mrf.mxu0
  %v2843 = vpop.f32.mrf.mxu0
  %v2844 = vadd.f32 0.0, %v2843
  %v2845 = vpop.f32.mrf.mxu0
  %2846 = vmatprep.mubr.bf16.mxu0 %v2753
  %2847 = vmatmul.mubr.bf16.gmra.mxu0 %v2692
  %v2848 = vpop.f32.mrf.mxu0
  %v2849 = vadd.f32 0.0, %v2848
  %v2850 = vpop.f32.mrf.mxu0
  %v2851 = vpop.f32.mrf.mxu0
  %v2852 = vadd.f32 0.0, %v2851
  %v2853 = vpop.f32.mrf.mxu0
  %2854 = vdwg.mxu0
  %v2855 = vadd.f32 %v2597, %v2793
  %v2856 = vadd.f32 %v2598, %v2796
  %v2857 = vadd.f32 %v2599, %v2801
  %v2858 = vadd.f32 %v2600, %v2804
  %v2859 = vadd.f32 %v2601, %v2809
  %v2860 = vadd.f32 %v2602, %v2812
  %v2861 = vadd.f32 %v2603, %v2817
  %v2862 = vadd.f32 %v2604, %v2820
  %v2863 = vadd.f32 %v2605, %v2825
  %v2864 = vadd.f32 %v2606, %v2828
  %v2865 = vadd.f32 %v2607, %v2833
  %v2866 = vadd.f32 %v2608, %v2836
  %v2867 = vadd.f32 %v2609, %v2841
  %v2868 = vadd.f32 %v2610, %v2844
  %v2869 = vadd.f32 %v2611, %v2849
  %v2870 = vadd.f32 %v2612, %v2852
  %s2871 = scalar_lea.vmem %s1, 1408
  %v2872 = vld [vmem:[%s2871] sm:$0xff]
  %v2873 = vld [vmem:[%s2871 + $0x8] sm:$0xff]
  %v2874 = vld [vmem:[%s2871 + $0x10] sm:$0xff]
  %v2875 = vld [vmem:[%s2871 + $0x18] sm:$0xff]
  %v2876 = vld [vmem:[%s2871 + $0x20] sm:$0xff]
  %v2877 = vld [vmem:[%s2871 + $0x28] sm:$0xff]
  %v2878 = vld [vmem:[%s2871 + $0x30] sm:$0xff]
  %v2879 = vld [vmem:[%s2871 + $0x38] sm:$0xff]
  %v2880 = vld [vmem:[%s2871 + $0x40] sm:$0xff]
  %v2881 = vld [vmem:[%s2871 + $0x48] sm:$0xff]
  %v2882 = vld [vmem:[%s2871 + $0x50] sm:$0xff]
  %v2883 = vld [vmem:[%s2871 + $0x58] sm:$0xff]
  %v2884 = vld [vmem:[%s2871 + $0x60] sm:$0xff]
  %v2885 = vld [vmem:[%s2871 + $0x68] sm:$0xff]
  %v2886 = vld [vmem:[%s2871 + $0x70] sm:$0xff]
  %v2887 = vld [vmem:[%s2871 + $0x78] sm:$0xff]
  %v2904 = vunpack.c.l.b16 %v2872
  %v2905 = vunpack.c.h.b16 %v2872
  %v2906 = vunpack.c.l.b16 %v2873
  %v2907 = vunpack.c.h.b16 %v2873
  %v2908 = vunpack.c.l.b16 %v2874
  %v2909 = vunpack.c.h.b16 %v2874
  %v2910 = vunpack.c.l.b16 %v2875
  %v2911 = vunpack.c.h.b16 %v2875
  %v2912 = vunpack.c.l.b16 %v2876
  %v2913 = vunpack.c.h.b16 %v2876
  %v2914 = vunpack.c.l.b16 %v2877
  %v2915 = vunpack.c.h.b16 %v2877
  %v2916 = vunpack.c.l.b16 %v2878
  %v2917 = vunpack.c.h.b16 %v2878
  %v2918 = vunpack.c.l.b16 %v2879
  %v2919 = vunpack.c.h.b16 %v2879
  %v2920 = vunpack.c.l.b16 %v2880
  %v2921 = vunpack.c.h.b16 %v2880
  %v2922 = vunpack.c.l.b16 %v2881
  %v2923 = vunpack.c.h.b16 %v2881
  %v2924 = vunpack.c.l.b16 %v2882
  %v2925 = vunpack.c.h.b16 %v2882
  %v2926 = vunpack.c.l.b16 %v2883
  %v2927 = vunpack.c.h.b16 %v2883
  %v2928 = vunpack.c.l.b16 %v2884
  %v2929 = vunpack.c.h.b16 %v2884
  %v2930 = vunpack.c.l.b16 %v2885
  %v2931 = vunpack.c.h.b16 %v2885
  %v2932 = vunpack.c.l.b16 %v2886
  %v2933 = vunpack.c.h.b16 %v2886
  %v2934 = vunpack.c.l.b16 %v2887
  %v2935 = vunpack.c.h.b16 %v2887
  %v2936 = vpack.c.b16 %v2906, %v2904
  %v2937 = vpack.c.b16 %v2907, %v2905
  %v2938 = vpack.c.b16 %v2910, %v2908
  %v2939 = vpack.c.b16 %v2911, %v2909
  %v2940 = vpack.c.b16 %v2914, %v2912
  %v2941 = vpack.c.b16 %v2915, %v2913
  %v2942 = vpack.c.b16 %v2918, %v2916
  %v2943 = vpack.c.b16 %v2919, %v2917
  %v2944 = vpack.c.b16 %v2922, %v2920
  %v2945 = vpack.c.b16 %v2923, %v2921
  %v2946 = vpack.c.b16 %v2926, %v2924
  %v2947 = vpack.c.b16 %v2927, %v2925
  %v2948 = vpack.c.b16 %v2930, %v2928
  %v2949 = vpack.c.b16 %v2931, %v2929
  %v2950 = vpack.c.b16 %v2934, %v2932
  %v2951 = vpack.c.b16 %v2935, %v2933
  %2960 = vrot.lane.b32.xlu0 %v73, 117
  %v2961 = vpop.permute.xlu0 %2960
  %2962 = vrot.lane.b32.xlu0 %v74, 117
  %v2963 = vpop.permute.xlu0 %2962
  %2964 = vrot.lane.b32.xlu0 %v75, 117
  %v2965 = vpop.permute.xlu0 %2964
  %2966 = vrot.lane.b32.xlu0 %v76, 117
  %v2967 = vpop.permute.xlu0 %2966
  %2968 = vrot.lane.b32.xlu0 %v77, 117
  %v2969 = vpop.permute.xlu0 %2968
  %2970 = vrot.lane.b32.xlu0 %v78, 117
  %v2971 = vpop.permute.xlu0 %2970
  %2972 = vrot.lane.b32.xlu0 %v79, 117
  %v2973 = vpop.permute.xlu0 %2972
  %2974 = vrot.lane.b32.xlu0 %v80, 117
  %v2975 = vpop.permute.xlu0 %2974
  %2976 = vrot.lane.b32.xlu0 %v81, 117
  %v2977 = vpop.permute.xlu0 %2976
  %2978 = vrot.lane.b32.xlu0 %v82, 117
  %v2979 = vpop.permute.xlu0 %2978
  %v2990 = vsel %vm227, %v2937, 0
  %v2993 = vsel %vm227, %v2939, 0
  %v2996 = vsel %vm227, %v2941, 0
  %v2999 = vsel %vm227, %v2943, 0
  %v3002 = vsel %vm227, %v2945, 0
  %v3005 = vsel %vm227, %v2947, 0
  %v3008 = vsel %vm227, %v2949, 0
  %v3011 = vsel %vm227, %v2951, 0
  %v3014 = vsel %vm252, %v2979, 0
  %3016 = vmatprep.subr.bf16.mxu0 0
  %3017 = vmatpush1.bf16.msra.mxu0 %v2975
  %3018 = vmatprep.subr.bf16.mxu0 0
  %3019 = vmatpush1.bf16.msra.mxu0 %v2973
  %3020 = vmatprep.subr.bf16.mxu0 0
  %3021 = vmatpush1.bf16.msra.mxu0 %v2971
  %3022 = vmatprep.subr.bf16.mxu0 0
  %3023 = vmatpush1.bf16.msra.mxu0 %v2969
  %3024 = vmatprep.subr.bf16.mxu0 0
  %3025 = vmatpush1.bf16.msra.mxu0 %v2967
  %3026 = vmatprep.subr.bf16.mxu0 0
  %3027 = vmatpush1.bf16.msra.mxu0 %v2965
  %3028 = vmatprep.subr.bf16.mxu0 0
  %3029 = vmatpush1.bf16.msra.mxu0 %v2963
  %3030 = vmatprep.subr.bf16.mxu0 0
  %3031 = vmatpush1.bf16.msra.mxu0 %v2961
  %3032 = vmatprep.subr.bf16.mxu0 0
  %3033 = vmatpush2.bf16.msra.mxu0 0
  %3034 = vmatprep.subr.bf16.mxu0 0
  %3035 = vmatpush2.bf16.msra.mxu0 0
  %3036 = vmatprep.subr.bf16.mxu0 0
  %3037 = vmatpush2.bf16.msra.mxu0 0
  %3038 = vmatprep.subr.bf16.mxu0 0
  %3039 = vmatpush2.bf16.msra.mxu0 0
  %3040 = vmatprep.subr.bf16.mxu0 0
  %3041 = vmatpush2.bf16.msra.mxu0 0
  %3042 = vmatprep.subr.bf16.mxu0 0
  %3043 = vmatpush2.bf16.msra.mxu0 0
  %3044 = vmatprep.subr.bf16.mxu0 0
  %3045 = vmatpush2.bf16.msra.mxu0 %v3014
  %3046 = vmatprep.subr.bf16.mxu0 0
  %3047 = vmatpush2.bf16.msra.mxu0 %v2977
  %3048 = vmatprep.mubr.bf16.mxu0 %v2990
  %3049 = vmatmul.mubr.bf16.gmra.mxu0 %v2936
  %v3050 = vpop.f32.mrf.mxu0
  %v3051 = vadd.f32 0.0, %v3050
  %v3052 = vpop.f32.mrf.mxu0
  %v3053 = vpop.f32.mrf.mxu0
  %v3054 = vadd.f32 0.0, %v3053
  %v3055 = vpop.f32.mrf.mxu0
  %3056 = vmatprep.mubr.bf16.mxu0 %v2993
  %3057 = vmatmul.mubr.bf16.gmra.mxu0 %v2938
  %v3058 = vpop.f32.mrf.mxu0
  %v3059 = vadd.f32 0.0, %v3058
  %v3060 = vpop.f32.mrf.mxu0
  %v3061 = vpop.f32.mrf.mxu0
  %v3062 = vadd.f32 0.0, %v3061
  %v3063 = vpop.f32.mrf.mxu0
  %3064 = vmatprep.mubr.bf16.mxu0 %v2996
  %3065 = vmatmul.mubr.bf16.gmra.mxu0 %v2940
  %v3066 = vpop.f32.mrf.mxu0
  %v3067 = vadd.f32 0.0, %v3066
  %v3068 = vpop.f32.mrf.mxu0
  %v3069 = vpop.f32.mrf.mxu0
  %v3070 = vadd.f32 0.0, %v3069
  %v3071 = vpop.f32.mrf.mxu0
  %3072 = vmatprep.mubr.bf16.mxu0 %v2999
  %3073 = vmatmul.mubr.bf16.gmra.mxu0 %v2942
  %v3074 = vpop.f32.mrf.mxu0
  %v3075 = vadd.f32 0.0, %v3074
  %v3076 = vpop.f32.mrf.mxu0
  %v3077 = vpop.f32.mrf.mxu0
  %v3078 = vadd.f32 0.0, %v3077
  %v3079 = vpop.f32.mrf.mxu0
  %3080 = vmatprep.mubr.bf16.mxu0 %v3002
  %3081 = vmatmul.mubr.bf16.gmra.mxu0 %v2944
  %v3082 = vpop.f32.mrf.mxu0
  %v3083 = vadd.f32 0.0, %v3082
  %v3084 = vpop.f32.mrf.mxu0
  %v3085 = vpop.f32.mrf.mxu0
  %v3086 = vadd.f32 0.0, %v3085
  %v3087 = vpop.f32.mrf.mxu0
  %3088 = vmatprep.mubr.bf16.mxu0 %v3005
  %3089 = vmatmul.mubr.bf16.gmra.mxu0 %v2946
  %v3090 = vpop.f32.mrf.mxu0
  %v3091 = vadd.f32 0.0, %v3090
  %v3092 = vpop.f32.mrf.mxu0
  %v3093 = vpop.f32.mrf.mxu0
  %v3094 = vadd.f32 0.0, %v3093
  %v3095 = vpop.f32.mrf.mxu0
  %3096 = vmatprep.mubr.bf16.mxu0 %v3008
  %3097 = vmatmul.mubr.bf16.gmra.mxu0 %v2948
  %v3098 = vpop.f32.mrf.mxu0
  %v3099 = vadd.f32 0.0, %v3098
  %v3100 = vpop.f32.mrf.mxu0
  %v3101 = vpop.f32.mrf.mxu0
  %v3102 = vadd.f32 0.0, %v3101
  %v3103 = vpop.f32.mrf.mxu0
  %3104 = vmatprep.mubr.bf16.mxu0 %v3011
  %3105 = vmatmul.mubr.bf16.gmra.mxu0 %v2950
  %v3106 = vpop.f32.mrf.mxu0
  %v3107 = vadd.f32 0.0, %v3106
  %v3108 = vpop.f32.mrf.mxu0
  %v3109 = vpop.f32.mrf.mxu0
  %v3110 = vadd.f32 0.0, %v3109
  %v3111 = vpop.f32.mrf.mxu0
  %3112 = vdwg.mxu0
  %v3113 = vadd.f32 %v2855, %v3051
  %v3114 = vadd.f32 %v2856, %v3054
  %v3115 = vadd.f32 %v2857, %v3059
  %v3116 = vadd.f32 %v2858, %v3062
  %v3117 = vadd.f32 %v2859, %v3067
  %v3118 = vadd.f32 %v2860, %v3070
  %v3119 = vadd.f32 %v2861, %v3075
  %v3120 = vadd.f32 %v2862, %v3078
  %v3121 = vadd.f32 %v2863, %v3083
  %v3122 = vadd.f32 %v2864, %v3086
  %v3123 = vadd.f32 %v2865, %v3091
  %v3124 = vadd.f32 %v2866, %v3094
  %v3125 = vadd.f32 %v2867, %v3099
  %v3126 = vadd.f32 %v2868, %v3102
  %v3127 = vadd.f32 %v2869, %v3107
  %v3128 = vadd.f32 %v2870, %v3110
  %s3129 = scalar_lea.vmem %s1, 1536
  %v3130 = vld [vmem:[%s3129] sm:$0xff]
  %v3131 = vld [vmem:[%s3129 + $0x8] sm:$0xff]
  %v3132 = vld [vmem:[%s3129 + $0x10] sm:$0xff]
  %v3133 = vld [vmem:[%s3129 + $0x18] sm:$0xff]
  %v3134 = vld [vmem:[%s3129 + $0x20] sm:$0xff]
  %v3135 = vld [vmem:[%s3129 + $0x28] sm:$0xff]
  %v3136 = vld [vmem:[%s3129 + $0x30] sm:$0xff]
  %v3137 = vld [vmem:[%s3129 + $0x38] sm:$0xff]
  %v3138 = vld [vmem:[%s3129 + $0x40] sm:$0xff]
  %v3139 = vld [vmem:[%s3129 + $0x48] sm:$0xff]
  %v3140 = vld [vmem:[%s3129 + $0x50] sm:$0xff]
  %v3141 = vld [vmem:[%s3129 + $0x58] sm:$0xff]
  %v3142 = vld [vmem:[%s3129 + $0x60] sm:$0xff]
  %v3143 = vld [vmem:[%s3129 + $0x68] sm:$0xff]
  %v3144 = vld [vmem:[%s3129 + $0x70] sm:$0xff]
  %v3145 = vld [vmem:[%s3129 + $0x78] sm:$0xff]
  %v3162 = vunpack.c.l.b16 %v3130
  %v3163 = vunpack.c.h.b16 %v3130
  %v3164 = vunpack.c.l.b16 %v3131
  %v3165 = vunpack.c.h.b16 %v3131
  %v3166 = vunpack.c.l.b16 %v3132
  %v3167 = vunpack.c.h.b16 %v3132
  %v3168 = vunpack.c.l.b16 %v3133
  %v3169 = vunpack.c.h.b16 %v3133
  %v3170 = vunpack.c.l.b16 %v3134
  %v3171 = vunpack.c.h.b16 %v3134
  %v3172 = vunpack.c.l.b16 %v3135
  %v3173 = vunpack.c.h.b16 %v3135
  %v3174 = vunpack.c.l.b16 %v3136
  %v3175 = vunpack.c.h.b16 %v3136
  %v3176 = vunpack.c.l.b16 %v3137
  %v3177 = vunpack.c.h.b16 %v3137
  %v3178 = vunpack.c.l.b16 %v3138
  %v3179 = vunpack.c.h.b16 %v3138
  %v3180 = vunpack.c.l.b16 %v3139
  %v3181 = vunpack.c.h.b16 %v3139
  %v3182 = vunpack.c.l.b16 %v3140
  %v3183 = vunpack.c.h.b16 %v3140
  %v3184 = vunpack.c.l.b16 %v3141
  %v3185 = vunpack.c.h.b16 %v3141
  %v3186 = vunpack.c.l.b16 %v3142
  %v3187 = vunpack.c.h.b16 %v3142
  %v3188 = vunpack.c.l.b16 %v3143
  %v3189 = vunpack.c.h.b16 %v3143
  %v3190 = vunpack.c.l.b16 %v3144
  %v3191 = vunpack.c.h.b16 %v3144
  %v3192 = vunpack.c.l.b16 %v3145
  %v3193 = vunpack.c.h.b16 %v3145
  %v3194 = vpack.c.b16 %v3164, %v3162
  %v3195 = vpack.c.b16 %v3165, %v3163
  %v3196 = vpack.c.b16 %v3168, %v3166
  %v3197 = vpack.c.b16 %v3169, %v3167
  %v3198 = vpack.c.b16 %v3172, %v3170
  %v3199 = vpack.c.b16 %v3173, %v3171
  %v3200 = vpack.c.b16 %v3176, %v3174
  %v3201 = vpack.c.b16 %v3177, %v3175
  %v3202 = vpack.c.b16 %v3180, %v3178
  %v3203 = vpack.c.b16 %v3181, %v3179
  %v3204 = vpack.c.b16 %v3184, %v3182
  %v3205 = vpack.c.b16 %v3185, %v3183
  %v3206 = vpack.c.b16 %v3188, %v3186
  %v3207 = vpack.c.b16 %v3189, %v3187
  %v3208 = vpack.c.b16 %v3192, %v3190
  %v3209 = vpack.c.b16 %v3193, %v3191
  %3218 = vrot.lane.b32.xlu0 %v73, 116
  %v3219 = vpop.permute.xlu0 %3218
  %3220 = vrot.lane.b32.xlu0 %v74, 116
  %v3221 = vpop.permute.xlu0 %3220
  %3222 = vrot.lane.b32.xlu0 %v75, 116
  %v3223 = vpop.permute.xlu0 %3222
  %3224 = vrot.lane.b32.xlu0 %v76, 116
  %v3225 = vpop.permute.xlu0 %3224
  %3226 = vrot.lane.b32.xlu0 %v77, 116
  %v3227 = vpop.permute.xlu0 %3226
  %3228 = vrot.lane.b32.xlu0 %v78, 116
  %v3229 = vpop.permute.xlu0 %3228
  %3230 = vrot.lane.b32.xlu0 %v79, 116
  %v3231 = vpop.permute.xlu0 %3230
  %3232 = vrot.lane.b32.xlu0 %v80, 116
  %v3233 = vpop.permute.xlu0 %3232
  %3234 = vrot.lane.b32.xlu0 %v81, 116
  %v3235 = vpop.permute.xlu0 %3234
  %3236 = vrot.lane.b32.xlu0 %v82, 116
  %v3237 = vpop.permute.xlu0 %3236
  %v3248 = vsel %vm227, %v3195, 0
  %v3251 = vsel %vm227, %v3197, 0
  %v3254 = vsel %vm227, %v3199, 0
  %v3257 = vsel %vm227, %v3201, 0
  %v3260 = vsel %vm227, %v3203, 0
  %v3263 = vsel %vm227, %v3205, 0
  %v3266 = vsel %vm227, %v3207, 0
  %v3269 = vsel %vm227, %v3209, 0
  %v3272 = vsel %vm252, %v3237, 0
  %3274 = vmatprep.subr.bf16.mxu0 0
  %3275 = vmatpush1.bf16.msra.mxu0 %v3233
  %3276 = vmatprep.subr.bf16.mxu0 0
  %3277 = vmatpush1.bf16.msra.mxu0 %v3231
  %3278 = vmatprep.subr.bf16.mxu0 0
  %3279 = vmatpush1.bf16.msra.mxu0 %v3229
  %3280 = vmatprep.subr.bf16.mxu0 0
  %3281 = vmatpush1.bf16.msra.mxu0 %v3227
  %3282 = vmatprep.subr.bf16.mxu0 0
  %3283 = vmatpush1.bf16.msra.mxu0 %v3225
  %3284 = vmatprep.subr.bf16.mxu0 0
  %3285 = vmatpush1.bf16.msra.mxu0 %v3223
  %3286 = vmatprep.subr.bf16.mxu0 0
  %3287 = vmatpush1.bf16.msra.mxu0 %v3221
  %3288 = vmatprep.subr.bf16.mxu0 0
  %3289 = vmatpush1.bf16.msra.mxu0 %v3219
  %3290 = vmatprep.subr.bf16.mxu0 0
  %3291 = vmatpush2.bf16.msra.mxu0 0
  %3292 = vmatprep.subr.bf16.mxu0 0
  %3293 = vmatpush2.bf16.msra.mxu0 0
  %3294 = vmatprep.subr.bf16.mxu0 0
  %3295 = vmatpush2.bf16.msra.mxu0 0
  %3296 = vmatprep.subr.bf16.mxu0 0
  %3297 = vmatpush2.bf16.msra.mxu0 0
  %3298 = vmatprep.subr.bf16.mxu0 0
  %3299 = vmatpush2.bf16.msra.mxu0 0
  %3300 = vmatprep.subr.bf16.mxu0 0
  %3301 = vmatpush2.bf16.msra.mxu0 0
  %3302 = vmatprep.subr.bf16.mxu0 0
  %3303 = vmatpush2.bf16.msra.mxu0 %v3272
  %3304 = vmatprep.subr.bf16.mxu0 0
  %3305 = vmatpush2.bf16.msra.mxu0 %v3235
  %3306 = vmatprep.mubr.bf16.mxu0 %v3248
  %3307 = vmatmul.mubr.bf16.gmra.mxu0 %v3194
  %v3308 = vpop.f32.mrf.mxu0
  %v3309 = vadd.f32 0.0, %v3308
  %v3310 = vpop.f32.mrf.mxu0
  %v3311 = vpop.f32.mrf.mxu0
  %v3312 = vadd.f32 0.0, %v3311
  %v3313 = vpop.f32.mrf.mxu0
  %3314 = vmatprep.mubr.bf16.mxu0 %v3251
  %3315 = vmatmul.mubr.bf16.gmra.mxu0 %v3196
  %v3316 = vpop.f32.mrf.mxu0
  %v3317 = vadd.f32 0.0, %v3316
  %v3318 = vpop.f32.mrf.mxu0
  %v3319 = vpop.f32.mrf.mxu0
  %v3320 = vadd.f32 0.0, %v3319
  %v3321 = vpop.f32.mrf.mxu0
  %3322 = vmatprep.mubr.bf16.mxu0 %v3254
  %3323 = vmatmul.mubr.bf16.gmra.mxu0 %v3198
  %v3324 = vpop.f32.mrf.mxu0
  %v3325 = vadd.f32 0.0, %v3324
  %v3326 = vpop.f32.mrf.mxu0
  %v3327 = vpop.f32.mrf.mxu0
  %v3328 = vadd.f32 0.0, %v3327
  %v3329 = vpop.f32.mrf.mxu0
  %3330 = vmatprep.mubr.bf16.mxu0 %v3257
  %3331 = vmatmul.mubr.bf16.gmra.mxu0 %v3200
  %v3332 = vpop.f32.mrf.mxu0
  %v3333 = vadd.f32 0.0, %v3332
  %v3334 = vpop.f32.mrf.mxu0
  %v3335 = vpop.f32.mrf.mxu0
  %v3336 = vadd.f32 0.0, %v3335
  %v3337 = vpop.f32.mrf.mxu0
  %3338 = vmatprep.mubr.bf16.mxu0 %v3260
  %3339 = vmatmul.mubr.bf16.gmra.mxu0 %v3202
  %v3340 = vpop.f32.mrf.mxu0
  %v3341 = vadd.f32 0.0, %v3340
  %v3342 = vpop.f32.mrf.mxu0
  %v3343 = vpop.f32.mrf.mxu0
  %v3344 = vadd.f32 0.0, %v3343
  %v3345 = vpop.f32.mrf.mxu0
  %3346 = vmatprep.mubr.bf16.mxu0 %v3263
  %3347 = vmatmul.mubr.bf16.gmra.mxu0 %v3204
  %v3348 = vpop.f32.mrf.mxu0
  %v3349 = vadd.f32 0.0, %v3348
  %v3350 = vpop.f32.mrf.mxu0
  %v3351 = vpop.f32.mrf.mxu0
  %v3352 = vadd.f32 0.0, %v3351
  %v3353 = vpop.f32.mrf.mxu0
  %3354 = vmatprep.mubr.bf16.mxu0 %v3266
  %3355 = vmatmul.mubr.bf16.gmra.mxu0 %v3206
  %v3356 = vpop.f32.mrf.mxu0
  %v3357 = vadd.f32 0.0, %v3356
  %v3358 = vpop.f32.mrf.mxu0
  %v3359 = vpop.f32.mrf.mxu0
  %v3360 = vadd.f32 0.0, %v3359
  %v3361 = vpop.f32.mrf.mxu0
  %3362 = vmatprep.mubr.bf16.mxu0 %v3269
  %3363 = vmatmul.mubr.bf16.gmra.mxu0 %v3208
  %v3364 = vpop.f32.mrf.mxu0
  %v3365 = vadd.f32 0.0, %v3364
  %v3366 = vpop.f32.mrf.mxu0
  %v3367 = vpop.f32.mrf.mxu0
  %v3368 = vadd.f32 0.0, %v3367
  %v3369 = vpop.f32.mrf.mxu0
  %3370 = vdwg.mxu0
  %v3371 = vadd.f32 %v3113, %v3309
  %v3372 = vadd.f32 %v3114, %v3312
  %v3373 = vadd.f32 %v3115, %v3317
  %v3374 = vadd.f32 %v3116, %v3320
  %v3375 = vadd.f32 %v3117, %v3325
  %v3376 = vadd.f32 %v3118, %v3328
  %v3377 = vadd.f32 %v3119, %v3333
  %v3378 = vadd.f32 %v3120, %v3336
  %v3379 = vadd.f32 %v3121, %v3341
  %v3380 = vadd.f32 %v3122, %v3344
  %v3381 = vadd.f32 %v3123, %v3349
  %v3382 = vadd.f32 %v3124, %v3352
  %v3383 = vadd.f32 %v3125, %v3357
  %v3384 = vadd.f32 %v3126, %v3360
  %v3385 = vadd.f32 %v3127, %v3365
  %v3386 = vadd.f32 %v3128, %v3368
  %s3387 = scalar_lea.vmem %s1, 1664
  %v3388 = vld [vmem:[%s3387] sm:$0xff]
  %v3389 = vld [vmem:[%s3387 + $0x8] sm:$0xff]
  %v3390 = vld [vmem:[%s3387 + $0x10] sm:$0xff]
  %v3391 = vld [vmem:[%s3387 + $0x18] sm:$0xff]
  %v3392 = vld [vmem:[%s3387 + $0x20] sm:$0xff]
  %v3393 = vld [vmem:[%s3387 + $0x28] sm:$0xff]
  %v3394 = vld [vmem:[%s3387 + $0x30] sm:$0xff]
  %v3395 = vld [vmem:[%s3387 + $0x38] sm:$0xff]
  %v3396 = vld [vmem:[%s3387 + $0x40] sm:$0xff]
  %v3397 = vld [vmem:[%s3387 + $0x48] sm:$0xff]
  %v3398 = vld [vmem:[%s3387 + $0x50] sm:$0xff]
  %v3399 = vld [vmem:[%s3387 + $0x58] sm:$0xff]
  %v3400 = vld [vmem:[%s3387 + $0x60] sm:$0xff]
  %v3401 = vld [vmem:[%s3387 + $0x68] sm:$0xff]
  %v3402 = vld [vmem:[%s3387 + $0x70] sm:$0xff]
  %v3403 = vld [vmem:[%s3387 + $0x78] sm:$0xff]
  %v3420 = vunpack.c.l.b16 %v3388
  %v3421 = vunpack.c.h.b16 %v3388
  %v3422 = vunpack.c.l.b16 %v3389
  %v3423 = vunpack.c.h.b16 %v3389
  %v3424 = vunpack.c.l.b16 %v3390
  %v3425 = vunpack.c.h.b16 %v3390
  %v3426 = vunpack.c.l.b16 %v3391
  %v3427 = vunpack.c.h.b16 %v3391
  %v3428 = vunpack.c.l.b16 %v3392
  %v3429 = vunpack.c.h.b16 %v3392
  %v3430 = vunpack.c.l.b16 %v3393
  %v3431 = vunpack.c.h.b16 %v3393
  %v3432 = vunpack.c.l.b16 %v3394
  %v3433 = vunpack.c.h.b16 %v3394
  %v3434 = vunpack.c.l.b16 %v3395
  %v3435 = vunpack.c.h.b16 %v3395
  %v3436 = vunpack.c.l.b16 %v3396
  %v3437 = vunpack.c.h.b16 %v3396
  %v3438 = vunpack.c.l.b16 %v3397
  %v3439 = vunpack.c.h.b16 %v3397
  %v3440 = vunpack.c.l.b16 %v3398
  %v3441 = vunpack.c.h.b16 %v3398
  %v3442 = vunpack.c.l.b16 %v3399
  %v3443 = vunpack.c.h.b16 %v3399
  %v3444 = vunpack.c.l.b16 %v3400
  %v3445 = vunpack.c.h.b16 %v3400
  %v3446 = vunpack.c.l.b16 %v3401
  %v3447 = vunpack.c.h.b16 %v3401
  %v3448 = vunpack.c.l.b16 %v3402
  %v3449 = vunpack.c.h.b16 %v3402
  %v3450 = vunpack.c.l.b16 %v3403
  %v3451 = vunpack.c.h.b16 %v3403
  %v3452 = vpack.c.b16 %v3422, %v3420
  %v3453 = vpack.c.b16 %v3423, %v3421
  %v3454 = vpack.c.b16 %v3426, %v3424
  %v3455 = vpack.c.b16 %v3427, %v3425
  %v3456 = vpack.c.b16 %v3430, %v3428
  %v3457 = vpack.c.b16 %v3431, %v3429
  %v3458 = vpack.c.b16 %v3434, %v3432
  %v3459 = vpack.c.b16 %v3435, %v3433
  %v3460 = vpack.c.b16 %v3438, %v3436
  %v3461 = vpack.c.b16 %v3439, %v3437
  %v3462 = vpack.c.b16 %v3442, %v3440
  %v3463 = vpack.c.b16 %v3443, %v3441
  %v3464 = vpack.c.b16 %v3446, %v3444
  %v3465 = vpack.c.b16 %v3447, %v3445
  %v3466 = vpack.c.b16 %v3450, %v3448
  %v3467 = vpack.c.b16 %v3451, %v3449
  %3476 = vrot.lane.b32.xlu0 %v73, 115
  %v3477 = vpop.permute.xlu0 %3476
  %3478 = vrot.lane.b32.xlu0 %v74, 115
  %v3479 = vpop.permute.xlu0 %3478
  %3480 = vrot.lane.b32.xlu0 %v75, 115
  %v3481 = vpop.permute.xlu0 %3480
  %3482 = vrot.lane.b32.xlu0 %v76, 115
  %v3483 = vpop.permute.xlu0 %3482
  %3484 = vrot.lane.b32.xlu0 %v77, 115
  %v3485 = vpop.permute.xlu0 %3484
  %3486 = vrot.lane.b32.xlu0 %v78, 115
  %v3487 = vpop.permute.xlu0 %3486
  %3488 = vrot.lane.b32.xlu0 %v79, 115
  %v3489 = vpop.permute.xlu0 %3488
  %3490 = vrot.lane.b32.xlu0 %v80, 115
  %v3491 = vpop.permute.xlu0 %3490
  %3492 = vrot.lane.b32.xlu0 %v81, 115
  %v3493 = vpop.permute.xlu0 %3492
  %3494 = vrot.lane.b32.xlu0 %v82, 115
  %v3495 = vpop.permute.xlu0 %3494
  %v3506 = vsel %vm227, %v3453, 0
  %v3509 = vsel %vm227, %v3455, 0
  %v3512 = vsel %vm227, %v3457, 0
  %v3515 = vsel %vm227, %v3459, 0
  %v3518 = vsel %vm227, %v3461, 0
  %v3521 = vsel %vm227, %v3463, 0
  %v3524 = vsel %vm227, %v3465, 0
  %v3527 = vsel %vm227, %v3467, 0
  %v3530 = vsel %vm252, %v3495, 0
  %3532 = vmatprep.subr.bf16.mxu0 0
  %3533 = vmatpush1.bf16.msra.mxu0 %v3491
  %3534 = vmatprep.subr.bf16.mxu0 0
  %3535 = vmatpush1.bf16.msra.mxu0 %v3489
  %3536 = vmatprep.subr.bf16.mxu0 0
  %3537 = vmatpush1.bf16.msra.mxu0 %v3487
  %3538 = vmatprep.subr.bf16.mxu0 0
  %3539 = vmatpush1.bf16.msra.mxu0 %v3485
  %3540 = vmatprep.subr.bf16.mxu0 0
  %3541 = vmatpush1.bf16.msra.mxu0 %v3483
  %3542 = vmatprep.subr.bf16.mxu0 0
  %3543 = vmatpush1.bf16.msra.mxu0 %v3481
  %3544 = vmatprep.subr.bf16.mxu0 0
  %3545 = vmatpush1.bf16.msra.mxu0 %v3479
  %3546 = vmatprep.subr.bf16.mxu0 0
  %3547 = vmatpush1.bf16.msra.mxu0 %v3477
  %3548 = vmatprep.subr.bf16.mxu0 0
  %3549 = vmatpush2.bf16.msra.mxu0 0
  %3550 = vmatprep.subr.bf16.mxu0 0
  %3551 = vmatpush2.bf16.msra.mxu0 0
  %3552 = vmatprep.subr.bf16.mxu0 0
  %3553 = vmatpush2.bf16.msra.mxu0 0
  %3554 = vmatprep.subr.bf16.mxu0 0
  %3555 = vmatpush2.bf16.msra.mxu0 0
  %3556 = vmatprep.subr.bf16.mxu0 0
  %3557 = vmatpush2.bf16.msra.mxu0 0
  %3558 = vmatprep.subr.bf16.mxu0 0
  %3559 = vmatpush2.bf16.msra.mxu0 0
  %3560 = vmatprep.subr.bf16.mxu0 0
  %3561 = vmatpush2.bf16.msra.mxu0 %v3530
  %3562 = vmatprep.subr.bf16.mxu0 0
  %3563 = vmatpush2.bf16.msra.mxu0 %v3493
  %3564 = vmatprep.mubr.bf16.mxu0 %v3506
  %3565 = vmatmul.mubr.bf16.gmra.mxu0 %v3452
  %v3566 = vpop.f32.mrf.mxu0
  %v3567 = vadd.f32 0.0, %v3566
  %v3568 = vpop.f32.mrf.mxu0
  %v3569 = vpop.f32.mrf.mxu0
  %v3570 = vadd.f32 0.0, %v3569
  %v3571 = vpop.f32.mrf.mxu0
  %3572 = vmatprep.mubr.bf16.mxu0 %v3509
  %3573 = vmatmul.mubr.bf16.gmra.mxu0 %v3454
  %v3574 = vpop.f32.mrf.mxu0
  %v3575 = vadd.f32 0.0, %v3574
  %v3576 = vpop.f32.mrf.mxu0
  %v3577 = vpop.f32.mrf.mxu0
  %v3578 = vadd.f32 0.0, %v3577
  %v3579 = vpop.f32.mrf.mxu0
  %3580 = vmatprep.mubr.bf16.mxu0 %v3512
  %3581 = vmatmul.mubr.bf16.gmra.mxu0 %v3456
  %v3582 = vpop.f32.mrf.mxu0
  %v3583 = vadd.f32 0.0, %v3582
  %v3584 = vpop.f32.mrf.mxu0
  %v3585 = vpop.f32.mrf.mxu0
  %v3586 = vadd.f32 0.0, %v3585
  %v3587 = vpop.f32.mrf.mxu0
  %3588 = vmatprep.mubr.bf16.mxu0 %v3515
  %3589 = vmatmul.mubr.bf16.gmra.mxu0 %v3458
  %v3590 = vpop.f32.mrf.mxu0
  %v3591 = vadd.f32 0.0, %v3590
  %v3592 = vpop.f32.mrf.mxu0
  %v3593 = vpop.f32.mrf.mxu0
  %v3594 = vadd.f32 0.0, %v3593
  %v3595 = vpop.f32.mrf.mxu0
  %3596 = vmatprep.mubr.bf16.mxu0 %v3518
  %3597 = vmatmul.mubr.bf16.gmra.mxu0 %v3460
  %v3598 = vpop.f32.mrf.mxu0
  %v3599 = vadd.f32 0.0, %v3598
  %v3600 = vpop.f32.mrf.mxu0
  %v3601 = vpop.f32.mrf.mxu0
  %v3602 = vadd.f32 0.0, %v3601
  %v3603 = vpop.f32.mrf.mxu0
  %3604 = vmatprep.mubr.bf16.mxu0 %v3521
  %3605 = vmatmul.mubr.bf16.gmra.mxu0 %v3462
  %v3606 = vpop.f32.mrf.mxu0
  %v3607 = vadd.f32 0.0, %v3606
  %v3608 = vpop.f32.mrf.mxu0
  %v3609 = vpop.f32.mrf.mxu0
  %v3610 = vadd.f32 0.0, %v3609
  %v3611 = vpop.f32.mrf.mxu0
  %3612 = vmatprep.mubr.bf16.mxu0 %v3524
  %3613 = vmatmul.mubr.bf16.gmra.mxu0 %v3464
  %v3614 = vpop.f32.mrf.mxu0
  %v3615 = vadd.f32 0.0, %v3614
  %v3616 = vpop.f32.mrf.mxu0
  %v3617 = vpop.f32.mrf.mxu0
  %v3618 = vadd.f32 0.0, %v3617
  %v3619 = vpop.f32.mrf.mxu0
  %3620 = vmatprep.mubr.bf16.mxu0 %v3527
  %3621 = vmatmul.mubr.bf16.gmra.mxu0 %v3466
  %v3622 = vpop.f32.mrf.mxu0
  %v3623 = vadd.f32 0.0, %v3622
  %v3624 = vpop.f32.mrf.mxu0
  %v3625 = vpop.f32.mrf.mxu0
  %v3626 = vadd.f32 0.0, %v3625
  %v3627 = vpop.f32.mrf.mxu0
  %3628 = vdwg.mxu0
  %v3629 = vadd.f32 %v3371, %v3567
  %v3630 = vadd.f32 %v3372, %v3570
  %v3631 = vadd.f32 %v3373, %v3575
  %v3632 = vadd.f32 %v3374, %v3578
  %v3633 = vadd.f32 %v3375, %v3583
  %v3634 = vadd.f32 %v3376, %v3586
  %v3635 = vadd.f32 %v3377, %v3591
  %v3636 = vadd.f32 %v3378, %v3594
  %v3637 = vadd.f32 %v3379, %v3599
  %v3638 = vadd.f32 %v3380, %v3602
  %v3639 = vadd.f32 %v3381, %v3607
  %v3640 = vadd.f32 %v3382, %v3610
  %v3641 = vadd.f32 %v3383, %v3615
  %v3642 = vadd.f32 %v3384, %v3618
  %v3643 = vadd.f32 %v3385, %v3623
  %v3644 = vadd.f32 %v3386, %v3626
  %s3645 = scalar_lea.vmem %s1, 1792
  %v3646 = vld [vmem:[%s3645] sm:$0xff]
  %v3647 = vld [vmem:[%s3645 + $0x8] sm:$0xff]
  %v3648 = vld [vmem:[%s3645 + $0x10] sm:$0xff]
  %v3649 = vld [vmem:[%s3645 + $0x18] sm:$0xff]
  %v3650 = vld [vmem:[%s3645 + $0x20] sm:$0xff]
  %v3651 = vld [vmem:[%s3645 + $0x28] sm:$0xff]
  %v3652 = vld [vmem:[%s3645 + $0x30] sm:$0xff]
  %v3653 = vld [vmem:[%s3645 + $0x38] sm:$0xff]
  %v3654 = vld [vmem:[%s3645 + $0x40] sm:$0xff]
  %v3655 = vld [vmem:[%s3645 + $0x48] sm:$0xff]
  %v3656 = vld [vmem:[%s3645 + $0x50] sm:$0xff]
  %v3657 = vld [vmem:[%s3645 + $0x58] sm:$0xff]
  %v3658 = vld [vmem:[%s3645 + $0x60] sm:$0xff]
  %v3659 = vld [vmem:[%s3645 + $0x68] sm:$0xff]
  %v3660 = vld [vmem:[%s3645 + $0x70] sm:$0xff]
  %v3661 = vld [vmem:[%s3645 + $0x78] sm:$0xff]
  %v3678 = vunpack.c.l.b16 %v3646
  %v3679 = vunpack.c.h.b16 %v3646
  %v3680 = vunpack.c.l.b16 %v3647
  %v3681 = vunpack.c.h.b16 %v3647
  %v3682 = vunpack.c.l.b16 %v3648
  %v3683 = vunpack.c.h.b16 %v3648
  %v3684 = vunpack.c.l.b16 %v3649
  %v3685 = vunpack.c.h.b16 %v3649
  %v3686 = vunpack.c.l.b16 %v3650
  %v3687 = vunpack.c.h.b16 %v3650
  %v3688 = vunpack.c.l.b16 %v3651
  %v3689 = vunpack.c.h.b16 %v3651
  %v3690 = vunpack.c.l.b16 %v3652
  %v3691 = vunpack.c.h.b16 %v3652
  %v3692 = vunpack.c.l.b16 %v3653
  %v3693 = vunpack.c.h.b16 %v3653
  %v3694 = vunpack.c.l.b16 %v3654
  %v3695 = vunpack.c.h.b16 %v3654
  %v3696 = vunpack.c.l.b16 %v3655
  %v3697 = vunpack.c.h.b16 %v3655
  %v3698 = vunpack.c.l.b16 %v3656
  %v3699 = vunpack.c.h.b16 %v3656
  %v3700 = vunpack.c.l.b16 %v3657
  %v3701 = vunpack.c.h.b16 %v3657
  %v3702 = vunpack.c.l.b16 %v3658
  %v3703 = vunpack.c.h.b16 %v3658
  %v3704 = vunpack.c.l.b16 %v3659
  %v3705 = vunpack.c.h.b16 %v3659
  %v3706 = vunpack.c.l.b16 %v3660
  %v3707 = vunpack.c.h.b16 %v3660
  %v3708 = vunpack.c.l.b16 %v3661
  %v3709 = vunpack.c.h.b16 %v3661
  %v3710 = vpack.c.b16 %v3680, %v3678
  %v3711 = vpack.c.b16 %v3681, %v3679
  %v3712 = vpack.c.b16 %v3684, %v3682
  %v3713 = vpack.c.b16 %v3685, %v3683
  %v3714 = vpack.c.b16 %v3688, %v3686
  %v3715 = vpack.c.b16 %v3689, %v3687
  %v3716 = vpack.c.b16 %v3692, %v3690
  %v3717 = vpack.c.b16 %v3693, %v3691
  %v3718 = vpack.c.b16 %v3696, %v3694
  %v3719 = vpack.c.b16 %v3697, %v3695
  %v3720 = vpack.c.b16 %v3700, %v3698
  %v3721 = vpack.c.b16 %v3701, %v3699
  %v3722 = vpack.c.b16 %v3704, %v3702
  %v3723 = vpack.c.b16 %v3705, %v3703
  %v3724 = vpack.c.b16 %v3708, %v3706
  %v3725 = vpack.c.b16 %v3709, %v3707
  %3734 = vrot.lane.b32.xlu0 %v73, 114
  %v3735 = vpop.permute.xlu0 %3734
  %3736 = vrot.lane.b32.xlu0 %v74, 114
  %v3737 = vpop.permute.xlu0 %3736
  %3738 = vrot.lane.b32.xlu0 %v75, 114
  %v3739 = vpop.permute.xlu0 %3738
  %3740 = vrot.lane.b32.xlu0 %v76, 114
  %v3741 = vpop.permute.xlu0 %3740
  %3742 = vrot.lane.b32.xlu0 %v77, 114
  %v3743 = vpop.permute.xlu0 %3742
  %3744 = vrot.lane.b32.xlu0 %v78, 114
  %v3745 = vpop.permute.xlu0 %3744
  %3746 = vrot.lane.b32.xlu0 %v79, 114
  %v3747 = vpop.permute.xlu0 %3746
  %3748 = vrot.lane.b32.xlu0 %v80, 114
  %v3749 = vpop.permute.xlu0 %3748
  %3750 = vrot.lane.b32.xlu0 %v81, 114
  %v3751 = vpop.permute.xlu0 %3750
  %3752 = vrot.lane.b32.xlu0 %v82, 114
  %v3753 = vpop.permute.xlu0 %3752
  %v3764 = vsel %vm227, %v3711, 0
  %v3767 = vsel %vm227, %v3713, 0
  %v3770 = vsel %vm227, %v3715, 0
  %v3773 = vsel %vm227, %v3717, 0
  %v3776 = vsel %vm227, %v3719, 0
  %v3779 = vsel %vm227, %v3721, 0
  %v3782 = vsel %vm227, %v3723, 0
  %v3785 = vsel %vm227, %v3725, 0
  %v3788 = vsel %vm252, %v3753, 0
  %3790 = vmatprep.subr.bf16.mxu0 0
  %3791 = vmatpush1.bf16.msra.mxu0 %v3749
  %3792 = vmatprep.subr.bf16.mxu0 0
  %3793 = vmatpush1.bf16.msra.mxu0 %v3747
  %3794 = vmatprep.subr.bf16.mxu0 0
  %3795 = vmatpush1.bf16.msra.mxu0 %v3745
  %3796 = vmatprep.subr.bf16.mxu0 0
  %3797 = vmatpush1.bf16.msra.mxu0 %v3743
  %3798 = vmatprep.subr.bf16.mxu0 0
  %3799 = vmatpush1.bf16.msra.mxu0 %v3741
  %3800 = vmatprep.subr.bf16.mxu0 0
  %3801 = vmatpush1.bf16.msra.mxu0 %v3739
  %3802 = vmatprep.subr.bf16.mxu0 0
  %3803 = vmatpush1.bf16.msra.mxu0 %v3737
  %3804 = vmatprep.subr.bf16.mxu0 0
  %3805 = vmatpush1.bf16.msra.mxu0 %v3735
  %3806 = vmatprep.subr.bf16.mxu0 0
  %3807 = vmatpush2.bf16.msra.mxu0 0
  %3808 = vmatprep.subr.bf16.mxu0 0
  %3809 = vmatpush2.bf16.msra.mxu0 0
  %3810 = vmatprep.subr.bf16.mxu0 0
  %3811 = vmatpush2.bf16.msra.mxu0 0
  %3812 = vmatprep.subr.bf16.mxu0 0
  %3813 = vmatpush2.bf16.msra.mxu0 0
  %3814 = vmatprep.subr.bf16.mxu0 0
  %3815 = vmatpush2.bf16.msra.mxu0 0
  %3816 = vmatprep.subr.bf16.mxu0 0
  %3817 = vmatpush2.bf16.msra.mxu0 0
  %3818 = vmatprep.subr.bf16.mxu0 0
  %3819 = vmatpush2.bf16.msra.mxu0 %v3788
  %3820 = vmatprep.subr.bf16.mxu0 0
  %3821 = vmatpush2.bf16.msra.mxu0 %v3751
  %3822 = vmatprep.mubr.bf16.mxu0 %v3764
  %3823 = vmatmul.mubr.bf16.gmra.mxu0 %v3710
  %v3824 = vpop.f32.mrf.mxu0
  %v3825 = vadd.f32 0.0, %v3824
  %v3826 = vpop.f32.mrf.mxu0
  %v3827 = vpop.f32.mrf.mxu0
  %v3828 = vadd.f32 0.0, %v3827
  %v3829 = vpop.f32.mrf.mxu0
  %3830 = vmatprep.mubr.bf16.mxu0 %v3767
  %3831 = vmatmul.mubr.bf16.gmra.mxu0 %v3712
  %v3832 = vpop.f32.mrf.mxu0
  %v3833 = vadd.f32 0.0, %v3832
  %v3834 = vpop.f32.mrf.mxu0
  %v3835 = vpop.f32.mrf.mxu0
  %v3836 = vadd.f32 0.0, %v3835
  %v3837 = vpop.f32.mrf.mxu0
  %3838 = vmatprep.mubr.bf16.mxu0 %v3770
  %3839 = vmatmul.mubr.bf16.gmra.mxu0 %v3714
  %v3840 = vpop.f32.mrf.mxu0
  %v3841 = vadd.f32 0.0, %v3840
  %v3842 = vpop.f32.mrf.mxu0
  %v3843 = vpop.f32.mrf.mxu0
  %v3844 = vadd.f32 0.0, %v3843
  %v3845 = vpop.f32.mrf.mxu0
  %3846 = vmatprep.mubr.bf16.mxu0 %v3773
  %3847 = vmatmul.mubr.bf16.gmra.mxu0 %v3716
  %v3848 = vpop.f32.mrf.mxu0
  %v3849 = vadd.f32 0.0, %v3848
  %v3850 = vpop.f32.mrf.mxu0
  %v3851 = vpop.f32.mrf.mxu0
  %v3852 = vadd.f32 0.0, %v3851
  %v3853 = vpop.f32.mrf.mxu0
  %3854 = vmatprep.mubr.bf16.mxu0 %v3776
  %3855 = vmatmul.mubr.bf16.gmra.mxu0 %v3718
  %v3856 = vpop.f32.mrf.mxu0
  %v3857 = vadd.f32 0.0, %v3856
  %v3858 = vpop.f32.mrf.mxu0
  %v3859 = vpop.f32.mrf.mxu0
  %v3860 = vadd.f32 0.0, %v3859
  %v3861 = vpop.f32.mrf.mxu0
  %3862 = vmatprep.mubr.bf16.mxu0 %v3779
  %3863 = vmatmul.mubr.bf16.gmra.mxu0 %v3720
  %v3864 = vpop.f32.mrf.mxu0
  %v3865 = vadd.f32 0.0, %v3864
  %v3866 = vpop.f32.mrf.mxu0
  %v3867 = vpop.f32.mrf.mxu0
  %v3868 = vadd.f32 0.0, %v3867
  %v3869 = vpop.f32.mrf.mxu0
  %3870 = vmatprep.mubr.bf16.mxu0 %v3782
  %3871 = vmatmul.mubr.bf16.gmra.mxu0 %v3722
  %v3872 = vpop.f32.mrf.mxu0
  %v3873 = vadd.f32 0.0, %v3872
  %v3874 = vpop.f32.mrf.mxu0
  %v3875 = vpop.f32.mrf.mxu0
  %v3876 = vadd.f32 0.0, %v3875
  %v3877 = vpop.f32.mrf.mxu0
  %3878 = vmatprep.mubr.bf16.mxu0 %v3785
  %3879 = vmatmul.mubr.bf16.gmra.mxu0 %v3724
  %v3880 = vpop.f32.mrf.mxu0
  %v3881 = vadd.f32 0.0, %v3880
  %v3882 = vpop.f32.mrf.mxu0
  %v3883 = vpop.f32.mrf.mxu0
  %v3884 = vadd.f32 0.0, %v3883
  %v3885 = vpop.f32.mrf.mxu0
  %3886 = vdwg.mxu0
  %v3887 = vadd.f32 %v3629, %v3825
  %v3888 = vadd.f32 %v3630, %v3828
  %v3889 = vadd.f32 %v3631, %v3833
  %v3890 = vadd.f32 %v3632, %v3836
  %v3891 = vadd.f32 %v3633, %v3841
  %v3892 = vadd.f32 %v3634, %v3844
  %v3893 = vadd.f32 %v3635, %v3849
  %v3894 = vadd.f32 %v3636, %v3852
  %v3895 = vadd.f32 %v3637, %v3857
  %v3896 = vadd.f32 %v3638, %v3860
  %v3897 = vadd.f32 %v3639, %v3865
  %v3898 = vadd.f32 %v3640, %v3868
  %v3899 = vadd.f32 %v3641, %v3873
  %v3900 = vadd.f32 %v3642, %v3876
  %v3901 = vadd.f32 %v3643, %v3881
  %v3902 = vadd.f32 %v3644, %v3884
  %s3903 = scalar_lea.vmem %s1, 1920
  %v3904 = vld [vmem:[%s3903] sm:$0xff]
  %v3905 = vld [vmem:[%s3903 + $0x8] sm:$0xff]
  %v3906 = vld [vmem:[%s3903 + $0x10] sm:$0xff]
  %v3907 = vld [vmem:[%s3903 + $0x18] sm:$0xff]
  %v3908 = vld [vmem:[%s3903 + $0x20] sm:$0xff]
  %v3909 = vld [vmem:[%s3903 + $0x28] sm:$0xff]
  %v3910 = vld [vmem:[%s3903 + $0x30] sm:$0xff]
  %v3911 = vld [vmem:[%s3903 + $0x38] sm:$0xff]
  %v3912 = vld [vmem:[%s3903 + $0x40] sm:$0xff]
  %v3913 = vld [vmem:[%s3903 + $0x48] sm:$0xff]
  %v3914 = vld [vmem:[%s3903 + $0x50] sm:$0xff]
  %v3915 = vld [vmem:[%s3903 + $0x58] sm:$0xff]
  %v3916 = vld [vmem:[%s3903 + $0x60] sm:$0xff]
  %v3917 = vld [vmem:[%s3903 + $0x68] sm:$0xff]
  %v3918 = vld [vmem:[%s3903 + $0x70] sm:$0xff]
  %v3919 = vld [vmem:[%s3903 + $0x78] sm:$0xff]
  %v3936 = vunpack.c.l.b16 %v3904
  %v3937 = vunpack.c.h.b16 %v3904
  %v3938 = vunpack.c.l.b16 %v3905
  %v3939 = vunpack.c.h.b16 %v3905
  %v3940 = vunpack.c.l.b16 %v3906
  %v3941 = vunpack.c.h.b16 %v3906
  %v3942 = vunpack.c.l.b16 %v3907
  %v3943 = vunpack.c.h.b16 %v3907
  %v3944 = vunpack.c.l.b16 %v3908
  %v3945 = vunpack.c.h.b16 %v3908
  %v3946 = vunpack.c.l.b16 %v3909
  %v3947 = vunpack.c.h.b16 %v3909
  %v3948 = vunpack.c.l.b16 %v3910
  %v3949 = vunpack.c.h.b16 %v3910
  %v3950 = vunpack.c.l.b16 %v3911
  %v3951 = vunpack.c.h.b16 %v3911
  %v3952 = vunpack.c.l.b16 %v3912
  %v3953 = vunpack.c.h.b16 %v3912
  %v3954 = vunpack.c.l.b16 %v3913
  %v3955 = vunpack.c.h.b16 %v3913
  %v3956 = vunpack.c.l.b16 %v3914
  %v3957 = vunpack.c.h.b16 %v3914
  %v3958 = vunpack.c.l.b16 %v3915
  %v3959 = vunpack.c.h.b16 %v3915
  %v3960 = vunpack.c.l.b16 %v3916
  %v3961 = vunpack.c.h.b16 %v3916
  %v3962 = vunpack.c.l.b16 %v3917
  %v3963 = vunpack.c.h.b16 %v3917
  %v3964 = vunpack.c.l.b16 %v3918
  %v3965 = vunpack.c.h.b16 %v3918
  %v3966 = vunpack.c.l.b16 %v3919
  %v3967 = vunpack.c.h.b16 %v3919
  %v3968 = vpack.c.b16 %v3938, %v3936
  %v3969 = vpack.c.b16 %v3939, %v3937
  %v3970 = vpack.c.b16 %v3942, %v3940
  %v3971 = vpack.c.b16 %v3943, %v3941
  %v3972 = vpack.c.b16 %v3946, %v3944
  %v3973 = vpack.c.b16 %v3947, %v3945
  %v3974 = vpack.c.b16 %v3950, %v3948
  %v3975 = vpack.c.b16 %v3951, %v3949
  %v3976 = vpack.c.b16 %v3954, %v3952
  %v3977 = vpack.c.b16 %v3955, %v3953
  %v3978 = vpack.c.b16 %v3958, %v3956
  %v3979 = vpack.c.b16 %v3959, %v3957
  %v3980 = vpack.c.b16 %v3962, %v3960
  %v3981 = vpack.c.b16 %v3963, %v3961
  %v3982 = vpack.c.b16 %v3966, %v3964
  %v3983 = vpack.c.b16 %v3967, %v3965
  %3992 = vrot.lane.b32.xlu0 %v73, 113
  %v3993 = vpop.permute.xlu0 %3992
  %3994 = vrot.lane.b32.xlu0 %v74, 113
  %v3995 = vpop.permute.xlu0 %3994
  %3996 = vrot.lane.b32.xlu0 %v75, 113
  %v3997 = vpop.permute.xlu0 %3996
  %3998 = vrot.lane.b32.xlu0 %v76, 113
  %v3999 = vpop.permute.xlu0 %3998
  %4000 = vrot.lane.b32.xlu0 %v77, 113
  %v4001 = vpop.permute.xlu0 %4000
  %4002 = vrot.lane.b32.xlu0 %v78, 113
  %v4003 = vpop.permute.xlu0 %4002
  %4004 = vrot.lane.b32.xlu0 %v79, 113
  %v4005 = vpop.permute.xlu0 %4004
  %4006 = vrot.lane.b32.xlu0 %v80, 113
  %v4007 = vpop.permute.xlu0 %4006
  %4008 = vrot.lane.b32.xlu0 %v81, 113
  %v4009 = vpop.permute.xlu0 %4008
  %4010 = vrot.lane.b32.xlu0 %v82, 113
  %v4011 = vpop.permute.xlu0 %4010
  %v4022 = vsel %vm227, %v3969, 0
  %v4025 = vsel %vm227, %v3971, 0
  %v4028 = vsel %vm227, %v3973, 0
  %v4031 = vsel %vm227, %v3975, 0
  %v4034 = vsel %vm227, %v3977, 0
  %v4037 = vsel %vm227, %v3979, 0
  %v4040 = vsel %vm227, %v3981, 0
  %v4043 = vsel %vm227, %v3983, 0
  %v4046 = vsel %vm252, %v4011, 0
  %4048 = vmatprep.subr.bf16.mxu0 0
  %4049 = vmatpush1.bf16.msra.mxu0 %v4007
  %4050 = vmatprep.subr.bf16.mxu0 0
  %4051 = vmatpush1.bf16.msra.mxu0 %v4005
  %4052 = vmatprep.subr.bf16.mxu0 0
  %4053 = vmatpush1.bf16.msra.mxu0 %v4003
  %4054 = vmatprep.subr.bf16.mxu0 0
  %4055 = vmatpush1.bf16.msra.mxu0 %v4001
  %4056 = vmatprep.subr.bf16.mxu0 0
  %4057 = vmatpush1.bf16.msra.mxu0 %v3999
  %4058 = vmatprep.subr.bf16.mxu0 0
  %4059 = vmatpush1.bf16.msra.mxu0 %v3997
  %4060 = vmatprep.subr.bf16.mxu0 0
  %4061 = vmatpush1.bf16.msra.mxu0 %v3995
  %4062 = vmatprep.subr.bf16.mxu0 0
  %4063 = vmatpush1.bf16.msra.mxu0 %v3993
  %4064 = vmatprep.subr.bf16.mxu0 0
  %4065 = vmatpush2.bf16.msra.mxu0 0
  %4066 = vmatprep.subr.bf16.mxu0 0
  %4067 = vmatpush2.bf16.msra.mxu0 0
  %4068 = vmatprep.subr.bf16.mxu0 0
  %4069 = vmatpush2.bf16.msra.mxu0 0
  %4070 = vmatprep.subr.bf16.mxu0 0
  %4071 = vmatpush2.bf16.msra.mxu0 0
  %4072 = vmatprep.subr.bf16.mxu0 0
  %4073 = vmatpush2.bf16.msra.mxu0 0
  %4074 = vmatprep.subr.bf16.mxu0 0
  %4075 = vmatpush2.bf16.msra.mxu0 0
  %4076 = vmatprep.subr.bf16.mxu0 0
  %4077 = vmatpush2.bf16.msra.mxu0 %v4046
  %4078 = vmatprep.subr.bf16.mxu0 0
  %4079 = vmatpush2.bf16.msra.mxu0 %v4009
  %4080 = vmatprep.mubr.bf16.mxu0 %v4022
  %4081 = vmatmul.mubr.bf16.gmra.mxu0 %v3968
  %v4082 = vpop.f32.mrf.mxu0
  %v4083 = vadd.f32 0.0, %v4082
  %v4084 = vpop.f32.mrf.mxu0
  %v4085 = vpop.f32.mrf.mxu0
  %v4086 = vadd.f32 0.0, %v4085
  %v4087 = vpop.f32.mrf.mxu0
  %4088 = vmatprep.mubr.bf16.mxu0 %v4025
  %4089 = vmatmul.mubr.bf16.gmra.mxu0 %v3970
  %v4090 = vpop.f32.mrf.mxu0
  %v4091 = vadd.f32 0.0, %v4090
  %v4092 = vpop.f32.mrf.mxu0
  %v4093 = vpop.f32.mrf.mxu0
  %v4094 = vadd.f32 0.0, %v4093
  %v4095 = vpop.f32.mrf.mxu0
  %4096 = vmatprep.mubr.bf16.mxu0 %v4028
  %4097 = vmatmul.mubr.bf16.gmra.mxu0 %v3972
  %v4098 = vpop.f32.mrf.mxu0
  %v4099 = vadd.f32 0.0, %v4098
  %v4100 = vpop.f32.mrf.mxu0
  %v4101 = vpop.f32.mrf.mxu0
  %v4102 = vadd.f32 0.0, %v4101
  %v4103 = vpop.f32.mrf.mxu0
  %4104 = vmatprep.mubr.bf16.mxu0 %v4031
  %4105 = vmatmul.mubr.bf16.gmra.mxu0 %v3974
  %v4106 = vpop.f32.mrf.mxu0
  %v4107 = vadd.f32 0.0, %v4106
  %v4108 = vpop.f32.mrf.mxu0
  %v4109 = vpop.f32.mrf.mxu0
  %v4110 = vadd.f32 0.0, %v4109
  %v4111 = vpop.f32.mrf.mxu0
  %4112 = vmatprep.mubr.bf16.mxu0 %v4034
  %4113 = vmatmul.mubr.bf16.gmra.mxu0 %v3976
  %v4114 = vpop.f32.mrf.mxu0
  %v4115 = vadd.f32 0.0, %v4114
  %v4116 = vpop.f32.mrf.mxu0
  %v4117 = vpop.f32.mrf.mxu0
  %v4118 = vadd.f32 0.0, %v4117
  %v4119 = vpop.f32.mrf.mxu0
  %4120 = vmatprep.mubr.bf16.mxu0 %v4037
  %4121 = vmatmul.mubr.bf16.gmra.mxu0 %v3978
  %v4122 = vpop.f32.mrf.mxu0
  %v4123 = vadd.f32 0.0, %v4122
  %v4124 = vpop.f32.mrf.mxu0
  %v4125 = vpop.f32.mrf.mxu0
  %v4126 = vadd.f32 0.0, %v4125
  %v4127 = vpop.f32.mrf.mxu0
  %4128 = vmatprep.mubr.bf16.mxu0 %v4040
  %4129 = vmatmul.mubr.bf16.gmra.mxu0 %v3980
  %v4130 = vpop.f32.mrf.mxu0
  %v4131 = vadd.f32 0.0, %v4130
  %v4132 = vpop.f32.mrf.mxu0
  %v4133 = vpop.f32.mrf.mxu0
  %v4134 = vadd.f32 0.0, %v4133
  %v4135 = vpop.f32.mrf.mxu0
  %4136 = vmatprep.mubr.bf16.mxu0 %v4043
  %4137 = vmatmul.mubr.bf16.gmra.mxu0 %v3982
  %v4138 = vpop.f32.mrf.mxu0
  %v4139 = vadd.f32 0.0, %v4138
  %v4140 = vpop.f32.mrf.mxu0
  %v4141 = vpop.f32.mrf.mxu0
  %v4142 = vadd.f32 0.0, %v4141
  %v4143 = vpop.f32.mrf.mxu0
  %4144 = vdwg.mxu0
  %v4145 = vadd.f32 %v3887, %v4083
  %v4146 = vadd.f32 %v3888, %v4086
  %v4147 = vadd.f32 %v3889, %v4091
  %v4148 = vadd.f32 %v3890, %v4094
  %v4149 = vadd.f32 %v3891, %v4099
  %v4150 = vadd.f32 %v3892, %v4102
  %v4151 = vadd.f32 %v3893, %v4107
  %v4152 = vadd.f32 %v3894, %v4110
  %v4153 = vadd.f32 %v3895, %v4115
  %v4154 = vadd.f32 %v3896, %v4118
  %v4155 = vadd.f32 %v3897, %v4123
  %v4156 = vadd.f32 %v3898, %v4126
  %v4157 = vadd.f32 %v3899, %v4131
  %v4158 = vadd.f32 %v3900, %v4134
  %v4159 = vadd.f32 %v3901, %v4139
  %v4160 = vadd.f32 %v3902, %v4142
  %s4161 = scalar_lea.vmem %s1, 2048
  %v4162 = vld [vmem:[%s4161] sm:$0xff]
  %v4163 = vld [vmem:[%s4161 + $0x8] sm:$0xff]
  %v4164 = vld [vmem:[%s4161 + $0x10] sm:$0xff]
  %v4165 = vld [vmem:[%s4161 + $0x18] sm:$0xff]
  %v4166 = vld [vmem:[%s4161 + $0x20] sm:$0xff]
  %v4167 = vld [vmem:[%s4161 + $0x28] sm:$0xff]
  %v4168 = vld [vmem:[%s4161 + $0x30] sm:$0xff]
  %v4169 = vld [vmem:[%s4161 + $0x38] sm:$0xff]
  %v4170 = vld [vmem:[%s4161 + $0x40] sm:$0xff]
  %v4171 = vld [vmem:[%s4161 + $0x48] sm:$0xff]
  %v4172 = vld [vmem:[%s4161 + $0x50] sm:$0xff]
  %v4173 = vld [vmem:[%s4161 + $0x58] sm:$0xff]
  %v4174 = vld [vmem:[%s4161 + $0x60] sm:$0xff]
  %v4175 = vld [vmem:[%s4161 + $0x68] sm:$0xff]
  %v4176 = vld [vmem:[%s4161 + $0x70] sm:$0xff]
  %v4177 = vld [vmem:[%s4161 + $0x78] sm:$0xff]
  %v4194 = vunpack.c.l.b16 %v4162
  %v4195 = vunpack.c.h.b16 %v4162
  %v4196 = vunpack.c.l.b16 %v4163
  %v4197 = vunpack.c.h.b16 %v4163
  %v4198 = vunpack.c.l.b16 %v4164
  %v4199 = vunpack.c.h.b16 %v4164
  %v4200 = vunpack.c.l.b16 %v4165
  %v4201 = vunpack.c.h.b16 %v4165
  %v4202 = vunpack.c.l.b16 %v4166
  %v4203 = vunpack.c.h.b16 %v4166
  %v4204 = vunpack.c.l.b16 %v4167
  %v4205 = vunpack.c.h.b16 %v4167
  %v4206 = vunpack.c.l.b16 %v4168
  %v4207 = vunpack.c.h.b16 %v4168
  %v4208 = vunpack.c.l.b16 %v4169
  %v4209 = vunpack.c.h.b16 %v4169
  %v4210 = vunpack.c.l.b16 %v4170
  %v4211 = vunpack.c.h.b16 %v4170
  %v4212 = vunpack.c.l.b16 %v4171
  %v4213 = vunpack.c.h.b16 %v4171
  %v4214 = vunpack.c.l.b16 %v4172
  %v4215 = vunpack.c.h.b16 %v4172
  %v4216 = vunpack.c.l.b16 %v4173
  %v4217 = vunpack.c.h.b16 %v4173
  %v4218 = vunpack.c.l.b16 %v4174
  %v4219 = vunpack.c.h.b16 %v4174
  %v4220 = vunpack.c.l.b16 %v4175
  %v4221 = vunpack.c.h.b16 %v4175
  %v4222 = vunpack.c.l.b16 %v4176
  %v4223 = vunpack.c.h.b16 %v4176
  %v4224 = vunpack.c.l.b16 %v4177
  %v4225 = vunpack.c.h.b16 %v4177
  %v4226 = vpack.c.b16 %v4196, %v4194
  %v4227 = vpack.c.b16 %v4197, %v4195
  %v4228 = vpack.c.b16 %v4200, %v4198
  %v4229 = vpack.c.b16 %v4201, %v4199
  %v4230 = vpack.c.b16 %v4204, %v4202
  %v4231 = vpack.c.b16 %v4205, %v4203
  %v4232 = vpack.c.b16 %v4208, %v4206
  %v4233 = vpack.c.b16 %v4209, %v4207
  %v4234 = vpack.c.b16 %v4212, %v4210
  %v4235 = vpack.c.b16 %v4213, %v4211
  %v4236 = vpack.c.b16 %v4216, %v4214
  %v4237 = vpack.c.b16 %v4217, %v4215
  %v4238 = vpack.c.b16 %v4220, %v4218
  %v4239 = vpack.c.b16 %v4221, %v4219
  %v4240 = vpack.c.b16 %v4224, %v4222
  %v4241 = vpack.c.b16 %v4225, %v4223
  %4250 = vrot.lane.b32.xlu0 %v73, 112
  %v4251 = vpop.permute.xlu0 %4250
  %4252 = vrot.lane.b32.xlu0 %v74, 112
  %v4253 = vpop.permute.xlu0 %4252
  %4254 = vrot.lane.b32.xlu0 %v75, 112
  %v4255 = vpop.permute.xlu0 %4254
  %4256 = vrot.lane.b32.xlu0 %v76, 112
  %v4257 = vpop.permute.xlu0 %4256
  %4258 = vrot.lane.b32.xlu0 %v77, 112
  %v4259 = vpop.permute.xlu0 %4258
  %4260 = vrot.lane.b32.xlu0 %v78, 112
  %v4261 = vpop.permute.xlu0 %4260
  %4262 = vrot.lane.b32.xlu0 %v79, 112
  %v4263 = vpop.permute.xlu0 %4262
  %4264 = vrot.lane.b32.xlu0 %v80, 112
  %v4265 = vpop.permute.xlu0 %4264
  %4266 = vrot.lane.b32.xlu0 %v81, 112
  %v4267 = vpop.permute.xlu0 %4266
  %4268 = vrot.lane.b32.xlu0 %v82, 112
  %v4269 = vpop.permute.xlu0 %4268
  %v4280 = vsel %vm227, %v4227, 0
  %v4283 = vsel %vm227, %v4229, 0
  %v4286 = vsel %vm227, %v4231, 0
  %v4289 = vsel %vm227, %v4233, 0
  %v4292 = vsel %vm227, %v4235, 0
  %v4295 = vsel %vm227, %v4237, 0
  %v4298 = vsel %vm227, %v4239, 0
  %v4301 = vsel %vm227, %v4241, 0
  %v4304 = vsel %vm252, %v4269, 0
  %4306 = vmatprep.subr.bf16.mxu0 0
  %4307 = vmatpush1.bf16.msra.mxu0 %v4265
  %4308 = vmatprep.subr.bf16.mxu0 0
  %4309 = vmatpush1.bf16.msra.mxu0 %v4263
  %4310 = vmatprep.subr.bf16.mxu0 0
  %4311 = vmatpush1.bf16.msra.mxu0 %v4261
  %4312 = vmatprep.subr.bf16.mxu0 0
  %4313 = vmatpush1.bf16.msra.mxu0 %v4259
  %4314 = vmatprep.subr.bf16.mxu0 0
  %4315 = vmatpush1.bf16.msra.mxu0 %v4257
  %4316 = vmatprep.subr.bf16.mxu0 0
  %4317 = vmatpush1.bf16.msra.mxu0 %v4255
  %4318 = vmatprep.subr.bf16.mxu0 0
  %4319 = vmatpush1.bf16.msra.mxu0 %v4253
  %4320 = vmatprep.subr.bf16.mxu0 0
  %4321 = vmatpush1.bf16.msra.mxu0 %v4251
  %4322 = vmatprep.subr.bf16.mxu0 0
  %4323 = vmatpush2.bf16.msra.mxu0 0
  %4324 = vmatprep.subr.bf16.mxu0 0
  %4325 = vmatpush2.bf16.msra.mxu0 0
  %4326 = vmatprep.subr.bf16.mxu0 0
  %4327 = vmatpush2.bf16.msra.mxu0 0
  %4328 = vmatprep.subr.bf16.mxu0 0
  %4329 = vmatpush2.bf16.msra.mxu0 0
  %4330 = vmatprep.subr.bf16.mxu0 0
  %4331 = vmatpush2.bf16.msra.mxu0 0
  %4332 = vmatprep.subr.bf16.mxu0 0
  %4333 = vmatpush2.bf16.msra.mxu0 0
  %4334 = vmatprep.subr.bf16.mxu0 0
  %4335 = vmatpush2.bf16.msra.mxu0 %v4304
  %4336 = vmatprep.subr.bf16.mxu0 0
  %4337 = vmatpush2.bf16.msra.mxu0 %v4267
  %4338 = vmatprep.mubr.bf16.mxu0 %v4280
  %4339 = vmatmul.mubr.bf16.gmra.mxu0 %v4226
  %v4340 = vpop.f32.mrf.mxu0
  %v4341 = vadd.f32 0.0, %v4340
  %v4342 = vpop.f32.mrf.mxu0
  %v4343 = vpop.f32.mrf.mxu0
  %v4344 = vadd.f32 0.0, %v4343
  %v4345 = vpop.f32.mrf.mxu0
  %4346 = vmatprep.mubr.bf16.mxu0 %v4283
  %4347 = vmatmul.mubr.bf16.gmra.mxu0 %v4228
  %v4348 = vpop.f32.mrf.mxu0
  %v4349 = vadd.f32 0.0, %v4348
  %v4350 = vpop.f32.mrf.mxu0
  %v4351 = vpop.f32.mrf.mxu0
  %v4352 = vadd.f32 0.0, %v4351
  %v4353 = vpop.f32.mrf.mxu0
  %4354 = vmatprep.mubr.bf16.mxu0 %v4286
  %4355 = vmatmul.mubr.bf16.gmra.mxu0 %v4230
  %v4356 = vpop.f32.mrf.mxu0
  %v4357 = vadd.f32 0.0, %v4356
  %v4358 = vpop.f32.mrf.mxu0
  %v4359 = vpop.f32.mrf.mxu0
  %v4360 = vadd.f32 0.0, %v4359
  %v4361 = vpop.f32.mrf.mxu0
  %4362 = vmatprep.mubr.bf16.mxu0 %v4289
  %4363 = vmatmul.mubr.bf16.gmra.mxu0 %v4232
  %v4364 = vpop.f32.mrf.mxu0
  %v4365 = vadd.f32 0.0, %v4364
  %v4366 = vpop.f32.mrf.mxu0
  %v4367 = vpop.f32.mrf.mxu0
  %v4368 = vadd.f32 0.0, %v4367
  %v4369 = vpop.f32.mrf.mxu0
  %4370 = vmatprep.mubr.bf16.mxu0 %v4292
  %4371 = vmatmul.mubr.bf16.gmra.mxu0 %v4234
  %v4372 = vpop.f32.mrf.mxu0
  %v4373 = vadd.f32 0.0, %v4372
  %v4374 = vpop.f32.mrf.mxu0
  %v4375 = vpop.f32.mrf.mxu0
  %v4376 = vadd.f32 0.0, %v4375
  %v4377 = vpop.f32.mrf.mxu0
  %4378 = vmatprep.mubr.bf16.mxu0 %v4295
  %4379 = vmatmul.mubr.bf16.gmra.mxu0 %v4236
  %v4380 = vpop.f32.mrf.mxu0
  %v4381 = vadd.f32 0.0, %v4380
  %v4382 = vpop.f32.mrf.mxu0
  %v4383 = vpop.f32.mrf.mxu0
  %v4384 = vadd.f32 0.0, %v4383
  %v4385 = vpop.f32.mrf.mxu0
  %4386 = vmatprep.mubr.bf16.mxu0 %v4298
  %4387 = vmatmul.mubr.bf16.gmra.mxu0 %v4238
  %v4388 = vpop.f32.mrf.mxu0
  %v4389 = vadd.f32 0.0, %v4388
  %v4390 = vpop.f32.mrf.mxu0
  %v4391 = vpop.f32.mrf.mxu0
  %v4392 = vadd.f32 0.0, %v4391
  %v4393 = vpop.f32.mrf.mxu0
  %4394 = vmatprep.mubr.bf16.mxu0 %v4301
  %4395 = vmatmul.mubr.bf16.gmra.mxu0 %v4240
  %v4396 = vpop.f32.mrf.mxu0
  %v4397 = vadd.f32 0.0, %v4396
  %v4398 = vpop.f32.mrf.mxu0
  %v4399 = vpop.f32.mrf.mxu0
  %v4400 = vadd.f32 0.0, %v4399
  %v4401 = vpop.f32.mrf.mxu0
  %4402 = vdwg.mxu0
  %v4403 = vadd.f32 %v4145, %v4341
  %v4404 = vadd.f32 %v4146, %v4344
  %v4405 = vadd.f32 %v4147, %v4349
  %v4406 = vadd.f32 %v4148, %v4352
  %v4407 = vadd.f32 %v4149, %v4357
  %v4408 = vadd.f32 %v4150, %v4360
  %v4409 = vadd.f32 %v4151, %v4365
  %v4410 = vadd.f32 %v4152, %v4368
  %v4411 = vadd.f32 %v4153, %v4373
  %v4412 = vadd.f32 %v4154, %v4376
  %v4413 = vadd.f32 %v4155, %v4381
  %v4414 = vadd.f32 %v4156, %v4384
  %v4415 = vadd.f32 %v4157, %v4389
  %v4416 = vadd.f32 %v4158, %v4392
  %v4417 = vadd.f32 %v4159, %v4397
  %v4418 = vadd.f32 %v4160, %v4400
  %s4419 = scalar_lea.vmem %s1, 2176
  %v4420 = vld [vmem:[%s4419] sm:$0xff]
  %v4421 = vld [vmem:[%s4419 + $0x8] sm:$0xff]
  %v4422 = vld [vmem:[%s4419 + $0x10] sm:$0xff]
  %v4423 = vld [vmem:[%s4419 + $0x18] sm:$0xff]
  %v4424 = vld [vmem:[%s4419 + $0x20] sm:$0xff]
  %v4425 = vld [vmem:[%s4419 + $0x28] sm:$0xff]
  %v4426 = vld [vmem:[%s4419 + $0x30] sm:$0xff]
  %v4427 = vld [vmem:[%s4419 + $0x38] sm:$0xff]
  %v4428 = vld [vmem:[%s4419 + $0x40] sm:$0xff]
  %v4429 = vld [vmem:[%s4419 + $0x48] sm:$0xff]
  %v4430 = vld [vmem:[%s4419 + $0x50] sm:$0xff]
  %v4431 = vld [vmem:[%s4419 + $0x58] sm:$0xff]
  %v4432 = vld [vmem:[%s4419 + $0x60] sm:$0xff]
  %v4433 = vld [vmem:[%s4419 + $0x68] sm:$0xff]
  %v4434 = vld [vmem:[%s4419 + $0x70] sm:$0xff]
  %v4435 = vld [vmem:[%s4419 + $0x78] sm:$0xff]
  %v4452 = vunpack.c.l.b16 %v4420
  %v4453 = vunpack.c.h.b16 %v4420
  %v4454 = vunpack.c.l.b16 %v4421
  %v4455 = vunpack.c.h.b16 %v4421
  %v4456 = vunpack.c.l.b16 %v4422
  %v4457 = vunpack.c.h.b16 %v4422
  %v4458 = vunpack.c.l.b16 %v4423
  %v4459 = vunpack.c.h.b16 %v4423
  %v4460 = vunpack.c.l.b16 %v4424
  %v4461 = vunpack.c.h.b16 %v4424
  %v4462 = vunpack.c.l.b16 %v4425
  %v4463 = vunpack.c.h.b16 %v4425
  %v4464 = vunpack.c.l.b16 %v4426
  %v4465 = vunpack.c.h.b16 %v4426
  %v4466 = vunpack.c.l.b16 %v4427
  %v4467 = vunpack.c.h.b16 %v4427
  %v4468 = vunpack.c.l.b16 %v4428
  %v4469 = vunpack.c.h.b16 %v4428
  %v4470 = vunpack.c.l.b16 %v4429
  %v4471 = vunpack.c.h.b16 %v4429
  %v4472 = vunpack.c.l.b16 %v4430
  %v4473 = vunpack.c.h.b16 %v4430
  %v4474 = vunpack.c.l.b16 %v4431
  %v4475 = vunpack.c.h.b16 %v4431
  %v4476 = vunpack.c.l.b16 %v4432
  %v4477 = vunpack.c.h.b16 %v4432
  %v4478 = vunpack.c.l.b16 %v4433
  %v4479 = vunpack.c.h.b16 %v4433
  %v4480 = vunpack.c.l.b16 %v4434
  %v4481 = vunpack.c.h.b16 %v4434
  %v4482 = vunpack.c.l.b16 %v4435
  %v4483 = vunpack.c.h.b16 %v4435
  %v4484 = vpack.c.b16 %v4454, %v4452
  %v4485 = vpack.c.b16 %v4455, %v4453
  %v4486 = vpack.c.b16 %v4458, %v4456
  %v4487 = vpack.c.b16 %v4459, %v4457
  %v4488 = vpack.c.b16 %v4462, %v4460
  %v4489 = vpack.c.b16 %v4463, %v4461
  %v4490 = vpack.c.b16 %v4466, %v4464
  %v4491 = vpack.c.b16 %v4467, %v4465
  %v4492 = vpack.c.b16 %v4470, %v4468
  %v4493 = vpack.c.b16 %v4471, %v4469
  %v4494 = vpack.c.b16 %v4474, %v4472
  %v4495 = vpack.c.b16 %v4475, %v4473
  %v4496 = vpack.c.b16 %v4478, %v4476
  %v4497 = vpack.c.b16 %v4479, %v4477
  %v4498 = vpack.c.b16 %v4482, %v4480
  %v4499 = vpack.c.b16 %v4483, %v4481
  %4508 = vrot.lane.b32.xlu0 %v73, 111
  %v4509 = vpop.permute.xlu0 %4508
  %4510 = vrot.lane.b32.xlu0 %v74, 111
  %v4511 = vpop.permute.xlu0 %4510
  %4512 = vrot.lane.b32.xlu0 %v75, 111
  %v4513 = vpop.permute.xlu0 %4512
  %4514 = vrot.lane.b32.xlu0 %v76, 111
  %v4515 = vpop.permute.xlu0 %4514
  %4516 = vrot.lane.b32.xlu0 %v77, 111
  %v4517 = vpop.permute.xlu0 %4516
  %4518 = vrot.lane.b32.xlu0 %v78, 111
  %v4519 = vpop.permute.xlu0 %4518
  %4520 = vrot.lane.b32.xlu0 %v79, 111
  %v4521 = vpop.permute.xlu0 %4520
  %4522 = vrot.lane.b32.xlu0 %v80, 111
  %v4523 = vpop.permute.xlu0 %4522
  %4524 = vrot.lane.b32.xlu0 %v81, 111
  %v4525 = vpop.permute.xlu0 %4524
  %4526 = vrot.lane.b32.xlu0 %v82, 111
  %v4527 = vpop.permute.xlu0 %4526
  %v4538 = vsel %vm227, %v4485, 0
  %v4541 = vsel %vm227, %v4487, 0
  %v4544 = vsel %vm227, %v4489, 0
  %v4547 = vsel %vm227, %v4491, 0
  %v4550 = vsel %vm227, %v4493, 0
  %v4553 = vsel %vm227, %v4495, 0
  %v4556 = vsel %vm227, %v4497, 0
  %v4559 = vsel %vm227, %v4499, 0
  %v4562 = vsel %vm252, %v4527, 0
  %4564 = vmatprep.subr.bf16.mxu0 0
  %4565 = vmatpush1.bf16.msra.mxu0 %v4523
  %4566 = vmatprep.subr.bf16.mxu0 0
  %4567 = vmatpush1.bf16.msra.mxu0 %v4521
  %4568 = vmatprep.subr.bf16.mxu0 0
  %4569 = vmatpush1.bf16.msra.mxu0 %v4519
  %4570 = vmatprep.subr.bf16.mxu0 0
  %4571 = vmatpush1.bf16.msra.mxu0 %v4517
  %4572 = vmatprep.subr.bf16.mxu0 0
  %4573 = vmatpush1.bf16.msra.mxu0 %v4515
  %4574 = vmatprep.subr.bf16.mxu0 0
  %4575 = vmatpush1.bf16.msra.mxu0 %v4513
  %4576 = vmatprep.subr.bf16.mxu0 0
  %4577 = vmatpush1.bf16.msra.mxu0 %v4511
  %4578 = vmatprep.subr.bf16.mxu0 0
  %4579 = vmatpush1.bf16.msra.mxu0 %v4509
  %4580 = vmatprep.subr.bf16.mxu0 0
  %4581 = vmatpush2.bf16.msra.mxu0 0
  %4582 = vmatprep.subr.bf16.mxu0 0
  %4583 = vmatpush2.bf16.msra.mxu0 0
  %4584 = vmatprep.subr.bf16.mxu0 0
  %4585 = vmatpush2.bf16.msra.mxu0 0
  %4586 = vmatprep.subr.bf16.mxu0 0
  %4587 = vmatpush2.bf16.msra.mxu0 0
  %4588 = vmatprep.subr.bf16.mxu0 0
  %4589 = vmatpush2.bf16.msra.mxu0 0
  %4590 = vmatprep.subr.bf16.mxu0 0
  %4591 = vmatpush2.bf16.msra.mxu0 0
  %4592 = vmatprep.subr.bf16.mxu0 0
  %4593 = vmatpush2.bf16.msra.mxu0 %v4562
  %4594 = vmatprep.subr.bf16.mxu0 0
  %4595 = vmatpush2.bf16.msra.mxu0 %v4525
  %4596 = vmatprep.mubr.bf16.mxu0 %v4538
  %4597 = vmatmul.mubr.bf16.gmra.mxu0 %v4484
  %v4598 = vpop.f32.mrf.mxu0
  %v4599 = vadd.f32 0.0, %v4598
  %v4600 = vpop.f32.mrf.mxu0
  %v4601 = vpop.f32.mrf.mxu0
  %v4602 = vadd.f32 0.0, %v4601
  %v4603 = vpop.f32.mrf.mxu0
  %4604 = vmatprep.mubr.bf16.mxu0 %v4541
  %4605 = vmatmul.mubr.bf16.gmra.mxu0 %v4486
  %v4606 = vpop.f32.mrf.mxu0
  %v4607 = vadd.f32 0.0, %v4606
  %v4608 = vpop.f32.mrf.mxu0
  %v4609 = vpop.f32.mrf.mxu0
  %v4610 = vadd.f32 0.0, %v4609
  %v4611 = vpop.f32.mrf.mxu0
  %4612 = vmatprep.mubr.bf16.mxu0 %v4544
  %4613 = vmatmul.mubr.bf16.gmra.mxu0 %v4488
  %v4614 = vpop.f32.mrf.mxu0
  %v4615 = vadd.f32 0.0, %v4614
  %v4616 = vpop.f32.mrf.mxu0
  %v4617 = vpop.f32.mrf.mxu0
  %v4618 = vadd.f32 0.0, %v4617
  %v4619 = vpop.f32.mrf.mxu0
  %4620 = vmatprep.mubr.bf16.mxu0 %v4547
  %4621 = vmatmul.mubr.bf16.gmra.mxu0 %v4490
  %v4622 = vpop.f32.mrf.mxu0
  %v4623 = vadd.f32 0.0, %v4622
  %v4624 = vpop.f32.mrf.mxu0
  %v4625 = vpop.f32.mrf.mxu0
  %v4626 = vadd.f32 0.0, %v4625
  %v4627 = vpop.f32.mrf.mxu0
  %4628 = vmatprep.mubr.bf16.mxu0 %v4550
  %4629 = vmatmul.mubr.bf16.gmra.mxu0 %v4492
  %v4630 = vpop.f32.mrf.mxu0
  %v4631 = vadd.f32 0.0, %v4630
  %v4632 = vpop.f32.mrf.mxu0
  %v4633 = vpop.f32.mrf.mxu0
  %v4634 = vadd.f32 0.0, %v4633
  %v4635 = vpop.f32.mrf.mxu0
  %4636 = vmatprep.mubr.bf16.mxu0 %v4553
  %4637 = vmatmul.mubr.bf16.gmra.mxu0 %v4494
  %v4638 = vpop.f32.mrf.mxu0
  %v4639 = vadd.f32 0.0, %v4638
  %v4640 = vpop.f32.mrf.mxu0
  %v4641 = vpop.f32.mrf.mxu0
  %v4642 = vadd.f32 0.0, %v4641
  %v4643 = vpop.f32.mrf.mxu0
  %4644 = vmatprep.mubr.bf16.mxu0 %v4556
  %4645 = vmatmul.mubr.bf16.gmra.mxu0 %v4496
  %v4646 = vpop.f32.mrf.mxu0
  %v4647 = vadd.f32 0.0, %v4646
  %v4648 = vpop.f32.mrf.mxu0
  %v4649 = vpop.f32.mrf.mxu0
  %v4650 = vadd.f32 0.0, %v4649
  %v4651 = vpop.f32.mrf.mxu0
  %4652 = vmatprep.mubr.bf16.mxu0 %v4559
  %4653 = vmatmul.mubr.bf16.gmra.mxu0 %v4498
  %v4654 = vpop.f32.mrf.mxu0
  %v4655 = vadd.f32 0.0, %v4654
  %v4656 = vpop.f32.mrf.mxu0
  %v4657 = vpop.f32.mrf.mxu0
  %v4658 = vadd.f32 0.0, %v4657
  %v4659 = vpop.f32.mrf.mxu0
  %4660 = vdwg.mxu0
  %v4661 = vadd.f32 %v4403, %v4599
  %v4662 = vadd.f32 %v4404, %v4602
  %v4663 = vadd.f32 %v4405, %v4607
  %v4664 = vadd.f32 %v4406, %v4610
  %v4665 = vadd.f32 %v4407, %v4615
  %v4666 = vadd.f32 %v4408, %v4618
  %v4667 = vadd.f32 %v4409, %v4623
  %v4668 = vadd.f32 %v4410, %v4626
  %v4669 = vadd.f32 %v4411, %v4631
  %v4670 = vadd.f32 %v4412, %v4634
  %v4671 = vadd.f32 %v4413, %v4639
  %v4672 = vadd.f32 %v4414, %v4642
  %v4673 = vadd.f32 %v4415, %v4647
  %v4674 = vadd.f32 %v4416, %v4650
  %v4675 = vadd.f32 %v4417, %v4655
  %v4676 = vadd.f32 %v4418, %v4658
  %s4677 = scalar_lea.vmem %s1, 2304
  %v4678 = vld [vmem:[%s4677] sm:$0xff]
  %v4679 = vld [vmem:[%s4677 + $0x8] sm:$0xff]
  %v4680 = vld [vmem:[%s4677 + $0x10] sm:$0xff]
  %v4681 = vld [vmem:[%s4677 + $0x18] sm:$0xff]
  %v4682 = vld [vmem:[%s4677 + $0x20] sm:$0xff]
  %v4683 = vld [vmem:[%s4677 + $0x28] sm:$0xff]
  %v4684 = vld [vmem:[%s4677 + $0x30] sm:$0xff]
  %v4685 = vld [vmem:[%s4677 + $0x38] sm:$0xff]
  %v4686 = vld [vmem:[%s4677 + $0x40] sm:$0xff]
  %v4687 = vld [vmem:[%s4677 + $0x48] sm:$0xff]
  %v4688 = vld [vmem:[%s4677 + $0x50] sm:$0xff]
  %v4689 = vld [vmem:[%s4677 + $0x58] sm:$0xff]
  %v4690 = vld [vmem:[%s4677 + $0x60] sm:$0xff]
  %v4691 = vld [vmem:[%s4677 + $0x68] sm:$0xff]
  %v4692 = vld [vmem:[%s4677 + $0x70] sm:$0xff]
  %v4693 = vld [vmem:[%s4677 + $0x78] sm:$0xff]
  %v4710 = vunpack.c.l.b16 %v4678
  %v4711 = vunpack.c.h.b16 %v4678
  %v4712 = vunpack.c.l.b16 %v4679
  %v4713 = vunpack.c.h.b16 %v4679
  %v4714 = vunpack.c.l.b16 %v4680
  %v4715 = vunpack.c.h.b16 %v4680
  %v4716 = vunpack.c.l.b16 %v4681
  %v4717 = vunpack.c.h.b16 %v4681
  %v4718 = vunpack.c.l.b16 %v4682
  %v4719 = vunpack.c.h.b16 %v4682
  %v4720 = vunpack.c.l.b16 %v4683
  %v4721 = vunpack.c.h.b16 %v4683
  %v4722 = vunpack.c.l.b16 %v4684
  %v4723 = vunpack.c.h.b16 %v4684
  %v4724 = vunpack.c.l.b16 %v4685
  %v4725 = vunpack.c.h.b16 %v4685
  %v4726 = vunpack.c.l.b16 %v4686
  %v4727 = vunpack.c.h.b16 %v4686
  %v4728 = vunpack.c.l.b16 %v4687
  %v4729 = vunpack.c.h.b16 %v4687
  %v4730 = vunpack.c.l.b16 %v4688
  %v4731 = vunpack.c.h.b16 %v4688
  %v4732 = vunpack.c.l.b16 %v4689
  %v4733 = vunpack.c.h.b16 %v4689
  %v4734 = vunpack.c.l.b16 %v4690
  %v4735 = vunpack.c.h.b16 %v4690
  %v4736 = vunpack.c.l.b16 %v4691
  %v4737 = vunpack.c.h.b16 %v4691
  %v4738 = vunpack.c.l.b16 %v4692
  %v4739 = vunpack.c.h.b16 %v4692
  %v4740 = vunpack.c.l.b16 %v4693
  %v4741 = vunpack.c.h.b16 %v4693
  %v4742 = vpack.c.b16 %v4712, %v4710
  %v4743 = vpack.c.b16 %v4713, %v4711
  %v4744 = vpack.c.b16 %v4716, %v4714
  %v4745 = vpack.c.b16 %v4717, %v4715
  %v4746 = vpack.c.b16 %v4720, %v4718
  %v4747 = vpack.c.b16 %v4721, %v4719
  %v4748 = vpack.c.b16 %v4724, %v4722
  %v4749 = vpack.c.b16 %v4725, %v4723
  %v4750 = vpack.c.b16 %v4728, %v4726
  %v4751 = vpack.c.b16 %v4729, %v4727
  %v4752 = vpack.c.b16 %v4732, %v4730
  %v4753 = vpack.c.b16 %v4733, %v4731
  %v4754 = vpack.c.b16 %v4736, %v4734
  %v4755 = vpack.c.b16 %v4737, %v4735
  %v4756 = vpack.c.b16 %v4740, %v4738
  %v4757 = vpack.c.b16 %v4741, %v4739
  %4766 = vrot.lane.b32.xlu0 %v73, 110
  %v4767 = vpop.permute.xlu0 %4766
  %4768 = vrot.lane.b32.xlu0 %v74, 110
  %v4769 = vpop.permute.xlu0 %4768
  %4770 = vrot.lane.b32.xlu0 %v75, 110
  %v4771 = vpop.permute.xlu0 %4770
  %4772 = vrot.lane.b32.xlu0 %v76, 110
  %v4773 = vpop.permute.xlu0 %4772
  %4774 = vrot.lane.b32.xlu0 %v77, 110
  %v4775 = vpop.permute.xlu0 %4774
  %4776 = vrot.lane.b32.xlu0 %v78, 110
  %v4777 = vpop.permute.xlu0 %4776
  %4778 = vrot.lane.b32.xlu0 %v79, 110
  %v4779 = vpop.permute.xlu0 %4778
  %4780 = vrot.lane.b32.xlu0 %v80, 110
  %v4781 = vpop.permute.xlu0 %4780
  %4782 = vrot.lane.b32.xlu0 %v81, 110
  %v4783 = vpop.permute.xlu0 %4782
  %4784 = vrot.lane.b32.xlu0 %v82, 110
  %v4785 = vpop.permute.xlu0 %4784
  %v4796 = vsel %vm227, %v4743, 0
  %v4799 = vsel %vm227, %v4745, 0
  %v4802 = vsel %vm227, %v4747, 0
  %v4805 = vsel %vm227, %v4749, 0
  %v4808 = vsel %vm227, %v4751, 0
  %v4811 = vsel %vm227, %v4753, 0
  %v4814 = vsel %vm227, %v4755, 0
  %v4817 = vsel %vm227, %v4757, 0
  %v4820 = vsel %vm252, %v4785, 0
  %4822 = vmatprep.subr.bf16.mxu0 0
  %4823 = vmatpush1.bf16.msra.mxu0 %v4781
  %4824 = vmatprep.subr.bf16.mxu0 0
  %4825 = vmatpush1.bf16.msra.mxu0 %v4779
  %4826 = vmatprep.subr.bf16.mxu0 0
  %4827 = vmatpush1.bf16.msra.mxu0 %v4777
  %4828 = vmatprep.subr.bf16.mxu0 0
  %4829 = vmatpush1.bf16.msra.mxu0 %v4775
  %4830 = vmatprep.subr.bf16.mxu0 0
  %4831 = vmatpush1.bf16.msra.mxu0 %v4773
  %4832 = vmatprep.subr.bf16.mxu0 0
  %4833 = vmatpush1.bf16.msra.mxu0 %v4771
  %4834 = vmatprep.subr.bf16.mxu0 0
  %4835 = vmatpush1.bf16.msra.mxu0 %v4769
  %4836 = vmatprep.subr.bf16.mxu0 0
  %4837 = vmatpush1.bf16.msra.mxu0 %v4767
  %4838 = vmatprep.subr.bf16.mxu0 0
  %4839 = vmatpush2.bf16.msra.mxu0 0
  %4840 = vmatprep.subr.bf16.mxu0 0
  %4841 = vmatpush2.bf16.msra.mxu0 0
  %4842 = vmatprep.subr.bf16.mxu0 0
  %4843 = vmatpush2.bf16.msra.mxu0 0
  %4844 = vmatprep.subr.bf16.mxu0 0
  %4845 = vmatpush2.bf16.msra.mxu0 0
  %4846 = vmatprep.subr.bf16.mxu0 0
  %4847 = vmatpush2.bf16.msra.mxu0 0
  %4848 = vmatprep.subr.bf16.mxu0 0
  %4849 = vmatpush2.bf16.msra.mxu0 0
  %4850 = vmatprep.subr.bf16.mxu0 0
  %4851 = vmatpush2.bf16.msra.mxu0 %v4820
  %4852 = vmatprep.subr.bf16.mxu0 0
  %4853 = vmatpush2.bf16.msra.mxu0 %v4783
  %4854 = vmatprep.mubr.bf16.mxu0 %v4796
  %4855 = vmatmul.mubr.bf16.gmra.mxu0 %v4742
  %v4856 = vpop.f32.mrf.mxu0
  %v4857 = vadd.f32 0.0, %v4856
  %v4858 = vpop.f32.mrf.mxu0
  %v4859 = vpop.f32.mrf.mxu0
  %v4860 = vadd.f32 0.0, %v4859
  %v4861 = vpop.f32.mrf.mxu0
  %4862 = vmatprep.mubr.bf16.mxu0 %v4799
  %4863 = vmatmul.mubr.bf16.gmra.mxu0 %v4744
  %v4864 = vpop.f32.mrf.mxu0
  %v4865 = vadd.f32 0.0, %v4864
  %v4866 = vpop.f32.mrf.mxu0
  %v4867 = vpop.f32.mrf.mxu0
  %v4868 = vadd.f32 0.0, %v4867
  %v4869 = vpop.f32.mrf.mxu0
  %4870 = vmatprep.mubr.bf16.mxu0 %v4802
  %4871 = vmatmul.mubr.bf16.gmra.mxu0 %v4746
  %v4872 = vpop.f32.mrf.mxu0
  %v4873 = vadd.f32 0.0, %v4872
  %v4874 = vpop.f32.mrf.mxu0
  %v4875 = vpop.f32.mrf.mxu0
  %v4876 = vadd.f32 0.0, %v4875
  %v4877 = vpop.f32.mrf.mxu0
  %4878 = vmatprep.mubr.bf16.mxu0 %v4805
  %4879 = vmatmul.mubr.bf16.gmra.mxu0 %v4748
  %v4880 = vpop.f32.mrf.mxu0
  %v4881 = vadd.f32 0.0, %v4880
  %v4882 = vpop.f32.mrf.mxu0
  %v4883 = vpop.f32.mrf.mxu0
  %v4884 = vadd.f32 0.0, %v4883
  %v4885 = vpop.f32.mrf.mxu0
  %4886 = vmatprep.mubr.bf16.mxu0 %v4808
  %4887 = vmatmul.mubr.bf16.gmra.mxu0 %v4750
  %v4888 = vpop.f32.mrf.mxu0
  %v4889 = vadd.f32 0.0, %v4888
  %v4890 = vpop.f32.mrf.mxu0
  %v4891 = vpop.f32.mrf.mxu0
  %v4892 = vadd.f32 0.0, %v4891
  %v4893 = vpop.f32.mrf.mxu0
  %4894 = vmatprep.mubr.bf16.mxu0 %v4811
  %4895 = vmatmul.mubr.bf16.gmra.mxu0 %v4752
  %v4896 = vpop.f32.mrf.mxu0
  %v4897 = vadd.f32 0.0, %v4896
  %v4898 = vpop.f32.mrf.mxu0
  %v4899 = vpop.f32.mrf.mxu0
  %v4900 = vadd.f32 0.0, %v4899
  %v4901 = vpop.f32.mrf.mxu0
  %4902 = vmatprep.mubr.bf16.mxu0 %v4814
  %4903 = vmatmul.mubr.bf16.gmra.mxu0 %v4754
  %v4904 = vpop.f32.mrf.mxu0
  %v4905 = vadd.f32 0.0, %v4904
  %v4906 = vpop.f32.mrf.mxu0
  %v4907 = vpop.f32.mrf.mxu0
  %v4908 = vadd.f32 0.0, %v4907
  %v4909 = vpop.f32.mrf.mxu0
  %4910 = vmatprep.mubr.bf16.mxu0 %v4817
  %4911 = vmatmul.mubr.bf16.gmra.mxu0 %v4756
  %v4912 = vpop.f32.mrf.mxu0
  %v4913 = vadd.f32 0.0, %v4912
  %v4914 = vpop.f32.mrf.mxu0
  %v4915 = vpop.f32.mrf.mxu0
  %v4916 = vadd.f32 0.0, %v4915
  %v4917 = vpop.f32.mrf.mxu0
  %4918 = vdwg.mxu0
  %v4919 = vadd.f32 %v4661, %v4857
  %v4920 = vadd.f32 %v4662, %v4860
  %v4921 = vadd.f32 %v4663, %v4865
  %v4922 = vadd.f32 %v4664, %v4868
  %v4923 = vadd.f32 %v4665, %v4873
  %v4924 = vadd.f32 %v4666, %v4876
  %v4925 = vadd.f32 %v4667, %v4881
  %v4926 = vadd.f32 %v4668, %v4884
  %v4927 = vadd.f32 %v4669, %v4889
  %v4928 = vadd.f32 %v4670, %v4892
  %v4929 = vadd.f32 %v4671, %v4897
  %v4930 = vadd.f32 %v4672, %v4900
  %v4931 = vadd.f32 %v4673, %v4905
  %v4932 = vadd.f32 %v4674, %v4908
  %v4933 = vadd.f32 %v4675, %v4913
  %v4934 = vadd.f32 %v4676, %v4916
  %v4935 = vld [vmem:[%s2] sm:$0xff]
  %v4936 = vld [vmem:[%s2 + $0x8] sm:$0xff]
  %v4937 = vld [vmem:[%s2 + $0x10] sm:$0xff]
  %v4938 = vld [vmem:[%s2 + $0x18] sm:$0xff]
  %v4939 = vld [vmem:[%s2 + $0x20] sm:$0xff]
  %v4940 = vld [vmem:[%s2 + $0x28] sm:$0xff]
  %v4941 = vld [vmem:[%s2 + $0x30] sm:$0xff]
  %v4942 = vld [vmem:[%s2 + $0x38] sm:$0xff]
  %v4943 = vld [vmem:[%s2 + $0x40] sm:$0xff]
  %v4944 = vld [vmem:[%s2 + $0x48] sm:$0xff]
  %v4945 = vld [vmem:[%s2 + $0x50] sm:$0xff]
  %v4946 = vld [vmem:[%s2 + $0x58] sm:$0xff]
  %v4947 = vld [vmem:[%s2 + $0x60] sm:$0xff]
  %v4948 = vld [vmem:[%s2 + $0x68] sm:$0xff]
  %v4949 = vld [vmem:[%s2 + $0x70] sm:$0xff]
  %v4950 = vld [vmem:[%s2 + $0x78] sm:$0xff]
  %4952 = vset.pattern.permute.xlu0 0
  %4953 = vperm.xlu0 %4952, %v4935
  %v4954 = vpop.permute.xlu0 %4953
  %4957 = vset.pattern.permute.xlu0 0
  %4958 = vperm.xlu0 %4957, %v4936
  %v4959 = vpop.permute.xlu0 %4958
  %4962 = vset.pattern.permute.xlu0 0
  %4963 = vperm.xlu0 %4962, %v4937
  %v4964 = vpop.permute.xlu0 %4963
  %4967 = vset.pattern.permute.xlu0 0
  %4968 = vperm.xlu0 %4967, %v4938
  %v4969 = vpop.permute.xlu0 %4968
  %4972 = vset.pattern.permute.xlu0 0
  %4973 = vperm.xlu0 %4972, %v4939
  %v4974 = vpop.permute.xlu0 %4973
  %4977 = vset.pattern.permute.xlu0 0
  %4978 = vperm.xlu0 %4977, %v4940
  %v4979 = vpop.permute.xlu0 %4978
  %4982 = vset.pattern.permute.xlu0 0
  %4983 = vperm.xlu0 %4982, %v4941
  %v4984 = vpop.permute.xlu0 %4983
  %4987 = vset.pattern.permute.xlu0 0
  %4988 = vperm.xlu0 %4987, %v4942
  %v4989 = vpop.permute.xlu0 %4988
  %4992 = vset.pattern.permute.xlu0 0
  %4993 = vperm.xlu0 %4992, %v4943
  %v4994 = vpop.permute.xlu0 %4993
  %4997 = vset.pattern.permute.xlu0 0
  %4998 = vperm.xlu0 %4997, %v4944
  %v4999 = vpop.permute.xlu0 %4998
  %5002 = vset.pattern.permute.xlu0 0
  %5003 = vperm.xlu0 %5002, %v4945
  %v5004 = vpop.permute.xlu0 %5003
  %5007 = vset.pattern.permute.xlu0 0
  %5008 = vperm.xlu0 %5007, %v4946
  %v5009 = vpop.permute.xlu0 %5008
  %5012 = vset.pattern.permute.xlu0 0
  %5013 = vperm.xlu0 %5012, %v4947
  %v5014 = vpop.permute.xlu0 %5013
  %5017 = vset.pattern.permute.xlu0 0
  %5018 = vperm.xlu0 %5017, %v4948
  %v5019 = vpop.permute.xlu0 %5018
  %5022 = vset.pattern.permute.xlu0 0
  %5023 = vperm.xlu0 %5022, %v4949
  %v5024 = vpop.permute.xlu0 %5023
  %5027 = vset.pattern.permute.xlu0 0
  %5028 = vperm.xlu0 %5027, %v4950
  %v5029 = vpop.permute.xlu0 %5028
  %v5031 = vadd.f32 %v4919, %v4954
  %v5032 = vadd.f32 %v4920, %v4959
  %v5033 = vadd.f32 %v4921, %v4964
  %v5034 = vadd.f32 %v4922, %v4969
  %v5035 = vadd.f32 %v4923, %v4974
  %v5036 = vadd.f32 %v4924, %v4979
  %v5037 = vadd.f32 %v4925, %v4984
  %v5038 = vadd.f32 %v4926, %v4989
  %v5039 = vadd.f32 %v4927, %v4994
  %v5040 = vadd.f32 %v4928, %v4999
  %v5041 = vadd.f32 %v4929, %v5004
  %v5042 = vadd.f32 %v4930, %v5009
  %v5043 = vadd.f32 %v4931, %v5014
  %v5044 = vadd.f32 %v4932, %v5019
  %v5045 = vadd.f32 %v4933, %v5024
  %v5046 = vadd.f32 %v4934, %v5029
  %v5047 = vld [vmem:[%s3] sm:$0xff]
  %v5048 = vld [vmem:[%s3 + $0x8] sm:$0xff]
  %v5049 = vld [vmem:[%s3 + $0x10] sm:$0xff]
  %v5050 = vld [vmem:[%s3 + $0x18] sm:$0xff]
  %v5051 = vld [vmem:[%s3 + $0x20] sm:$0xff]
  %v5052 = vld [vmem:[%s3 + $0x28] sm:$0xff]
  %v5053 = vld [vmem:[%s3 + $0x30] sm:$0xff]
  %v5054 = vld [vmem:[%s3 + $0x38] sm:$0xff]
  %v5055 = vld [vmem:[%s3 + $0x40] sm:$0xff]
  %v5056 = vld [vmem:[%s3 + $0x48] sm:$0xff]
  %v5057 = vld [vmem:[%s3 + $0x50] sm:$0xff]
  %v5058 = vld [vmem:[%s3 + $0x58] sm:$0xff]
  %v5059 = vld [vmem:[%s3 + $0x60] sm:$0xff]
  %v5060 = vld [vmem:[%s3 + $0x68] sm:$0xff]
  %v5061 = vld [vmem:[%s3 + $0x70] sm:$0xff]
  %v5062 = vld [vmem:[%s3 + $0x78] sm:$0xff]
  %5064 = vset.pattern.permute.xlu0 0
  %5065 = vperm.xlu0 %5064, %v5047
  %v5066 = vpop.permute.xlu0 %5065
  %5069 = vset.pattern.permute.xlu0 0
  %5070 = vperm.xlu0 %5069, %v5048
  %v5071 = vpop.permute.xlu0 %5070
  %5074 = vset.pattern.permute.xlu0 0
  %5075 = vperm.xlu0 %5074, %v5049
  %v5076 = vpop.permute.xlu0 %5075
  %5079 = vset.pattern.permute.xlu0 0
  %5080 = vperm.xlu0 %5079, %v5050
  %v5081 = vpop.permute.xlu0 %5080
  %5084 = vset.pattern.permute.xlu0 0
  %5085 = vperm.xlu0 %5084, %v5051
  %v5086 = vpop.permute.xlu0 %5085
  %5089 = vset.pattern.permute.xlu0 0
  %5090 = vperm.xlu0 %5089, %v5052
  %v5091 = vpop.permute.xlu0 %5090
  %5094 = vset.pattern.permute.xlu0 0
  %5095 = vperm.xlu0 %5094, %v5053
  %v5096 = vpop.permute.xlu0 %5095
  %5099 = vset.pattern.permute.xlu0 0
  %5100 = vperm.xlu0 %5099, %v5054
  %v5101 = vpop.permute.xlu0 %5100
  %5104 = vset.pattern.permute.xlu0 0
  %5105 = vperm.xlu0 %5104, %v5055
  %v5106 = vpop.permute.xlu0 %5105
  %5109 = vset.pattern.permute.xlu0 0
  %5110 = vperm.xlu0 %5109, %v5056
  %v5111 = vpop.permute.xlu0 %5110
  %5114 = vset.pattern.permute.xlu0 0
  %5115 = vperm.xlu0 %5114, %v5057
  %v5116 = vpop.permute.xlu0 %5115
  %5119 = vset.pattern.permute.xlu0 0
  %5120 = vperm.xlu0 %5119, %v5058
  %v5121 = vpop.permute.xlu0 %5120
  %5124 = vset.pattern.permute.xlu0 0
  %5125 = vperm.xlu0 %5124, %v5059
  %v5126 = vpop.permute.xlu0 %5125
  %5129 = vset.pattern.permute.xlu0 0
  %5130 = vperm.xlu0 %5129, %v5060
  %v5131 = vpop.permute.xlu0 %5130
  %5134 = vset.pattern.permute.xlu0 0
  %5135 = vperm.xlu0 %5134, %v5061
  %v5136 = vpop.permute.xlu0 %5135
  %5139 = vset.pattern.permute.xlu0 0
  %5140 = vperm.xlu0 %5139, %v5062
  %v5141 = vpop.permute.xlu0 %5140
  %v5143 = vmul.f32 %v5031, %v5066
  %v5144 = vmul.f32 %v5032, %v5071
  %v5145 = vmul.f32 %v5033, %v5076
  %v5146 = vmul.f32 %v5034, %v5081
  %v5147 = vmul.f32 %v5035, %v5086
  %v5148 = vmul.f32 %v5036, %v5091
  %v5149 = vmul.f32 %v5037, %v5096
  %v5150 = vmul.f32 %v5038, %v5101
  %v5151 = vmul.f32 %v5039, %v5106
  %v5152 = vmul.f32 %v5040, %v5111
  %v5153 = vmul.f32 %v5041, %v5116
  %v5154 = vmul.f32 %v5042, %v5121
  %v5155 = vmul.f32 %v5043, %v5126
  %v5156 = vmul.f32 %v5044, %v5131
  %v5157 = vmul.f32 %v5045, %v5136
  %v5158 = vmul.f32 %v5046, %v5141
  %v5159 = vld [vmem:[%s4] sm:$0xff]
  %v5160 = vld [vmem:[%s4 + $0x8] sm:$0xff]
  %v5161 = vld [vmem:[%s4 + $0x10] sm:$0xff]
  %v5162 = vld [vmem:[%s4 + $0x18] sm:$0xff]
  %v5163 = vld [vmem:[%s4 + $0x20] sm:$0xff]
  %v5164 = vld [vmem:[%s4 + $0x28] sm:$0xff]
  %v5165 = vld [vmem:[%s4 + $0x30] sm:$0xff]
  %v5166 = vld [vmem:[%s4 + $0x38] sm:$0xff]
  %v5167 = vld [vmem:[%s4 + $0x40] sm:$0xff]
  %v5168 = vld [vmem:[%s4 + $0x48] sm:$0xff]
  %v5169 = vld [vmem:[%s4 + $0x50] sm:$0xff]
  %v5170 = vld [vmem:[%s4 + $0x58] sm:$0xff]
  %v5171 = vld [vmem:[%s4 + $0x60] sm:$0xff]
  %v5172 = vld [vmem:[%s4 + $0x68] sm:$0xff]
  %v5173 = vld [vmem:[%s4 + $0x70] sm:$0xff]
  %v5174 = vld [vmem:[%s4 + $0x78] sm:$0xff]
  %5176 = vset.pattern.permute.xlu0 0
  %5177 = vperm.xlu0 %5176, %v5159
  %v5178 = vpop.permute.xlu0 %5177
  %5181 = vset.pattern.permute.xlu0 0
  %5182 = vperm.xlu0 %5181, %v5160
  %v5183 = vpop.permute.xlu0 %5182
  %5186 = vset.pattern.permute.xlu0 0
  %5187 = vperm.xlu0 %5186, %v5161
  %v5188 = vpop.permute.xlu0 %5187
  %5191 = vset.pattern.permute.xlu0 0
  %5192 = vperm.xlu0 %5191, %v5162
  %v5193 = vpop.permute.xlu0 %5192
  %5196 = vset.pattern.permute.xlu0 0
  %5197 = vperm.xlu0 %5196, %v5163
  %v5198 = vpop.permute.xlu0 %5197
  %5201 = vset.pattern.permute.xlu0 0
  %5202 = vperm.xlu0 %5201, %v5164
  %v5203 = vpop.permute.xlu0 %5202
  %5206 = vset.pattern.permute.xlu0 0
  %5207 = vperm.xlu0 %5206, %v5165
  %v5208 = vpop.permute.xlu0 %5207
  %5211 = vset.pattern.permute.xlu0 0
  %5212 = vperm.xlu0 %5211, %v5166
  %v5213 = vpop.permute.xlu0 %5212
  %5216 = vset.pattern.permute.xlu0 0
  %5217 = vperm.xlu0 %5216, %v5167
  %v5218 = vpop.permute.xlu0 %5217
  %5221 = vset.pattern.permute.xlu0 0
  %5222 = vperm.xlu0 %5221, %v5168
  %v5223 = vpop.permute.xlu0 %5222
  %5226 = vset.pattern.permute.xlu0 0
  %5227 = vperm.xlu0 %5226, %v5169
  %v5228 = vpop.permute.xlu0 %5227
  %5231 = vset.pattern.permute.xlu0 0
  %5232 = vperm.xlu0 %5231, %v5170
  %v5233 = vpop.permute.xlu0 %5232
  %5236 = vset.pattern.permute.xlu0 0
  %5237 = vperm.xlu0 %5236, %v5171
  %v5238 = vpop.permute.xlu0 %5237
  %5241 = vset.pattern.permute.xlu0 0
  %5242 = vperm.xlu0 %5241, %v5172
  %v5243 = vpop.permute.xlu0 %5242
  %5246 = vset.pattern.permute.xlu0 0
  %5247 = vperm.xlu0 %5246, %v5173
  %v5248 = vpop.permute.xlu0 %5247
  %5251 = vset.pattern.permute.xlu0 0
  %5252 = vperm.xlu0 %5251, %v5174
  %v5253 = vpop.permute.xlu0 %5252
  %v5255 = vadd.f32 %v5143, %v5178
  %v5256 = vadd.f32 %v5144, %v5183
  %v5257 = vadd.f32 %v5145, %v5188
  %v5258 = vadd.f32 %v5146, %v5193
  %v5259 = vadd.f32 %v5147, %v5198
  %v5260 = vadd.f32 %v5148, %v5203
  %v5261 = vadd.f32 %v5149, %v5208
  %v5262 = vadd.f32 %v5150, %v5213
  %v5263 = vadd.f32 %v5151, %v5218
  %v5264 = vadd.f32 %v5152, %v5223
  %v5265 = vadd.f32 %v5153, %v5228
  %v5266 = vadd.f32 %v5154, %v5233
  %v5267 = vadd.f32 %v5155, %v5238
  %v5268 = vadd.f32 %v5156, %v5243
  %v5269 = vadd.f32 %v5157, %v5248
  %v5270 = vadd.f32 %v5158, %v5253
  %vm5271 = vcmp.gt.f32.partialorder %v5255, 0.0
  %vm5272 = vcmp.gt.f32.partialorder %v5256, 0.0
  %vm5273 = vcmp.gt.f32.partialorder %v5257, 0.0
  %vm5274 = vcmp.gt.f32.partialorder %v5258, 0.0
  %vm5275 = vcmp.gt.f32.partialorder %v5259, 0.0
  %vm5276 = vcmp.gt.f32.partialorder %v5260, 0.0
  %vm5277 = vcmp.gt.f32.partialorder %v5261, 0.0
  %vm5278 = vcmp.gt.f32.partialorder %v5262, 0.0
  %vm5279 = vcmp.gt.f32.partialorder %v5263, 0.0
  %vm5280 = vcmp.gt.f32.partialorder %v5264, 0.0
  %vm5281 = vcmp.gt.f32.partialorder %v5265, 0.0
  %vm5282 = vcmp.gt.f32.partialorder %v5266, 0.0
  %vm5283 = vcmp.gt.f32.partialorder %v5267, 0.0
  %vm5284 = vcmp.gt.f32.partialorder %v5268, 0.0
  %vm5285 = vcmp.gt.f32.partialorder %v5269, 0.0
  %vm5286 = vcmp.gt.f32.partialorder %v5270, 0.0
  %v5287 = vmin.f32 %v5255, 0.0
  %v5288 = vmin.f32 %v5256, 0.0
  %v5289 = vmin.f32 %v5257, 0.0
  %v5290 = vmin.f32 %v5258, 0.0
  %v5291 = vmin.f32 %v5259, 0.0
  %v5292 = vmin.f32 %v5260, 0.0
  %v5293 = vmin.f32 %v5261, 0.0
  %v5294 = vmin.f32 %v5262, 0.0
  %v5295 = vmin.f32 %v5263, 0.0
  %v5296 = vmin.f32 %v5264, 0.0
  %v5297 = vmin.f32 %v5265, 0.0
  %v5298 = vmin.f32 %v5266, 0.0
  %v5299 = vmin.f32 %v5267, 0.0
  %v5300 = vmin.f32 %v5268, 0.0
  %v5301 = vmin.f32 %v5269, 0.0
  %v5302 = vmin.f32 %v5270, 0.0
  %v5303 = vmul.f32 %v5287, 1.442695
  %v5304 = vpow.pop %v5303
  %v5305 = vmul.f32 %v5288, 1.442695
  %v5306 = vpow.pop %v5305
  %v5307 = vmul.f32 %v5289, 1.442695
  %v5308 = vpow.pop %v5307
  %v5309 = vmul.f32 %v5290, 1.442695
  %v5310 = vpow.pop %v5309
  %v5311 = vmul.f32 %v5291, 1.442695
  %v5312 = vpow.pop %v5311
  %v5313 = vmul.f32 %v5292, 1.442695
  %v5314 = vpow.pop %v5313
  %v5315 = vmul.f32 %v5293, 1.442695
  %v5316 = vpow.pop %v5315
  %v5317 = vmul.f32 %v5294, 1.442695
  %v5318 = vpow.pop %v5317
  %v5319 = vmul.f32 %v5295, 1.442695
  %v5320 = vpow.pop %v5319
  %v5321 = vmul.f32 %v5296, 1.442695
  %v5322 = vpow.pop %v5321
  %v5323 = vmul.f32 %v5297, 1.442695
  %v5324 = vpow.pop %v5323
  %v5325 = vmul.f32 %v5298, 1.442695
  %v5326 = vpow.pop %v5325
  %v5327 = vmul.f32 %v5299, 1.442695
  %v5328 = vpow.pop %v5327
  %v5329 = vmul.f32 %v5300, 1.442695
  %v5330 = vpow.pop %v5329
  %v5331 = vmul.f32 %v5301, 1.442695
  %v5332 = vpow.pop %v5331
  %v5333 = vmul.f32 %v5302, 1.442695
  %v5334 = vpow.pop %v5333
  %v5335 = vsub.f32 %v5304, 1.0
  %v5336 = vsub.f32 %v5306, 1.0
  %v5337 = vsub.f32 %v5308, 1.0
  %v5338 = vsub.f32 %v5310, 1.0
  %v5339 = vsub.f32 %v5312, 1.0
  %v5340 = vsub.f32 %v5314, 1.0
  %v5341 = vsub.f32 %v5316, 1.0
  %v5342 = vsub.f32 %v5318, 1.0
  %v5343 = vsub.f32 %v5320, 1.0
  %v5344 = vsub.f32 %v5322, 1.0
  %v5345 = vsub.f32 %v5324, 1.0
  %v5346 = vsub.f32 %v5326, 1.0
  %v5347 = vsub.f32 %v5328, 1.0
  %v5348 = vsub.f32 %v5330, 1.0
  %v5349 = vsub.f32 %v5332, 1.0
  %v5350 = vsub.f32 %v5334, 1.0
  %v5351 = vsel %vm5271, %v5255, %v5335
  %v5352 = vsel %vm5272, %v5256, %v5336
  %v5353 = vsel %vm5273, %v5257, %v5337
  %v5354 = vsel %vm5274, %v5258, %v5338
  %v5355 = vsel %vm5275, %v5259, %v5339
  %v5356 = vsel %vm5276, %v5260, %v5340
  %v5357 = vsel %vm5277, %v5261, %v5341
  %v5358 = vsel %vm5278, %v5262, %v5342
  %v5359 = vsel %vm5279, %v5263, %v5343
  %v5360 = vsel %vm5280, %v5264, %v5344
  %v5361 = vsel %vm5281, %v5265, %v5345
  %v5362 = vsel %vm5282, %v5266, %v5346
  %v5363 = vsel %vm5283, %v5267, %v5347
  %v5364 = vsel %vm5284, %v5268, %v5348
  %v5365 = vsel %vm5285, %v5269, %v5349
  %v5366 = vsel %vm5286, %v5270, %v5350
  %v5367 = vpack.c.bf16 %v5352, %v5351
  %v5368 = vpack.c.bf16 %v5354, %v5353
  %v5369 = vpack.c.bf16 %v5356, %v5355
  %v5370 = vpack.c.bf16 %v5358, %v5357
  %v5371 = vpack.c.bf16 %v5360, %v5359
  %v5372 = vpack.c.bf16 %v5362, %v5361
  %v5373 = vpack.c.bf16 %v5364, %v5363
  %v5374 = vpack.c.bf16 %v5366, %v5365
  %v5375 = vld [vmem:[%s5] sm:$0xf]
  %v5376 = vld [vmem:[%s5 + $0x4] sm:$0xf]
  %v5377 = vld [vmem:[%s5 + $0x8] sm:$0xf]
  %v5378 = vld [vmem:[%s5 + $0xc] sm:$0xf]
  %v5379 = vld [vmem:[%s5 + $0x10] sm:$0xf]
  %v5380 = vld [vmem:[%s5 + $0x14] sm:$0xf]
  %v5381 = vld [vmem:[%s5 + $0x18] sm:$0xf]
  %v5382 = vld [vmem:[%s5 + $0x1c] sm:$0xf]
  %v5383 = vld [vmem:[%s5 + $0x20] sm:$0xf]
  %v5384 = vld [vmem:[%s5 + $0x24] sm:$0xf]
  %v5385 = vld [vmem:[%s5 + $0x28] sm:$0xf]
  %v5386 = vld [vmem:[%s5 + $0x2c] sm:$0xf]
  %v5387 = vld [vmem:[%s5 + $0x30] sm:$0xf]
  %v5388 = vld [vmem:[%s5 + $0x34] sm:$0x7]
  %v5403 = vunpack.c.l.b16 %v5375
  %v5404 = vunpack.c.l.b16 %v5376
  %v5405 = vunpack.c.l.b16 %v5377
  %v5406 = vunpack.c.l.b16 %v5378
  %v5407 = vunpack.c.l.b16 %v5379
  %v5408 = vunpack.c.l.b16 %v5380
  %v5409 = vunpack.c.l.b16 %v5381
  %v5410 = vunpack.c.l.b16 %v5382
  %v5411 = vunpack.c.l.b16 %v5383
  %v5412 = vunpack.c.l.b16 %v5384
  %v5413 = vunpack.c.l.b16 %v5385
  %v5414 = vunpack.c.l.b16 %v5386
  %v5415 = vunpack.c.l.b16 %v5387
  %v5416 = vunpack.c.l.b16 %v5388
  %v5417 = vpack.c.b16 %v5404, %v5403
  %v5418 = vpack.c.b16 %v5406, %v5405
  %v5419 = vpack.c.b16 %v5408, %v5407
  %v5420 = vpack.c.b16 %v5410, %v5409
  %v5421 = vpack.c.b16 %v5412, %v5411
  %v5422 = vpack.c.b16 %v5414, %v5413
  %v5423 = vpack.c.b16 %v5416, %v5415
  %vm5430 = vcmask 900096
  %v5432 = vsel %vm5430, %v5367, 0
  %v5435 = vsel %vm5430, %v5368, 0
  %v5438 = vsel %vm5430, %v5369, 0
  %v5441 = vsel %vm5430, %v5370, 0
  %v5444 = vsel %vm5430, %v5371, 0
  %v5447 = vsel %vm5430, %v5372, 0
  %v5450 = vsel %vm5430, %v5373, 0
  %v5453 = vsel %vm5430, %v5374, 0
  %vm5455 = vcmask 1046528
  %v5457 = vsel %vm5455, %v5423, 0
  %5459 = vmatprep.subr.bf16.mxu0 0
  %5460 = vmatpush1.bf16.msra.mxu0 0
  %5461 = vmatprep.subr.bf16.mxu0 0
  %5462 = vmatpush1.bf16.msra.mxu0 %v5457
  %5463 = vmatprep.subr.bf16.mxu0 0
  %5464 = vmatpush1.bf16.msra.mxu0 %v5422
  %5465 = vmatprep.subr.bf16.mxu0 0
  %5466 = vmatpush1.bf16.msra.mxu0 %v5421
  %5467 = vmatprep.subr.bf16.mxu0 0
  %5468 = vmatpush1.bf16.msra.mxu0 %v5420
  %5469 = vmatprep.subr.bf16.mxu0 0
  %5470 = vmatpush1.bf16.msra.mxu0 %v5419
  %5471 = vmatprep.subr.bf16.mxu0 0
  %5472 = vmatpush1.bf16.msra.mxu0 %v5418
  %5473 = vmatprep.subr.bf16.mxu0 0
  %5474 = vmatpush1.bf16.msra.mxu0 %v5417
  %5475 = vmatprep.subr.bf16.mxu0 0
  %5476 = vmatpush2.bf16.msra.mxu0 0
  %5477 = vmatprep.subr.bf16.mxu0 0
  %5478 = vmatpush2.bf16.msra.mxu0 0
  %5479 = vmatprep.subr.bf16.mxu0 0
  %5480 = vmatpush2.bf16.msra.mxu0 0
  %5481 = vmatprep.subr.bf16.mxu0 0
  %5482 = vmatpush2.bf16.msra.mxu0 0
  %5483 = vmatprep.subr.bf16.mxu0 0
  %5484 = vmatpush2.bf16.msra.mxu0 0
  %5485 = vmatprep.subr.bf16.mxu0 0
  %5486 = vmatpush2.bf16.msra.mxu0 0
  %5487 = vmatprep.subr.bf16.mxu0 0
  %5488 = vmatpush2.bf16.msra.mxu0 0
  %5489 = vmatprep.subr.bf16.mxu0 0
  %5490 = vmatpush2.bf16.msra.mxu0 0
  %5491 = vmatprep.mubr.bf16.mxu0 0
  %5492 = vmatmul.mubr.bf16.gmra.mxu0 %v5432
  %v5493 = vpop.f32.mrf.mxu0
  %v5494 = vadd.f32 0.0, %v5493
  %v5495 = vpop.f32.mrf.mxu0
  %v5496 = vpop.f32.mrf.mxu0
  %v5497 = vadd.f32 0.0, %v5496
  %v5498 = vpop.f32.mrf.mxu0
  %5499 = vmatprep.mubr.bf16.mxu0 0
  %5500 = vmatmul.mubr.bf16.gmra.mxu0 %v5435
  %v5501 = vpop.f32.mrf.mxu0
  %v5502 = vadd.f32 0.0, %v5501
  %v5503 = vpop.f32.mrf.mxu0
  %v5504 = vpop.f32.mrf.mxu0
  %v5505 = vadd.f32 0.0, %v5504
  %v5506 = vpop.f32.mrf.mxu0
  %5507 = vmatprep.mubr.bf16.mxu0 0
  %5508 = vmatmul.mubr.bf16.gmra.mxu0 %v5438
  %v5509 = vpop.f32.mrf.mxu0
  %v5510 = vadd.f32 0.0, %v5509
  %v5511 = vpop.f32.mrf.mxu0
  %v5512 = vpop.f32.mrf.mxu0
  %v5513 = vadd.f32 0.0, %v5512
  %v5514 = vpop.f32.mrf.mxu0
  %5515 = vmatprep.mubr.bf16.mxu0 0
  %5516 = vmatmul.mubr.bf16.gmra.mxu0 %v5441
  %v5517 = vpop.f32.mrf.mxu0
  %v5518 = vadd.f32 0.0, %v5517
  %v5519 = vpop.f32.mrf.mxu0
  %v5520 = vpop.f32.mrf.mxu0
  %v5521 = vadd.f32 0.0, %v5520
  %v5522 = vpop.f32.mrf.mxu0
  %5523 = vmatprep.mubr.bf16.mxu0 0
  %5524 = vmatmul.mubr.bf16.gmra.mxu0 %v5444
  %v5525 = vpop.f32.mrf.mxu0
  %v5526 = vadd.f32 0.0, %v5525
  %v5527 = vpop.f32.mrf.mxu0
  %v5528 = vpop.f32.mrf.mxu0
  %v5529 = vadd.f32 0.0, %v5528
  %v5530 = vpop.f32.mrf.mxu0
  %5531 = vmatprep.mubr.bf16.mxu0 0
  %5532 = vmatmul.mubr.bf16.gmra.mxu0 %v5447
  %v5533 = vpop.f32.mrf.mxu0
  %v5534 = vadd.f32 0.0, %v5533
  %v5535 = vpop.f32.mrf.mxu0
  %v5536 = vpop.f32.mrf.mxu0
  %v5537 = vadd.f32 0.0, %v5536
  %v5538 = vpop.f32.mrf.mxu0
  %5539 = vmatprep.mubr.bf16.mxu0 0
  %5540 = vmatmul.mubr.bf16.gmra.mxu0 %v5450
  %v5541 = vpop.f32.mrf.mxu0
  %v5542 = vadd.f32 0.0, %v5541
  %v5543 = vpop.f32.mrf.mxu0
  %v5544 = vpop.f32.mrf.mxu0
  %v5545 = vadd.f32 0.0, %v5544
  %v5546 = vpop.f32.mrf.mxu0
  %5547 = vmatprep.mubr.bf16.mxu0 0
  %5548 = vmatmul.mubr.bf16.gmra.mxu0 %v5453
  %v5549 = vpop.f32.mrf.mxu0
  %v5550 = vadd.f32 0.0, %v5549
  %v5551 = vpop.f32.mrf.mxu0
  %v5552 = vpop.f32.mrf.mxu0
  %v5553 = vadd.f32 0.0, %v5552
  %v5554 = vpop.f32.mrf.mxu0
  %5555 = vdwg.mxu0
  %v5556 = vld [vmem:[%s6] sm:$0xff]
  %v5557 = vld [vmem:[%s6 + $0x8] sm:$0xff]
  %v5558 = vld [vmem:[%s6 + $0x10] sm:$0xff]
  %v5559 = vld [vmem:[%s6 + $0x18] sm:$0xff]
  %v5560 = vld [vmem:[%s6 + $0x20] sm:$0xff]
  %v5561 = vld [vmem:[%s6 + $0x28] sm:$0xff]
  %v5562 = vld [vmem:[%s6 + $0x30] sm:$0xff]
  %v5563 = vld [vmem:[%s6 + $0x38] sm:$0xff]
  %v5564 = vld [vmem:[%s6 + $0x40] sm:$0xff]
  %v5565 = vld [vmem:[%s6 + $0x48] sm:$0xff]
  %v5566 = vld [vmem:[%s6 + $0x50] sm:$0xff]
  %v5567 = vld [vmem:[%s6 + $0x58] sm:$0xff]
  %v5568 = vld [vmem:[%s6 + $0x60] sm:$0xff]
  %v5569 = vld [vmem:[%s6 + $0x68] sm:$0xff]
  %v5570 = vld [vmem:[%s6 + $0x70] sm:$0xff]
  %v5571 = vld [vmem:[%s6 + $0x78] sm:$0xff]
  %5573 = vset.pattern.permute.xlu0 0
  %5574 = vperm.xlu0 %5573, %v5556
  %v5575 = vpop.permute.xlu0 %5574
  %5578 = vset.pattern.permute.xlu0 0
  %5579 = vperm.xlu0 %5578, %v5557
  %v5580 = vpop.permute.xlu0 %5579
  %5583 = vset.pattern.permute.xlu0 0
  %5584 = vperm.xlu0 %5583, %v5558
  %v5585 = vpop.permute.xlu0 %5584
  %5588 = vset.pattern.permute.xlu0 0
  %5589 = vperm.xlu0 %5588, %v5559
  %v5590 = vpop.permute.xlu0 %5589
  %5593 = vset.pattern.permute.xlu0 0
  %5594 = vperm.xlu0 %5593, %v5560
  %v5595 = vpop.permute.xlu0 %5594
  %5598 = vset.pattern.permute.xlu0 0
  %5599 = vperm.xlu0 %5598, %v5561
  %v5600 = vpop.permute.xlu0 %5599
  %5603 = vset.pattern.permute.xlu0 0
  %5604 = vperm.xlu0 %5603, %v5562
  %v5605 = vpop.permute.xlu0 %5604
  %5608 = vset.pattern.permute.xlu0 0
  %5609 = vperm.xlu0 %5608, %v5563
  %v5610 = vpop.permute.xlu0 %5609
  %5613 = vset.pattern.permute.xlu0 0
  %5614 = vperm.xlu0 %5613, %v5564
  %v5615 = vpop.permute.xlu0 %5614
  %5618 = vset.pattern.permute.xlu0 0
  %5619 = vperm.xlu0 %5618, %v5565
  %v5620 = vpop.permute.xlu0 %5619
  %5623 = vset.pattern.permute.xlu0 0
  %5624 = vperm.xlu0 %5623, %v5566
  %v5625 = vpop.permute.xlu0 %5624
  %5628 = vset.pattern.permute.xlu0 0
  %5629 = vperm.xlu0 %5628, %v5567
  %v5630 = vpop.permute.xlu0 %5629
  %5633 = vset.pattern.permute.xlu0 0
  %5634 = vperm.xlu0 %5633, %v5568
  %v5635 = vpop.permute.xlu0 %5634
  %5638 = vset.pattern.permute.xlu0 0
  %5639 = vperm.xlu0 %5638, %v5569
  %v5640 = vpop.permute.xlu0 %5639
  %5643 = vset.pattern.permute.xlu0 0
  %5644 = vperm.xlu0 %5643, %v5570
  %v5645 = vpop.permute.xlu0 %5644
  %5648 = vset.pattern.permute.xlu0 0
  %5649 = vperm.xlu0 %5648, %v5571
  %v5650 = vpop.permute.xlu0 %5649
  %v5652 = vmul.f32 %v5575, %v5494
  %v5653 = vmul.f32 %v5580, %v5497
  %v5654 = vmul.f32 %v5585, %v5502
  %v5655 = vmul.f32 %v5590, %v5505
  %v5656 = vmul.f32 %v5595, %v5510
  %v5657 = vmul.f32 %v5600, %v5513
  %v5658 = vmul.f32 %v5605, %v5518
  %v5659 = vmul.f32 %v5610, %v5521
  %v5660 = vmul.f32 %v5615, %v5526
  %v5661 = vmul.f32 %v5620, %v5529
  %v5662 = vmul.f32 %v5625, %v5534
  %v5663 = vmul.f32 %v5630, %v5537
  %v5664 = vmul.f32 %v5635, %v5542
  %v5665 = vmul.f32 %v5640, %v5545
  %v5666 = vmul.f32 %v5645, %v5550
  %v5667 = vmul.f32 %v5650, %v5553
  %v5668 = vadd.f32 %v5652, 0.0
  %v5669 = vadd.f32 %v5653, 0.0
  %v5670 = vadd.f32 %v5654, 0.0
  %v5671 = vadd.f32 %v5655, 0.0
  %v5672 = vadd.f32 %v5656, 0.0
  %v5673 = vadd.f32 %v5657, 0.0
  %v5674 = vadd.f32 %v5658, 0.0
  %v5675 = vadd.f32 %v5659, 0.0
  %v5676 = vadd.f32 %v5660, 0.0
  %v5677 = vadd.f32 %v5661, 0.0
  %v5678 = vadd.f32 %v5662, 0.0
  %v5679 = vadd.f32 %v5663, 0.0
  %v5680 = vadd.f32 %v5664, 0.0
  %v5681 = vadd.f32 %v5665, 0.0
  %v5682 = vadd.f32 %v5666, 0.0
  %v5683 = vadd.f32 %v5667, 0.0
  %5684 = vset.pattern.permute.xlu0 1
  %5685 = vperm.xlu0 %5684, %v5556
  %v5686 = vpop.permute.xlu0 %5685
  %5688 = vset.pattern.permute.xlu0 1
  %5689 = vperm.xlu0 %5688, %v5557
  %v5690 = vpop.permute.xlu0 %5689
  %5692 = vset.pattern.permute.xlu0 1
  %5693 = vperm.xlu0 %5692, %v5558
  %v5694 = vpop.permute.xlu0 %5693
  %5696 = vset.pattern.permute.xlu0 1
  %5697 = vperm.xlu0 %5696, %v5559
  %v5698 = vpop.permute.xlu0 %5697
  %5700 = vset.pattern.permute.xlu0 1
  %5701 = vperm.xlu0 %5700, %v5560
  %v5702 = vpop.permute.xlu0 %5701
  %5704 = vset.pattern.permute.xlu0 1
  %5705 = vperm.xlu0 %5704, %v5561
  %v5706 = vpop.permute.xlu0 %5705
  %5708 = vset.pattern.permute.xlu0 1
  %5709 = vperm.xlu0 %5708, %v5562
  %v5710 = vpop.permute.xlu0 %5709
  %5712 = vset.pattern.permute.xlu0 1
  %5713 = vperm.xlu0 %5712, %v5563
  %v5714 = vpop.permute.xlu0 %5713
  %5716 = vset.pattern.permute.xlu0 1
  %5717 = vperm.xlu0 %5716, %v5564
  %v5718 = vpop.permute.xlu0 %5717
  %5720 = vset.pattern.permute.xlu0 1
  %5721 = vperm.xlu0 %5720, %v5565
  %v5722 = vpop.permute.xlu0 %5721
  %5724 = vset.pattern.permute.xlu0 1
  %5725 = vperm.xlu0 %5724, %v5566
  %v5726 = vpop.permute.xlu0 %5725
  %5728 = vset.pattern.permute.xlu0 1
  %5729 = vperm.xlu0 %5728, %v5567
  %v5730 = vpop.permute.xlu0 %5729
  %5732 = vset.pattern.permute.xlu0 1
  %5733 = vperm.xlu0 %5732, %v5568
  %v5734 = vpop.permute.xlu0 %5733
  %5736 = vset.pattern.permute.xlu0 1
  %5737 = vperm.xlu0 %5736, %v5569
  %v5738 = vpop.permute.xlu0 %5737
  %5740 = vset.pattern.permute.xlu0 1
  %5741 = vperm.xlu0 %5740, %v5570
  %v5742 = vpop.permute.xlu0 %5741
  %5744 = vset.pattern.permute.xlu0 1
  %5745 = vperm.xlu0 %5744, %v5571
  %v5746 = vpop.permute.xlu0 %5745
  %v5748 = vmul.f32 %v5686, %v5494
  %v5749 = vmul.f32 %v5690, %v5497
  %v5750 = vmul.f32 %v5694, %v5502
  %v5751 = vmul.f32 %v5698, %v5505
  %v5752 = vmul.f32 %v5702, %v5510
  %v5753 = vmul.f32 %v5706, %v5513
  %v5754 = vmul.f32 %v5710, %v5518
  %v5755 = vmul.f32 %v5714, %v5521
  %v5756 = vmul.f32 %v5718, %v5526
  %v5757 = vmul.f32 %v5722, %v5529
  %v5758 = vmul.f32 %v5726, %v5534
  %v5759 = vmul.f32 %v5730, %v5537
  %v5760 = vmul.f32 %v5734, %v5542
  %v5761 = vmul.f32 %v5738, %v5545
  %v5762 = vmul.f32 %v5742, %v5550
  %v5763 = vmul.f32 %v5746, %v5553
  %5780 = vrot.lane.b32.xlu0 %v5748, 127
  %v5781 = vpop.permute.xlu0 %5780
  %5782 = vrot.lane.b32.xlu0 %v5749, 127
  %v5783 = vpop.permute.xlu0 %5782
  %5784 = vrot.lane.b32.xlu0 %v5750, 127
  %v5785 = vpop.permute.xlu0 %5784
  %5786 = vrot.lane.b32.xlu0 %v5751, 127
  %v5787 = vpop.permute.xlu0 %5786
  %5788 = vrot.lane.b32.xlu0 %v5752, 127
  %v5789 = vpop.permute.xlu0 %5788
  %5790 = vrot.lane.b32.xlu0 %v5753, 127
  %v5791 = vpop.permute.xlu0 %5790
  %5792 = vrot.lane.b32.xlu0 %v5754, 127
  %v5793 = vpop.permute.xlu0 %5792
  %5794 = vrot.lane.b32.xlu0 %v5755, 127
  %v5795 = vpop.permute.xlu0 %5794
  %5796 = vrot.lane.b32.xlu0 %v5756, 127
  %v5797 = vpop.permute.xlu0 %5796
  %5798 = vrot.lane.b32.xlu0 %v5757, 127
  %v5799 = vpop.permute.xlu0 %5798
  %5800 = vrot.lane.b32.xlu0 %v5758, 127
  %v5801 = vpop.permute.xlu0 %5800
  %5802 = vrot.lane.b32.xlu0 %v5759, 127
  %v5803 = vpop.permute.xlu0 %5802
  %5804 = vrot.lane.b32.xlu0 %v5760, 127
  %v5805 = vpop.permute.xlu0 %5804
  %5806 = vrot.lane.b32.xlu0 %v5761, 127
  %v5807 = vpop.permute.xlu0 %5806
  %5808 = vrot.lane.b32.xlu0 %v5762, 127
  %v5809 = vpop.permute.xlu0 %5808
  %5810 = vrot.lane.b32.xlu0 %v5763, 127
  %v5811 = vpop.permute.xlu0 %5810
  %v5828 = vadd.f32 %v5668, %v5781
  %v5829 = vadd.f32 %v5669, %v5783
  %v5830 = vadd.f32 %v5670, %v5785
  %v5831 = vadd.f32 %v5671, %v5787
  %v5832 = vadd.f32 %v5672, %v5789
  %v5833 = vadd.f32 %v5673, %v5791
  %v5834 = vadd.f32 %v5674, %v5793
  %v5835 = vadd.f32 %v5675, %v5795
  %v5836 = vadd.f32 %v5676, %v5797
  %v5837 = vadd.f32 %v5677, %v5799
  %v5838 = vadd.f32 %v5678, %v5801
  %v5839 = vadd.f32 %v5679, %v5803
  %v5840 = vadd.f32 %v5680, %v5805
  %v5841 = vadd.f32 %v5681, %v5807
  %v5842 = vadd.f32 %v5682, %v5809
  %v5843 = vadd.f32 %v5683, %v5811
  %5844 = vset.pattern.permute.xlu0 2
  %5845 = vperm.xlu0 %5844, %v5556
  %v5846 = vpop.permute.xlu0 %5845
  %5848 = vset.pattern.permute.xlu0 2
  %5849 = vperm.xlu0 %5848, %v5557
  %v5850 = vpop.permute.xlu0 %5849
  %5852 = vset.pattern.permute.xlu0 2
  %5853 = vperm.xlu0 %5852, %v5558
  %v5854 = vpop.permute.xlu0 %5853
  %5856 = vset.pattern.permute.xlu0 2
  %5857 = vperm.xlu0 %5856, %v5559
  %v5858 = vpop.permute.xlu0 %5857
  %5860 = vset.pattern.permute.xlu0 2
  %5861 = vperm.xlu0 %5860, %v5560
  %v5862 = vpop.permute.xlu0 %5861
  %5864 = vset.pattern.permute.xlu0 2
  %5865 = vperm.xlu0 %5864, %v5561
  %v5866 = vpop.permute.xlu0 %5865
  %5868 = vset.pattern.permute.xlu0 2
  %5869 = vperm.xlu0 %5868, %v5562
  %v5870 = vpop.permute.xlu0 %5869
  %5872 = vset.pattern.permute.xlu0 2
  %5873 = vperm.xlu0 %5872, %v5563
  %v5874 = vpop.permute.xlu0 %5873
  %5876 = vset.pattern.permute.xlu0 2
  %5877 = vperm.xlu0 %5876, %v5564
  %v5878 = vpop.permute.xlu0 %5877
  %5880 = vset.pattern.permute.xlu0 2
  %5881 = vperm.xlu0 %5880, %v5565
  %v5882 = vpop.permute.xlu0 %5881
  %5884 = vset.pattern.permute.xlu0 2
  %5885 = vperm.xlu0 %5884, %v5566
  %v5886 = vpop.permute.xlu0 %5885
  %5888 = vset.pattern.permute.xlu0 2
  %5889 = vperm.xlu0 %5888, %v5567
  %v5890 = vpop.permute.xlu0 %5889
  %5892 = vset.pattern.permute.xlu0 2
  %5893 = vperm.xlu0 %5892, %v5568
  %v5894 = vpop.permute.xlu0 %5893
  %5896 = vset.pattern.permute.xlu0 2
  %5897 = vperm.xlu0 %5896, %v5569
  %v5898 = vpop.permute.xlu0 %5897
  %5900 = vset.pattern.permute.xlu0 2
  %5901 = vperm.xlu0 %5900, %v5570
  %v5902 = vpop.permute.xlu0 %5901
  %5904 = vset.pattern.permute.xlu0 2
  %5905 = vperm.xlu0 %5904, %v5571
  %v5906 = vpop.permute.xlu0 %5905
  %v5908 = vmul.f32 %v5846, %v5494
  %v5909 = vmul.f32 %v5850, %v5497
  %v5910 = vmul.f32 %v5854, %v5502
  %v5911 = vmul.f32 %v5858, %v5505
  %v5912 = vmul.f32 %v5862, %v5510
  %v5913 = vmul.f32 %v5866, %v5513
  %v5914 = vmul.f32 %v5870, %v5518
  %v5915 = vmul.f32 %v5874, %v5521
  %v5916 = vmul.f32 %v5878, %v5526
  %v5917 = vmul.f32 %v5882, %v5529
  %v5918 = vmul.f32 %v5886, %v5534
  %v5919 = vmul.f32 %v5890, %v5537
  %v5920 = vmul.f32 %v5894, %v5542
  %v5921 = vmul.f32 %v5898, %v5545
  %v5922 = vmul.f32 %v5902, %v5550
  %v5923 = vmul.f32 %v5906, %v5553
  %5940 = vrot.lane.b32.xlu0 %v5908, 126
  %v5941 = vpop.permute.xlu0 %5940
  %5942 = vrot.lane.b32.xlu0 %v5909, 126
  %v5943 = vpop.permute.xlu0 %5942
  %5944 = vrot.lane.b32.xlu0 %v5910, 126
  %v5945 = vpop.permute.xlu0 %5944
  %5946 = vrot.lane.b32.xlu0 %v5911, 126
  %v5947 = vpop.permute.xlu0 %5946
  %5948 = vrot.lane.b32.xlu0 %v5912, 126
  %v5949 = vpop.permute.xlu0 %5948
  %5950 = vrot.lane.b32.xlu0 %v5913, 126
  %v5951 = vpop.permute.xlu0 %5950
  %5952 = vrot.lane.b32.xlu0 %v5914, 126
  %v5953 = vpop.permute.xlu0 %5952
  %5954 = vrot.lane.b32.xlu0 %v5915, 126
  %v5955 = vpop.permute.xlu0 %5954
  %5956 = vrot.lane.b32.xlu0 %v5916, 126
  %v5957 = vpop.permute.xlu0 %5956
  %5958 = vrot.lane.b32.xlu0 %v5917, 126
  %v5959 = vpop.permute.xlu0 %5958
  %5960 = vrot.lane.b32.xlu0 %v5918, 126
  %v5961 = vpop.permute.xlu0 %5960
  %5962 = vrot.lane.b32.xlu0 %v5919, 126
  %v5963 = vpop.permute.xlu0 %5962
  %5964 = vrot.lane.b32.xlu0 %v5920, 126
  %v5965 = vpop.permute.xlu0 %5964
  %5966 = vrot.lane.b32.xlu0 %v5921, 126
  %v5967 = vpop.permute.xlu0 %5966
  %5968 = vrot.lane.b32.xlu0 %v5922, 126
  %v5969 = vpop.permute.xlu0 %5968
  %5970 = vrot.lane.b32.xlu0 %v5923, 126
  %v5971 = vpop.permute.xlu0 %5970
  %v5988 = vadd.f32 %v5828, %v5941
  %v5989 = vadd.f32 %v5829, %v5943
  %v5990 = vadd.f32 %v5830, %v5945
  %v5991 = vadd.f32 %v5831, %v5947
  %v5992 = vadd.f32 %v5832, %v5949
  %v5993 = vadd.f32 %v5833, %v5951
  %v5994 = vadd.f32 %v5834, %v5953
  %v5995 = vadd.f32 %v5835, %v5955
  %v5996 = vadd.f32 %v5836, %v5957
  %v5997 = vadd.f32 %v5837, %v5959
  %v5998 = vadd.f32 %v5838, %v5961
  %v5999 = vadd.f32 %v5839, %v5963
  %v6000 = vadd.f32 %v5840, %v5965
  %v6001 = vadd.f32 %v5841, %v5967
  %v6002 = vadd.f32 %v5842, %v5969
  %v6003 = vadd.f32 %v5843, %v5971
  %6004 = vset.pattern.permute.xlu0 3
  %6005 = vperm.xlu0 %6004, %v5556
  %v6006 = vpop.permute.xlu0 %6005
  %6008 = vset.pattern.permute.xlu0 3
  %6009 = vperm.xlu0 %6008, %v5557
  %v6010 = vpop.permute.xlu0 %6009
  %6012 = vset.pattern.permute.xlu0 3
  %6013 = vperm.xlu0 %6012, %v5558
  %v6014 = vpop.permute.xlu0 %6013
  %6016 = vset.pattern.permute.xlu0 3
  %6017 = vperm.xlu0 %6016, %v5559
  %v6018 = vpop.permute.xlu0 %6017
  %6020 = vset.pattern.permute.xlu0 3
  %6021 = vperm.xlu0 %6020, %v5560
  %v6022 = vpop.permute.xlu0 %6021
  %6024 = vset.pattern.permute.xlu0 3
  %6025 = vperm.xlu0 %6024, %v5561
  %v6026 = vpop.permute.xlu0 %6025
  %6028 = vset.pattern.permute.xlu0 3
  %6029 = vperm.xlu0 %6028, %v5562
  %v6030 = vpop.permute.xlu0 %6029
  %6032 = vset.pattern.permute.xlu0 3
  %6033 = vperm.xlu0 %6032, %v5563
  %v6034 = vpop.permute.xlu0 %6033
  %6036 = vset.pattern.permute.xlu0 3
  %6037 = vperm.xlu0 %6036, %v5564
  %v6038 = vpop.permute.xlu0 %6037
  %6040 = vset.pattern.permute.xlu0 3
  %6041 = vperm.xlu0 %6040, %v5565
  %v6042 = vpop.permute.xlu0 %6041
  %6044 = vset.pattern.permute.xlu0 3
  %6045 = vperm.xlu0 %6044, %v5566
  %v6046 = vpop.permute.xlu0 %6045
  %6048 = vset.pattern.permute.xlu0 3
  %6049 = vperm.xlu0 %6048, %v5567
  %v6050 = vpop.permute.xlu0 %6049
  %6052 = vset.pattern.permute.xlu0 3
  %6053 = vperm.xlu0 %6052, %v5568
  %v6054 = vpop.permute.xlu0 %6053
  %6056 = vset.pattern.permute.xlu0 3
  %6057 = vperm.xlu0 %6056, %v5569
  %v6058 = vpop.permute.xlu0 %6057
  %6060 = vset.pattern.permute.xlu0 3
  %6061 = vperm.xlu0 %6060, %v5570
  %v6062 = vpop.permute.xlu0 %6061
  %6064 = vset.pattern.permute.xlu0 3
  %6065 = vperm.xlu0 %6064, %v5571
  %v6066 = vpop.permute.xlu0 %6065
  %v6068 = vmul.f32 %v6006, %v5494
  %v6069 = vmul.f32 %v6010, %v5497
  %v6070 = vmul.f32 %v6014, %v5502
  %v6071 = vmul.f32 %v6018, %v5505
  %v6072 = vmul.f32 %v6022, %v5510
  %v6073 = vmul.f32 %v6026, %v5513
  %v6074 = vmul.f32 %v6030, %v5518
  %v6075 = vmul.f32 %v6034, %v5521
  %v6076 = vmul.f32 %v6038, %v5526
  %v6077 = vmul.f32 %v6042, %v5529
  %v6078 = vmul.f32 %v6046, %v5534
  %v6079 = vmul.f32 %v6050, %v5537
  %v6080 = vmul.f32 %v6054, %v5542
  %v6081 = vmul.f32 %v6058, %v5545
  %v6082 = vmul.f32 %v6062, %v5550
  %v6083 = vmul.f32 %v6066, %v5553
  %6100 = vrot.lane.b32.xlu0 %v6068, 125
  %v6101 = vpop.permute.xlu0 %6100
  %6102 = vrot.lane.b32.xlu0 %v6069, 125
  %v6103 = vpop.permute.xlu0 %6102
  %6104 = vrot.lane.b32.xlu0 %v6070, 125
  %v6105 = vpop.permute.xlu0 %6104
  %6106 = vrot.lane.b32.xlu0 %v6071, 125
  %v6107 = vpop.permute.xlu0 %6106
  %6108 = vrot.lane.b32.xlu0 %v6072, 125
  %v6109 = vpop.permute.xlu0 %6108
  %6110 = vrot.lane.b32.xlu0 %v6073, 125
  %v6111 = vpop.permute.xlu0 %6110
  %6112 = vrot.lane.b32.xlu0 %v6074, 125
  %v6113 = vpop.permute.xlu0 %6112
  %6114 = vrot.lane.b32.xlu0 %v6075, 125
  %v6115 = vpop.permute.xlu0 %6114
  %6116 = vrot.lane.b32.xlu0 %v6076, 125
  %v6117 = vpop.permute.xlu0 %6116
  %6118 = vrot.lane.b32.xlu0 %v6077, 125
  %v6119 = vpop.permute.xlu0 %6118
  %6120 = vrot.lane.b32.xlu0 %v6078, 125
  %v6121 = vpop.permute.xlu0 %6120
  %6122 = vrot.lane.b32.xlu0 %v6079, 125
  %v6123 = vpop.permute.xlu0 %6122
  %6124 = vrot.lane.b32.xlu0 %v6080, 125
  %v6125 = vpop.permute.xlu0 %6124
  %6126 = vrot.lane.b32.xlu0 %v6081, 125
  %v6127 = vpop.permute.xlu0 %6126
  %6128 = vrot.lane.b32.xlu0 %v6082, 125
  %v6129 = vpop.permute.xlu0 %6128
  %6130 = vrot.lane.b32.xlu0 %v6083, 125
  %v6131 = vpop.permute.xlu0 %6130
  %v6148 = vadd.f32 %v5988, %v6101
  %v6149 = vadd.f32 %v5989, %v6103
  %v6150 = vadd.f32 %v5990, %v6105
  %v6151 = vadd.f32 %v5991, %v6107
  %v6152 = vadd.f32 %v5992, %v6109
  %v6153 = vadd.f32 %v5993, %v6111
  %v6154 = vadd.f32 %v5994, %v6113
  %v6155 = vadd.f32 %v5995, %v6115
  %v6156 = vadd.f32 %v5996, %v6117
  %v6157 = vadd.f32 %v5997, %v6119
  %v6158 = vadd.f32 %v5998, %v6121
  %v6159 = vadd.f32 %v5999, %v6123
  %v6160 = vadd.f32 %v6000, %v6125
  %v6161 = vadd.f32 %v6001, %v6127
  %v6162 = vadd.f32 %v6002, %v6129
  %v6163 = vadd.f32 %v6003, %v6131
  %6164 = vset.pattern.permute.xlu0 4
  %6165 = vperm.xlu0 %6164, %v5556
  %v6166 = vpop.permute.xlu0 %6165
  %6168 = vset.pattern.permute.xlu0 4
  %6169 = vperm.xlu0 %6168, %v5557
  %v6170 = vpop.permute.xlu0 %6169
  %6172 = vset.pattern.permute.xlu0 4
  %6173 = vperm.xlu0 %6172, %v5558
  %v6174 = vpop.permute.xlu0 %6173
  %6176 = vset.pattern.permute.xlu0 4
  %6177 = vperm.xlu0 %6176, %v5559
  %v6178 = vpop.permute.xlu0 %6177
  %6180 = vset.pattern.permute.xlu0 4
  %6181 = vperm.xlu0 %6180, %v5560
  %v6182 = vpop.permute.xlu0 %6181
  %6184 = vset.pattern.permute.xlu0 4
  %6185 = vperm.xlu0 %6184, %v5561
  %v6186 = vpop.permute.xlu0 %6185
  %6188 = vset.pattern.permute.xlu0 4
  %6189 = vperm.xlu0 %6188, %v5562
  %v6190 = vpop.permute.xlu0 %6189
  %6192 = vset.pattern.permute.xlu0 4
  %6193 = vperm.xlu0 %6192, %v5563
  %v6194 = vpop.permute.xlu0 %6193
  %6196 = vset.pattern.permute.xlu0 4
  %6197 = vperm.xlu0 %6196, %v5564
  %v6198 = vpop.permute.xlu0 %6197
  %6200 = vset.pattern.permute.xlu0 4
  %6201 = vperm.xlu0 %6200, %v5565
  %v6202 = vpop.permute.xlu0 %6201
  %6204 = vset.pattern.permute.xlu0 4
  %6205 = vperm.xlu0 %6204, %v5566
  %v6206 = vpop.permute.xlu0 %6205
  %6208 = vset.pattern.permute.xlu0 4
  %6209 = vperm.xlu0 %6208, %v5567
  %v6210 = vpop.permute.xlu0 %6209
  %6212 = vset.pattern.permute.xlu0 4
  %6213 = vperm.xlu0 %6212, %v5568
  %v6214 = vpop.permute.xlu0 %6213
  %6216 = vset.pattern.permute.xlu0 4
  %6217 = vperm.xlu0 %6216, %v5569
  %v6218 = vpop.permute.xlu0 %6217
  %6220 = vset.pattern.permute.xlu0 4
  %6221 = vperm.xlu0 %6220, %v5570
  %v6222 = vpop.permute.xlu0 %6221
  %6224 = vset.pattern.permute.xlu0 4
  %6225 = vperm.xlu0 %6224, %v5571
  %v6226 = vpop.permute.xlu0 %6225
  %v6228 = vmul.f32 %v6166, %v5494
  %v6229 = vmul.f32 %v6170, %v5497
  %v6230 = vmul.f32 %v6174, %v5502
  %v6231 = vmul.f32 %v6178, %v5505
  %v6232 = vmul.f32 %v6182, %v5510
  %v6233 = vmul.f32 %v6186, %v5513
  %v6234 = vmul.f32 %v6190, %v5518
  %v6235 = vmul.f32 %v6194, %v5521
  %v6236 = vmul.f32 %v6198, %v5526
  %v6237 = vmul.f32 %v6202, %v5529
  %v6238 = vmul.f32 %v6206, %v5534
  %v6239 = vmul.f32 %v6210, %v5537
  %v6240 = vmul.f32 %v6214, %v5542
  %v6241 = vmul.f32 %v6218, %v5545
  %v6242 = vmul.f32 %v6222, %v5550
  %v6243 = vmul.f32 %v6226, %v5553
  %6260 = vrot.lane.b32.xlu0 %v6228, 124
  %v6261 = vpop.permute.xlu0 %6260
  %6262 = vrot.lane.b32.xlu0 %v6229, 124
  %v6263 = vpop.permute.xlu0 %6262
  %6264 = vrot.lane.b32.xlu0 %v6230, 124
  %v6265 = vpop.permute.xlu0 %6264
  %6266 = vrot.lane.b32.xlu0 %v6231, 124
  %v6267 = vpop.permute.xlu0 %6266
  %6268 = vrot.lane.b32.xlu0 %v6232, 124
  %v6269 = vpop.permute.xlu0 %6268
  %6270 = vrot.lane.b32.xlu0 %v6233, 124
  %v6271 = vpop.permute.xlu0 %6270
  %6272 = vrot.lane.b32.xlu0 %v6234, 124
  %v6273 = vpop.permute.xlu0 %6272
  %6274 = vrot.lane.b32.xlu0 %v6235, 124
  %v6275 = vpop.permute.xlu0 %6274
  %6276 = vrot.lane.b32.xlu0 %v6236, 124
  %v6277 = vpop.permute.xlu0 %6276
  %6278 = vrot.lane.b32.xlu0 %v6237, 124
  %v6279 = vpop.permute.xlu0 %6278
  %6280 = vrot.lane.b32.xlu0 %v6238, 124
  %v6281 = vpop.permute.xlu0 %6280
  %6282 = vrot.lane.b32.xlu0 %v6239, 124
  %v6283 = vpop.permute.xlu0 %6282
  %6284 = vrot.lane.b32.xlu0 %v6240, 124
  %v6285 = vpop.permute.xlu0 %6284
  %6286 = vrot.lane.b32.xlu0 %v6241, 124
  %v6287 = vpop.permute.xlu0 %6286
  %6288 = vrot.lane.b32.xlu0 %v6242, 124
  %v6289 = vpop.permute.xlu0 %6288
  %6290 = vrot.lane.b32.xlu0 %v6243, 124
  %v6291 = vpop.permute.xlu0 %6290
  %v6308 = vadd.f32 %v6148, %v6261
  %v6309 = vadd.f32 %v6149, %v6263
  %v6310 = vadd.f32 %v6150, %v6265
  %v6311 = vadd.f32 %v6151, %v6267
  %v6312 = vadd.f32 %v6152, %v6269
  %v6313 = vadd.f32 %v6153, %v6271
  %v6314 = vadd.f32 %v6154, %v6273
  %v6315 = vadd.f32 %v6155, %v6275
  %v6316 = vadd.f32 %v6156, %v6277
  %v6317 = vadd.f32 %v6157, %v6279
  %v6318 = vadd.f32 %v6158, %v6281
  %v6319 = vadd.f32 %v6159, %v6283
  %v6320 = vadd.f32 %v6160, %v6285
  %v6321 = vadd.f32 %v6161, %v6287
  %v6322 = vadd.f32 %v6162, %v6289
  %v6323 = vadd.f32 %v6163, %v6291
  %6324 = vset.pattern.permute.xlu0 5
  %6325 = vperm.xlu0 %6324, %v5556
  %v6326 = vpop.permute.xlu0 %6325
  %6328 = vset.pattern.permute.xlu0 5
  %6329 = vperm.xlu0 %6328, %v5557
  %v6330 = vpop.permute.xlu0 %6329
  %6332 = vset.pattern.permute.xlu0 5
  %6333 = vperm.xlu0 %6332, %v5558
  %v6334 = vpop.permute.xlu0 %6333
  %6336 = vset.pattern.permute.xlu0 5
  %6337 = vperm.xlu0 %6336, %v5559
  %v6338 = vpop.permute.xlu0 %6337
  %6340 = vset.pattern.permute.xlu0 5
  %6341 = vperm.xlu0 %6340, %v5560
  %v6342 = vpop.permute.xlu0 %6341
  %6344 = vset.pattern.permute.xlu0 5
  %6345 = vperm.xlu0 %6344, %v5561
  %v6346 = vpop.permute.xlu0 %6345
  %6348 = vset.pattern.permute.xlu0 5
  %6349 = vperm.xlu0 %6348, %v5562
  %v6350 = vpop.permute.xlu0 %6349
  %6352 = vset.pattern.permute.xlu0 5
  %6353 = vperm.xlu0 %6352, %v5563
  %v6354 = vpop.permute.xlu0 %6353
  %6356 = vset.pattern.permute.xlu0 5
  %6357 = vperm.xlu0 %6356, %v5564
  %v6358 = vpop.permute.xlu0 %6357
  %6360 = vset.pattern.permute.xlu0 5
  %6361 = vperm.xlu0 %6360, %v5565
  %v6362 = vpop.permute.xlu0 %6361
  %6364 = vset.pattern.permute.xlu0 5
  %6365 = vperm.xlu0 %6364, %v5566
  %v6366 = vpop.permute.xlu0 %6365
  %6368 = vset.pattern.permute.xlu0 5
  %6369 = vperm.xlu0 %6368, %v5567
  %v6370 = vpop.permute.xlu0 %6369
  %6372 = vset.pattern.permute.xlu0 5
  %6373 = vperm.xlu0 %6372, %v5568
  %v6374 = vpop.permute.xlu0 %6373
  %6376 = vset.pattern.permute.xlu0 5
  %6377 = vperm.xlu0 %6376, %v5569
  %v6378 = vpop.permute.xlu0 %6377
  %6380 = vset.pattern.permute.xlu0 5
  %6381 = vperm.xlu0 %6380, %v5570
  %v6382 = vpop.permute.xlu0 %6381
  %6384 = vset.pattern.permute.xlu0 5
  %6385 = vperm.xlu0 %6384, %v5571
  %v6386 = vpop.permute.xlu0 %6385
  %v6388 = vmul.f32 %v6326, %v5494
  %v6389 = vmul.f32 %v6330, %v5497
  %v6390 = vmul.f32 %v6334, %v5502
  %v6391 = vmul.f32 %v6338, %v5505
  %v6392 = vmul.f32 %v6342, %v5510
  %v6393 = vmul.f32 %v6346, %v5513
  %v6394 = vmul.f32 %v6350, %v5518
  %v6395 = vmul.f32 %v6354, %v5521
  %v6396 = vmul.f32 %v6358, %v5526
  %v6397 = vmul.f32 %v6362, %v5529
  %v6398 = vmul.f32 %v6366, %v5534
  %v6399 = vmul.f32 %v6370, %v5537
  %v6400 = vmul.f32 %v6374, %v5542
  %v6401 = vmul.f32 %v6378, %v5545
  %v6402 = vmul.f32 %v6382, %v5550
  %v6403 = vmul.f32 %v6386, %v5553
  %6420 = vrot.lane.b32.xlu0 %v6388, 123
  %v6421 = vpop.permute.xlu0 %6420
  %6422 = vrot.lane.b32.xlu0 %v6389, 123
  %v6423 = vpop.permute.xlu0 %6422
  %6424 = vrot.lane.b32.xlu0 %v6390, 123
  %v6425 = vpop.permute.xlu0 %6424
  %6426 = vrot.lane.b32.xlu0 %v6391, 123
  %v6427 = vpop.permute.xlu0 %6426
  %6428 = vrot.lane.b32.xlu0 %v6392, 123
  %v6429 = vpop.permute.xlu0 %6428
  %6430 = vrot.lane.b32.xlu0 %v6393, 123
  %v6431 = vpop.permute.xlu0 %6430
  %6432 = vrot.lane.b32.xlu0 %v6394, 123
  %v6433 = vpop.permute.xlu0 %6432
  %6434 = vrot.lane.b32.xlu0 %v6395, 123
  %v6435 = vpop.permute.xlu0 %6434
  %6436 = vrot.lane.b32.xlu0 %v6396, 123
  %v6437 = vpop.permute.xlu0 %6436
  %6438 = vrot.lane.b32.xlu0 %v6397, 123
  %v6439 = vpop.permute.xlu0 %6438
  %6440 = vrot.lane.b32.xlu0 %v6398, 123
  %v6441 = vpop.permute.xlu0 %6440
  %6442 = vrot.lane.b32.xlu0 %v6399, 123
  %v6443 = vpop.permute.xlu0 %6442
  %6444 = vrot.lane.b32.xlu0 %v6400, 123
  %v6445 = vpop.permute.xlu0 %6444
  %6446 = vrot.lane.b32.xlu0 %v6401, 123
  %v6447 = vpop.permute.xlu0 %6446
  %6448 = vrot.lane.b32.xlu0 %v6402, 123
  %v6449 = vpop.permute.xlu0 %6448
  %6450 = vrot.lane.b32.xlu0 %v6403, 123
  %v6451 = vpop.permute.xlu0 %6450
  %v6468 = vadd.f32 %v6308, %v6421
  %v6469 = vadd.f32 %v6309, %v6423
  %v6470 = vadd.f32 %v6310, %v6425
  %v6471 = vadd.f32 %v6311, %v6427
  %v6472 = vadd.f32 %v6312, %v6429
  %v6473 = vadd.f32 %v6313, %v6431
  %v6474 = vadd.f32 %v6314, %v6433
  %v6475 = vadd.f32 %v6315, %v6435
  %v6476 = vadd.f32 %v6316, %v6437
  %v6477 = vadd.f32 %v6317, %v6439
  %v6478 = vadd.f32 %v6318, %v6441
  %v6479 = vadd.f32 %v6319, %v6443
  %v6480 = vadd.f32 %v6320, %v6445
  %v6481 = vadd.f32 %v6321, %v6447
  %v6482 = vadd.f32 %v6322, %v6449
  %v6483 = vadd.f32 %v6323, %v6451
  %6484 = vset.pattern.permute.xlu0 6
  %6485 = vperm.xlu0 %6484, %v5556
  %v6486 = vpop.permute.xlu0 %6485
  %6488 = vset.pattern.permute.xlu0 6
  %6489 = vperm.xlu0 %6488, %v5557
  %v6490 = vpop.permute.xlu0 %6489
  %6492 = vset.pattern.permute.xlu0 6
  %6493 = vperm.xlu0 %6492, %v5558
  %v6494 = vpop.permute.xlu0 %6493
  %6496 = vset.pattern.permute.xlu0 6
  %6497 = vperm.xlu0 %6496, %v5559
  %v6498 = vpop.permute.xlu0 %6497
  %6500 = vset.pattern.permute.xlu0 6
  %6501 = vperm.xlu0 %6500, %v5560
  %v6502 = vpop.permute.xlu0 %6501
  %6504 = vset.pattern.permute.xlu0 6
  %6505 = vperm.xlu0 %6504, %v5561
  %v6506 = vpop.permute.xlu0 %6505
  %6508 = vset.pattern.permute.xlu0 6
  %6509 = vperm.xlu0 %6508, %v5562
  %v6510 = vpop.permute.xlu0 %6509
  %6512 = vset.pattern.permute.xlu0 6
  %6513 = vperm.xlu0 %6512, %v5563
  %v6514 = vpop.permute.xlu0 %6513
  %6516 = vset.pattern.permute.xlu0 6
  %6517 = vperm.xlu0 %6516, %v5564
  %v6518 = vpop.permute.xlu0 %6517
  %6520 = vset.pattern.permute.xlu0 6
  %6521 = vperm.xlu0 %6520, %v5565
  %v6522 = vpop.permute.xlu0 %6521
  %6524 = vset.pattern.permute.xlu0 6
  %6525 = vperm.xlu0 %6524, %v5566
  %v6526 = vpop.permute.xlu0 %6525
  %6528 = vset.pattern.permute.xlu0 6
  %6529 = vperm.xlu0 %6528, %v5567
  %v6530 = vpop.permute.xlu0 %6529
  %6532 = vset.pattern.permute.xlu0 6
  %6533 = vperm.xlu0 %6532, %v5568
  %v6534 = vpop.permute.xlu0 %6533
  %6536 = vset.pattern.permute.xlu0 6
  %6537 = vperm.xlu0 %6536, %v5569
  %v6538 = vpop.permute.xlu0 %6537
  %6540 = vset.pattern.permute.xlu0 6
  %6541 = vperm.xlu0 %6540, %v5570
  %v6542 = vpop.permute.xlu0 %6541
  %6544 = vset.pattern.permute.xlu0 6
  %6545 = vperm.xlu0 %6544, %v5571
  %v6546 = vpop.permute.xlu0 %6545
  %v6548 = vmul.f32 %v6486, %v5494
  %v6549 = vmul.f32 %v6490, %v5497
  %v6550 = vmul.f32 %v6494, %v5502
  %v6551 = vmul.f32 %v6498, %v5505
  %v6552 = vmul.f32 %v6502, %v5510
  %v6553 = vmul.f32 %v6506, %v5513
  %v6554 = vmul.f32 %v6510, %v5518
  %v6555 = vmul.f32 %v6514, %v5521
  %v6556 = vmul.f32 %v6518, %v5526
  %v6557 = vmul.f32 %v6522, %v5529
  %v6558 = vmul.f32 %v6526, %v5534
  %v6559 = vmul.f32 %v6530, %v5537
  %v6560 = vmul.f32 %v6534, %v5542
  %v6561 = vmul.f32 %v6538, %v5545
  %v6562 = vmul.f32 %v6542, %v5550
  %v6563 = vmul.f32 %v6546, %v5553
  %6580 = vrot.lane.b32.xlu0 %v6548, 122
  %v6581 = vpop.permute.xlu0 %6580
  %6582 = vrot.lane.b32.xlu0 %v6549, 122
  %v6583 = vpop.permute.xlu0 %6582
  %6584 = vrot.lane.b32.xlu0 %v6550, 122
  %v6585 = vpop.permute.xlu0 %6584
  %6586 = vrot.lane.b32.xlu0 %v6551, 122
  %v6587 = vpop.permute.xlu0 %6586
  %6588 = vrot.lane.b32.xlu0 %v6552, 122
  %v6589 = vpop.permute.xlu0 %6588
  %6590 = vrot.lane.b32.xlu0 %v6553, 122
  %v6591 = vpop.permute.xlu0 %6590
  %6592 = vrot.lane.b32.xlu0 %v6554, 122
  %v6593 = vpop.permute.xlu0 %6592
  %6594 = vrot.lane.b32.xlu0 %v6555, 122
  %v6595 = vpop.permute.xlu0 %6594
  %6596 = vrot.lane.b32.xlu0 %v6556, 122
  %v6597 = vpop.permute.xlu0 %6596
  %6598 = vrot.lane.b32.xlu0 %v6557, 122
  %v6599 = vpop.permute.xlu0 %6598
  %6600 = vrot.lane.b32.xlu0 %v6558, 122
  %v6601 = vpop.permute.xlu0 %6600
  %6602 = vrot.lane.b32.xlu0 %v6559, 122
  %v6603 = vpop.permute.xlu0 %6602
  %6604 = vrot.lane.b32.xlu0 %v6560, 122
  %v6605 = vpop.permute.xlu0 %6604
  %6606 = vrot.lane.b32.xlu0 %v6561, 122
  %v6607 = vpop.permute.xlu0 %6606
  %6608 = vrot.lane.b32.xlu0 %v6562, 122
  %v6609 = vpop.permute.xlu0 %6608
  %6610 = vrot.lane.b32.xlu0 %v6563, 122
  %v6611 = vpop.permute.xlu0 %6610
  %v6628 = vadd.f32 %v6468, %v6581
  %v6629 = vadd.f32 %v6469, %v6583
  %v6630 = vadd.f32 %v6470, %v6585
  %v6631 = vadd.f32 %v6471, %v6587
  %v6632 = vadd.f32 %v6472, %v6589
  %v6633 = vadd.f32 %v6473, %v6591
  %v6634 = vadd.f32 %v6474, %v6593
  %v6635 = vadd.f32 %v6475, %v6595
  %v6636 = vadd.f32 %v6476, %v6597
  %v6637 = vadd.f32 %v6477, %v6599
  %v6638 = vadd.f32 %v6478, %v6601
  %v6639 = vadd.f32 %v6479, %v6603
  %v6640 = vadd.f32 %v6480, %v6605
  %v6641 = vadd.f32 %v6481, %v6607
  %v6642 = vadd.f32 %v6482, %v6609
  %v6643 = vadd.f32 %v6483, %v6611
  %6644 = vset.pattern.permute.xlu0 7
  %6645 = vperm.xlu0 %6644, %v5556
  %v6646 = vpop.permute.xlu0 %6645
  %6648 = vset.pattern.permute.xlu0 7
  %6649 = vperm.xlu0 %6648, %v5557
  %v6650 = vpop.permute.xlu0 %6649
  %6652 = vset.pattern.permute.xlu0 7
  %6653 = vperm.xlu0 %6652, %v5558
  %v6654 = vpop.permute.xlu0 %6653
  %6656 = vset.pattern.permute.xlu0 7
  %6657 = vperm.xlu0 %6656, %v5559
  %v6658 = vpop.permute.xlu0 %6657
  %6660 = vset.pattern.permute.xlu0 7
  %6661 = vperm.xlu0 %6660, %v5560
  %v6662 = vpop.permute.xlu0 %6661
  %6664 = vset.pattern.permute.xlu0 7
  %6665 = vperm.xlu0 %6664, %v5561
  %v6666 = vpop.permute.xlu0 %6665
  %6668 = vset.pattern.permute.xlu0 7
  %6669 = vperm.xlu0 %6668, %v5562
  %v6670 = vpop.permute.xlu0 %6669
  %6672 = vset.pattern.permute.xlu0 7
  %6673 = vperm.xlu0 %6672, %v5563
  %v6674 = vpop.permute.xlu0 %6673
  %6676 = vset.pattern.permute.xlu0 7
  %6677 = vperm.xlu0 %6676, %v5564
  %v6678 = vpop.permute.xlu0 %6677
  %6680 = vset.pattern.permute.xlu0 7
  %6681 = vperm.xlu0 %6680, %v5565
  %v6682 = vpop.permute.xlu0 %6681
  %6684 = vset.pattern.permute.xlu0 7
  %6685 = vperm.xlu0 %6684, %v5566
  %v6686 = vpop.permute.xlu0 %6685
  %6688 = vset.pattern.permute.xlu0 7
  %6689 = vperm.xlu0 %6688, %v5567
  %v6690 = vpop.permute.xlu0 %6689
  %6692 = vset.pattern.permute.xlu0 7
  %6693 = vperm.xlu0 %6692, %v5568
  %v6694 = vpop.permute.xlu0 %6693
  %6696 = vset.pattern.permute.xlu0 7
  %6697 = vperm.xlu0 %6696, %v5569
  %v6698 = vpop.permute.xlu0 %6697
  %6700 = vset.pattern.permute.xlu0 7
  %6701 = vperm.xlu0 %6700, %v5570
  %v6702 = vpop.permute.xlu0 %6701
  %6704 = vset.pattern.permute.xlu0 7
  %6705 = vperm.xlu0 %6704, %v5571
  %v6706 = vpop.permute.xlu0 %6705
  %v6708 = vmul.f32 %v6646, %v5494
  %v6709 = vmul.f32 %v6650, %v5497
  %v6710 = vmul.f32 %v6654, %v5502
  %v6711 = vmul.f32 %v6658, %v5505
  %v6712 = vmul.f32 %v6662, %v5510
  %v6713 = vmul.f32 %v6666, %v5513
  %v6714 = vmul.f32 %v6670, %v5518
  %v6715 = vmul.f32 %v6674, %v5521
  %v6716 = vmul.f32 %v6678, %v5526
  %v6717 = vmul.f32 %v6682, %v5529
  %v6718 = vmul.f32 %v6686, %v5534
  %v6719 = vmul.f32 %v6690, %v5537
  %v6720 = vmul.f32 %v6694, %v5542
  %v6721 = vmul.f32 %v6698, %v5545
  %v6722 = vmul.f32 %v6702, %v5550
  %v6723 = vmul.f32 %v6706, %v5553
  %6740 = vrot.lane.b32.xlu0 %v6708, 121
  %v6741 = vpop.permute.xlu0 %6740
  %6742 = vrot.lane.b32.xlu0 %v6709, 121
  %v6743 = vpop.permute.xlu0 %6742
  %6744 = vrot.lane.b32.xlu0 %v6710, 121
  %v6745 = vpop.permute.xlu0 %6744
  %6746 = vrot.lane.b32.xlu0 %v6711, 121
  %v6747 = vpop.permute.xlu0 %6746
  %6748 = vrot.lane.b32.xlu0 %v6712, 121
  %v6749 = vpop.permute.xlu0 %6748
  %6750 = vrot.lane.b32.xlu0 %v6713, 121
  %v6751 = vpop.permute.xlu0 %6750
  %6752 = vrot.lane.b32.xlu0 %v6714, 121
  %v6753 = vpop.permute.xlu0 %6752
  %6754 = vrot.lane.b32.xlu0 %v6715, 121
  %v6755 = vpop.permute.xlu0 %6754
  %6756 = vrot.lane.b32.xlu0 %v6716, 121
  %v6757 = vpop.permute.xlu0 %6756
  %6758 = vrot.lane.b32.xlu0 %v6717, 121
  %v6759 = vpop.permute.xlu0 %6758
  %6760 = vrot.lane.b32.xlu0 %v6718, 121
  %v6761 = vpop.permute.xlu0 %6760
  %6762 = vrot.lane.b32.xlu0 %v6719, 121
  %v6763 = vpop.permute.xlu0 %6762
  %6764 = vrot.lane.b32.xlu0 %v6720, 121
  %v6765 = vpop.permute.xlu0 %6764
  %6766 = vrot.lane.b32.xlu0 %v6721, 121
  %v6767 = vpop.permute.xlu0 %6766
  %6768 = vrot.lane.b32.xlu0 %v6722, 121
  %v6769 = vpop.permute.xlu0 %6768
  %6770 = vrot.lane.b32.xlu0 %v6723, 121
  %v6771 = vpop.permute.xlu0 %6770
  %v6788 = vadd.f32 %v6628, %v6741
  %v6789 = vadd.f32 %v6629, %v6743
  %v6790 = vadd.f32 %v6630, %v6745
  %v6791 = vadd.f32 %v6631, %v6747
  %v6792 = vadd.f32 %v6632, %v6749
  %v6793 = vadd.f32 %v6633, %v6751
  %v6794 = vadd.f32 %v6634, %v6753
  %v6795 = vadd.f32 %v6635, %v6755
  %v6796 = vadd.f32 %v6636, %v6757
  %v6797 = vadd.f32 %v6637, %v6759
  %v6798 = vadd.f32 %v6638, %v6761
  %v6799 = vadd.f32 %v6639, %v6763
  %v6800 = vadd.f32 %v6640, %v6765
  %v6801 = vadd.f32 %v6641, %v6767
  %v6802 = vadd.f32 %v6642, %v6769
  %v6803 = vadd.f32 %v6643, %v6771
  %6804 = vset.pattern.permute.xlu0 8
  %6805 = vperm.xlu0 %6804, %v5556
  %v6806 = vpop.permute.xlu0 %6805
  %6808 = vset.pattern.permute.xlu0 8
  %6809 = vperm.xlu0 %6808, %v5557
  %v6810 = vpop.permute.xlu0 %6809
  %6812 = vset.pattern.permute.xlu0 8
  %6813 = vperm.xlu0 %6812, %v5558
  %v6814 = vpop.permute.xlu0 %6813
  %6816 = vset.pattern.permute.xlu0 8
  %6817 = vperm.xlu0 %6816, %v5559
  %v6818 = vpop.permute.xlu0 %6817
  %6820 = vset.pattern.permute.xlu0 8
  %6821 = vperm.xlu0 %6820, %v5560
  %v6822 = vpop.permute.xlu0 %6821
  %6824 = vset.pattern.permute.xlu0 8
  %6825 = vperm.xlu0 %6824, %v5561
  %v6826 = vpop.permute.xlu0 %6825
  %6828 = vset.pattern.permute.xlu0 8
  %6829 = vperm.xlu0 %6828, %v5562
  %v6830 = vpop.permute.xlu0 %6829
  %6832 = vset.pattern.permute.xlu0 8
  %6833 = vperm.xlu0 %6832, %v5563
  %v6834 = vpop.permute.xlu0 %6833
  %6836 = vset.pattern.permute.xlu0 8
  %6837 = vperm.xlu0 %6836, %v5564
  %v6838 = vpop.permute.xlu0 %6837
  %6840 = vset.pattern.permute.xlu0 8
  %6841 = vperm.xlu0 %6840, %v5565
  %v6842 = vpop.permute.xlu0 %6841
  %6844 = vset.pattern.permute.xlu0 8
  %6845 = vperm.xlu0 %6844, %v5566
  %v6846 = vpop.permute.xlu0 %6845
  %6848 = vset.pattern.permute.xlu0 8
  %6849 = vperm.xlu0 %6848, %v5567
  %v6850 = vpop.permute.xlu0 %6849
  %6852 = vset.pattern.permute.xlu0 8
  %6853 = vperm.xlu0 %6852, %v5568
  %v6854 = vpop.permute.xlu0 %6853
  %6856 = vset.pattern.permute.xlu0 8
  %6857 = vperm.xlu0 %6856, %v5569
  %v6858 = vpop.permute.xlu0 %6857
  %6860 = vset.pattern.permute.xlu0 8
  %6861 = vperm.xlu0 %6860, %v5570
  %v6862 = vpop.permute.xlu0 %6861
  %6864 = vset.pattern.permute.xlu0 8
  %6865 = vperm.xlu0 %6864, %v5571
  %v6866 = vpop.permute.xlu0 %6865
  %v6868 = vmul.f32 %v6806, %v5494
  %v6869 = vmul.f32 %v6810, %v5497
  %v6870 = vmul.f32 %v6814, %v5502
  %v6871 = vmul.f32 %v6818, %v5505
  %v6872 = vmul.f32 %v6822, %v5510
  %v6873 = vmul.f32 %v6826, %v5513
  %v6874 = vmul.f32 %v6830, %v5518
  %v6875 = vmul.f32 %v6834, %v5521
  %v6876 = vmul.f32 %v6838, %v5526
  %v6877 = vmul.f32 %v6842, %v5529
  %v6878 = vmul.f32 %v6846, %v5534
  %v6879 = vmul.f32 %v6850, %v5537
  %v6880 = vmul.f32 %v6854, %v5542
  %v6881 = vmul.f32 %v6858, %v5545
  %v6882 = vmul.f32 %v6862, %v5550
  %v6883 = vmul.f32 %v6866, %v5553
  %6900 = vrot.lane.b32.xlu0 %v6868, 120
  %v6901 = vpop.permute.xlu0 %6900
  %6902 = vrot.lane.b32.xlu0 %v6869, 120
  %v6903 = vpop.permute.xlu0 %6902
  %6904 = vrot.lane.b32.xlu0 %v6870, 120
  %v6905 = vpop.permute.xlu0 %6904
  %6906 = vrot.lane.b32.xlu0 %v6871, 120
  %v6907 = vpop.permute.xlu0 %6906
  %6908 = vrot.lane.b32.xlu0 %v6872, 120
  %v6909 = vpop.permute.xlu0 %6908
  %6910 = vrot.lane.b32.xlu0 %v6873, 120
  %v6911 = vpop.permute.xlu0 %6910
  %6912 = vrot.lane.b32.xlu0 %v6874, 120
  %v6913 = vpop.permute.xlu0 %6912
  %6914 = vrot.lane.b32.xlu0 %v6875, 120
  %v6915 = vpop.permute.xlu0 %6914
  %6916 = vrot.lane.b32.xlu0 %v6876, 120
  %v6917 = vpop.permute.xlu0 %6916
  %6918 = vrot.lane.b32.xlu0 %v6877, 120
  %v6919 = vpop.permute.xlu0 %6918
  %6920 = vrot.lane.b32.xlu0 %v6878, 120
  %v6921 = vpop.permute.xlu0 %6920
  %6922 = vrot.lane.b32.xlu0 %v6879, 120
  %v6923 = vpop.permute.xlu0 %6922
  %6924 = vrot.lane.b32.xlu0 %v6880, 120
  %v6925 = vpop.permute.xlu0 %6924
  %6926 = vrot.lane.b32.xlu0 %v6881, 120
  %v6927 = vpop.permute.xlu0 %6926
  %6928 = vrot.lane.b32.xlu0 %v6882, 120
  %v6929 = vpop.permute.xlu0 %6928
  %6930 = vrot.lane.b32.xlu0 %v6883, 120
  %v6931 = vpop.permute.xlu0 %6930
  %v6948 = vadd.f32 %v6788, %v6901
  %v6949 = vadd.f32 %v6789, %v6903
  %v6950 = vadd.f32 %v6790, %v6905
  %v6951 = vadd.f32 %v6791, %v6907
  %v6952 = vadd.f32 %v6792, %v6909
  %v6953 = vadd.f32 %v6793, %v6911
  %v6954 = vadd.f32 %v6794, %v6913
  %v6955 = vadd.f32 %v6795, %v6915
  %v6956 = vadd.f32 %v6796, %v6917
  %v6957 = vadd.f32 %v6797, %v6919
  %v6958 = vadd.f32 %v6798, %v6921
  %v6959 = vadd.f32 %v6799, %v6923
  %v6960 = vadd.f32 %v6800, %v6925
  %v6961 = vadd.f32 %v6801, %v6927
  %v6962 = vadd.f32 %v6802, %v6929
  %v6963 = vadd.f32 %v6803, %v6931
  %6964 = vset.pattern.permute.xlu0 9
  %6965 = vperm.xlu0 %6964, %v5556
  %v6966 = vpop.permute.xlu0 %6965
  %6968 = vset.pattern.permute.xlu0 9
  %6969 = vperm.xlu0 %6968, %v5557
  %v6970 = vpop.permute.xlu0 %6969
  %6972 = vset.pattern.permute.xlu0 9
  %6973 = vperm.xlu0 %6972, %v5558
  %v6974 = vpop.permute.xlu0 %6973
  %6976 = vset.pattern.permute.xlu0 9
  %6977 = vperm.xlu0 %6976, %v5559
  %v6978 = vpop.permute.xlu0 %6977
  %6980 = vset.pattern.permute.xlu0 9
  %6981 = vperm.xlu0 %6980, %v5560
  %v6982 = vpop.permute.xlu0 %6981
  %6984 = vset.pattern.permute.xlu0 9
  %6985 = vperm.xlu0 %6984, %v5561
  %v6986 = vpop.permute.xlu0 %6985
  %6988 = vset.pattern.permute.xlu0 9
  %6989 = vperm.xlu0 %6988, %v5562
  %v6990 = vpop.permute.xlu0 %6989
  %6992 = vset.pattern.permute.xlu0 9
  %6993 = vperm.xlu0 %6992, %v5563
  %v6994 = vpop.permute.xlu0 %6993
  %6996 = vset.pattern.permute.xlu0 9
  %6997 = vperm.xlu0 %6996, %v5564
  %v6998 = vpop.permute.xlu0 %6997
  %7000 = vset.pattern.permute.xlu0 9
  %7001 = vperm.xlu0 %7000, %v5565
  %v7002 = vpop.permute.xlu0 %7001
  %7004 = vset.pattern.permute.xlu0 9
  %7005 = vperm.xlu0 %7004, %v5566
  %v7006 = vpop.permute.xlu0 %7005
  %7008 = vset.pattern.permute.xlu0 9
  %7009 = vperm.xlu0 %7008, %v5567
  %v7010 = vpop.permute.xlu0 %7009
  %7012 = vset.pattern.permute.xlu0 9
  %7013 = vperm.xlu0 %7012, %v5568
  %v7014 = vpop.permute.xlu0 %7013
  %7016 = vset.pattern.permute.xlu0 9
  %7017 = vperm.xlu0 %7016, %v5569
  %v7018 = vpop.permute.xlu0 %7017
  %7020 = vset.pattern.permute.xlu0 9
  %7021 = vperm.xlu0 %7020, %v5570
  %v7022 = vpop.permute.xlu0 %7021
  %7024 = vset.pattern.permute.xlu0 9
  %7025 = vperm.xlu0 %7024, %v5571
  %v7026 = vpop.permute.xlu0 %7025
  %v7028 = vmul.f32 %v6966, %v5494
  %v7029 = vmul.f32 %v6970, %v5497
  %v7030 = vmul.f32 %v6974, %v5502
  %v7031 = vmul.f32 %v6978, %v5505
  %v7032 = vmul.f32 %v6982, %v5510
  %v7033 = vmul.f32 %v6986, %v5513
  %v7034 = vmul.f32 %v6990, %v5518
  %v7035 = vmul.f32 %v6994, %v5521
  %v7036 = vmul.f32 %v6998, %v5526
  %v7037 = vmul.f32 %v7002, %v5529
  %v7038 = vmul.f32 %v7006, %v5534
  %v7039 = vmul.f32 %v7010, %v5537
  %v7040 = vmul.f32 %v7014, %v5542
  %v7041 = vmul.f32 %v7018, %v5545
  %v7042 = vmul.f32 %v7022, %v5550
  %v7043 = vmul.f32 %v7026, %v5553
  %7060 = vrot.lane.b32.xlu0 %v7028, 119
  %v7061 = vpop.permute.xlu0 %7060
  %7062 = vrot.lane.b32.xlu0 %v7029, 119
  %v7063 = vpop.permute.xlu0 %7062
  %7064 = vrot.lane.b32.xlu0 %v7030, 119
  %v7065 = vpop.permute.xlu0 %7064
  %7066 = vrot.lane.b32.xlu0 %v7031, 119
  %v7067 = vpop.permute.xlu0 %7066
  %7068 = vrot.lane.b32.xlu0 %v7032, 119
  %v7069 = vpop.permute.xlu0 %7068
  %7070 = vrot.lane.b32.xlu0 %v7033, 119
  %v7071 = vpop.permute.xlu0 %7070
  %7072 = vrot.lane.b32.xlu0 %v7034, 119
  %v7073 = vpop.permute.xlu0 %7072
  %7074 = vrot.lane.b32.xlu0 %v7035, 119
  %v7075 = vpop.permute.xlu0 %7074
  %7076 = vrot.lane.b32.xlu0 %v7036, 119
  %v7077 = vpop.permute.xlu0 %7076
  %7078 = vrot.lane.b32.xlu0 %v7037, 119
  %v7079 = vpop.permute.xlu0 %7078
  %7080 = vrot.lane.b32.xlu0 %v7038, 119
  %v7081 = vpop.permute.xlu0 %7080
  %7082 = vrot.lane.b32.xlu0 %v7039, 119
  %v7083 = vpop.permute.xlu0 %7082
  %7084 = vrot.lane.b32.xlu0 %v7040, 119
  %v7085 = vpop.permute.xlu0 %7084
  %7086 = vrot.lane.b32.xlu0 %v7041, 119
  %v7087 = vpop.permute.xlu0 %7086
  %7088 = vrot.lane.b32.xlu0 %v7042, 119
  %v7089 = vpop.permute.xlu0 %7088
  %7090 = vrot.lane.b32.xlu0 %v7043, 119
  %v7091 = vpop.permute.xlu0 %7090
  %v7108 = vadd.f32 %v6948, %v7061
  %v7109 = vadd.f32 %v6949, %v7063
  %v7110 = vadd.f32 %v6950, %v7065
  %v7111 = vadd.f32 %v6951, %v7067
  %v7112 = vadd.f32 %v6952, %v7069
  %v7113 = vadd.f32 %v6953, %v7071
  %v7114 = vadd.f32 %v6954, %v7073
  %v7115 = vadd.f32 %v6955, %v7075
  %v7116 = vadd.f32 %v6956, %v7077
  %v7117 = vadd.f32 %v6957, %v7079
  %v7118 = vadd.f32 %v6958, %v7081
  %v7119 = vadd.f32 %v6959, %v7083
  %v7120 = vadd.f32 %v6960, %v7085
  %v7121 = vadd.f32 %v6961, %v7087
  %v7122 = vadd.f32 %v6962, %v7089
  %v7123 = vadd.f32 %v6963, %v7091
  %7124 = vset.pattern.permute.xlu0 10
  %7125 = vperm.xlu0 %7124, %v5556
  %v7126 = vpop.permute.xlu0 %7125
  %7128 = vset.pattern.permute.xlu0 10
  %7129 = vperm.xlu0 %7128, %v5557
  %v7130 = vpop.permute.xlu0 %7129
  %7132 = vset.pattern.permute.xlu0 10
  %7133 = vperm.xlu0 %7132, %v5558
  %v7134 = vpop.permute.xlu0 %7133
  %7136 = vset.pattern.permute.xlu0 10
  %7137 = vperm.xlu0 %7136, %v5559
  %v7138 = vpop.permute.xlu0 %7137
  %7140 = vset.pattern.permute.xlu0 10
  %7141 = vperm.xlu0 %7140, %v5560
  %v7142 = vpop.permute.xlu0 %7141
  %7144 = vset.pattern.permute.xlu0 10
  %7145 = vperm.xlu0 %7144, %v5561
  %v7146 = vpop.permute.xlu0 %7145
  %7148 = vset.pattern.permute.xlu0 10
  %7149 = vperm.xlu0 %7148, %v5562
  %v7150 = vpop.permute.xlu0 %7149
  %7152 = vset.pattern.permute.xlu0 10
  %7153 = vperm.xlu0 %7152, %v5563
  %v7154 = vpop.permute.xlu0 %7153
  %7156 = vset.pattern.permute.xlu0 10
  %7157 = vperm.xlu0 %7156, %v5564
  %v7158 = vpop.permute.xlu0 %7157
  %7160 = vset.pattern.permute.xlu0 10
  %7161 = vperm.xlu0 %7160, %v5565
  %v7162 = vpop.permute.xlu0 %7161
  %7164 = vset.pattern.permute.xlu0 10
  %7165 = vperm.xlu0 %7164, %v5566
  %v7166 = vpop.permute.xlu0 %7165
  %7168 = vset.pattern.permute.xlu0 10
  %7169 = vperm.xlu0 %7168, %v5567
  %v7170 = vpop.permute.xlu0 %7169
  %7172 = vset.pattern.permute.xlu0 10
  %7173 = vperm.xlu0 %7172, %v5568
  %v7174 = vpop.permute.xlu0 %7173
  %7176 = vset.pattern.permute.xlu0 10
  %7177 = vperm.xlu0 %7176, %v5569
  %v7178 = vpop.permute.xlu0 %7177
  %7180 = vset.pattern.permute.xlu0 10
  %7181 = vperm.xlu0 %7180, %v5570
  %v7182 = vpop.permute.xlu0 %7181
  %7184 = vset.pattern.permute.xlu0 10
  %7185 = vperm.xlu0 %7184, %v5571
  %v7186 = vpop.permute.xlu0 %7185
  %v7188 = vmul.f32 %v7126, %v5494
  %v7189 = vmul.f32 %v7130, %v5497
  %v7190 = vmul.f32 %v7134, %v5502
  %v7191 = vmul.f32 %v7138, %v5505
  %v7192 = vmul.f32 %v7142, %v5510
  %v7193 = vmul.f32 %v7146, %v5513
  %v7194 = vmul.f32 %v7150, %v5518
  %v7195 = vmul.f32 %v7154, %v5521
  %v7196 = vmul.f32 %v7158, %v5526
  %v7197 = vmul.f32 %v7162, %v5529
  %v7198 = vmul.f32 %v7166, %v5534
  %v7199 = vmul.f32 %v7170, %v5537
  %v7200 = vmul.f32 %v7174, %v5542
  %v7201 = vmul.f32 %v7178, %v5545
  %v7202 = vmul.f32 %v7182, %v5550
  %v7203 = vmul.f32 %v7186, %v5553
  %7220 = vrot.lane.b32.xlu0 %v7188, 118
  %v7221 = vpop.permute.xlu0 %7220
  %7222 = vrot.lane.b32.xlu0 %v7189, 118
  %v7223 = vpop.permute.xlu0 %7222
  %7224 = vrot.lane.b32.xlu0 %v7190, 118
  %v7225 = vpop.permute.xlu0 %7224
  %7226 = vrot.lane.b32.xlu0 %v7191, 118
  %v7227 = vpop.permute.xlu0 %7226
  %7228 = vrot.lane.b32.xlu0 %v7192, 118
  %v7229 = vpop.permute.xlu0 %7228
  %7230 = vrot.lane.b32.xlu0 %v7193, 118
  %v7231 = vpop.permute.xlu0 %7230
  %7232 = vrot.lane.b32.xlu0 %v7194, 118
  %v7233 = vpop.permute.xlu0 %7232
  %7234 = vrot.lane.b32.xlu0 %v7195, 118
  %v7235 = vpop.permute.xlu0 %7234
  %7236 = vrot.lane.b32.xlu0 %v7196, 118
  %v7237 = vpop.permute.xlu0 %7236
  %7238 = vrot.lane.b32.xlu0 %v7197, 118
  %v7239 = vpop.permute.xlu0 %7238
  %7240 = vrot.lane.b32.xlu0 %v7198, 118
  %v7241 = vpop.permute.xlu0 %7240
  %7242 = vrot.lane.b32.xlu0 %v7199, 118
  %v7243 = vpop.permute.xlu0 %7242
  %7244 = vrot.lane.b32.xlu0 %v7200, 118
  %v7245 = vpop.permute.xlu0 %7244
  %7246 = vrot.lane.b32.xlu0 %v7201, 118
  %v7247 = vpop.permute.xlu0 %7246
  %7248 = vrot.lane.b32.xlu0 %v7202, 118
  %v7249 = vpop.permute.xlu0 %7248
  %7250 = vrot.lane.b32.xlu0 %v7203, 118
  %v7251 = vpop.permute.xlu0 %7250
  %v7268 = vadd.f32 %v7108, %v7221
  %v7269 = vadd.f32 %v7109, %v7223
  %v7270 = vadd.f32 %v7110, %v7225
  %v7271 = vadd.f32 %v7111, %v7227
  %v7272 = vadd.f32 %v7112, %v7229
  %v7273 = vadd.f32 %v7113, %v7231
  %v7274 = vadd.f32 %v7114, %v7233
  %v7275 = vadd.f32 %v7115, %v7235
  %v7276 = vadd.f32 %v7116, %v7237
  %v7277 = vadd.f32 %v7117, %v7239
  %v7278 = vadd.f32 %v7118, %v7241
  %v7279 = vadd.f32 %v7119, %v7243
  %v7280 = vadd.f32 %v7120, %v7245
  %v7281 = vadd.f32 %v7121, %v7247
  %v7282 = vadd.f32 %v7122, %v7249
  %v7283 = vadd.f32 %v7123, %v7251
  %7284 = vset.pattern.permute.xlu0 11
  %7285 = vperm.xlu0 %7284, %v5556
  %v7286 = vpop.permute.xlu0 %7285
  %7288 = vset.pattern.permute.xlu0 11
  %7289 = vperm.xlu0 %7288, %v5557
  %v7290 = vpop.permute.xlu0 %7289
  %7292 = vset.pattern.permute.xlu0 11
  %7293 = vperm.xlu0 %7292, %v5558
  %v7294 = vpop.permute.xlu0 %7293
  %7296 = vset.pattern.permute.xlu0 11
  %7297 = vperm.xlu0 %7296, %v5559
  %v7298 = vpop.permute.xlu0 %7297
  %7300 = vset.pattern.permute.xlu0 11
  %7301 = vperm.xlu0 %7300, %v5560
  %v7302 = vpop.permute.xlu0 %7301
  %7304 = vset.pattern.permute.xlu0 11
  %7305 = vperm.xlu0 %7304, %v5561
  %v7306 = vpop.permute.xlu0 %7305
  %7308 = vset.pattern.permute.xlu0 11
  %7309 = vperm.xlu0 %7308, %v5562
  %v7310 = vpop.permute.xlu0 %7309
  %7312 = vset.pattern.permute.xlu0 11
  %7313 = vperm.xlu0 %7312, %v5563
  %v7314 = vpop.permute.xlu0 %7313
  %7316 = vset.pattern.permute.xlu0 11
  %7317 = vperm.xlu0 %7316, %v5564
  %v7318 = vpop.permute.xlu0 %7317
  %7320 = vset.pattern.permute.xlu0 11
  %7321 = vperm.xlu0 %7320, %v5565
  %v7322 = vpop.permute.xlu0 %7321
  %7324 = vset.pattern.permute.xlu0 11
  %7325 = vperm.xlu0 %7324, %v5566
  %v7326 = vpop.permute.xlu0 %7325
  %7328 = vset.pattern.permute.xlu0 11
  %7329 = vperm.xlu0 %7328, %v5567
  %v7330 = vpop.permute.xlu0 %7329
  %7332 = vset.pattern.permute.xlu0 11
  %7333 = vperm.xlu0 %7332, %v5568
  %v7334 = vpop.permute.xlu0 %7333
  %7336 = vset.pattern.permute.xlu0 11
  %7337 = vperm.xlu0 %7336, %v5569
  %v7338 = vpop.permute.xlu0 %7337
  %7340 = vset.pattern.permute.xlu0 11
  %7341 = vperm.xlu0 %7340, %v5570
  %v7342 = vpop.permute.xlu0 %7341
  %7344 = vset.pattern.permute.xlu0 11
  %7345 = vperm.xlu0 %7344, %v5571
  %v7346 = vpop.permute.xlu0 %7345
  %v7348 = vmul.f32 %v7286, %v5494
  %v7349 = vmul.f32 %v7290, %v5497
  %v7350 = vmul.f32 %v7294, %v5502
  %v7351 = vmul.f32 %v7298, %v5505
  %v7352 = vmul.f32 %v7302, %v5510
  %v7353 = vmul.f32 %v7306, %v5513
  %v7354 = vmul.f32 %v7310, %v5518
  %v7355 = vmul.f32 %v7314, %v5521
  %v7356 = vmul.f32 %v7318, %v5526
  %v7357 = vmul.f32 %v7322, %v5529
  %v7358 = vmul.f32 %v7326, %v5534
  %v7359 = vmul.f32 %v7330, %v5537
  %v7360 = vmul.f32 %v7334, %v5542
  %v7361 = vmul.f32 %v7338, %v5545
  %v7362 = vmul.f32 %v7342, %v5550
  %v7363 = vmul.f32 %v7346, %v5553
  %7380 = vrot.lane.b32.xlu0 %v7348, 117
  %v7381 = vpop.permute.xlu0 %7380
  %7382 = vrot.lane.b32.xlu0 %v7349, 117
  %v7383 = vpop.permute.xlu0 %7382
  %7384 = vrot.lane.b32.xlu0 %v7350, 117
  %v7385 = vpop.permute.xlu0 %7384
  %7386 = vrot.lane.b32.xlu0 %v7351, 117
  %v7387 = vpop.permute.xlu0 %7386
  %7388 = vrot.lane.b32.xlu0 %v7352, 117
  %v7389 = vpop.permute.xlu0 %7388
  %7390 = vrot.lane.b32.xlu0 %v7353, 117
  %v7391 = vpop.permute.xlu0 %7390
  %7392 = vrot.lane.b32.xlu0 %v7354, 117
  %v7393 = vpop.permute.xlu0 %7392
  %7394 = vrot.lane.b32.xlu0 %v7355, 117
  %v7395 = vpop.permute.xlu0 %7394
  %7396 = vrot.lane.b32.xlu0 %v7356, 117
  %v7397 = vpop.permute.xlu0 %7396
  %7398 = vrot.lane.b32.xlu0 %v7357, 117
  %v7399 = vpop.permute.xlu0 %7398
  %7400 = vrot.lane.b32.xlu0 %v7358, 117
  %v7401 = vpop.permute.xlu0 %7400
  %7402 = vrot.lane.b32.xlu0 %v7359, 117
  %v7403 = vpop.permute.xlu0 %7402
  %7404 = vrot.lane.b32.xlu0 %v7360, 117
  %v7405 = vpop.permute.xlu0 %7404
  %7406 = vrot.lane.b32.xlu0 %v7361, 117
  %v7407 = vpop.permute.xlu0 %7406
  %7408 = vrot.lane.b32.xlu0 %v7362, 117
  %v7409 = vpop.permute.xlu0 %7408
  %7410 = vrot.lane.b32.xlu0 %v7363, 117
  %v7411 = vpop.permute.xlu0 %7410
  %v7428 = vadd.f32 %v7268, %v7381
  %v7429 = vadd.f32 %v7269, %v7383
  %v7430 = vadd.f32 %v7270, %v7385
  %v7431 = vadd.f32 %v7271, %v7387
  %v7432 = vadd.f32 %v7272, %v7389
  %v7433 = vadd.f32 %v7273, %v7391
  %v7434 = vadd.f32 %v7274, %v7393
  %v7435 = vadd.f32 %v7275, %v7395
  %v7436 = vadd.f32 %v7276, %v7397
  %v7437 = vadd.f32 %v7277, %v7399
  %v7438 = vadd.f32 %v7278, %v7401
  %v7439 = vadd.f32 %v7279, %v7403
  %v7440 = vadd.f32 %v7280, %v7405
  %v7441 = vadd.f32 %v7281, %v7407
  %v7442 = vadd.f32 %v7282, %v7409
  %v7443 = vadd.f32 %v7283, %v7411
  %7444 = vset.pattern.permute.xlu0 12
  %7445 = vperm.xlu0 %7444, %v5556
  %v7446 = vpop.permute.xlu0 %7445
  %7448 = vset.pattern.permute.xlu0 12
  %7449 = vperm.xlu0 %7448, %v5557
  %v7450 = vpop.permute.xlu0 %7449
  %7452 = vset.pattern.permute.xlu0 12
  %7453 = vperm.xlu0 %7452, %v5558
  %v7454 = vpop.permute.xlu0 %7453
  %7456 = vset.pattern.permute.xlu0 12
  %7457 = vperm.xlu0 %7456, %v5559
  %v7458 = vpop.permute.xlu0 %7457
  %7460 = vset.pattern.permute.xlu0 12
  %7461 = vperm.xlu0 %7460, %v5560
  %v7462 = vpop.permute.xlu0 %7461
  %7464 = vset.pattern.permute.xlu0 12
  %7465 = vperm.xlu0 %7464, %v5561
  %v7466 = vpop.permute.xlu0 %7465
  %7468 = vset.pattern.permute.xlu0 12
  %7469 = vperm.xlu0 %7468, %v5562
  %v7470 = vpop.permute.xlu0 %7469
  %7472 = vset.pattern.permute.xlu0 12
  %7473 = vperm.xlu0 %7472, %v5563
  %v7474 = vpop.permute.xlu0 %7473
  %7476 = vset.pattern.permute.xlu0 12
  %7477 = vperm.xlu0 %7476, %v5564
  %v7478 = vpop.permute.xlu0 %7477
  %7480 = vset.pattern.permute.xlu0 12
  %7481 = vperm.xlu0 %7480, %v5565
  %v7482 = vpop.permute.xlu0 %7481
  %7484 = vset.pattern.permute.xlu0 12
  %7485 = vperm.xlu0 %7484, %v5566
  %v7486 = vpop.permute.xlu0 %7485
  %7488 = vset.pattern.permute.xlu0 12
  %7489 = vperm.xlu0 %7488, %v5567
  %v7490 = vpop.permute.xlu0 %7489
  %7492 = vset.pattern.permute.xlu0 12
  %7493 = vperm.xlu0 %7492, %v5568
  %v7494 = vpop.permute.xlu0 %7493
  %7496 = vset.pattern.permute.xlu0 12
  %7497 = vperm.xlu0 %7496, %v5569
  %v7498 = vpop.permute.xlu0 %7497
  %7500 = vset.pattern.permute.xlu0 12
  %7501 = vperm.xlu0 %7500, %v5570
  %v7502 = vpop.permute.xlu0 %7501
  %7504 = vset.pattern.permute.xlu0 12
  %7505 = vperm.xlu0 %7504, %v5571
  %v7506 = vpop.permute.xlu0 %7505
  %v7508 = vmul.f32 %v7446, %v5494
  %v7509 = vmul.f32 %v7450, %v5497
  %v7510 = vmul.f32 %v7454, %v5502
  %v7511 = vmul.f32 %v7458, %v5505
  %v7512 = vmul.f32 %v7462, %v5510
  %v7513 = vmul.f32 %v7466, %v5513
  %v7514 = vmul.f32 %v7470, %v5518
  %v7515 = vmul.f32 %v7474, %v5521
  %v7516 = vmul.f32 %v7478, %v5526
  %v7517 = vmul.f32 %v7482, %v5529
  %v7518 = vmul.f32 %v7486, %v5534
  %v7519 = vmul.f32 %v7490, %v5537
  %v7520 = vmul.f32 %v7494, %v5542
  %v7521 = vmul.f32 %v7498, %v5545
  %v7522 = vmul.f32 %v7502, %v5550
  %v7523 = vmul.f32 %v7506, %v5553
  %7540 = vrot.lane.b32.xlu0 %v7508, 116
  %v7541 = vpop.permute.xlu0 %7540
  %7542 = vrot.lane.b32.xlu0 %v7509, 116
  %v7543 = vpop.permute.xlu0 %7542
  %7544 = vrot.lane.b32.xlu0 %v7510, 116
  %v7545 = vpop.permute.xlu0 %7544
  %7546 = vrot.lane.b32.xlu0 %v7511, 116
  %v7547 = vpop.permute.xlu0 %7546
  %7548 = vrot.lane.b32.xlu0 %v7512, 116
  %v7549 = vpop.permute.xlu0 %7548
  %7550 = vrot.lane.b32.xlu0 %v7513, 116
  %v7551 = vpop.permute.xlu0 %7550
  %7552 = vrot.lane.b32.xlu0 %v7514, 116
  %v7553 = vpop.permute.xlu0 %7552
  %7554 = vrot.lane.b32.xlu0 %v7515, 116
  %v7555 = vpop.permute.xlu0 %7554
  %7556 = vrot.lane.b32.xlu0 %v7516, 116
  %v7557 = vpop.permute.xlu0 %7556
  %7558 = vrot.lane.b32.xlu0 %v7517, 116
  %v7559 = vpop.permute.xlu0 %7558
  %7560 = vrot.lane.b32.xlu0 %v7518, 116
  %v7561 = vpop.permute.xlu0 %7560
  %7562 = vrot.lane.b32.xlu0 %v7519, 116
  %v7563 = vpop.permute.xlu0 %7562
  %7564 = vrot.lane.b32.xlu0 %v7520, 116
  %v7565 = vpop.permute.xlu0 %7564
  %7566 = vrot.lane.b32.xlu0 %v7521, 116
  %v7567 = vpop.permute.xlu0 %7566
  %7568 = vrot.lane.b32.xlu0 %v7522, 116
  %v7569 = vpop.permute.xlu0 %7568
  %7570 = vrot.lane.b32.xlu0 %v7523, 116
  %v7571 = vpop.permute.xlu0 %7570
  %v7588 = vadd.f32 %v7428, %v7541
  %v7589 = vadd.f32 %v7429, %v7543
  %v7590 = vadd.f32 %v7430, %v7545
  %v7591 = vadd.f32 %v7431, %v7547
  %v7592 = vadd.f32 %v7432, %v7549
  %v7593 = vadd.f32 %v7433, %v7551
  %v7594 = vadd.f32 %v7434, %v7553
  %v7595 = vadd.f32 %v7435, %v7555
  %v7596 = vadd.f32 %v7436, %v7557
  %v7597 = vadd.f32 %v7437, %v7559
  %v7598 = vadd.f32 %v7438, %v7561
  %v7599 = vadd.f32 %v7439, %v7563
  %v7600 = vadd.f32 %v7440, %v7565
  %v7601 = vadd.f32 %v7441, %v7567
  %v7602 = vadd.f32 %v7442, %v7569
  %v7603 = vadd.f32 %v7443, %v7571
  %7604 = vset.pattern.permute.xlu0 13
  %7605 = vperm.xlu0 %7604, %v5556
  %v7606 = vpop.permute.xlu0 %7605
  %7608 = vset.pattern.permute.xlu0 13
  %7609 = vperm.xlu0 %7608, %v5557
  %v7610 = vpop.permute.xlu0 %7609
  %7612 = vset.pattern.permute.xlu0 13
  %7613 = vperm.xlu0 %7612, %v5558
  %v7614 = vpop.permute.xlu0 %7613
  %7616 = vset.pattern.permute.xlu0 13
  %7617 = vperm.xlu0 %7616, %v5559
  %v7618 = vpop.permute.xlu0 %7617
  %7620 = vset.pattern.permute.xlu0 13
  %7621 = vperm.xlu0 %7620, %v5560
  %v7622 = vpop.permute.xlu0 %7621
  %7624 = vset.pattern.permute.xlu0 13
  %7625 = vperm.xlu0 %7624, %v5561
  %v7626 = vpop.permute.xlu0 %7625
  %7628 = vset.pattern.permute.xlu0 13
  %7629 = vperm.xlu0 %7628, %v5562
  %v7630 = vpop.permute.xlu0 %7629
  %7632 = vset.pattern.permute.xlu0 13
  %7633 = vperm.xlu0 %7632, %v5563
  %v7634 = vpop.permute.xlu0 %7633
  %7636 = vset.pattern.permute.xlu0 13
  %7637 = vperm.xlu0 %7636, %v5564
  %v7638 = vpop.permute.xlu0 %7637
  %7640 = vset.pattern.permute.xlu0 13
  %7641 = vperm.xlu0 %7640, %v5565
  %v7642 = vpop.permute.xlu0 %7641
  %7644 = vset.pattern.permute.xlu0 13
  %7645 = vperm.xlu0 %7644, %v5566
  %v7646 = vpop.permute.xlu0 %7645
  %7648 = vset.pattern.permute.xlu0 13
  %7649 = vperm.xlu0 %7648, %v5567
  %v7650 = vpop.permute.xlu0 %7649
  %7652 = vset.pattern.permute.xlu0 13
  %7653 = vperm.xlu0 %7652, %v5568
  %v7654 = vpop.permute.xlu0 %7653
  %7656 = vset.pattern.permute.xlu0 13
  %7657 = vperm.xlu0 %7656, %v5569
  %v7658 = vpop.permute.xlu0 %7657
  %7660 = vset.pattern.permute.xlu0 13
  %7661 = vperm.xlu0 %7660, %v5570
  %v7662 = vpop.permute.xlu0 %7661
  %7664 = vset.pattern.permute.xlu0 13
  %7665 = vperm.xlu0 %7664, %v5571
  %v7666 = vpop.permute.xlu0 %7665
  %v7668 = vmul.f32 %v7606, %v5494
  %v7669 = vmul.f32 %v7610, %v5497
  %v7670 = vmul.f32 %v7614, %v5502
  %v7671 = vmul.f32 %v7618, %v5505
  %v7672 = vmul.f32 %v7622, %v5510
  %v7673 = vmul.f32 %v7626, %v5513
  %v7674 = vmul.f32 %v7630, %v5518
  %v7675 = vmul.f32 %v7634, %v5521
  %v7676 = vmul.f32 %v7638, %v5526
  %v7677 = vmul.f32 %v7642, %v5529
  %v7678 = vmul.f32 %v7646, %v5534
  %v7679 = vmul.f32 %v7650, %v5537
  %v7680 = vmul.f32 %v7654, %v5542
  %v7681 = vmul.f32 %v7658, %v5545
  %v7682 = vmul.f32 %v7662, %v5550
  %v7683 = vmul.f32 %v7666, %v5553
  %7700 = vrot.lane.b32.xlu0 %v7668, 115
  %v7701 = vpop.permute.xlu0 %7700
  %7702 = vrot.lane.b32.xlu0 %v7669, 115
  %v7703 = vpop.permute.xlu0 %7702
  %7704 = vrot.lane.b32.xlu0 %v7670, 115
  %v7705 = vpop.permute.xlu0 %7704
  %7706 = vrot.lane.b32.xlu0 %v7671, 115
  %v7707 = vpop.permute.xlu0 %7706
  %7708 = vrot.lane.b32.xlu0 %v7672, 115
  %v7709 = vpop.permute.xlu0 %7708
  %7710 = vrot.lane.b32.xlu0 %v7673, 115
  %v7711 = vpop.permute.xlu0 %7710
  %7712 = vrot.lane.b32.xlu0 %v7674, 115
  %v7713 = vpop.permute.xlu0 %7712
  %7714 = vrot.lane.b32.xlu0 %v7675, 115
  %v7715 = vpop.permute.xlu0 %7714
  %7716 = vrot.lane.b32.xlu0 %v7676, 115
  %v7717 = vpop.permute.xlu0 %7716
  %7718 = vrot.lane.b32.xlu0 %v7677, 115
  %v7719 = vpop.permute.xlu0 %7718
  %7720 = vrot.lane.b32.xlu0 %v7678, 115
  %v7721 = vpop.permute.xlu0 %7720
  %7722 = vrot.lane.b32.xlu0 %v7679, 115
  %v7723 = vpop.permute.xlu0 %7722
  %7724 = vrot.lane.b32.xlu0 %v7680, 115
  %v7725 = vpop.permute.xlu0 %7724
  %7726 = vrot.lane.b32.xlu0 %v7681, 115
  %v7727 = vpop.permute.xlu0 %7726
  %7728 = vrot.lane.b32.xlu0 %v7682, 115
  %v7729 = vpop.permute.xlu0 %7728
  %7730 = vrot.lane.b32.xlu0 %v7683, 115
  %v7731 = vpop.permute.xlu0 %7730
  %v7748 = vadd.f32 %v7588, %v7701
  %v7749 = vadd.f32 %v7589, %v7703
  %v7750 = vadd.f32 %v7590, %v7705
  %v7751 = vadd.f32 %v7591, %v7707
  %v7752 = vadd.f32 %v7592, %v7709
  %v7753 = vadd.f32 %v7593, %v7711
  %v7754 = vadd.f32 %v7594, %v7713
  %v7755 = vadd.f32 %v7595, %v7715
  %v7756 = vadd.f32 %v7596, %v7717
  %v7757 = vadd.f32 %v7597, %v7719
  %v7758 = vadd.f32 %v7598, %v7721
  %v7759 = vadd.f32 %v7599, %v7723
  %v7760 = vadd.f32 %v7600, %v7725
  %v7761 = vadd.f32 %v7601, %v7727
  %v7762 = vadd.f32 %v7602, %v7729
  %v7763 = vadd.f32 %v7603, %v7731
  %7764 = vset.pattern.permute.xlu0 14
  %7765 = vperm.xlu0 %7764, %v5556
  %v7766 = vpop.permute.xlu0 %7765
  %7768 = vset.pattern.permute.xlu0 14
  %7769 = vperm.xlu0 %7768, %v5557
  %v7770 = vpop.permute.xlu0 %7769
  %7772 = vset.pattern.permute.xlu0 14
  %7773 = vperm.xlu0 %7772, %v5558
  %v7774 = vpop.permute.xlu0 %7773
  %7776 = vset.pattern.permute.xlu0 14
  %7777 = vperm.xlu0 %7776, %v5559
  %v7778 = vpop.permute.xlu0 %7777
  %7780 = vset.pattern.permute.xlu0 14
  %7781 = vperm.xlu0 %7780, %v5560
  %v7782 = vpop.permute.xlu0 %7781
  %7784 = vset.pattern.permute.xlu0 14
  %7785 = vperm.xlu0 %7784, %v5561
  %v7786 = vpop.permute.xlu0 %7785
  %7788 = vset.pattern.permute.xlu0 14
  %7789 = vperm.xlu0 %7788, %v5562
  %v7790 = vpop.permute.xlu0 %7789
  %7792 = vset.pattern.permute.xlu0 14
  %7793 = vperm.xlu0 %7792, %v5563
  %v7794 = vpop.permute.xlu0 %7793
  %7796 = vset.pattern.permute.xlu0 14
  %7797 = vperm.xlu0 %7796, %v5564
  %v7798 = vpop.permute.xlu0 %7797
  %7800 = vset.pattern.permute.xlu0 14
  %7801 = vperm.xlu0 %7800, %v5565
  %v7802 = vpop.permute.xlu0 %7801
  %7804 = vset.pattern.permute.xlu0 14
  %7805 = vperm.xlu0 %7804, %v5566
  %v7806 = vpop.permute.xlu0 %7805
  %7808 = vset.pattern.permute.xlu0 14
  %7809 = vperm.xlu0 %7808, %v5567
  %v7810 = vpop.permute.xlu0 %7809
  %7812 = vset.pattern.permute.xlu0 14
  %7813 = vperm.xlu0 %7812, %v5568
  %v7814 = vpop.permute.xlu0 %7813
  %7816 = vset.pattern.permute.xlu0 14
  %7817 = vperm.xlu0 %7816, %v5569
  %v7818 = vpop.permute.xlu0 %7817
  %7820 = vset.pattern.permute.xlu0 14
  %7821 = vperm.xlu0 %7820, %v5570
  %v7822 = vpop.permute.xlu0 %7821
  %7824 = vset.pattern.permute.xlu0 14
  %7825 = vperm.xlu0 %7824, %v5571
  %v7826 = vpop.permute.xlu0 %7825
  %v7828 = vmul.f32 %v7766, %v5494
  %v7829 = vmul.f32 %v7770, %v5497
  %v7830 = vmul.f32 %v7774, %v5502
  %v7831 = vmul.f32 %v7778, %v5505
  %v7832 = vmul.f32 %v7782, %v5510
  %v7833 = vmul.f32 %v7786, %v5513
  %v7834 = vmul.f32 %v7790, %v5518
  %v7835 = vmul.f32 %v7794, %v5521
  %v7836 = vmul.f32 %v7798, %v5526
  %v7837 = vmul.f32 %v7802, %v5529
  %v7838 = vmul.f32 %v7806, %v5534
  %v7839 = vmul.f32 %v7810, %v5537
  %v7840 = vmul.f32 %v7814, %v5542
  %v7841 = vmul.f32 %v7818, %v5545
  %v7842 = vmul.f32 %v7822, %v5550
  %v7843 = vmul.f32 %v7826, %v5553
  %7860 = vrot.lane.b32.xlu0 %v7828, 114
  %v7861 = vpop.permute.xlu0 %7860
  %7862 = vrot.lane.b32.xlu0 %v7829, 114
  %v7863 = vpop.permute.xlu0 %7862
  %7864 = vrot.lane.b32.xlu0 %v7830, 114
  %v7865 = vpop.permute.xlu0 %7864
  %7866 = vrot.lane.b32.xlu0 %v7831, 114
  %v7867 = vpop.permute.xlu0 %7866
  %7868 = vrot.lane.b32.xlu0 %v7832, 114
  %v7869 = vpop.permute.xlu0 %7868
  %7870 = vrot.lane.b32.xlu0 %v7833, 114
  %v7871 = vpop.permute.xlu0 %7870
  %7872 = vrot.lane.b32.xlu0 %v7834, 114
  %v7873 = vpop.permute.xlu0 %7872
  %7874 = vrot.lane.b32.xlu0 %v7835, 114
  %v7875 = vpop.permute.xlu0 %7874
  %7876 = vrot.lane.b32.xlu0 %v7836, 114
  %v7877 = vpop.permute.xlu0 %7876
  %7878 = vrot.lane.b32.xlu0 %v7837, 114
  %v7879 = vpop.permute.xlu0 %7878
  %7880 = vrot.lane.b32.xlu0 %v7838, 114
  %v7881 = vpop.permute.xlu0 %7880
  %7882 = vrot.lane.b32.xlu0 %v7839, 114
  %v7883 = vpop.permute.xlu0 %7882
  %7884 = vrot.lane.b32.xlu0 %v7840, 114
  %v7885 = vpop.permute.xlu0 %7884
  %7886 = vrot.lane.b32.xlu0 %v7841, 114
  %v7887 = vpop.permute.xlu0 %7886
  %7888 = vrot.lane.b32.xlu0 %v7842, 114
  %v7889 = vpop.permute.xlu0 %7888
  %7890 = vrot.lane.b32.xlu0 %v7843, 114
  %v7891 = vpop.permute.xlu0 %7890
  %v7908 = vadd.f32 %v7748, %v7861
  %v7909 = vadd.f32 %v7749, %v7863
  %v7910 = vadd.f32 %v7750, %v7865
  %v7911 = vadd.f32 %v7751, %v7867
  %v7912 = vadd.f32 %v7752, %v7869
  %v7913 = vadd.f32 %v7753, %v7871
  %v7914 = vadd.f32 %v7754, %v7873
  %v7915 = vadd.f32 %v7755, %v7875
  %v7916 = vadd.f32 %v7756, %v7877
  %v7917 = vadd.f32 %v7757, %v7879
  %v7918 = vadd.f32 %v7758, %v7881
  %v7919 = vadd.f32 %v7759, %v7883
  %v7920 = vadd.f32 %v7760, %v7885
  %v7921 = vadd.f32 %v7761, %v7887
  %v7922 = vadd.f32 %v7762, %v7889
  %v7923 = vadd.f32 %v7763, %v7891
  %7924 = vset.pattern.permute.xlu0 15
  %7925 = vperm.xlu0 %7924, %v5556
  %v7926 = vpop.permute.xlu0 %7925
  %7928 = vset.pattern.permute.xlu0 15
  %7929 = vperm.xlu0 %7928, %v5557
  %v7930 = vpop.permute.xlu0 %7929
  %7932 = vset.pattern.permute.xlu0 15
  %7933 = vperm.xlu0 %7932, %v5558
  %v7934 = vpop.permute.xlu0 %7933
  %7936 = vset.pattern.permute.xlu0 15
  %7937 = vperm.xlu0 %7936, %v5559
  %v7938 = vpop.permute.xlu0 %7937
  %7940 = vset.pattern.permute.xlu0 15
  %7941 = vperm.xlu0 %7940, %v5560
  %v7942 = vpop.permute.xlu0 %7941
  %7944 = vset.pattern.permute.xlu0 15
  %7945 = vperm.xlu0 %7944, %v5561
  %v7946 = vpop.permute.xlu0 %7945
  %7948 = vset.pattern.permute.xlu0 15
  %7949 = vperm.xlu0 %7948, %v5562
  %v7950 = vpop.permute.xlu0 %7949
  %7952 = vset.pattern.permute.xlu0 15
  %7953 = vperm.xlu0 %7952, %v5563
  %v7954 = vpop.permute.xlu0 %7953
  %7956 = vset.pattern.permute.xlu0 15
  %7957 = vperm.xlu0 %7956, %v5564
  %v7958 = vpop.permute.xlu0 %7957
  %7960 = vset.pattern.permute.xlu0 15
  %7961 = vperm.xlu0 %7960, %v5565
  %v7962 = vpop.permute.xlu0 %7961
  %7964 = vset.pattern.permute.xlu0 15
  %7965 = vperm.xlu0 %7964, %v5566
  %v7966 = vpop.permute.xlu0 %7965
  %7968 = vset.pattern.permute.xlu0 15
  %7969 = vperm.xlu0 %7968, %v5567
  %v7970 = vpop.permute.xlu0 %7969
  %7972 = vset.pattern.permute.xlu0 15
  %7973 = vperm.xlu0 %7972, %v5568
  %v7974 = vpop.permute.xlu0 %7973
  %7976 = vset.pattern.permute.xlu0 15
  %7977 = vperm.xlu0 %7976, %v5569
  %v7978 = vpop.permute.xlu0 %7977
  %7980 = vset.pattern.permute.xlu0 15
  %7981 = vperm.xlu0 %7980, %v5570
  %v7982 = vpop.permute.xlu0 %7981
  %7984 = vset.pattern.permute.xlu0 15
  %7985 = vperm.xlu0 %7984, %v5571
  %v7986 = vpop.permute.xlu0 %7985
  %v7988 = vmul.f32 %v7926, %v5494
  %v7989 = vmul.f32 %v7930, %v5497
  %v7990 = vmul.f32 %v7934, %v5502
  %v7991 = vmul.f32 %v7938, %v5505
  %v7992 = vmul.f32 %v7942, %v5510
  %v7993 = vmul.f32 %v7946, %v5513
  %v7994 = vmul.f32 %v7950, %v5518
  %v7995 = vmul.f32 %v7954, %v5521
  %v7996 = vmul.f32 %v7958, %v5526
  %v7997 = vmul.f32 %v7962, %v5529
  %v7998 = vmul.f32 %v7966, %v5534
  %v7999 = vmul.f32 %v7970, %v5537
  %v8000 = vmul.f32 %v7974, %v5542
  %v8001 = vmul.f32 %v7978, %v5545
  %v8002 = vmul.f32 %v7982, %v5550
  %v8003 = vmul.f32 %v7986, %v5553
  %8020 = vrot.lane.b32.xlu0 %v7988, 113
  %v8021 = vpop.permute.xlu0 %8020
  %8022 = vrot.lane.b32.xlu0 %v7989, 113
  %v8023 = vpop.permute.xlu0 %8022
  %8024 = vrot.lane.b32.xlu0 %v7990, 113
  %v8025 = vpop.permute.xlu0 %8024
  %8026 = vrot.lane.b32.xlu0 %v7991, 113
  %v8027 = vpop.permute.xlu0 %8026
  %8028 = vrot.lane.b32.xlu0 %v7992, 113
  %v8029 = vpop.permute.xlu0 %8028
  %8030 = vrot.lane.b32.xlu0 %v7993, 113
  %v8031 = vpop.permute.xlu0 %8030
  %8032 = vrot.lane.b32.xlu0 %v7994, 113
  %v8033 = vpop.permute.xlu0 %8032
  %8034 = vrot.lane.b32.xlu0 %v7995, 113
  %v8035 = vpop.permute.xlu0 %8034
  %8036 = vrot.lane.b32.xlu0 %v7996, 113
  %v8037 = vpop.permute.xlu0 %8036
  %8038 = vrot.lane.b32.xlu0 %v7997, 113
  %v8039 = vpop.permute.xlu0 %8038
  %8040 = vrot.lane.b32.xlu0 %v7998, 113
  %v8041 = vpop.permute.xlu0 %8040
  %8042 = vrot.lane.b32.xlu0 %v7999, 113
  %v8043 = vpop.permute.xlu0 %8042
  %8044 = vrot.lane.b32.xlu0 %v8000, 113
  %v8045 = vpop.permute.xlu0 %8044
  %8046 = vrot.lane.b32.xlu0 %v8001, 113
  %v8047 = vpop.permute.xlu0 %8046
  %8048 = vrot.lane.b32.xlu0 %v8002, 113
  %v8049 = vpop.permute.xlu0 %8048
  %8050 = vrot.lane.b32.xlu0 %v8003, 113
  %v8051 = vpop.permute.xlu0 %8050
  %v8068 = vadd.f32 %v7908, %v8021
  %v8069 = vadd.f32 %v7909, %v8023
  %v8070 = vadd.f32 %v7910, %v8025
  %v8071 = vadd.f32 %v7911, %v8027
  %v8072 = vadd.f32 %v7912, %v8029
  %v8073 = vadd.f32 %v7913, %v8031
  %v8074 = vadd.f32 %v7914, %v8033
  %v8075 = vadd.f32 %v7915, %v8035
  %v8076 = vadd.f32 %v7916, %v8037
  %v8077 = vadd.f32 %v7917, %v8039
  %v8078 = vadd.f32 %v7918, %v8041
  %v8079 = vadd.f32 %v7919, %v8043
  %v8080 = vadd.f32 %v7920, %v8045
  %v8081 = vadd.f32 %v7921, %v8047
  %v8082 = vadd.f32 %v7922, %v8049
  %v8083 = vadd.f32 %v7923, %v8051
  %v8084 = vld [vmem:[%s7] sm:$0xf]
  %v8085 = vld [vmem:[%s7 + $0x4] sm:$0xf]
  %v8086 = vld [vmem:[%s7 + $0x8] sm:$0xf]
  %v8087 = vld [vmem:[%s7 + $0xc] sm:$0xf]
  %v8088 = vld [vmem:[%s7 + $0x10] sm:$0xf]
  %v8089 = vld [vmem:[%s7 + $0x14] sm:$0xf]
  %v8090 = vld [vmem:[%s7 + $0x18] sm:$0xf]
  %v8091 = vld [vmem:[%s7 + $0x1c] sm:$0xf]
  %v8092 = vld [vmem:[%s7 + $0x20] sm:$0xf]
  %v8093 = vld [vmem:[%s7 + $0x24] sm:$0xf]
  %v8094 = vld [vmem:[%s7 + $0x28] sm:$0xf]
  %v8095 = vld [vmem:[%s7 + $0x2c] sm:$0xf]
  %v8096 = vld [vmem:[%s7 + $0x30] sm:$0xf]
  %v8097 = vld [vmem:[%s7 + $0x34] sm:$0xf]
  %v8098 = vld [vmem:[%s7 + $0x38] sm:$0xf]
  %v8099 = vld [vmem:[%s7 + $0x3c] sm:$0xf]
  %v8100 = vpack.c.bf16 %v8069, %v8068
  %v8101 = vpack.c.bf16 %v8071, %v8070
  %v8102 = vpack.c.bf16 %v8073, %v8072
  %v8103 = vpack.c.bf16 %v8075, %v8074
  %v8104 = vpack.c.bf16 %v8077, %v8076
  %v8105 = vpack.c.bf16 %v8079, %v8078
  %v8106 = vpack.c.bf16 %v8081, %v8080
  %v8107 = vpack.c.bf16 %v8083, %v8082
  %v8124 = vunpack.c.l.b16 %v8084
  %v8125 = vunpack.c.l.b16 %v8085
  %v8126 = vunpack.c.l.b16 %v8086
  %v8127 = vunpack.c.l.b16 %v8087
  %v8128 = vunpack.c.l.b16 %v8088
  %v8129 = vunpack.c.l.b16 %v8089
  %v8130 = vunpack.c.l.b16 %v8090
  %v8131 = vunpack.c.l.b16 %v8091
  %v8132 = vunpack.c.l.b16 %v8092
  %v8133 = vunpack.c.l.b16 %v8093
  %v8134 = vunpack.c.l.b16 %v8094
  %v8135 = vunpack.c.l.b16 %v8095
  %v8136 = vunpack.c.l.b16 %v8096
  %v8137 = vunpack.c.l.b16 %v8097
  %v8138 = vunpack.c.l.b16 %v8098
  %v8139 = vunpack.c.l.b16 %v8099
  %v8140 = vpack.c.b16 %v8125, %v8124
  %v8141 = vpack.c.b16 %v8127, %v8126
  %v8142 = vpack.c.b16 %v8129, %v8128
  %v8143 = vpack.c.b16 %v8131, %v8130
  %v8144 = vpack.c.b16 %v8133, %v8132
  %v8145 = vpack.c.b16 %v8135, %v8134
  %v8146 = vpack.c.b16 %v8137, %v8136
  %v8147 = vpack.c.b16 %v8139, %v8138
  %8156 = vmatprep.subr.bf16.mxu0 0
  %8157 = vmatpush1.bf16.msra.mxu0 %v8107
  %8158 = vmatprep.subr.bf16.mxu0 0
  %8159 = vmatpush1.bf16.msra.mxu0 %v8106
  %8160 = vmatprep.subr.bf16.mxu0 0
  %8161 = vmatpush1.bf16.msra.mxu0 %v8105
  %8162 = vmatprep.subr.bf16.mxu0 0
  %8163 = vmatpush1.bf16.msra.mxu0 %v8104
  %8164 = vmatprep.subr.bf16.mxu0 0
  %8165 = vmatpush1.bf16.msra.mxu0 %v8103
  %8166 = vmatprep.subr.bf16.mxu0 0
  %8167 = vmatpush1.bf16.msra.mxu0 %v8102
  %8168 = vmatprep.subr.bf16.mxu0 0
  %8169 = vmatpush1.bf16.msra.mxu0 %v8101
  %8170 = vmatprep.subr.bf16.mxu0 0
  %8171 = vmatpush1.bf16.msra.mxu0 %v8100
  %8172 = vmatprep.subr.bf16.mxu0 0
  %8173 = vmatpush2.bf16.msra.mxu0 0
  %8174 = vmatprep.subr.bf16.mxu0 0
  %8175 = vmatpush2.bf16.msra.mxu0 0
  %8176 = vmatprep.subr.bf16.mxu0 0
  %8177 = vmatpush2.bf16.msra.mxu0 0
  %8178 = vmatprep.subr.bf16.mxu0 0
  %8179 = vmatpush2.bf16.msra.mxu0 0
  %8180 = vmatprep.subr.bf16.mxu0 0
  %8181 = vmatpush2.bf16.msra.mxu0 0
  %8182 = vmatprep.subr.bf16.mxu0 0
  %8183 = vmatpush2.bf16.msra.mxu0 0
  %8184 = vmatprep.subr.bf16.mxu0 0
  %8185 = vmatpush2.bf16.msra.mxu0 0
  %8186 = vmatprep.subr.bf16.mxu0 0
  %8187 = vmatpush2.bf16.msra.mxu0 0
  %8188 = vmatprep.mubr.bf16.mxu0 0
  %8189 = vmatmul.mubr.bf16.gmra.mxu0 %v8140
  %v8190 = vpop.f32.mrf.mxu0
  %v8191 = vadd.f32 0.0, %v8190
  %v8192 = vpop.f32.mrf.mxu0
  %v8193 = vpop.f32.mrf.mxu0
  %v8194 = vadd.f32 0.0, %v8193
  %v8195 = vpop.f32.mrf.mxu0
  %8196 = vmatprep.mubr.bf16.mxu0 0
  %8197 = vmatmul.mubr.bf16.gmra.mxu0 %v8141
  %v8198 = vpop.f32.mrf.mxu0
  %v8199 = vadd.f32 0.0, %v8198
  %v8200 = vpop.f32.mrf.mxu0
  %v8201 = vpop.f32.mrf.mxu0
  %v8202 = vadd.f32 0.0, %v8201
  %v8203 = vpop.f32.mrf.mxu0
  %8204 = vmatprep.mubr.bf16.mxu0 0
  %8205 = vmatmul.mubr.bf16.gmra.mxu0 %v8142
  %v8206 = vpop.f32.mrf.mxu0
  %v8207 = vadd.f32 0.0, %v8206
  %v8208 = vpop.f32.mrf.mxu0
  %v8209 = vpop.f32.mrf.mxu0
  %v8210 = vadd.f32 0.0, %v8209
  %v8211 = vpop.f32.mrf.mxu0
  %8212 = vmatprep.mubr.bf16.mxu0 0
  %8213 = vmatmul.mubr.bf16.gmra.mxu0 %v8143
  %v8214 = vpop.f32.mrf.mxu0
  %v8215 = vadd.f32 0.0, %v8214
  %v8216 = vpop.f32.mrf.mxu0
  %v8217 = vpop.f32.mrf.mxu0
  %v8218 = vadd.f32 0.0, %v8217
  %v8219 = vpop.f32.mrf.mxu0
  %8220 = vmatprep.mubr.bf16.mxu0 0
  %8221 = vmatmul.mubr.bf16.gmra.mxu0 %v8144
  %v8222 = vpop.f32.mrf.mxu0
  %v8223 = vadd.f32 0.0, %v8222
  %v8224 = vpop.f32.mrf.mxu0
  %v8225 = vpop.f32.mrf.mxu0
  %v8226 = vadd.f32 0.0, %v8225
  %v8227 = vpop.f32.mrf.mxu0
  %8228 = vmatprep.mubr.bf16.mxu0 0
  %8229 = vmatmul.mubr.bf16.gmra.mxu0 %v8145
  %v8230 = vpop.f32.mrf.mxu0
  %v8231 = vadd.f32 0.0, %v8230
  %v8232 = vpop.f32.mrf.mxu0
  %v8233 = vpop.f32.mrf.mxu0
  %v8234 = vadd.f32 0.0, %v8233
  %v8235 = vpop.f32.mrf.mxu0
  %8236 = vmatprep.mubr.bf16.mxu0 0
  %8237 = vmatmul.mubr.bf16.gmra.mxu0 %v8146
  %v8238 = vpop.f32.mrf.mxu0
  %v8239 = vadd.f32 0.0, %v8238
  %v8240 = vpop.f32.mrf.mxu0
  %v8241 = vpop.f32.mrf.mxu0
  %v8242 = vadd.f32 0.0, %v8241
  %v8243 = vpop.f32.mrf.mxu0
  %8244 = vmatprep.mubr.bf16.mxu0 0
  %8245 = vmatmul.mubr.bf16.gmra.mxu0 %v8147
  %v8246 = vpop.f32.mrf.mxu0
  %v8247 = vadd.f32 0.0, %v8246
  %v8248 = vpop.f32.mrf.mxu0
  %v8249 = vpop.f32.mrf.mxu0
  %v8250 = vadd.f32 0.0, %v8249
  %v8251 = vpop.f32.mrf.mxu0
  %8252 = vdwg.mxu0
  %v8253 = vld [vmem:[%s8] sm:$0xff]
  %v8254 = vld [vmem:[%s8 + $0x8] sm:$0xff]
  %v8255 = vld [vmem:[%s8 + $0x10] sm:$0xff]
  %v8256 = vld [vmem:[%s8 + $0x18] sm:$0xff]
  %v8257 = vld [vmem:[%s8 + $0x20] sm:$0xff]
  %v8258 = vld [vmem:[%s8 + $0x28] sm:$0xff]
  %v8259 = vld [vmem:[%s8 + $0x30] sm:$0xff]
  %v8260 = vld [vmem:[%s8 + $0x38] sm:$0xff]
  %v8261 = vld [vmem:[%s8 + $0x40] sm:$0xff]
  %v8262 = vld [vmem:[%s8 + $0x48] sm:$0xff]
  %v8263 = vld [vmem:[%s8 + $0x50] sm:$0xff]
  %v8264 = vld [vmem:[%s8 + $0x58] sm:$0xff]
  %v8265 = vld [vmem:[%s8 + $0x60] sm:$0xff]
  %v8266 = vld [vmem:[%s8 + $0x68] sm:$0xff]
  %v8267 = vld [vmem:[%s8 + $0x70] sm:$0xff]
  %v8268 = vld [vmem:[%s8 + $0x78] sm:$0xff]
  %8270 = vset.pattern.permute.xlu0 0
  %8271 = vperm.xlu0 %8270, %v8253
  %v8272 = vpop.permute.xlu0 %8271
  %8275 = vset.pattern.permute.xlu0 0
  %8276 = vperm.xlu0 %8275, %v8254
  %v8277 = vpop.permute.xlu0 %8276
  %8280 = vset.pattern.permute.xlu0 0
  %8281 = vperm.xlu0 %8280, %v8255
  %v8282 = vpop.permute.xlu0 %8281
  %8285 = vset.pattern.permute.xlu0 0
  %8286 = vperm.xlu0 %8285, %v8256
  %v8287 = vpop.permute.xlu0 %8286
  %8290 = vset.pattern.permute.xlu0 0
  %8291 = vperm.xlu0 %8290, %v8257
  %v8292 = vpop.permute.xlu0 %8291
  %8295 = vset.pattern.permute.xlu0 0
  %8296 = vperm.xlu0 %8295, %v8258
  %v8297 = vpop.permute.xlu0 %8296
  %8300 = vset.pattern.permute.xlu0 0
  %8301 = vperm.xlu0 %8300, %v8259
  %v8302 = vpop.permute.xlu0 %8301
  %8305 = vset.pattern.permute.xlu0 0
  %8306 = vperm.xlu0 %8305, %v8260
  %v8307 = vpop.permute.xlu0 %8306
  %8310 = vset.pattern.permute.xlu0 0
  %8311 = vperm.xlu0 %8310, %v8261
  %v8312 = vpop.permute.xlu0 %8311
  %8315 = vset.pattern.permute.xlu0 0
  %8316 = vperm.xlu0 %8315, %v8262
  %v8317 = vpop.permute.xlu0 %8316
  %8320 = vset.pattern.permute.xlu0 0
  %8321 = vperm.xlu0 %8320, %v8263
  %v8322 = vpop.permute.xlu0 %8321
  %8325 = vset.pattern.permute.xlu0 0
  %8326 = vperm.xlu0 %8325, %v8264
  %v8327 = vpop.permute.xlu0 %8326
  %8330 = vset.pattern.permute.xlu0 0
  %8331 = vperm.xlu0 %8330, %v8265
  %v8332 = vpop.permute.xlu0 %8331
  %8335 = vset.pattern.permute.xlu0 0
  %8336 = vperm.xlu0 %8335, %v8266
  %v8337 = vpop.permute.xlu0 %8336
  %8340 = vset.pattern.permute.xlu0 0
  %8341 = vperm.xlu0 %8340, %v8267
  %v8342 = vpop.permute.xlu0 %8341
  %8345 = vset.pattern.permute.xlu0 0
  %8346 = vperm.xlu0 %8345, %v8268
  %v8347 = vpop.permute.xlu0 %8346
  %v8349 = vmul.f32 %v8191, %v8272
  %v8350 = vmul.f32 %v8194, %v8277
  %v8351 = vmul.f32 %v8199, %v8282
  %v8352 = vmul.f32 %v8202, %v8287
  %v8353 = vmul.f32 %v8207, %v8292
  %v8354 = vmul.f32 %v8210, %v8297
  %v8355 = vmul.f32 %v8215, %v8302
  %v8356 = vmul.f32 %v8218, %v8307
  %v8357 = vmul.f32 %v8223, %v8312
  %v8358 = vmul.f32 %v8226, %v8317
  %v8359 = vmul.f32 %v8231, %v8322
  %v8360 = vmul.f32 %v8234, %v8327
  %v8361 = vmul.f32 %v8239, %v8332
  %v8362 = vmul.f32 %v8242, %v8337
  %v8363 = vmul.f32 %v8247, %v8342
  %v8364 = vmul.f32 %v8250, %v8347
  %v8365 = vld [vmem:[%s9] sm:$0xff]
  %v8366 = vld [vmem:[%s9 + $0x8] sm:$0xff]
  %v8367 = vld [vmem:[%s9 + $0x10] sm:$0xff]
  %v8368 = vld [vmem:[%s9 + $0x18] sm:$0xff]
  %v8369 = vld [vmem:[%s9 + $0x20] sm:$0xff]
  %v8370 = vld [vmem:[%s9 + $0x28] sm:$0xff]
  %v8371 = vld [vmem:[%s9 + $0x30] sm:$0xff]
  %v8372 = vld [vmem:[%s9 + $0x38] sm:$0xff]
  %v8373 = vld [vmem:[%s9 + $0x40] sm:$0xff]
  %v8374 = vld [vmem:[%s9 + $0x48] sm:$0xff]
  %v8375 = vld [vmem:[%s9 + $0x50] sm:$0xff]
  %v8376 = vld [vmem:[%s9 + $0x58] sm:$0xff]
  %v8377 = vld [vmem:[%s9 + $0x60] sm:$0xff]
  %v8378 = vld [vmem:[%s9 + $0x68] sm:$0xff]
  %v8379 = vld [vmem:[%s9 + $0x70] sm:$0xff]
  %v8380 = vld [vmem:[%s9 + $0x78] sm:$0xff]
  %8382 = vset.pattern.permute.xlu0 0
  %8383 = vperm.xlu0 %8382, %v8365
  %v8384 = vpop.permute.xlu0 %8383
  %8387 = vset.pattern.permute.xlu0 0
  %8388 = vperm.xlu0 %8387, %v8366
  %v8389 = vpop.permute.xlu0 %8388
  %8392 = vset.pattern.permute.xlu0 0
  %8393 = vperm.xlu0 %8392, %v8367
  %v8394 = vpop.permute.xlu0 %8393
  %8397 = vset.pattern.permute.xlu0 0
  %8398 = vperm.xlu0 %8397, %v8368
  %v8399 = vpop.permute.xlu0 %8398
  %8402 = vset.pattern.permute.xlu0 0
  %8403 = vperm.xlu0 %8402, %v8369
  %v8404 = vpop.permute.xlu0 %8403
  %8407 = vset.pattern.permute.xlu0 0
  %8408 = vperm.xlu0 %8407, %v8370
  %v8409 = vpop.permute.xlu0 %8408
  %8412 = vset.pattern.permute.xlu0 0
  %8413 = vperm.xlu0 %8412, %v8371
  %v8414 = vpop.permute.xlu0 %8413
  %8417 = vset.pattern.permute.xlu0 0
  %8418 = vperm.xlu0 %8417, %v8372
  %v8419 = vpop.permute.xlu0 %8418
  %8422 = vset.pattern.permute.xlu0 0
  %8423 = vperm.xlu0 %8422, %v8373
  %v8424 = vpop.permute.xlu0 %8423
  %8427 = vset.pattern.permute.xlu0 0
  %8428 = vperm.xlu0 %8427, %v8374
  %v8429 = vpop.permute.xlu0 %8428
  %8432 = vset.pattern.permute.xlu0 0
  %8433 = vperm.xlu0 %8432, %v8375
  %v8434 = vpop.permute.xlu0 %8433
  %8437 = vset.pattern.permute.xlu0 0
  %8438 = vperm.xlu0 %8437, %v8376
  %v8439 = vpop.permute.xlu0 %8438
  %8442 = vset.pattern.permute.xlu0 0
  %8443 = vperm.xlu0 %8442, %v8377
  %v8444 = vpop.permute.xlu0 %8443
  %8447 = vset.pattern.permute.xlu0 0
  %8448 = vperm.xlu0 %8447, %v8378
  %v8449 = vpop.permute.xlu0 %8448
  %8452 = vset.pattern.permute.xlu0 0
  %8453 = vperm.xlu0 %8452, %v8379
  %v8454 = vpop.permute.xlu0 %8453
  %8457 = vset.pattern.permute.xlu0 0
  %8458 = vperm.xlu0 %8457, %v8380
  %v8459 = vpop.permute.xlu0 %8458
  %v8461 = vadd.f32 %v8349, %v8384
  %v8462 = vadd.f32 %v8350, %v8389
  %v8463 = vadd.f32 %v8351, %v8394
  %v8464 = vadd.f32 %v8352, %v8399
  %v8465 = vadd.f32 %v8353, %v8404
  %v8466 = vadd.f32 %v8354, %v8409
  %v8467 = vadd.f32 %v8355, %v8414
  %v8468 = vadd.f32 %v8356, %v8419
  %v8469 = vadd.f32 %v8357, %v8424
  %v8470 = vadd.f32 %v8358, %v8429
  %v8471 = vadd.f32 %v8359, %v8434
  %v8472 = vadd.f32 %v8360, %v8439
  %v8473 = vadd.f32 %v8361, %v8444
  %v8474 = vadd.f32 %v8362, %v8449
  %v8475 = vadd.f32 %v8363, %v8454
  %v8476 = vadd.f32 %v8364, %v8459
  %vm8477 = vcmp.gt.f32.partialorder %v8461, 0.0
  %vm8478 = vcmp.gt.f32.partialorder %v8462, 0.0
  %vm8479 = vcmp.gt.f32.partialorder %v8463, 0.0
  %vm8480 = vcmp.gt.f32.partialorder %v8464, 0.0
  %vm8481 = vcmp.gt.f32.partialorder %v8465, 0.0
  %vm8482 = vcmp.gt.f32.partialorder %v8466, 0.0
  %vm8483 = vcmp.gt.f32.partialorder %v8467, 0.0
  %vm8484 = vcmp.gt.f32.partialorder %v8468, 0.0
  %vm8485 = vcmp.gt.f32.partialorder %v8469, 0.0
  %vm8486 = vcmp.gt.f32.partialorder %v8470, 0.0
  %vm8487 = vcmp.gt.f32.partialorder %v8471, 0.0
  %vm8488 = vcmp.gt.f32.partialorder %v8472, 0.0
  %vm8489 = vcmp.gt.f32.partialorder %v8473, 0.0
  %vm8490 = vcmp.gt.f32.partialorder %v8474, 0.0
  %vm8491 = vcmp.gt.f32.partialorder %v8475, 0.0
  %vm8492 = vcmp.gt.f32.partialorder %v8476, 0.0
  %v8493 = vmin.f32 %v8461, 0.0
  %v8494 = vmin.f32 %v8462, 0.0
  %v8495 = vmin.f32 %v8463, 0.0
  %v8496 = vmin.f32 %v8464, 0.0
  %v8497 = vmin.f32 %v8465, 0.0
  %v8498 = vmin.f32 %v8466, 0.0
  %v8499 = vmin.f32 %v8467, 0.0
  %v8500 = vmin.f32 %v8468, 0.0
  %v8501 = vmin.f32 %v8469, 0.0
  %v8502 = vmin.f32 %v8470, 0.0
  %v8503 = vmin.f32 %v8471, 0.0
  %v8504 = vmin.f32 %v8472, 0.0
  %v8505 = vmin.f32 %v8473, 0.0
  %v8506 = vmin.f32 %v8474, 0.0
  %v8507 = vmin.f32 %v8475, 0.0
  %v8508 = vmin.f32 %v8476, 0.0
  %v8509 = vmul.f32 %v8493, 1.442695
  %v8510 = vpow.pop %v8509
  %v8511 = vmul.f32 %v8494, 1.442695
  %v8512 = vpow.pop %v8511
  %v8513 = vmul.f32 %v8495, 1.442695
  %v8514 = vpow.pop %v8513
  %v8515 = vmul.f32 %v8496, 1.442695
  %v8516 = vpow.pop %v8515
  %v8517 = vmul.f32 %v8497, 1.442695
  %v8518 = vpow.pop %v8517
  %v8519 = vmul.f32 %v8498, 1.442695
  %v8520 = vpow.pop %v8519
  %v8521 = vmul.f32 %v8499, 1.442695
  %v8522 = vpow.pop %v8521
  %v8523 = vmul.f32 %v8500, 1.442695
  %v8524 = vpow.pop %v8523
  %v8525 = vmul.f32 %v8501, 1.442695
  %v8526 = vpow.pop %v8525
  %v8527 = vmul.f32 %v8502, 1.442695
  %v8528 = vpow.pop %v8527
  %v8529 = vmul.f32 %v8503, 1.442695
  %v8530 = vpow.pop %v8529
  %v8531 = vmul.f32 %v8504, 1.442695
  %v8532 = vpow.pop %v8531
  %v8533 = vmul.f32 %v8505, 1.442695
  %v8534 = vpow.pop %v8533
  %v8535 = vmul.f32 %v8506, 1.442695
  %v8536 = vpow.pop %v8535
  %v8537 = vmul.f32 %v8507, 1.442695
  %v8538 = vpow.pop %v8537
  %v8539 = vmul.f32 %v8508, 1.442695
  %v8540 = vpow.pop %v8539
  %v8541 = vsub.f32 %v8510, 1.0
  %v8542 = vsub.f32 %v8512, 1.0
  %v8543 = vsub.f32 %v8514, 1.0
  %v8544 = vsub.f32 %v8516, 1.0
  %v8545 = vsub.f32 %v8518, 1.0
  %v8546 = vsub.f32 %v8520, 1.0
  %v8547 = vsub.f32 %v8522, 1.0
  %v8548 = vsub.f32 %v8524, 1.0
  %v8549 = vsub.f32 %v8526, 1.0
  %v8550 = vsub.f32 %v8528, 1.0
  %v8551 = vsub.f32 %v8530, 1.0
  %v8552 = vsub.f32 %v8532, 1.0
  %v8553 = vsub.f32 %v8534, 1.0
  %v8554 = vsub.f32 %v8536, 1.0
  %v8555 = vsub.f32 %v8538, 1.0
  %v8556 = vsub.f32 %v8540, 1.0
  %v8557 = vsel %vm8477, %v8461, %v8541
  %v8558 = vsel %vm8478, %v8462, %v8542
  %v8559 = vsel %vm8479, %v8463, %v8543
  %v8560 = vsel %vm8480, %v8464, %v8544
  %v8561 = vsel %vm8481, %v8465, %v8545
  %v8562 = vsel %vm8482, %v8466, %v8546
  %v8563 = vsel %vm8483, %v8467, %v8547
  %v8564 = vsel %vm8484, %v8468, %v8548
  %v8565 = vsel %vm8485, %v8469, %v8549
  %v8566 = vsel %vm8486, %v8470, %v8550
  %v8567 = vsel %vm8487, %v8471, %v8551
  %v8568 = vsel %vm8488, %v8472, %v8552
  %v8569 = vsel %vm8489, %v8473, %v8553
  %v8570 = vsel %vm8490, %v8474, %v8554
  %v8571 = vsel %vm8491, %v8475, %v8555
  %v8572 = vsel %vm8492, %v8476, %v8556
  %v8573 = vpack.c.bf16 %v8558, %v8557
  %v8574 = vpack.c.bf16 %v8560, %v8559
  %v8575 = vpack.c.bf16 %v8562, %v8561
  %v8576 = vpack.c.bf16 %v8564, %v8563
  %v8577 = vpack.c.bf16 %v8566, %v8565
  %v8578 = vpack.c.bf16 %v8568, %v8567
  %v8579 = vpack.c.bf16 %v8570, %v8569
  %v8580 = vpack.c.bf16 %v8572, %v8571
  %v8581 = vld [vmem:[%s10] sm:$0xf]
  %v8582 = vld [vmem:[%s10 + $0x4] sm:$0xf]
  %v8583 = vld [vmem:[%s10 + $0x8] sm:$0xf]
  %v8584 = vld [vmem:[%s10 + $0xc] sm:$0x3]
  %v8589 = vunpack.c.l.b16 %v8581
  %v8590 = vunpack.c.l.b16 %v8582
  %v8591 = vunpack.c.l.b16 %v8583
  %v8592 = vunpack.c.l.b16 %v8584
  %v8593 = vpack.c.b16 %v8590, %v8589
  %v8594 = vpack.c.b16 %v8592, %v8591
  %vm8596 = vcmask 228352
  %v8598 = vsel %vm8596, %v8573, 0
  %v8601 = vsel %vm8596, %v8574, 0
  %v8604 = vsel %vm8596, %v8575, 0
  %v8607 = vsel %vm8596, %v8576, 0
  %v8610 = vsel %vm8596, %v8577, 0
  %v8613 = vsel %vm8596, %v8578, 0
  %v8616 = vsel %vm8596, %v8579, 0
  %v8619 = vsel %vm8596, %v8580, 0
  %vm8621 = vcmask 1045504
  %v8623 = vsel %vm8621, %v8594, 0
  %8625 = vmatprep.subr.bf16.mxu0 0
  %8626 = vmatpush1.bf16.msra.mxu0 0
  %8627 = vmatprep.subr.bf16.mxu0 0
  %8628 = vmatpush1.bf16.msra.mxu0 0
  %8629 = vmatprep.subr.bf16.mxu0 0
  %8630 = vmatpush1.bf16.msra.mxu0 0
  %8631 = vmatprep.subr.bf16.mxu0 0
  %8632 = vmatpush1.bf16.msra.mxu0 0
  %8633 = vmatprep.subr.bf16.mxu0 0
  %8634 = vmatpush1.bf16.msra.mxu0 0
  %8635 = vmatprep.subr.bf16.mxu0 0
  %8636 = vmatpush1.bf16.msra.mxu0 0
  %8637 = vmatprep.subr.bf16.mxu0 0
  %8638 = vmatpush1.bf16.msra.mxu0 %v8623
  %8639 = vmatprep.subr.bf16.mxu0 0
  %8640 = vmatpush1.bf16.msra.mxu0 %v8593
  %8641 = vmatprep.subr.bf16.mxu0 0
  %8642 = vmatpush2.bf16.msra.mxu0 0
  %8643 = vmatprep.subr.bf16.mxu0 0
  %8644 = vmatpush2.bf16.msra.mxu0 0
  %8645 = vmatprep.subr.bf16.mxu0 0
  %8646 = vmatpush2.bf16.msra.mxu0 0
  %8647 = vmatprep.subr.bf16.mxu0 0
  %8648 = vmatpush2.bf16.msra.mxu0 0
  %8649 = vmatprep.subr.bf16.mxu0 0
  %8650 = vmatpush2.bf16.msra.mxu0 0
  %8651 = vmatprep.subr.bf16.mxu0 0
  %8652 = vmatpush2.bf16.msra.mxu0 0
  %8653 = vmatprep.subr.bf16.mxu0 0
  %8654 = vmatpush2.bf16.msra.mxu0 0
  %8655 = vmatprep.subr.bf16.mxu0 0
  %8656 = vmatpush2.bf16.msra.mxu0 0
  %8657 = vmatprep.mubr.bf16.mxu0 0
  %8658 = vmatmul.mubr.bf16.gmra.mxu0 %v8598
  %v8659 = vpop.f32.mrf.mxu0
  %v8660 = vadd.f32 0.0, %v8659
  %v8661 = vpop.f32.mrf.mxu0
  %v8662 = vpop.f32.mrf.mxu0
  %v8663 = vadd.f32 0.0, %v8662
  %v8664 = vpop.f32.mrf.mxu0
  %8665 = vmatprep.mubr.bf16.mxu0 0
  %8666 = vmatmul.mubr.bf16.gmra.mxu0 %v8601
  %v8667 = vpop.f32.mrf.mxu0
  %v8668 = vadd.f32 0.0, %v8667
  %v8669 = vpop.f32.mrf.mxu0
  %v8670 = vpop.f32.mrf.mxu0
  %v8671 = vadd.f32 0.0, %v8670
  %v8672 = vpop.f32.mrf.mxu0
  %8673 = vmatprep.mubr.bf16.mxu0 0
  %8674 = vmatmul.mubr.bf16.gmra.mxu0 %v8604
  %v8675 = vpop.f32.mrf.mxu0
  %v8676 = vadd.f32 0.0, %v8675
  %v8677 = vpop.f32.mrf.mxu0
  %v8678 = vpop.f32.mrf.mxu0
  %v8679 = vadd.f32 0.0, %v8678
  %v8680 = vpop.f32.mrf.mxu0
  %8681 = vmatprep.mubr.bf16.mxu0 0
  %8682 = vmatmul.mubr.bf16.gmra.mxu0 %v8607
  %v8683 = vpop.f32.mrf.mxu0
  %v8684 = vadd.f32 0.0, %v8683
  %v8685 = vpop.f32.mrf.mxu0
  %v8686 = vpop.f32.mrf.mxu0
  %v8687 = vadd.f32 0.0, %v8686
  %v8688 = vpop.f32.mrf.mxu0
  %8689 = vmatprep.mubr.bf16.mxu0 0
  %8690 = vmatmul.mubr.bf16.gmra.mxu0 %v8610
  %v8691 = vpop.f32.mrf.mxu0
  %v8692 = vadd.f32 0.0, %v8691
  %v8693 = vpop.f32.mrf.mxu0
  %v8694 = vpop.f32.mrf.mxu0
  %v8695 = vadd.f32 0.0, %v8694
  %v8696 = vpop.f32.mrf.mxu0
  %8697 = vmatprep.mubr.bf16.mxu0 0
  %8698 = vmatmul.mubr.bf16.gmra.mxu0 %v8613
  %v8699 = vpop.f32.mrf.mxu0
  %v8700 = vadd.f32 0.0, %v8699
  %v8701 = vpop.f32.mrf.mxu0
  %v8702 = vpop.f32.mrf.mxu0
  %v8703 = vadd.f32 0.0, %v8702
  %v8704 = vpop.f32.mrf.mxu0
  %8705 = vmatprep.mubr.bf16.mxu0 0
  %8706 = vmatmul.mubr.bf16.gmra.mxu0 %v8616
  %v8707 = vpop.f32.mrf.mxu0
  %v8708 = vadd.f32 0.0, %v8707
  %v8709 = vpop.f32.mrf.mxu0
  %v8710 = vpop.f32.mrf.mxu0
  %v8711 = vadd.f32 0.0, %v8710
  %v8712 = vpop.f32.mrf.mxu0
  %8713 = vmatprep.mubr.bf16.mxu0 0
  %8714 = vmatmul.mubr.bf16.gmra.mxu0 %v8619
  %v8715 = vpop.f32.mrf.mxu0
  %v8716 = vadd.f32 0.0, %v8715
  %v8717 = vpop.f32.mrf.mxu0
  %v8718 = vpop.f32.mrf.mxu0
  %v8719 = vadd.f32 0.0, %v8718
  %v8720 = vpop.f32.mrf.mxu0
  %8721 = vdwg.mxu0
  %v8722 = vld [vmem:[%s11] sm:$0xff]
  %v8723 = vld [vmem:[%s11 + $0x8] sm:$0xff]
  %v8724 = vld [vmem:[%s11 + $0x10] sm:$0xff]
  %v8725 = vld [vmem:[%s11 + $0x18] sm:$0xff]
  %v8726 = vld [vmem:[%s11 + $0x20] sm:$0xff]
  %v8727 = vld [vmem:[%s11 + $0x28] sm:$0xff]
  %v8728 = vld [vmem:[%s11 + $0x30] sm:$0xff]
  %v8729 = vld [vmem:[%s11 + $0x38] sm:$0xff]
  %v8730 = vld [vmem:[%s11 + $0x40] sm:$0xff]
  %v8731 = vld [vmem:[%s11 + $0x48] sm:$0xff]
  %v8732 = vld [vmem:[%s11 + $0x50] sm:$0xff]
  %v8733 = vld [vmem:[%s11 + $0x58] sm:$0xff]
  %v8734 = vld [vmem:[%s11 + $0x60] sm:$0xff]
  %v8735 = vld [vmem:[%s11 + $0x68] sm:$0xff]
  %v8736 = vld [vmem:[%s11 + $0x70] sm:$0xff]
  %v8737 = vld [vmem:[%s11 + $0x78] sm:$0xff]
  %v8738 = vld [vmem:[%s11 + $0x80] sm:$0xff]
  %v8739 = vld [vmem:[%s11 + $0x88] sm:$0xff]
  %v8740 = vld [vmem:[%s11 + $0x90] sm:$0xff]
  %v8741 = vld [vmem:[%s11 + $0x98] sm:$0xff]
  %v8742 = vld [vmem:[%s11 + $0xa0] sm:$0xff]
  %v8743 = vld [vmem:[%s11 + $0xa8] sm:$0xff]
  %v8744 = vld [vmem:[%s11 + $0xb0] sm:$0xff]
  %v8745 = vld [vmem:[%s11 + $0xb8] sm:$0xff]
  %v8746 = vld [vmem:[%s11 + $0xc0] sm:$0xff]
  %v8747 = vld [vmem:[%s11 + $0xc8] sm:$0xff]
  %v8748 = vld [vmem:[%s11 + $0xd0] sm:$0xff]
  %v8749 = vld [vmem:[%s11 + $0xd8] sm:$0xff]
  %v8750 = vld [vmem:[%s11 + $0xe0] sm:$0xff]
  %v8751 = vld [vmem:[%s11 + $0xe8] sm:$0xff]
  %v8752 = vld [vmem:[%s11 + $0xf0] sm:$0xff]
  %v8753 = vld [vmem:[%s11 + $0xf8] sm:$0xff]
  %v8754 = vld [vmem:[%s11 + $0x100] sm:$0xff]
  %v8755 = vld [vmem:[%s11 + $0x108] sm:$0xff]
  %v8756 = vld [vmem:[%s11 + $0x110] sm:$0xff]
  %v8757 = vld [vmem:[%s11 + $0x118] sm:$0xff]
  %v8758 = vld [vmem:[%s11 + $0x120] sm:$0xff]
  %v8759 = vld [vmem:[%s11 + $0x128] sm:$0xff]
  %v8760 = vld [vmem:[%s11 + $0x130] sm:$0xff]
  %v8761 = vld [vmem:[%s11 + $0x138] sm:$0xff]
  %8762 = vmatprep.subr.mxu0 0.0
  %8763 = vmatpush1.msra.mxu0 %v8719
  %8764 = vmatprep.subr.mxu0 0.0
  %8765 = vmatpush1.msra.mxu0 %v8716
  %8766 = vmatprep.subr.mxu0 0.0
  %8767 = vmatpush1.msra.mxu0 %v8711
  %8768 = vmatprep.subr.mxu0 0.0
  %8769 = vmatpush1.msra.mxu0 %v8708
  %8770 = vmatprep.subr.mxu0 0.0
  %8771 = vmatpush1.msra.mxu0 %v8703
  %8772 = vmatprep.subr.mxu0 0.0
  %8773 = vmatpush1.msra.mxu0 %v8700
  %8774 = vmatprep.subr.mxu0 0.0
  %8775 = vmatpush1.msra.mxu0 %v8695
  %8776 = vmatprep.subr.mxu0 0.0
  %8777 = vmatpush1.msra.mxu0 %v8692
  %8778 = vmatprep.subr.mxu0 0.0
  %8779 = vmatpush1.msra.mxu0 %v8687
  %8780 = vmatprep.subr.mxu0 0.0
  %8781 = vmatpush1.msra.mxu0 %v8684
  %8782 = vmatprep.subr.mxu0 0.0
  %8783 = vmatpush1.msra.mxu0 %v8679
  %8784 = vmatprep.subr.mxu0 0.0
  %8785 = vmatpush1.msra.mxu0 %v8676
  %8786 = vmatprep.subr.mxu0 0.0
  %8787 = vmatpush1.msra.mxu0 %v8671
  %8788 = vmatprep.subr.mxu0 0.0
  %8789 = vmatpush1.msra.mxu0 %v8668
  %8790 = vmatprep.subr.mxu0 0.0
  %8791 = vmatpush1.msra.mxu0 %v8663
  %8792 = vmatprep.subr.mxu0 0.0
  %8793 = vmatpush1.msra.mxu0 %v8660
  %8794 = vmatprep.subr.mxu0 0.0
  %8795 = vmatpush2.msra.mxu0 0.0
  %8796 = vmatprep.subr.mxu0 0.0
  %8797 = vmatpush2.msra.mxu0 0.0
  %8798 = vmatprep.subr.mxu0 0.0
  %8799 = vmatpush2.msra.mxu0 0.0
  %8800 = vmatprep.subr.mxu0 0.0
  %8801 = vmatpush2.msra.mxu0 0.0
  %8802 = vmatprep.subr.mxu0 0.0
  %8803 = vmatpush2.msra.mxu0 0.0
  %8804 = vmatprep.subr.mxu0 0.0
  %8805 = vmatpush2.msra.mxu0 0.0
  %8806 = vmatprep.subr.mxu0 0.0
  %8807 = vmatpush2.msra.mxu0 0.0
  %8808 = vmatprep.subr.mxu0 0.0
  %8809 = vmatpush2.msra.mxu0 0.0
  %8810 = vmatprep.subr.mxu0 0.0
  %8811 = vmatpush2.msra.mxu0 0.0
  %8812 = vmatprep.subr.mxu0 0.0
  %8813 = vmatpush2.msra.mxu0 0.0
  %8814 = vmatprep.subr.mxu0 0.0
  %8815 = vmatpush2.msra.mxu0 0.0
  %8816 = vmatprep.subr.mxu0 0.0
  %8817 = vmatpush2.msra.mxu0 0.0
  %8818 = vmatprep.subr.mxu0 0.0
  %8819 = vmatpush2.msra.mxu0 0.0
  %8820 = vmatprep.subr.mxu0 0.0
  %8821 = vmatpush2.msra.mxu0 0.0
  %8822 = vmatprep.subr.mxu0 0.0
  %8823 = vmatpush2.msra.mxu0 0.0
  %8824 = vmatprep.subr.mxu0 0.0
  %8825 = vmatpush2.msra.mxu0 0.0
  %8826 = vmatprep.mubr.f32.mxu0 0.0
  %8827 = vmatmul.mubr.f32.gmra.mxu0 %v8722
  %v8828 = vpop.f32.mrf.mxu0
  %v8829 = vadd.f32 0.0, %v8828
  %v8830 = vpop.f32.mrf.mxu0
  %8831 = vmatprep.mubr.f32.mxu0 0.0
  %8832 = vmatmul.mubr.f32.gmra.mxu0 %v8723
  %v8833 = vpop.f32.mrf.mxu0
  %v8834 = vadd.f32 0.0, %v8833
  %v8835 = vpop.f32.mrf.mxu0
  %8836 = vmatprep.mubr.f32.mxu0 0.0
  %8837 = vmatmul.mubr.f32.gmra.mxu0 %v8724
  %v8838 = vpop.f32.mrf.mxu0
  %v8839 = vadd.f32 0.0, %v8838
  %v8840 = vpop.f32.mrf.mxu0
  %8841 = vmatprep.mubr.f32.mxu0 0.0
  %8842 = vmatmul.mubr.f32.gmra.mxu0 %v8725
  %v8843 = vpop.f32.mrf.mxu0
  %v8844 = vadd.f32 0.0, %v8843
  %v8845 = vpop.f32.mrf.mxu0
  %8846 = vmatprep.mubr.f32.mxu0 0.0
  %8847 = vmatmul.mubr.f32.gmra.mxu0 %v8726
  %v8848 = vpop.f32.mrf.mxu0
  %v8849 = vadd.f32 0.0, %v8848
  %v8850 = vpop.f32.mrf.mxu0
  %8851 = vmatprep.mubr.f32.mxu0 0.0
  %8852 = vmatmul.mubr.f32.gmra.mxu0 %v8727
  %v8853 = vpop.f32.mrf.mxu0
  %v8854 = vadd.f32 0.0, %v8853
  %v8855 = vpop.f32.mrf.mxu0
  %8856 = vmatprep.mubr.f32.mxu0 0.0
  %8857 = vmatmul.mubr.f32.gmra.mxu0 %v8728
  %v8858 = vpop.f32.mrf.mxu0
  %v8859 = vadd.f32 0.0, %v8858
  %v8860 = vpop.f32.mrf.mxu0
  %8861 = vmatprep.mubr.f32.mxu0 0.0
  %8862 = vmatmul.mubr.f32.gmra.mxu0 %v8729
  %v8863 = vpop.f32.mrf.mxu0
  %v8864 = vadd.f32 0.0, %v8863
  %v8865 = vpop.f32.mrf.mxu0
  %8866 = vmatprep.mubr.f32.mxu0 0.0
  %8867 = vmatmul.mubr.f32.gmra.mxu0 %v8730
  %v8868 = vpop.f32.mrf.mxu0
  %v8869 = vadd.f32 0.0, %v8868
  %v8870 = vpop.f32.mrf.mxu0
  %8871 = vmatprep.mubr.f32.mxu0 0.0
  %8872 = vmatmul.mubr.f32.gmra.mxu0 %v8731
  %v8873 = vpop.f32.mrf.mxu0
  %v8874 = vadd.f32 0.0, %v8873
  %v8875 = vpop.f32.mrf.mxu0
  %8876 = vmatprep.mubr.f32.mxu0 0.0
  %8877 = vmatmul.mubr.f32.gmra.mxu0 %v8732
  %v8878 = vpop.f32.mrf.mxu0
  %v8879 = vadd.f32 0.0, %v8878
  %v8880 = vpop.f32.mrf.mxu0
  %8881 = vmatprep.mubr.f32.mxu0 0.0
  %8882 = vmatmul.mubr.f32.gmra.mxu0 %v8733
  %v8883 = vpop.f32.mrf.mxu0
  %v8884 = vadd.f32 0.0, %v8883
  %v8885 = vpop.f32.mrf.mxu0
  %8886 = vmatprep.mubr.f32.mxu0 0.0
  %8887 = vmatmul.mubr.f32.gmra.mxu0 %v8734
  %v8888 = vpop.f32.mrf.mxu0
  %v8889 = vadd.f32 0.0, %v8888
  %v8890 = vpop.f32.mrf.mxu0
  %8891 = vmatprep.mubr.f32.mxu0 0.0
  %8892 = vmatmul.mubr.f32.gmra.mxu0 %v8735
  %v8893 = vpop.f32.mrf.mxu0
  %v8894 = vadd.f32 0.0, %v8893
  %v8895 = vpop.f32.mrf.mxu0
  %8896 = vmatprep.mubr.f32.mxu0 0.0
  %8897 = vmatmul.mubr.f32.gmra.mxu0 %v8736
  %v8898 = vpop.f32.mrf.mxu0
  %v8899 = vadd.f32 0.0, %v8898
  %v8900 = vpop.f32.mrf.mxu0
  %8901 = vmatprep.mubr.f32.mxu0 0.0
  %8902 = vmatmul.mubr.f32.gmra.mxu0 %v8737
  %v8903 = vpop.f32.mrf.mxu0
  %v8904 = vadd.f32 0.0, %v8903
  %v8905 = vpop.f32.mrf.mxu0
  %8906 = vmatprep.mubr.f32.mxu0 0.0
  %8907 = vmatmul.mubr.f32.gmra.mxu0 %v8738
  %v8908 = vpop.f32.mrf.mxu0
  %v8909 = vadd.f32 0.0, %v8908
  %v8910 = vpop.f32.mrf.mxu0
  %8911 = vmatprep.mubr.f32.mxu0 0.0
  %8912 = vmatmul.mubr.f32.gmra.mxu0 %v8739
  %v8913 = vpop.f32.mrf.mxu0
  %v8914 = vadd.f32 0.0, %v8913
  %v8915 = vpop.f32.mrf.mxu0
  %8916 = vmatprep.mubr.f32.mxu0 0.0
  %8917 = vmatmul.mubr.f32.gmra.mxu0 %v8740
  %v8918 = vpop.f32.mrf.mxu0
  %v8919 = vadd.f32 0.0, %v8918
  %v8920 = vpop.f32.mrf.mxu0
  %8921 = vmatprep.mubr.f32.mxu0 0.0
  %8922 = vmatmul.mubr.f32.gmra.mxu0 %v8741
  %v8923 = vpop.f32.mrf.mxu0
  %v8924 = vadd.f32 0.0, %v8923
  %v8925 = vpop.f32.mrf.mxu0
  %8926 = vmatprep.mubr.f32.mxu0 0.0
  %8927 = vmatmul.mubr.f32.gmra.mxu0 %v8742
  %v8928 = vpop.f32.mrf.mxu0
  %v8929 = vadd.f32 0.0, %v8928
  %v8930 = vpop.f32.mrf.mxu0
  %8931 = vmatprep.mubr.f32.mxu0 0.0
  %8932 = vmatmul.mubr.f32.gmra.mxu0 %v8743
  %v8933 = vpop.f32.mrf.mxu0
  %v8934 = vadd.f32 0.0, %v8933
  %v8935 = vpop.f32.mrf.mxu0
  %8936 = vmatprep.mubr.f32.mxu0 0.0
  %8937 = vmatmul.mubr.f32.gmra.mxu0 %v8744
  %v8938 = vpop.f32.mrf.mxu0
  %v8939 = vadd.f32 0.0, %v8938
  %v8940 = vpop.f32.mrf.mxu0
  %8941 = vmatprep.mubr.f32.mxu0 0.0
  %8942 = vmatmul.mubr.f32.gmra.mxu0 %v8745
  %v8943 = vpop.f32.mrf.mxu0
  %v8944 = vadd.f32 0.0, %v8943
  %v8945 = vpop.f32.mrf.mxu0
  %8946 = vmatprep.mubr.f32.mxu0 0.0
  %8947 = vmatmul.mubr.f32.gmra.mxu0 %v8746
  %v8948 = vpop.f32.mrf.mxu0
  %v8949 = vadd.f32 0.0, %v8948
  %v8950 = vpop.f32.mrf.mxu0
  %8951 = vmatprep.mubr.f32.mxu0 0.0
  %8952 = vmatmul.mubr.f32.gmra.mxu0 %v8747
  %v8953 = vpop.f32.mrf.mxu0
  %v8954 = vadd.f32 0.0, %v8953
  %v8955 = vpop.f32.mrf.mxu0
  %8956 = vmatprep.mubr.f32.mxu0 0.0
  %8957 = vmatmul.mubr.f32.gmra.mxu0 %v8748
  %v8958 = vpop.f32.mrf.mxu0
  %v8959 = vadd.f32 0.0, %v8958
  %v8960 = vpop.f32.mrf.mxu0
  %8961 = vmatprep.mubr.f32.mxu0 0.0
  %8962 = vmatmul.mubr.f32.gmra.mxu0 %v8749
  %v8963 = vpop.f32.mrf.mxu0
  %v8964 = vadd.f32 0.0, %v8963
  %v8965 = vpop.f32.mrf.mxu0
  %8966 = vmatprep.mubr.f32.mxu0 0.0
  %8967 = vmatmul.mubr.f32.gmra.mxu0 %v8750
  %v8968 = vpop.f32.mrf.mxu0
  %v8969 = vadd.f32 0.0, %v8968
  %v8970 = vpop.f32.mrf.mxu0
  %8971 = vmatprep.mubr.f32.mxu0 0.0
  %8972 = vmatmul.mubr.f32.gmra.mxu0 %v8751
  %v8973 = vpop.f32.mrf.mxu0
  %v8974 = vadd.f32 0.0, %v8973
  %v8975 = vpop.f32.mrf.mxu0
  %8976 = vmatprep.mubr.f32.mxu0 0.0
  %8977 = vmatmul.mubr.f32.gmra.mxu0 %v8752
  %v8978 = vpop.f32.mrf.mxu0
  %v8979 = vadd.f32 0.0, %v8978
  %v8980 = vpop.f32.mrf.mxu0
  %8981 = vmatprep.mubr.f32.mxu0 0.0
  %8982 = vmatmul.mubr.f32.gmra.mxu0 %v8753
  %v8983 = vpop.f32.mrf.mxu0
  %v8984 = vadd.f32 0.0, %v8983
  %v8985 = vpop.f32.mrf.mxu0
  %8986 = vmatprep.mubr.f32.mxu0 0.0
  %8987 = vmatmul.mubr.f32.gmra.mxu0 %v8754
  %v8988 = vpop.f32.mrf.mxu0
  %v8989 = vadd.f32 0.0, %v8988
  %v8990 = vpop.f32.mrf.mxu0
  %8991 = vmatprep.mubr.f32.mxu0 0.0
  %8992 = vmatmul.mubr.f32.gmra.mxu0 %v8755
  %v8993 = vpop.f32.mrf.mxu0
  %v8994 = vadd.f32 0.0, %v8993
  %v8995 = vpop.f32.mrf.mxu0
  %8996 = vmatprep.mubr.f32.mxu0 0.0
  %8997 = vmatmul.mubr.f32.gmra.mxu0 %v8756
  %v8998 = vpop.f32.mrf.mxu0
  %v8999 = vadd.f32 0.0, %v8998
  %v9000 = vpop.f32.mrf.mxu0
  %9001 = vmatprep.mubr.f32.mxu0 0.0
  %9002 = vmatmul.mubr.f32.gmra.mxu0 %v8757
  %v9003 = vpop.f32.mrf.mxu0
  %v9004 = vadd.f32 0.0, %v9003
  %v9005 = vpop.f32.mrf.mxu0
  %9006 = vmatprep.mubr.f32.mxu0 0.0
  %9007 = vmatmul.mubr.f32.gmra.mxu0 %v8758
  %v9008 = vpop.f32.mrf.mxu0
  %v9009 = vadd.f32 0.0, %v9008
  %v9010 = vpop.f32.mrf.mxu0
  %9011 = vmatprep.mubr.f32.mxu0 0.0
  %9012 = vmatmul.mubr.f32.gmra.mxu0 %v8759
  %v9013 = vpop.f32.mrf.mxu0
  %v9014 = vadd.f32 0.0, %v9013
  %v9015 = vpop.f32.mrf.mxu0
  %9016 = vmatprep.mubr.f32.mxu0 0.0
  %9017 = vmatmul.mubr.f32.gmra.mxu0 %v8760
  %v9018 = vpop.f32.mrf.mxu0
  %v9019 = vadd.f32 0.0, %v9018
  %v9020 = vpop.f32.mrf.mxu0
  %9021 = vmatprep.mubr.f32.mxu0 0.0
  %9022 = vmatmul.mubr.f32.gmra.mxu0 %v8761
  %v9023 = vpop.f32.mrf.mxu0
  %v9024 = vadd.f32 0.0, %v9023
  %v9025 = vpop.f32.mrf.mxu0
  %9026 = vdwg.mxu0
  %v9027 = vld [vmem:[%s12] sm:$0xff]
  %v9028 = vld [vmem:[%s12 + $0x8] sm:$0xff]
  %v9029 = vld [vmem:[%s12 + $0x10] sm:$0xff]
  %v9030 = vld [vmem:[%s12 + $0x18] sm:$0xff]
  %v9031 = vld [vmem:[%s12 + $0x20] sm:$0xff]
  %v9032 = vld [vmem:[%s12 + $0x28] sm:$0xff]
  %v9033 = vld [vmem:[%s12 + $0x30] sm:$0xff]
  %v9034 = vld [vmem:[%s12 + $0x38] sm:$0xff]
  %v9035 = vld [vmem:[%s12 + $0x40] sm:$0xff]
  %v9036 = vld [vmem:[%s12 + $0x48] sm:$0xff]
  %v9037 = vld [vmem:[%s12 + $0x50] sm:$0xff]
  %v9038 = vld [vmem:[%s12 + $0x58] sm:$0xff]
  %v9039 = vld [vmem:[%s12 + $0x60] sm:$0xff]
  %v9040 = vld [vmem:[%s12 + $0x68] sm:$0xff]
  %v9041 = vld [vmem:[%s12 + $0x70] sm:$0xff]
  %v9042 = vld [vmem:[%s12 + $0x78] sm:$0xff]
  %v9043 = vld [vmem:[%s12 + $0x80] sm:$0xff]
  %v9044 = vld [vmem:[%s12 + $0x88] sm:$0xff]
  %v9045 = vld [vmem:[%s12 + $0x90] sm:$0xff]
  %v9046 = vld [vmem:[%s12 + $0x98] sm:$0xff]
  %v9047 = vld [vmem:[%s12 + $0xa0] sm:$0xff]
  %v9048 = vld [vmem:[%s12 + $0xa8] sm:$0xff]
  %v9049 = vld [vmem:[%s12 + $0xb0] sm:$0xff]
  %v9050 = vld [vmem:[%s12 + $0xb8] sm:$0xff]
  %v9051 = vld [vmem:[%s12 + $0xc0] sm:$0xff]
  %v9052 = vld [vmem:[%s12 + $0xc8] sm:$0xff]
  %v9053 = vld [vmem:[%s12 + $0xd0] sm:$0xff]
  %v9054 = vld [vmem:[%s12 + $0xd8] sm:$0xff]
  %v9055 = vld [vmem:[%s12 + $0xe0] sm:$0xff]
  %v9056 = vld [vmem:[%s12 + $0xe8] sm:$0xff]
  %v9057 = vld [vmem:[%s12 + $0xf0] sm:$0xff]
  %v9058 = vld [vmem:[%s12 + $0xf8] sm:$0xff]
  %v9059 = vld [vmem:[%s12 + $0x100] sm:$0xff]
  %v9060 = vld [vmem:[%s12 + $0x108] sm:$0xff]
  %v9061 = vld [vmem:[%s12 + $0x110] sm:$0xff]
  %v9062 = vld [vmem:[%s12 + $0x118] sm:$0xff]
  %v9063 = vld [vmem:[%s12 + $0x120] sm:$0xff]
  %v9064 = vld [vmem:[%s12 + $0x128] sm:$0xff]
  %v9065 = vld [vmem:[%s12 + $0x130] sm:$0xff]
  %v9066 = vld [vmem:[%s12 + $0x138] sm:$0xff]
  %vm9067 = vcmask 654336
  %v9069 = vsel %vm9067, %v9027, 0
  %v9072 = vsel %vm9067, %v9028, 0
  %v9075 = vsel %vm9067, %v9029, 0
  %v9078 = vsel %vm9067, %v9030, 0
  %v9081 = vsel %vm9067, %v9031, 0
  %v9084 = vsel %vm9067, %v9032, 0
  %v9087 = vsel %vm9067, %v9033, 0
  %v9090 = vsel %vm9067, %v9034, 0
  %v9093 = vsel %vm9067, %v9035, 0
  %v9096 = vsel %vm9067, %v9036, 0
  %v9099 = vsel %vm9067, %v9037, 0
  %v9102 = vsel %vm9067, %v9038, 0
  %v9105 = vsel %vm9067, %v9039, 0
  %v9108 = vsel %vm9067, %v9040, 0
  %v9111 = vsel %vm9067, %v9041, 0
  %v9114 = vsel %vm9067, %v9042, 0
  %v9117 = vsel %vm9067, %v9043, 0
  %v9120 = vsel %vm9067, %v9044, 0
  %v9123 = vsel %vm9067, %v9045, 0
  %v9126 = vsel %vm9067, %v9046, 0
  %v9129 = vsel %vm9067, %v9047, 0
  %v9132 = vsel %vm9067, %v9048, 0
  %v9135 = vsel %vm9067, %v9049, 0
  %v9138 = vsel %vm9067, %v9050, 0
  %v9141 = vsel %vm9067, %v9051, 0
  %v9144 = vsel %vm9067, %v9052, 0
  %v9147 = vsel %vm9067, %v9053, 0
  %v9150 = vsel %vm9067, %v9054, 0
  %v9153 = vsel %vm9067, %v9055, 0
  %v9156 = vsel %vm9067, %v9056, 0
  %v9159 = vsel %vm9067, %v9057, 0
  %v9162 = vsel %vm9067, %v9058, 0
  %v9165 = vsel %vm9067, %v9059, 0
  %v9168 = vsel %vm9067, %v9060, 0
  %v9171 = vsel %vm9067, %v9061, 0
  %v9174 = vsel %vm9067, %v9062, 0
  %v9177 = vsel %vm9067, %v9063, 0
  %v9180 = vsel %vm9067, %v9064, 0
  %v9183 = vsel %vm9067, %v9065, 0
  %v9186 = vsel %vm9067, %v9066, 0
  %9188 = vmatprep.subr.mxu0 0.0
  %9189 = vmatpush1.msra.mxu0 0.0
  %9190 = vmatprep.subr.mxu0 0.0
  %9191 = vmatpush1.msra.mxu0 0.0
  %9192 = vmatprep.subr.mxu0 0.0
  %9193 = vmatpush1.msra.mxu0 0.0
  %9194 = vmatprep.subr.mxu0 0.0
  %9195 = vmatpush1.msra.mxu0 0.0
  %9196 = vmatprep.subr.mxu0 0.0
  %9197 = vmatpush1.msra.mxu0 0.0
  %9198 = vmatprep.subr.mxu0 0.0
  %9199 = vmatpush1.msra.mxu0 0.0
  %9200 = vmatprep.subr.mxu0 0.0
  %9201 = vmatpush1.msra.mxu0 0.0
  %9202 = vmatprep.subr.mxu0 0.0
  %9203 = vmatpush1.msra.mxu0 0.0
  %9204 = vmatprep.subr.mxu0 0.0
  %9205 = vmatpush1.msra.mxu0 0.0
  %9206 = vmatprep.subr.mxu0 0.0
  %9207 = vmatpush1.msra.mxu0 0.0
  %9208 = vmatprep.subr.mxu0 0.0
  %9209 = vmatpush1.msra.mxu0 0.0
  %9210 = vmatprep.subr.mxu0 0.0
  %9211 = vmatpush1.msra.mxu0 0.0
  %9212 = vmatprep.subr.mxu0 0.0
  %9213 = vmatpush1.msra.mxu0 0.0
  %9214 = vmatprep.subr.mxu0 0.0
  %9215 = vmatpush1.msra.mxu0 0.0
  %9216 = vmatprep.subr.mxu0 0.0
  %9217 = vmatpush1.msra.mxu0 0.0
  %9218 = vmatprep.subr.mxu0 0.0
  %9219 = vmatpush1.msra.mxu0 0.0
  %9220 = vmatprep.subr.mxu0 0.0
  %9221 = vmatpush2.msra.mxu0 0.0
  %9222 = vmatprep.subr.mxu0 0.0
  %9223 = vmatpush2.msra.mxu0 0.0
  %9224 = vmatprep.subr.mxu0 0.0
  %9225 = vmatpush2.msra.mxu0 0.0
  %9226 = vmatprep.subr.mxu0 0.0
  %9227 = vmatpush2.msra.mxu0 0.0
  %9228 = vmatprep.subr.mxu0 0.0
  %9229 = vmatpush2.msra.mxu0 0.0
  %9230 = vmatprep.subr.mxu0 0.0
  %9231 = vmatpush2.msra.mxu0 0.0
  %9232 = vmatprep.subr.mxu0 0.0
  %9233 = vmatpush2.msra.mxu0 0.0
  %9234 = vmatprep.subr.mxu0 0.0
  %9235 = vmatpush2.msra.mxu0 0.0
  %9236 = vmatprep.subr.mxu0 0.0
  %9237 = vmatpush2.msra.mxu0 0.0
  %9238 = vmatprep.subr.mxu0 0.0
  %9239 = vmatpush2.msra.mxu0 0.0
  %9240 = vmatprep.subr.mxu0 0.0
  %9241 = vmatpush2.msra.mxu0 0.0
  %9242 = vmatprep.subr.mxu0 0.0
  %9243 = vmatpush2.msra.mxu0 0.0
  %9244 = vmatprep.subr.mxu0 0.0
  %9245 = vmatpush2.msra.mxu0 0.0
  %9246 = vmatprep.subr.mxu0 0.0
  %9247 = vmatpush2.msra.mxu0 0.0
  %9248 = vmatprep.subr.mxu0 0.0
  %9249 = vmatpush2.msra.mxu0 0.0
  %9250 = vmatprep.subr.mxu0 0.0
  %9251 = vmatpush2.msra.mxu0 0.0
  %9252 = vmatprep.mubr.f32.mxu0 0.0
  %9253 = vmatmul.mubr.f32.gmra.mxu0 %v9069
  %v9254 = vpop.f32.mrf.mxu0
  %v9255 = vadd.f32 0.0, %v9254
  %v9256 = vpop.f32.mrf.mxu0
  %9257 = vmatprep.mubr.f32.mxu0 0.0
  %9258 = vmatmul.mubr.f32.gmra.mxu0 %v9072
  %v9259 = vpop.f32.mrf.mxu0
  %v9260 = vadd.f32 0.0, %v9259
  %v9261 = vpop.f32.mrf.mxu0
  %9262 = vmatprep.mubr.f32.mxu0 0.0
  %9263 = vmatmul.mubr.f32.gmra.mxu0 %v9075
  %v9264 = vpop.f32.mrf.mxu0
  %v9265 = vadd.f32 0.0, %v9264
  %v9266 = vpop.f32.mrf.mxu0
  %9267 = vmatprep.mubr.f32.mxu0 0.0
  %9268 = vmatmul.mubr.f32.gmra.mxu0 %v9078
  %v9269 = vpop.f32.mrf.mxu0
  %v9270 = vadd.f32 0.0, %v9269
  %v9271 = vpop.f32.mrf.mxu0
  %9272 = vmatprep.mubr.f32.mxu0 0.0
  %9273 = vmatmul.mubr.f32.gmra.mxu0 %v9081
  %v9274 = vpop.f32.mrf.mxu0
  %v9275 = vadd.f32 0.0, %v9274
  %v9276 = vpop.f32.mrf.mxu0
  %9277 = vmatprep.mubr.f32.mxu0 0.0
  %9278 = vmatmul.mubr.f32.gmra.mxu0 %v9084
  %v9279 = vpop.f32.mrf.mxu0
  %v9280 = vadd.f32 0.0, %v9279
  %v9281 = vpop.f32.mrf.mxu0
  %9282 = vmatprep.mubr.f32.mxu0 0.0
  %9283 = vmatmul.mubr.f32.gmra.mxu0 %v9087
  %v9284 = vpop.f32.mrf.mxu0
  %v9285 = vadd.f32 0.0, %v9284
  %v9286 = vpop.f32.mrf.mxu0
  %9287 = vmatprep.mubr.f32.mxu0 0.0
  %9288 = vmatmul.mubr.f32.gmra.mxu0 %v9090
  %v9289 = vpop.f32.mrf.mxu0
  %v9290 = vadd.f32 0.0, %v9289
  %v9291 = vpop.f32.mrf.mxu0
  %9292 = vmatprep.mubr.f32.mxu0 0.0
  %9293 = vmatmul.mubr.f32.gmra.mxu0 %v9093
  %v9294 = vpop.f32.mrf.mxu0
  %v9295 = vadd.f32 0.0, %v9294
  %v9296 = vpop.f32.mrf.mxu0
  %9297 = vmatprep.mubr.f32.mxu0 0.0
  %9298 = vmatmul.mubr.f32.gmra.mxu0 %v9096
  %v9299 = vpop.f32.mrf.mxu0
  %v9300 = vadd.f32 0.0, %v9299
  %v9301 = vpop.f32.mrf.mxu0
  %9302 = vmatprep.mubr.f32.mxu0 0.0
  %9303 = vmatmul.mubr.f32.gmra.mxu0 %v9099
  %v9304 = vpop.f32.mrf.mxu0
  %v9305 = vadd.f32 0.0, %v9304
  %v9306 = vpop.f32.mrf.mxu0
  %9307 = vmatprep.mubr.f32.mxu0 0.0
  %9308 = vmatmul.mubr.f32.gmra.mxu0 %v9102
  %v9309 = vpop.f32.mrf.mxu0
  %v9310 = vadd.f32 0.0, %v9309
  %v9311 = vpop.f32.mrf.mxu0
  %9312 = vmatprep.mubr.f32.mxu0 0.0
  %9313 = vmatmul.mubr.f32.gmra.mxu0 %v9105
  %v9314 = vpop.f32.mrf.mxu0
  %v9315 = vadd.f32 0.0, %v9314
  %v9316 = vpop.f32.mrf.mxu0
  %9317 = vmatprep.mubr.f32.mxu0 0.0
  %9318 = vmatmul.mubr.f32.gmra.mxu0 %v9108
  %v9319 = vpop.f32.mrf.mxu0
  %v9320 = vadd.f32 0.0, %v9319
  %v9321 = vpop.f32.mrf.mxu0
  %9322 = vmatprep.mubr.f32.mxu0 0.0
  %9323 = vmatmul.mubr.f32.gmra.mxu0 %v9111
  %v9324 = vpop.f32.mrf.mxu0
  %v9325 = vadd.f32 0.0, %v9324
  %v9326 = vpop.f32.mrf.mxu0
  %9327 = vmatprep.mubr.f32.mxu0 0.0
  %9328 = vmatmul.mubr.f32.gmra.mxu0 %v9114
  %v9329 = vpop.f32.mrf.mxu0
  %v9330 = vadd.f32 0.0, %v9329
  %v9331 = vpop.f32.mrf.mxu0
  %9332 = vmatprep.mubr.f32.mxu0 0.0
  %9333 = vmatmul.mubr.f32.gmra.mxu0 %v9117
  %v9334 = vpop.f32.mrf.mxu0
  %v9335 = vadd.f32 0.0, %v9334
  %v9336 = vpop.f32.mrf.mxu0
  %9337 = vmatprep.mubr.f32.mxu0 0.0
  %9338 = vmatmul.mubr.f32.gmra.mxu0 %v9120
  %v9339 = vpop.f32.mrf.mxu0
  %v9340 = vadd.f32 0.0, %v9339
  %v9341 = vpop.f32.mrf.mxu0
  %9342 = vmatprep.mubr.f32.mxu0 0.0
  %9343 = vmatmul.mubr.f32.gmra.mxu0 %v9123
  %v9344 = vpop.f32.mrf.mxu0
  %v9345 = vadd.f32 0.0, %v9344
  %v9346 = vpop.f32.mrf.mxu0
  %9347 = vmatprep.mubr.f32.mxu0 0.0
  %9348 = vmatmul.mubr.f32.gmra.mxu0 %v9126
  %v9349 = vpop.f32.mrf.mxu0
  %v9350 = vadd.f32 0.0, %v9349
  %v9351 = vpop.f32.mrf.mxu0
  %9352 = vmatprep.mubr.f32.mxu0 0.0
  %9353 = vmatmul.mubr.f32.gmra.mxu0 %v9129
  %v9354 = vpop.f32.mrf.mxu0
  %v9355 = vadd.f32 0.0, %v9354
  %v9356 = vpop.f32.mrf.mxu0
  %9357 = vmatprep.mubr.f32.mxu0 0.0
  %9358 = vmatmul.mubr.f32.gmra.mxu0 %v9132
  %v9359 = vpop.f32.mrf.mxu0
  %v9360 = vadd.f32 0.0, %v9359
  %v9361 = vpop.f32.mrf.mxu0
  %9362 = vmatprep.mubr.f32.mxu0 0.0
  %9363 = vmatmul.mubr.f32.gmra.mxu0 %v9135
  %v9364 = vpop.f32.mrf.mxu0
  %v9365 = vadd.f32 0.0, %v9364
  %v9366 = vpop.f32.mrf.mxu0
  %9367 = vmatprep.mubr.f32.mxu0 0.0
  %9368 = vmatmul.mubr.f32.gmra.mxu0 %v9138
  %v9369 = vpop.f32.mrf.mxu0
  %v9370 = vadd.f32 0.0, %v9369
  %v9371 = vpop.f32.mrf.mxu0
  %9372 = vmatprep.mubr.f32.mxu0 0.0
  %9373 = vmatmul.mubr.f32.gmra.mxu0 %v9141
  %v9374 = vpop.f32.mrf.mxu0
  %v9375 = vadd.f32 0.0, %v9374
  %v9376 = vpop.f32.mrf.mxu0
  %9377 = vmatprep.mubr.f32.mxu0 0.0
  %9378 = vmatmul.mubr.f32.gmra.mxu0 %v9144
  %v9379 = vpop.f32.mrf.mxu0
  %v9380 = vadd.f32 0.0, %v9379
  %v9381 = vpop.f32.mrf.mxu0
  %9382 = vmatprep.mubr.f32.mxu0 0.0
  %9383 = vmatmul.mubr.f32.gmra.mxu0 %v9147
  %v9384 = vpop.f32.mrf.mxu0
  %v9385 = vadd.f32 0.0, %v9384
  %v9386 = vpop.f32.mrf.mxu0
  %9387 = vmatprep.mubr.f32.mxu0 0.0
  %9388 = vmatmul.mubr.f32.gmra.mxu0 %v9150
  %v9389 = vpop.f32.mrf.mxu0
  %v9390 = vadd.f32 0.0, %v9389
  %v9391 = vpop.f32.mrf.mxu0
  %9392 = vmatprep.mubr.f32.mxu0 0.0
  %9393 = vmatmul.mubr.f32.gmra.mxu0 %v9153
  %v9394 = vpop.f32.mrf.mxu0
  %v9395 = vadd.f32 0.0, %v9394
  %v9396 = vpop.f32.mrf.mxu0
  %9397 = vmatprep.mubr.f32.mxu0 0.0
  %9398 = vmatmul.mubr.f32.gmra.mxu0 %v9156
  %v9399 = vpop.f32.mrf.mxu0
  %v9400 = vadd.f32 0.0, %v9399
  %v9401 = vpop.f32.mrf.mxu0
  %9402 = vmatprep.mubr.f32.mxu0 0.0
  %9403 = vmatmul.mubr.f32.gmra.mxu0 %v9159
  %v9404 = vpop.f32.mrf.mxu0
  %v9405 = vadd.f32 0.0, %v9404
  %v9406 = vpop.f32.mrf.mxu0
  %9407 = vmatprep.mubr.f32.mxu0 0.0
  %9408 = vmatmul.mubr.f32.gmra.mxu0 %v9162
  %v9409 = vpop.f32.mrf.mxu0
  %v9410 = vadd.f32 0.0, %v9409
  %v9411 = vpop.f32.mrf.mxu0
  %9412 = vmatprep.mubr.f32.mxu0 0.0
  %9413 = vmatmul.mubr.f32.gmra.mxu0 %v9165
  %v9414 = vpop.f32.mrf.mxu0
  %v9415 = vadd.f32 0.0, %v9414
  %v9416 = vpop.f32.mrf.mxu0
  %9417 = vmatprep.mubr.f32.mxu0 0.0
  %9418 = vmatmul.mubr.f32.gmra.mxu0 %v9168
  %v9419 = vpop.f32.mrf.mxu0
  %v9420 = vadd.f32 0.0, %v9419
  %v9421 = vpop.f32.mrf.mxu0
  %9422 = vmatprep.mubr.f32.mxu0 0.0
  %9423 = vmatmul.mubr.f32.gmra.mxu0 %v9171
  %v9424 = vpop.f32.mrf.mxu0
  %v9425 = vadd.f32 0.0, %v9424
  %v9426 = vpop.f32.mrf.mxu0
  %9427 = vmatprep.mubr.f32.mxu0 0.0
  %9428 = vmatmul.mubr.f32.gmra.mxu0 %v9174
  %v9429 = vpop.f32.mrf.mxu0
  %v9430 = vadd.f32 0.0, %v9429
  %v9431 = vpop.f32.mrf.mxu0
  %9432 = vmatprep.mubr.f32.mxu0 0.0
  %9433 = vmatmul.mubr.f32.gmra.mxu0 %v9177
  %v9434 = vpop.f32.mrf.mxu0
  %v9435 = vadd.f32 0.0, %v9434
  %v9436 = vpop.f32.mrf.mxu0
  %9437 = vmatprep.mubr.f32.mxu0 0.0
  %9438 = vmatmul.mubr.f32.gmra.mxu0 %v9180
  %v9439 = vpop.f32.mrf.mxu0
  %v9440 = vadd.f32 0.0, %v9439
  %v9441 = vpop.f32.mrf.mxu0
  %9442 = vmatprep.mubr.f32.mxu0 0.0
  %9443 = vmatmul.mubr.f32.gmra.mxu0 %v9183
  %v9444 = vpop.f32.mrf.mxu0
  %v9445 = vadd.f32 0.0, %v9444
  %v9446 = vpop.f32.mrf.mxu0
  %9447 = vmatprep.mubr.f32.mxu0 0.0
  %9448 = vmatmul.mubr.f32.gmra.mxu0 %v9186
  %v9449 = vpop.f32.mrf.mxu0
  %v9450 = vadd.f32 0.0, %v9449
  %v9451 = vpop.f32.mrf.mxu0
  %9452 = vdwg.mxu0
  %v9453 = vadd.f32 %v8829, %v9255
  %v9454 = vadd.f32 %v8834, %v9260
  %v9455 = vadd.f32 %v8839, %v9265
  %v9456 = vadd.f32 %v8844, %v9270
  %v9457 = vadd.f32 %v8849, %v9275
  %v9458 = vadd.f32 %v8854, %v9280
  %v9459 = vadd.f32 %v8859, %v9285
  %v9460 = vadd.f32 %v8864, %v9290
  %v9461 = vadd.f32 %v8869, %v9295
  %v9462 = vadd.f32 %v8874, %v9300
  %v9463 = vadd.f32 %v8879, %v9305
  %v9464 = vadd.f32 %v8884, %v9310
  %v9465 = vadd.f32 %v8889, %v9315
  %v9466 = vadd.f32 %v8894, %v9320
  %v9467 = vadd.f32 %v8899, %v9325
  %v9468 = vadd.f32 %v8904, %v9330
  %v9469 = vadd.f32 %v8909, %v9335
  %v9470 = vadd.f32 %v8914, %v9340
  %v9471 = vadd.f32 %v8919, %v9345
  %v9472 = vadd.f32 %v8924, %v9350
  %v9473 = vadd.f32 %v8929, %v9355
  %v9474 = vadd.f32 %v8934, %v9360
  %v9475 = vadd.f32 %v8939, %v9365
  %v9476 = vadd.f32 %v8944, %v9370
  %v9477 = vadd.f32 %v8949, %v9375
  %v9478 = vadd.f32 %v8954, %v9380
  %v9479 = vadd.f32 %v8959, %v9385
  %v9480 = vadd.f32 %v8964, %v9390
  %v9481 = vadd.f32 %v8969, %v9395
  %v9482 = vadd.f32 %v8974, %v9400
  %v9483 = vadd.f32 %v8979, %v9405
  %v9484 = vadd.f32 %v8984, %v9410
  %v9485 = vadd.f32 %v8989, %v9415
  %v9486 = vadd.f32 %v8994, %v9420
  %v9487 = vadd.f32 %v8999, %v9425
  %v9488 = vadd.f32 %v9004, %v9430
  %v9489 = vadd.f32 %v9009, %v9435
  %v9490 = vadd.f32 %v9014, %v9440
  %v9491 = vadd.f32 %v9019, %v9445
  %v9492 = vadd.f32 %v9024, %v9450
  %v9493 = vld [vmem:[%s13] sm:$0xff]
  %v9494 = vld [vmem:[%s13 + $0x8] sm:$0xff]
  %v9495 = vld [vmem:[%s13 + $0x10] sm:$0xff]
  %v9496 = vld [vmem:[%s13 + $0x18] sm:$0xff]
  %v9497 = vld [vmem:[%s13 + $0x20] sm:$0xff]
  %v9498 = vld [vmem:[%s13 + $0x28] sm:$0xff]
  %v9499 = vld [vmem:[%s13 + $0x30] sm:$0xff]
  %v9500 = vld [vmem:[%s13 + $0x38] sm:$0xff]
  %v9501 = vld [vmem:[%s13 + $0x40] sm:$0xff]
  %v9502 = vld [vmem:[%s13 + $0x48] sm:$0xff]
  %v9503 = vld [vmem:[%s13 + $0x50] sm:$0xff]
  %v9504 = vld [vmem:[%s13 + $0x58] sm:$0xff]
  %v9505 = vld [vmem:[%s13 + $0x60] sm:$0xff]
  %v9506 = vld [vmem:[%s13 + $0x68] sm:$0xff]
  %v9507 = vld [vmem:[%s13 + $0x70] sm:$0xff]
  %v9508 = vld [vmem:[%s13 + $0x78] sm:$0xff]
  %v9509 = vld [vmem:[%s13 + $0x80] sm:$0xff]
  %v9510 = vld [vmem:[%s13 + $0x88] sm:$0xff]
  %v9511 = vld [vmem:[%s13 + $0x90] sm:$0xff]
  %v9512 = vld [vmem:[%s13 + $0x98] sm:$0xff]
  %v9513 = vld [vmem:[%s13 + $0xa0] sm:$0xff]
  %v9514 = vld [vmem:[%s13 + $0xa8] sm:$0xff]
  %v9515 = vld [vmem:[%s13 + $0xb0] sm:$0xff]
  %v9516 = vld [vmem:[%s13 + $0xb8] sm:$0xff]
  %v9517 = vld [vmem:[%s13 + $0xc0] sm:$0xff]
  %v9518 = vld [vmem:[%s13 + $0xc8] sm:$0xff]
  %v9519 = vld [vmem:[%s13 + $0xd0] sm:$0xff]
  %v9520 = vld [vmem:[%s13 + $0xd8] sm:$0xff]
  %v9521 = vld [vmem:[%s13 + $0xe0] sm:$0xff]
  %v9522 = vld [vmem:[%s13 + $0xe8] sm:$0xff]
  %v9523 = vld [vmem:[%s13 + $0xf0] sm:$0xff]
  %v9524 = vld [vmem:[%s13 + $0xf8] sm:$0xff]
  %v9525 = vld [vmem:[%s13 + $0x100] sm:$0xff]
  %v9526 = vld [vmem:[%s13 + $0x108] sm:$0xff]
  %v9527 = vld [vmem:[%s13 + $0x110] sm:$0xff]
  %v9528 = vld [vmem:[%s13 + $0x118] sm:$0xff]
  %v9529 = vld [vmem:[%s13 + $0x120] sm:$0xff]
  %v9530 = vld [vmem:[%s13 + $0x128] sm:$0xff]
  %v9531 = vld [vmem:[%s13 + $0x130] sm:$0xff]
  %v9532 = vld [vmem:[%s13 + $0x138] sm:$0xff]
  %v9533 = vadd.f32 %v9453, %v9493
  %v9534 = vadd.f32 %v9454, %v9494
  %v9535 = vadd.f32 %v9455, %v9495
  %v9536 = vadd.f32 %v9456, %v9496
  %v9537 = vadd.f32 %v9457, %v9497
  %v9538 = vadd.f32 %v9458, %v9498
  %v9539 = vadd.f32 %v9459, %v9499
  %v9540 = vadd.f32 %v9460, %v9500
  %v9541 = vadd.f32 %v9461, %v9501
  %v9542 = vadd.f32 %v9462, %v9502
  %v9543 = vadd.f32 %v9463, %v9503
  %v9544 = vadd.f32 %v9464, %v9504
  %v9545 = vadd.f32 %v9465, %v9505
  %v9546 = vadd.f32 %v9466, %v9506
  %v9547 = vadd.f32 %v9467, %v9507
  %v9548 = vadd.f32 %v9468, %v9508
  %v9549 = vadd.f32 %v9469, %v9509
  %v9550 = vadd.f32 %v9470, %v9510
  %v9551 = vadd.f32 %v9471, %v9511
  %v9552 = vadd.f32 %v9472, %v9512
  %v9553 = vadd.f32 %v9473, %v9513
  %v9554 = vadd.f32 %v9474, %v9514
  %v9555 = vadd.f32 %v9475, %v9515
  %v9556 = vadd.f32 %v9476, %v9516
  %v9557 = vadd.f32 %v9477, %v9517
  %v9558 = vadd.f32 %v9478, %v9518
  %v9559 = vadd.f32 %v9479, %v9519
  %v9560 = vadd.f32 %v9480, %v9520
  %v9561 = vadd.f32 %v9481, %v9521
  %v9562 = vadd.f32 %v9482, %v9522
  %v9563 = vadd.f32 %v9483, %v9523
  %v9564 = vadd.f32 %v9484, %v9524
  %v9565 = vadd.f32 %v9485, %v9525
  %v9566 = vadd.f32 %v9486, %v9526
  %v9567 = vadd.f32 %v9487, %v9527
  %v9568 = vadd.f32 %v9488, %v9528
  %v9569 = vadd.f32 %v9489, %v9529
  %v9570 = vadd.f32 %v9490, %v9530
  %v9571 = vadd.f32 %v9491, %v9531
  %v9572 = vadd.f32 %v9492, %v9532
  %v9573 = vxor.u32 %v9533, 2147483648
  %v9574 = vxor.u32 %v9534, 2147483648
  %v9575 = vxor.u32 %v9535, 2147483648
  %v9576 = vxor.u32 %v9536, 2147483648
  %v9577 = vxor.u32 %v9537, 2147483648
  %v9578 = vxor.u32 %v9538, 2147483648
  %v9579 = vxor.u32 %v9539, 2147483648
  %v9580 = vxor.u32 %v9540, 2147483648
  %v9581 = vxor.u32 %v9541, 2147483648
  %v9582 = vxor.u32 %v9542, 2147483648
  %v9583 = vmul.f32 %v9573, 1.442695
  %v9584 = vpow.pop %v9583
  %v9585 = vmul.f32 %v9574, 1.442695
  %v9586 = vpow.pop %v9585
  %v9587 = vmul.f32 %v9575, 1.442695
  %v9588 = vpow.pop %v9587
  %v9589 = vmul.f32 %v9576, 1.442695
  %v9590 = vpow.pop %v9589
  %v9591 = vmul.f32 %v9577, 1.442695
  %v9592 = vpow.pop %v9591
  %v9593 = vmul.f32 %v9578, 1.442695
  %v9594 = vpow.pop %v9593
  %v9595 = vmul.f32 %v9579, 1.442695
  %v9596 = vpow.pop %v9595
  %v9597 = vmul.f32 %v9580, 1.442695
  %v9598 = vpow.pop %v9597
  %v9599 = vmul.f32 %v9581, 1.442695
  %v9600 = vpow.pop %v9599
  %v9601 = vmul.f32 %v9582, 1.442695
  %v9602 = vpow.pop %v9601
  %v9603 = vadd.f32 %v9584, 1.0
  %v9604 = vadd.f32 %v9586, 1.0
  %v9605 = vadd.f32 %v9588, 1.0
  %v9606 = vadd.f32 %v9590, 1.0
  %v9607 = vadd.f32 %v9592, 1.0
  %v9608 = vadd.f32 %v9594, 1.0
  %v9609 = vadd.f32 %v9596, 1.0
  %v9610 = vadd.f32 %v9598, 1.0
  %v9611 = vadd.f32 %v9600, 1.0
  %v9612 = vadd.f32 %v9602, 1.0
  %v9613 = vrcp.pop %v9603
  %v9614 = vmul.f32 1.0, %v9613
  %v9615 = vrcp.pop %v9604
  %v9616 = vmul.f32 1.0, %v9615
  %v9617 = vrcp.pop %v9605
  %v9618 = vmul.f32 1.0, %v9617
  %v9619 = vrcp.pop %v9606
  %v9620 = vmul.f32 1.0, %v9619
  %v9621 = vrcp.pop %v9607
  %v9622 = vmul.f32 1.0, %v9621
  %v9623 = vrcp.pop %v9608
  %v9624 = vmul.f32 1.0, %v9623
  %v9625 = vrcp.pop %v9609
  %v9626 = vmul.f32 1.0, %v9625
  %v9627 = vrcp.pop %v9610
  %v9628 = vmul.f32 1.0, %v9627
  %v9629 = vrcp.pop %v9611
  %v9630 = vmul.f32 1.0, %v9629
  %v9631 = vrcp.pop %v9612
  %v9632 = vmul.f32 1.0, %v9631
  %v9633 = vxor.u32 %v9543, 2147483648
  %v9634 = vxor.u32 %v9544, 2147483648
  %v9635 = vxor.u32 %v9545, 2147483648
  %v9636 = vxor.u32 %v9546, 2147483648
  %v9637 = vxor.u32 %v9547, 2147483648
  %v9638 = vxor.u32 %v9548, 2147483648
  %v9639 = vxor.u32 %v9549, 2147483648
  %v9640 = vxor.u32 %v9550, 2147483648
  %v9641 = vxor.u32 %v9551, 2147483648
  %v9642 = vxor.u32 %v9552, 2147483648
  %v9643 = vmul.f32 %v9633, 1.442695
  %v9644 = vpow.pop %v9643
  %v9645 = vmul.f32 %v9634, 1.442695
  %v9646 = vpow.pop %v9645
  %v9647 = vmul.f32 %v9635, 1.442695
  %v9648 = vpow.pop %v9647
  %v9649 = vmul.f32 %v9636, 1.442695
  %v9650 = vpow.pop %v9649
  %v9651 = vmul.f32 %v9637, 1.442695
  %v9652 = vpow.pop %v9651
  %v9653 = vmul.f32 %v9638, 1.442695
  %v9654 = vpow.pop %v9653
  %v9655 = vmul.f32 %v9639, 1.442695
  %v9656 = vpow.pop %v9655
  %v9657 = vmul.f32 %v9640, 1.442695
  %v9658 = vpow.pop %v9657
  %v9659 = vmul.f32 %v9641, 1.442695
  %v9660 = vpow.pop %v9659
  %v9661 = vmul.f32 %v9642, 1.442695
  %v9662 = vpow.pop %v9661
  %v9663 = vadd.f32 %v9644, 1.0
  %v9664 = vadd.f32 %v9646, 1.0
  %v9665 = vadd.f32 %v9648, 1.0
  %v9666 = vadd.f32 %v9650, 1.0
  %v9667 = vadd.f32 %v9652, 1.0
  %v9668 = vadd.f32 %v9654, 1.0
  %v9669 = vadd.f32 %v9656, 1.0
  %v9670 = vadd.f32 %v9658, 1.0
  %v9671 = vadd.f32 %v9660, 1.0
  %v9672 = vadd.f32 %v9662, 1.0
  %v9673 = vrcp.pop %v9663
  %v9674 = vmul.f32 1.0, %v9673
  %v9675 = vrcp.pop %v9664
  %v9676 = vmul.f32 1.0, %v9675
  %v9677 = vrcp.pop %v9665
  %v9678 = vmul.f32 1.0, %v9677
  %v9679 = vrcp.pop %v9666
  %v9680 = vmul.f32 1.0, %v9679
  %v9681 = vrcp.pop %v9667
  %v9682 = vmul.f32 1.0, %v9681
  %v9683 = vrcp.pop %v9668
  %v9684 = vmul.f32 1.0, %v9683
  %v9685 = vrcp.pop %v9669
  %v9686 = vmul.f32 1.0, %v9685
  %v9687 = vrcp.pop %v9670
  %v9688 = vmul.f32 1.0, %v9687
  %v9689 = vrcp.pop %v9671
  %v9690 = vmul.f32 1.0, %v9689
  %v9691 = vrcp.pop %v9672
  %v9692 = vmul.f32 1.0, %v9691
  %v9693 = vtanh.pop %v9553
  %v9694 = vtanh.pop %v9554
  %v9695 = vtanh.pop %v9555
  %v9696 = vtanh.pop %v9556
  %v9697 = vtanh.pop %v9557
  %v9698 = vtanh.pop %v9558
  %v9699 = vtanh.pop %v9559
  %v9700 = vtanh.pop %v9560
  %v9701 = vtanh.pop %v9561
  %v9702 = vtanh.pop %v9562
  %v9703 = vxor.u32 %v9563, 2147483648
  %v9704 = vxor.u32 %v9564, 2147483648
  %v9705 = vxor.u32 %v9565, 2147483648
  %v9706 = vxor.u32 %v9566, 2147483648
  %v9707 = vxor.u32 %v9567, 2147483648
  %v9708 = vxor.u32 %v9568, 2147483648
  %v9709 = vxor.u32 %v9569, 2147483648
  %v9710 = vxor.u32 %v9570, 2147483648
  %v9711 = vxor.u32 %v9571, 2147483648
  %v9712 = vxor.u32 %v9572, 2147483648
  %v9713 = vmul.f32 %v9703, 1.442695
  %v9714 = vpow.pop %v9713
  %v9715 = vmul.f32 %v9704, 1.442695
  %v9716 = vpow.pop %v9715
  %v9717 = vmul.f32 %v9705, 1.442695
  %v9718 = vpow.pop %v9717
  %v9719 = vmul.f32 %v9706, 1.442695
  %v9720 = vpow.pop %v9719
  %v9721 = vmul.f32 %v9707, 1.442695
  %v9722 = vpow.pop %v9721
  %v9723 = vmul.f32 %v9708, 1.442695
  %v9724 = vpow.pop %v9723
  %v9725 = vmul.f32 %v9709, 1.442695
  %v9726 = vpow.pop %v9725
  %v9727 = vmul.f32 %v9710, 1.442695
  %v9728 = vpow.pop %v9727
  %v9729 = vmul.f32 %v9711, 1.442695
  %v9730 = vpow.pop %v9729
  %v9731 = vmul.f32 %v9712, 1.442695
  %v9732 = vpow.pop %v9731
  %v9733 = vadd.f32 %v9714, 1.0
  %v9734 = vadd.f32 %v9716, 1.0
  %v9735 = vadd.f32 %v9718, 1.0
  %v9736 = vadd.f32 %v9720, 1.0
  %v9737 = vadd.f32 %v9722, 1.0
  %v9738 = vadd.f32 %v9724, 1.0
  %v9739 = vadd.f32 %v9726, 1.0
  %v9740 = vadd.f32 %v9728, 1.0
  %v9741 = vadd.f32 %v9730, 1.0
  %v9742 = vadd.f32 %v9732, 1.0
  %v9743 = vrcp.pop %v9733
  %v9744 = vmul.f32 1.0, %v9743
  %v9745 = vrcp.pop %v9734
  %v9746 = vmul.f32 1.0, %v9745
  %v9747 = vrcp.pop %v9735
  %v9748 = vmul.f32 1.0, %v9747
  %v9749 = vrcp.pop %v9736
  %v9750 = vmul.f32 1.0, %v9749
  %v9751 = vrcp.pop %v9737
  %v9752 = vmul.f32 1.0, %v9751
  %v9753 = vrcp.pop %v9738
  %v9754 = vmul.f32 1.0, %v9753
  %v9755 = vrcp.pop %v9739
  %v9756 = vmul.f32 1.0, %v9755
  %v9757 = vrcp.pop %v9740
  %v9758 = vmul.f32 1.0, %v9757
  %v9759 = vrcp.pop %v9741
  %v9760 = vmul.f32 1.0, %v9759
  %v9761 = vrcp.pop %v9742
  %v9762 = vmul.f32 1.0, %v9761
  %v9763 = vmul.f32 %v9674, 0.0
  %v9764 = vmul.f32 %v9676, 0.0
  %v9765 = vmul.f32 %v9678, 0.0
  %v9766 = vmul.f32 %v9680, 0.0
  %v9767 = vmul.f32 %v9682, 0.0
  %v9768 = vmul.f32 %v9684, 0.0
  %v9769 = vmul.f32 %v9686, 0.0
  %v9770 = vmul.f32 %v9688, 0.0
  %v9771 = vmul.f32 %v9690, 0.0
  %v9772 = vmul.f32 %v9692, 0.0
  %v9773 = vmul.f32 %v9614, %v9693
  %v9774 = vmul.f32 %v9616, %v9694
  %v9775 = vmul.f32 %v9618, %v9695
  %v9776 = vmul.f32 %v9620, %v9696
  %v9777 = vmul.f32 %v9622, %v9697
  %v9778 = vmul.f32 %v9624, %v9698
  %v9779 = vmul.f32 %v9626, %v9699
  %v9780 = vmul.f32 %v9628, %v9700
  %v9781 = vmul.f32 %v9630, %v9701
  %v9782 = vmul.f32 %v9632, %v9702
  %v9783 = vadd.f32 %v9763, %v9773
  %v9784 = vadd.f32 %v9764, %v9774
  %v9785 = vadd.f32 %v9765, %v9775
  %v9786 = vadd.f32 %v9766, %v9776
  %v9787 = vadd.f32 %v9767, %v9777
  %v9788 = vadd.f32 %v9768, %v9778
  %v9789 = vadd.f32 %v9769, %v9779
  %v9790 = vadd.f32 %v9770, %v9780
  %v9791 = vadd.f32 %v9771, %v9781
  %v9792 = vadd.f32 %v9772, %v9782
  %v9793 = vtanh.pop %v9783
  %v9794 = vtanh.pop %v9784
  %v9795 = vtanh.pop %v9785
  %v9796 = vtanh.pop %v9786
  %v9797 = vtanh.pop %v9787
  %v9798 = vtanh.pop %v9788
  %v9799 = vtanh.pop %v9789
  %v9800 = vtanh.pop %v9790
  %v9801 = vtanh.pop %v9791
  %v9802 = vtanh.pop %v9792
  %v9803 = vmul.f32 %v9744, %v9793
  %v9804 = vmul.f32 %v9746, %v9794
  %v9805 = vmul.f32 %v9748, %v9795
  %v9806 = vmul.f32 %v9750, %v9796
  %v9807 = vmul.f32 %v9752, %v9797
  %v9808 = vmul.f32 %v9754, %v9798
  %v9809 = vmul.f32 %v9756, %v9799
  %v9810 = vmul.f32 %v9758, %v9800
  %v9811 = vmul.f32 %v9760, %v9801
  %v9812 = vmul.f32 %v9762, %v9802
  %9813 = vmatprep.subr.mxu0 0.0
  %9814 = vmatpush1.msra.mxu0 0.0
  %9815 = vmatprep.subr.mxu0 0.0
  %9816 = vmatpush1.msra.mxu0 0.0
  %9817 = vmatprep.subr.mxu0 0.0
  %9818 = vmatpush1.msra.mxu0 0.0
  %9819 = vmatprep.subr.mxu0 0.0
  %9820 = vmatpush1.msra.mxu0 0.0
  %9821 = vmatprep.subr.mxu0 0.0
  %9822 = vmatpush1.msra.mxu0 0.0
  %9823 = vmatprep.subr.mxu0 0.0
  %9824 = vmatpush1.msra.mxu0 0.0
  %9825 = vmatprep.subr.mxu0 0.0
  %9826 = vmatpush1.msra.mxu0 %v9812
  %9827 = vmatprep.subr.mxu0 0.0
  %9828 = vmatpush1.msra.mxu0 %v9811
  %9829 = vmatprep.subr.mxu0 0.0
  %9830 = vmatpush1.msra.mxu0 %v9810
  %9831 = vmatprep.subr.mxu0 0.0
  %9832 = vmatpush1.msra.mxu0 %v9809
  %9833 = vmatprep.subr.mxu0 0.0
  %9834 = vmatpush1.msra.mxu0 %v9808
  %9835 = vmatprep.subr.mxu0 0.0
  %9836 = vmatpush1.msra.mxu0 %v9807
  %9837 = vmatprep.subr.mxu0 0.0
  %9838 = vmatpush1.msra.mxu0 %v9806
  %9839 = vmatprep.subr.mxu0 0.0
  %9840 = vmatpush1.msra.mxu0 %v9805
  %9841 = vmatprep.subr.mxu0 0.0
  %9842 = vmatpush1.msra.mxu0 %v9804
  %9843 = vmatprep.subr.mxu0 0.0
  %9844 = vmatpush1.msra.mxu0 %v9803
  %9845 = vmatprep.subr.mxu0 0.0
  %9846 = vmatpush2.msra.mxu0 0.0
  %9847 = vmatprep.subr.mxu0 0.0
  %9848 = vmatpush2.msra.mxu0 0.0
  %9849 = vmatprep.subr.mxu0 0.0
  %9850 = vmatpush2.msra.mxu0 0.0
  %9851 = vmatprep.subr.mxu0 0.0
  %9852 = vmatpush2.msra.mxu0 0.0
  %9853 = vmatprep.subr.mxu0 0.0
  %9854 = vmatpush2.msra.mxu0 0.0
  %9855 = vmatprep.subr.mxu0 0.0
  %9856 = vmatpush2.msra.mxu0 0.0
  %9857 = vmatprep.subr.mxu0 0.0
  %9858 = vmatpush2.msra.mxu0 0.0
  %9859 = vmatprep.subr.mxu0 0.0
  %9860 = vmatpush2.msra.mxu0 0.0
  %9861 = vmatprep.subr.mxu0 0.0
  %9862 = vmatpush2.msra.mxu0 0.0
  %9863 = vmatprep.subr.mxu0 0.0
  %9864 = vmatpush2.msra.mxu0 0.0
  %9865 = vmatprep.subr.mxu0 0.0
  %9866 = vmatpush2.msra.mxu0 0.0
  %9867 = vmatprep.subr.mxu0 0.0
  %9868 = vmatpush2.msra.mxu0 0.0
  %9869 = vmatprep.subr.mxu0 0.0
  %9870 = vmatpush2.msra.mxu0 0.0
  %9871 = vmatprep.subr.mxu0 0.0
  %9872 = vmatpush2.msra.mxu0 0.0
  %9873 = vmatprep.subr.mxu0 0.0
  %9874 = vmatpush2.msra.mxu0 0.0
  %9875 = vmatprep.subr.mxu0 0.0
  %9876 = vmatpush2.msra.mxu0 0.0
  %9877 = vmatprep.mubr.f32.mxu0 0.0
  %9878 = vmatmul.mubr.f32.gmra.mxu0 %v9069
  %v9879 = vpop.f32.mrf.mxu0
  %v9880 = vadd.f32 0.0, %v9879
  %v9881 = vpop.f32.mrf.mxu0
  %9882 = vmatprep.mubr.f32.mxu0 0.0
  %9883 = vmatmul.mubr.f32.gmra.mxu0 %v9072
  %v9884 = vpop.f32.mrf.mxu0
  %v9885 = vadd.f32 0.0, %v9884
  %v9886 = vpop.f32.mrf.mxu0
  %9887 = vmatprep.mubr.f32.mxu0 0.0
  %9888 = vmatmul.mubr.f32.gmra.mxu0 %v9075
  %v9889 = vpop.f32.mrf.mxu0
  %v9890 = vadd.f32 0.0, %v9889
  %v9891 = vpop.f32.mrf.mxu0
  %9892 = vmatprep.mubr.f32.mxu0 0.0
  %9893 = vmatmul.mubr.f32.gmra.mxu0 %v9078
  %v9894 = vpop.f32.mrf.mxu0
  %v9895 = vadd.f32 0.0, %v9894
  %v9896 = vpop.f32.mrf.mxu0
  %9897 = vmatprep.mubr.f32.mxu0 0.0
  %9898 = vmatmul.mubr.f32.gmra.mxu0 %v9081
  %v9899 = vpop.f32.mrf.mxu0
  %v9900 = vadd.f32 0.0, %v9899
  %v9901 = vpop.f32.mrf.mxu0
  %9902 = vmatprep.mubr.f32.mxu0 0.0
  %9903 = vmatmul.mubr.f32.gmra.mxu0 %v9084
  %v9904 = vpop.f32.mrf.mxu0
  %v9905 = vadd.f32 0.0, %v9904
  %v9906 = vpop.f32.mrf.mxu0
  %9907 = vmatprep.mubr.f32.mxu0 0.0
  %9908 = vmatmul.mubr.f32.gmra.mxu0 %v9087
  %v9909 = vpop.f32.mrf.mxu0
  %v9910 = vadd.f32 0.0, %v9909
  %v9911 = vpop.f32.mrf.mxu0
  %9912 = vmatprep.mubr.f32.mxu0 0.0
  %9913 = vmatmul.mubr.f32.gmra.mxu0 %v9090
  %v9914 = vpop.f32.mrf.mxu0
  %v9915 = vadd.f32 0.0, %v9914
  %v9916 = vpop.f32.mrf.mxu0
  %9917 = vmatprep.mubr.f32.mxu0 0.0
  %9918 = vmatmul.mubr.f32.gmra.mxu0 %v9093
  %v9919 = vpop.f32.mrf.mxu0
  %v9920 = vadd.f32 0.0, %v9919
  %v9921 = vpop.f32.mrf.mxu0
  %9922 = vmatprep.mubr.f32.mxu0 0.0
  %9923 = vmatmul.mubr.f32.gmra.mxu0 %v9096
  %v9924 = vpop.f32.mrf.mxu0
  %v9925 = vadd.f32 0.0, %v9924
  %v9926 = vpop.f32.mrf.mxu0
  %9927 = vmatprep.mubr.f32.mxu0 0.0
  %9928 = vmatmul.mubr.f32.gmra.mxu0 %v9099
  %v9929 = vpop.f32.mrf.mxu0
  %v9930 = vadd.f32 0.0, %v9929
  %v9931 = vpop.f32.mrf.mxu0
  %9932 = vmatprep.mubr.f32.mxu0 0.0
  %9933 = vmatmul.mubr.f32.gmra.mxu0 %v9102
  %v9934 = vpop.f32.mrf.mxu0
  %v9935 = vadd.f32 0.0, %v9934
  %v9936 = vpop.f32.mrf.mxu0
  %9937 = vmatprep.mubr.f32.mxu0 0.0
  %9938 = vmatmul.mubr.f32.gmra.mxu0 %v9105
  %v9939 = vpop.f32.mrf.mxu0
  %v9940 = vadd.f32 0.0, %v9939
  %v9941 = vpop.f32.mrf.mxu0
  %9942 = vmatprep.mubr.f32.mxu0 0.0
  %9943 = vmatmul.mubr.f32.gmra.mxu0 %v9108
  %v9944 = vpop.f32.mrf.mxu0
  %v9945 = vadd.f32 0.0, %v9944
  %v9946 = vpop.f32.mrf.mxu0
  %9947 = vmatprep.mubr.f32.mxu0 0.0
  %9948 = vmatmul.mubr.f32.gmra.mxu0 %v9111
  %v9949 = vpop.f32.mrf.mxu0
  %v9950 = vadd.f32 0.0, %v9949
  %v9951 = vpop.f32.mrf.mxu0
  %9952 = vmatprep.mubr.f32.mxu0 0.0
  %9953 = vmatmul.mubr.f32.gmra.mxu0 %v9114
  %v9954 = vpop.f32.mrf.mxu0
  %v9955 = vadd.f32 0.0, %v9954
  %v9956 = vpop.f32.mrf.mxu0
  %9957 = vmatprep.mubr.f32.mxu0 0.0
  %9958 = vmatmul.mubr.f32.gmra.mxu0 %v9117
  %v9959 = vpop.f32.mrf.mxu0
  %v9960 = vadd.f32 0.0, %v9959
  %v9961 = vpop.f32.mrf.mxu0
  %9962 = vmatprep.mubr.f32.mxu0 0.0
  %9963 = vmatmul.mubr.f32.gmra.mxu0 %v9120
  %v9964 = vpop.f32.mrf.mxu0
  %v9965 = vadd.f32 0.0, %v9964
  %v9966 = vpop.f32.mrf.mxu0
  %9967 = vmatprep.mubr.f32.mxu0 0.0
  %9968 = vmatmul.mubr.f32.gmra.mxu0 %v9123
  %v9969 = vpop.f32.mrf.mxu0
  %v9970 = vadd.f32 0.0, %v9969
  %v9971 = vpop.f32.mrf.mxu0
  %9972 = vmatprep.mubr.f32.mxu0 0.0
  %9973 = vmatmul.mubr.f32.gmra.mxu0 %v9126
  %v9974 = vpop.f32.mrf.mxu0
  %v9975 = vadd.f32 0.0, %v9974
  %v9976 = vpop.f32.mrf.mxu0
  %9977 = vmatprep.mubr.f32.mxu0 0.0
  %9978 = vmatmul.mubr.f32.gmra.mxu0 %v9129
  %v9979 = vpop.f32.mrf.mxu0
  %v9980 = vadd.f32 0.0, %v9979
  %v9981 = vpop.f32.mrf.mxu0
  %9982 = vmatprep.mubr.f32.mxu0 0.0
  %9983 = vmatmul.mubr.f32.gmra.mxu0 %v9132
  %v9984 = vpop.f32.mrf.mxu0
  %v9985 = vadd.f32 0.0, %v9984
  %v9986 = vpop.f32.mrf.mxu0
  %9987 = vmatprep.mubr.f32.mxu0 0.0
  %9988 = vmatmul.mubr.f32.gmra.mxu0 %v9135
  %v9989 = vpop.f32.mrf.mxu0
  %v9990 = vadd.f32 0.0, %v9989
  %v9991 = vpop.f32.mrf.mxu0
  %9992 = vmatprep.mubr.f32.mxu0 0.0
  %9993 = vmatmul.mubr.f32.gmra.mxu0 %v9138
  %v9994 = vpop.f32.mrf.mxu0
  %v9995 = vadd.f32 0.0, %v9994
  %v9996 = vpop.f32.mrf.mxu0
  %9997 = vmatprep.mubr.f32.mxu0 0.0
  %9998 = vmatmul.mubr.f32.gmra.mxu0 %v9141
  %v9999 = vpop.f32.mrf.mxu0
  %v10000 = vadd.f32 0.0, %v9999
  %v10001 = vpop.f32.mrf.mxu0
  %10002 = vmatprep.mubr.f32.mxu0 0.0
  %10003 = vmatmul.mubr.f32.gmra.mxu0 %v9144
  %v10004 = vpop.f32.mrf.mxu0
  %v10005 = vadd.f32 0.0, %v10004
  %v10006 = vpop.f32.mrf.mxu0
  %10007 = vmatprep.mubr.f32.mxu0 0.0
  %10008 = vmatmul.mubr.f32.gmra.mxu0 %v9147
  %v10009 = vpop.f32.mrf.mxu0
  %v10010 = vadd.f32 0.0, %v10009
  %v10011 = vpop.f32.mrf.mxu0
  %10012 = vmatprep.mubr.f32.mxu0 0.0
  %10013 = vmatmul.mubr.f32.gmra.mxu0 %v9150
  %v10014 = vpop.f32.mrf.mxu0
  %v10015 = vadd.f32 0.0, %v10014
  %v10016 = vpop.f32.mrf.mxu0
  %10017 = vmatprep.mubr.f32.mxu0 0.0
  %10018 = vmatmul.mubr.f32.gmra.mxu0 %v9153
  %v10019 = vpop.f32.mrf.mxu0
  %v10020 = vadd.f32 0.0, %v10019
  %v10021 = vpop.f32.mrf.mxu0
  %10022 = vmatprep.mubr.f32.mxu0 0.0
  %10023 = vmatmul.mubr.f32.gmra.mxu0 %v9156
  %v10024 = vpop.f32.mrf.mxu0
  %v10025 = vadd.f32 0.0, %v10024
  %v10026 = vpop.f32.mrf.mxu0
  %10027 = vmatprep.mubr.f32.mxu0 0.0
  %10028 = vmatmul.mubr.f32.gmra.mxu0 %v9159
  %v10029 = vpop.f32.mrf.mxu0
  %v10030 = vadd.f32 0.0, %v10029
  %v10031 = vpop.f32.mrf.mxu0
  %10032 = vmatprep.mubr.f32.mxu0 0.0
  %10033 = vmatmul.mubr.f32.gmra.mxu0 %v9162
  %v10034 = vpop.f32.mrf.mxu0
  %v10035 = vadd.f32 0.0, %v10034
  %v10036 = vpop.f32.mrf.mxu0
  %10037 = vmatprep.mubr.f32.mxu0 0.0
  %10038 = vmatmul.mubr.f32.gmra.mxu0 %v9165
  %v10039 = vpop.f32.mrf.mxu0
  %v10040 = vadd.f32 0.0, %v10039
  %v10041 = vpop.f32.mrf.mxu0
  %10042 = vmatprep.mubr.f32.mxu0 0.0
  %10043 = vmatmul.mubr.f32.gmra.mxu0 %v9168
  %v10044 = vpop.f32.mrf.mxu0
  %v10045 = vadd.f32 0.0, %v10044
  %v10046 = vpop.f32.mrf.mxu0
  %10047 = vmatprep.mubr.f32.mxu0 0.0
  %10048 = vmatmul.mubr.f32.gmra.mxu0 %v9171
  %v10049 = vpop.f32.mrf.mxu0
  %v10050 = vadd.f32 0.0, %v10049
  %v10051 = vpop.f32.mrf.mxu0
  %10052 = vmatprep.mubr.f32.mxu0 0.0
  %10053 = vmatmul.mubr.f32.gmra.mxu0 %v9174
  %v10054 = vpop.f32.mrf.mxu0
  %v10055 = vadd.f32 0.0, %v10054
  %v10056 = vpop.f32.mrf.mxu0
  %10057 = vmatprep.mubr.f32.mxu0 0.0
  %10058 = vmatmul.mubr.f32.gmra.mxu0 %v9177
  %v10059 = vpop.f32.mrf.mxu0
  %v10060 = vadd.f32 0.0, %v10059
  %v10061 = vpop.f32.mrf.mxu0
  %10062 = vmatprep.mubr.f32.mxu0 0.0
  %10063 = vmatmul.mubr.f32.gmra.mxu0 %v9180
  %v10064 = vpop.f32.mrf.mxu0
  %v10065 = vadd.f32 0.0, %v10064
  %v10066 = vpop.f32.mrf.mxu0
  %10067 = vmatprep.mubr.f32.mxu0 0.0
  %10068 = vmatmul.mubr.f32.gmra.mxu0 %v9183
  %v10069 = vpop.f32.mrf.mxu0
  %v10070 = vadd.f32 0.0, %v10069
  %v10071 = vpop.f32.mrf.mxu0
  %10072 = vmatprep.mubr.f32.mxu0 0.0
  %10073 = vmatmul.mubr.f32.gmra.mxu0 %v9186
  %v10074 = vpop.f32.mrf.mxu0
  %v10075 = vadd.f32 0.0, %v10074
  %v10076 = vpop.f32.mrf.mxu0
  %10077 = vdwg.mxu0
  %10118 = vrot.lane.b32.xlu0 %v9880, 1
  %v10119 = vpop.permute.xlu0 %10118
  %10120 = vrot.lane.b32.xlu0 %v9885, 1
  %v10121 = vpop.permute.xlu0 %10120
  %10122 = vrot.lane.b32.xlu0 %v9890, 1
  %v10123 = vpop.permute.xlu0 %10122
  %10124 = vrot.lane.b32.xlu0 %v9895, 1
  %v10125 = vpop.permute.xlu0 %10124
  %10126 = vrot.lane.b32.xlu0 %v9900, 1
  %v10127 = vpop.permute.xlu0 %10126
  %10128 = vrot.lane.b32.xlu0 %v9905, 1
  %v10129 = vpop.permute.xlu0 %10128
  %10130 = vrot.lane.b32.xlu0 %v9910, 1
  %v10131 = vpop.permute.xlu0 %10130
  %10132 = vrot.lane.b32.xlu0 %v9915, 1
  %v10133 = vpop.permute.xlu0 %10132
  %10134 = vrot.lane.b32.xlu0 %v9920, 1
  %v10135 = vpop.permute.xlu0 %10134
  %10136 = vrot.lane.b32.xlu0 %v9925, 1
  %v10137 = vpop.permute.xlu0 %10136
  %10138 = vrot.lane.b32.xlu0 %v9930, 1
  %v10139 = vpop.permute.xlu0 %10138
  %10140 = vrot.lane.b32.xlu0 %v9935, 1
  %v10141 = vpop.permute.xlu0 %10140
  %10142 = vrot.lane.b32.xlu0 %v9940, 1
  %v10143 = vpop.permute.xlu0 %10142
  %10144 = vrot.lane.b32.xlu0 %v9945, 1
  %v10145 = vpop.permute.xlu0 %10144
  %10146 = vrot.lane.b32.xlu0 %v9950, 1
  %v10147 = vpop.permute.xlu0 %10146
  %10148 = vrot.lane.b32.xlu0 %v9955, 1
  %v10149 = vpop.permute.xlu0 %10148
  %10150 = vrot.lane.b32.xlu0 %v9960, 1
  %v10151 = vpop.permute.xlu0 %10150
  %10152 = vrot.lane.b32.xlu0 %v9965, 1
  %v10153 = vpop.permute.xlu0 %10152
  %10154 = vrot.lane.b32.xlu0 %v9970, 1
  %v10155 = vpop.permute.xlu0 %10154
  %10156 = vrot.lane.b32.xlu0 %v9975, 1
  %v10157 = vpop.permute.xlu0 %10156
  %10158 = vrot.lane.b32.xlu0 %v9980, 1
  %v10159 = vpop.permute.xlu0 %10158
  %10160 = vrot.lane.b32.xlu0 %v9985, 1
  %v10161 = vpop.permute.xlu0 %10160
  %10162 = vrot.lane.b32.xlu0 %v9990, 1
  %v10163 = vpop.permute.xlu0 %10162
  %10164 = vrot.lane.b32.xlu0 %v9995, 1
  %v10165 = vpop.permute.xlu0 %10164
  %10166 = vrot.lane.b32.xlu0 %v10000, 1
  %v10167 = vpop.permute.xlu0 %10166
  %10168 = vrot.lane.b32.xlu0 %v10005, 1
  %v10169 = vpop.permute.xlu0 %10168
  %10170 = vrot.lane.b32.xlu0 %v10010, 1
  %v10171 = vpop.permute.xlu0 %10170
  %10172 = vrot.lane.b32.xlu0 %v10015, 1
  %v10173 = vpop.permute.xlu0 %10172
  %10174 = vrot.lane.b32.xlu0 %v10020, 1
  %v10175 = vpop.permute.xlu0 %10174
  %10176 = vrot.lane.b32.xlu0 %v10025, 1
  %v10177 = vpop.permute.xlu0 %10176
  %10178 = vrot.lane.b32.xlu0 %v10030, 1
  %v10179 = vpop.permute.xlu0 %10178
  %10180 = vrot.lane.b32.xlu0 %v10035, 1
  %v10181 = vpop.permute.xlu0 %10180
  %10182 = vrot.lane.b32.xlu0 %v10040, 1
  %v10183 = vpop.permute.xlu0 %10182
  %10184 = vrot.lane.b32.xlu0 %v10045, 1
  %v10185 = vpop.permute.xlu0 %10184
  %10186 = vrot.lane.b32.xlu0 %v10050, 1
  %v10187 = vpop.permute.xlu0 %10186
  %10188 = vrot.lane.b32.xlu0 %v10055, 1
  %v10189 = vpop.permute.xlu0 %10188
  %10190 = vrot.lane.b32.xlu0 %v10060, 1
  %v10191 = vpop.permute.xlu0 %10190
  %10192 = vrot.lane.b32.xlu0 %v10065, 1
  %v10193 = vpop.permute.xlu0 %10192
  %10194 = vrot.lane.b32.xlu0 %v10070, 1
  %v10195 = vpop.permute.xlu0 %10194
  %10196 = vrot.lane.b32.xlu0 %v10075, 1
  %v10197 = vpop.permute.xlu0 %10196
  %v10238 = vadd.f32 %v8829, %v10119
  %v10239 = vadd.f32 %v8834, %v10121
  %v10240 = vadd.f32 %v8839, %v10123
  %v10241 = vadd.f32 %v8844, %v10125
  %v10242 = vadd.f32 %v8849, %v10127
  %v10243 = vadd.f32 %v8854, %v10129
  %v10244 = vadd.f32 %v8859, %v10131
  %v10245 = vadd.f32 %v8864, %v10133
  %v10246 = vadd.f32 %v8869, %v10135
  %v10247 = vadd.f32 %v8874, %v10137
  %v10248 = vadd.f32 %v8879, %v10139
  %v10249 = vadd.f32 %v8884, %v10141
  %v10250 = vadd.f32 %v8889, %v10143
  %v10251 = vadd.f32 %v8894, %v10145
  %v10252 = vadd.f32 %v8899, %v10147
  %v10253 = vadd.f32 %v8904, %v10149
  %v10254 = vadd.f32 %v8909, %v10151
  %v10255 = vadd.f32 %v8914, %v10153
  %v10256 = vadd.f32 %v8919, %v10155
  %v10257 = vadd.f32 %v8924, %v10157
  %v10258 = vadd.f32 %v8929, %v10159
  %v10259 = vadd.f32 %v8934, %v10161
  %v10260 = vadd.f32 %v8939, %v10163
  %v10261 = vadd.f32 %v8944, %v10165
  %v10262 = vadd.f32 %v8949, %v10167
  %v10263 = vadd.f32 %v8954, %v10169
  %v10264 = vadd.f32 %v8959, %v10171
  %v10265 = vadd.f32 %v8964, %v10173
  %v10266 = vadd.f32 %v8969, %v10175
  %v10267 = vadd.f32 %v8974, %v10177
  %v10268 = vadd.f32 %v8979, %v10179
  %v10269 = vadd.f32 %v8984, %v10181
  %v10270 = vadd.f32 %v8989, %v10183
  %v10271 = vadd.f32 %v8994, %v10185
  %v10272 = vadd.f32 %v8999, %v10187
  %v10273 = vadd.f32 %v9004, %v10189
  %v10274 = vadd.f32 %v9009, %v10191
  %v10275 = vadd.f32 %v9014, %v10193
  %v10276 = vadd.f32 %v9019, %v10195
  %v10277 = vadd.f32 %v9024, %v10197
  %10318 = vrot.lane.b32.xlu0 %v9493, 1
  %v10319 = vpop.permute.xlu0 %10318
  %10320 = vrot.lane.b32.xlu0 %v9494, 1
  %v10321 = vpop.permute.xlu0 %10320
  %10322 = vrot.lane.b32.xlu0 %v9495, 1
  %v10323 = vpop.permute.xlu0 %10322
  %10324 = vrot.lane.b32.xlu0 %v9496, 1
  %v10325 = vpop.permute.xlu0 %10324
  %10326 = vrot.lane.b32.xlu0 %v9497, 1
  %v10327 = vpop.permute.xlu0 %10326
  %10328 = vrot.lane.b32.xlu0 %v9498, 1
  %v10329 = vpop.permute.xlu0 %10328
  %10330 = vrot.lane.b32.xlu0 %v9499, 1
  %v10331 = vpop.permute.xlu0 %10330
  %10332 = vrot.lane.b32.xlu0 %v9500, 1
  %v10333 = vpop.permute.xlu0 %10332
  %10334 = vrot.lane.b32.xlu0 %v9501, 1
  %v10335 = vpop.permute.xlu0 %10334
  %10336 = vrot.lane.b32.xlu0 %v9502, 1
  %v10337 = vpop.permute.xlu0 %10336
  %10338 = vrot.lane.b32.xlu0 %v9503, 1
  %v10339 = vpop.permute.xlu0 %10338
  %10340 = vrot.lane.b32.xlu0 %v9504, 1
  %v10341 = vpop.permute.xlu0 %10340
  %10342 = vrot.lane.b32.xlu0 %v9505, 1
  %v10343 = vpop.permute.xlu0 %10342
  %10344 = vrot.lane.b32.xlu0 %v9506, 1
  %v10345 = vpop.permute.xlu0 %10344
  %10346 = vrot.lane.b32.xlu0 %v9507, 1
  %v10347 = vpop.permute.xlu0 %10346
  %10348 = vrot.lane.b32.xlu0 %v9508, 1
  %v10349 = vpop.permute.xlu0 %10348
  %10350 = vrot.lane.b32.xlu0 %v9509, 1
  %v10351 = vpop.permute.xlu0 %10350
  %10352 = vrot.lane.b32.xlu0 %v9510, 1
  %v10353 = vpop.permute.xlu0 %10352
  %10354 = vrot.lane.b32.xlu0 %v9511, 1
  %v10355 = vpop.permute.xlu0 %10354
  %10356 = vrot.lane.b32.xlu0 %v9512, 1
  %v10357 = vpop.permute.xlu0 %10356
  %10358 = vrot.lane.b32.xlu0 %v9513, 1
  %v10359 = vpop.permute.xlu0 %10358
  %10360 = vrot.lane.b32.xlu0 %v9514, 1
  %v10361 = vpop.permute.xlu0 %10360
  %10362 = vrot.lane.b32.xlu0 %v9515, 1
  %v10363 = vpop.permute.xlu0 %10362
  %10364 = vrot.lane.b32.xlu0 %v9516, 1
  %v10365 = vpop.permute.xlu0 %10364
  %10366 = vrot.lane.b32.xlu0 %v9517, 1
  %v10367 = vpop.permute.xlu0 %10366
  %10368 = vrot.lane.b32.xlu0 %v9518, 1
  %v10369 = vpop.permute.xlu0 %10368
  %10370 = vrot.lane.b32.xlu0 %v9519, 1
  %v10371 = vpop.permute.xlu0 %10370
  %10372 = vrot.lane.b32.xlu0 %v9520, 1
  %v10373 = vpop.permute.xlu0 %10372
  %10374 = vrot.lane.b32.xlu0 %v9521, 1
  %v10375 = vpop.permute.xlu0 %10374
  %10376 = vrot.lane.b32.xlu0 %v9522, 1
  %v10377 = vpop.permute.xlu0 %10376
  %10378 = vrot.lane.b32.xlu0 %v9523, 1
  %v10379 = vpop.permute.xlu0 %10378
  %10380 = vrot.lane.b32.xlu0 %v9524, 1
  %v10381 = vpop.permute.xlu0 %10380
  %10382 = vrot.lane.b32.xlu0 %v9525, 1
  %v10383 = vpop.permute.xlu0 %10382
  %10384 = vrot.lane.b32.xlu0 %v9526, 1
  %v10385 = vpop.permute.xlu0 %10384
  %10386 = vrot.lane.b32.xlu0 %v9527, 1
  %v10387 = vpop.permute.xlu0 %10386
  %10388 = vrot.lane.b32.xlu0 %v9528, 1
  %v10389 = vpop.permute.xlu0 %10388
  %10390 = vrot.lane.b32.xlu0 %v9529, 1
  %v10391 = vpop.permute.xlu0 %10390
  %10392 = vrot.lane.b32.xlu0 %v9530, 1
  %v10393 = vpop.permute.xlu0 %10392
  %10394 = vrot.lane.b32.xlu0 %v9531, 1
  %v10395 = vpop.permute.xlu0 %10394
  %10396 = vrot.lane.b32.xlu0 %v9532, 1
  %v10397 = vpop.permute.xlu0 %10396
  %v10438 = vadd.f32 %v10238, %v10319
  %v10439 = vadd.f32 %v10239, %v10321
  %v10440 = vadd.f32 %v10240, %v10323
  %v10441 = vadd.f32 %v10241, %v10325
  %v10442 = vadd.f32 %v10242, %v10327
  %v10443 = vadd.f32 %v10243, %v10329
  %v10444 = vadd.f32 %v10244, %v10331
  %v10445 = vadd.f32 %v10245, %v10333
  %v10446 = vadd.f32 %v10246, %v10335
  %v10447 = vadd.f32 %v10247, %v10337
  %v10448 = vadd.f32 %v10248, %v10339
  %v10449 = vadd.f32 %v10249, %v10341
  %v10450 = vadd.f32 %v10250, %v10343
  %v10451 = vadd.f32 %v10251, %v10345
  %v10452 = vadd.f32 %v10252, %v10347
  %v10453 = vadd.f32 %v10253, %v10349
  %v10454 = vadd.f32 %v10254, %v10351
  %v10455 = vadd.f32 %v10255, %v10353
  %v10456 = vadd.f32 %v10256, %v10355
  %v10457 = vadd.f32 %v10257, %v10357
  %v10458 = vadd.f32 %v10258, %v10359
  %v10459 = vadd.f32 %v10259, %v10361
  %v10460 = vadd.f32 %v10260, %v10363
  %v10461 = vadd.f32 %v10261, %v10365
  %v10462 = vadd.f32 %v10262, %v10367
  %v10463 = vadd.f32 %v10263, %v10369
  %v10464 = vadd.f32 %v10264, %v10371
  %v10465 = vadd.f32 %v10265, %v10373
  %v10466 = vadd.f32 %v10266, %v10375
  %v10467 = vadd.f32 %v10267, %v10377
  %v10468 = vadd.f32 %v10268, %v10379
  %v10469 = vadd.f32 %v10269, %v10381
  %v10470 = vadd.f32 %v10270, %v10383
  %v10471 = vadd.f32 %v10271, %v10385
  %v10472 = vadd.f32 %v10272, %v10387
  %v10473 = vadd.f32 %v10273, %v10389
  %v10474 = vadd.f32 %v10274, %v10391
  %v10475 = vadd.f32 %v10275, %v10393
  %v10476 = vadd.f32 %v10276, %v10395
  %v10477 = vadd.f32 %v10277, %v10397
  %v10478 = vxor.u32 %v10438, 2147483648
  %v10479 = vxor.u32 %v10439, 2147483648
  %v10480 = vxor.u32 %v10440, 2147483648
  %v10481 = vxor.u32 %v10441, 2147483648
  %v10482 = vxor.u32 %v10442, 2147483648
  %v10483 = vxor.u32 %v10443, 2147483648
  %v10484 = vxor.u32 %v10444, 2147483648
  %v10485 = vxor.u32 %v10445, 2147483648
  %v10486 = vxor.u32 %v10446, 2147483648
  %v10487 = vxor.u32 %v10447, 2147483648
  %v10488 = vmul.f32 %v10478, 1.442695
  %v10489 = vpow.pop %v10488
  %v10490 = vmul.f32 %v10479, 1.442695
  %v10491 = vpow.pop %v10490
  %v10492 = vmul.f32 %v10480, 1.442695
  %v10493 = vpow.pop %v10492
  %v10494 = vmul.f32 %v10481, 1.442695
  %v10495 = vpow.pop %v10494
  %v10496 = vmul.f32 %v10482, 1.442695
  %v10497 = vpow.pop %v10496
  %v10498 = vmul.f32 %v10483, 1.442695
  %v10499 = vpow.pop %v10498
  %v10500 = vmul.f32 %v10484, 1.442695
  %v10501 = vpow.pop %v10500
  %v10502 = vmul.f32 %v10485, 1.442695
  %v10503 = vpow.pop %v10502
  %v10504 = vmul.f32 %v10486, 1.442695
  %v10505 = vpow.pop %v10504
  %v10506 = vmul.f32 %v10487, 1.442695
  %v10507 = vpow.pop %v10506
  %v10508 = vadd.f32 %v10489, 1.0
  %v10509 = vadd.f32 %v10491, 1.0
  %v10510 = vadd.f32 %v10493, 1.0
  %v10511 = vadd.f32 %v10495, 1.0
  %v10512 = vadd.f32 %v10497, 1.0
  %v10513 = vadd.f32 %v10499, 1.0
  %v10514 = vadd.f32 %v10501, 1.0
  %v10515 = vadd.f32 %v10503, 1.0
  %v10516 = vadd.f32 %v10505, 1.0
  %v10517 = vadd.f32 %v10507, 1.0
  %v10518 = vrcp.pop %v10508
  %v10519 = vmul.f32 1.0, %v10518
  %v10520 = vrcp.pop %v10509
  %v10521 = vmul.f32 1.0, %v10520
  %v10522 = vrcp.pop %v10510
  %v10523 = vmul.f32 1.0, %v10522
  %v10524 = vrcp.pop %v10511
  %v10525 = vmul.f32 1.0, %v10524
  %v10526 = vrcp.pop %v10512
  %v10527 = vmul.f32 1.0, %v10526
  %v10528 = vrcp.pop %v10513
  %v10529 = vmul.f32 1.0, %v10528
  %v10530 = vrcp.pop %v10514
  %v10531 = vmul.f32 1.0, %v10530
  %v10532 = vrcp.pop %v10515
  %v10533 = vmul.f32 1.0, %v10532
  %v10534 = vrcp.pop %v10516
  %v10535 = vmul.f32 1.0, %v10534
  %v10536 = vrcp.pop %v10517
  %v10537 = vmul.f32 1.0, %v10536
  %v10538 = vxor.u32 %v10448, 2147483648
  %v10539 = vxor.u32 %v10449, 2147483648
  %v10540 = vxor.u32 %v10450, 2147483648
  %v10541 = vxor.u32 %v10451, 2147483648
  %v10542 = vxor.u32 %v10452, 2147483648
  %v10543 = vxor.u32 %v10453, 2147483648
  %v10544 = vxor.u32 %v10454, 2147483648
  %v10545 = vxor.u32 %v10455, 2147483648
  %v10546 = vxor.u32 %v10456, 2147483648
  %v10547 = vxor.u32 %v10457, 2147483648
  %v10548 = vmul.f32 %v10538, 1.442695
  %v10549 = vpow.pop %v10548
  %v10550 = vmul.f32 %v10539, 1.442695
  %v10551 = vpow.pop %v10550
  %v10552 = vmul.f32 %v10540, 1.442695
  %v10553 = vpow.pop %v10552
  %v10554 = vmul.f32 %v10541, 1.442695
  %v10555 = vpow.pop %v10554
  %v10556 = vmul.f32 %v10542, 1.442695
  %v10557 = vpow.pop %v10556
  %v10558 = vmul.f32 %v10543, 1.442695
  %v10559 = vpow.pop %v10558
  %v10560 = vmul.f32 %v10544, 1.442695
  %v10561 = vpow.pop %v10560
  %v10562 = vmul.f32 %v10545, 1.442695
  %v10563 = vpow.pop %v10562
  %v10564 = vmul.f32 %v10546, 1.442695
  %v10565 = vpow.pop %v10564
  %v10566 = vmul.f32 %v10547, 1.442695
  %v10567 = vpow.pop %v10566
  %v10568 = vadd.f32 %v10549, 1.0
  %v10569 = vadd.f32 %v10551, 1.0
  %v10570 = vadd.f32 %v10553, 1.0
  %v10571 = vadd.f32 %v10555, 1.0
  %v10572 = vadd.f32 %v10557, 1.0
  %v10573 = vadd.f32 %v10559, 1.0
  %v10574 = vadd.f32 %v10561, 1.0
  %v10575 = vadd.f32 %v10563, 1.0
  %v10576 = vadd.f32 %v10565, 1.0
  %v10577 = vadd.f32 %v10567, 1.0
  %v10578 = vrcp.pop %v10568
  %v10579 = vmul.f32 1.0, %v10578
  %v10580 = vrcp.pop %v10569
  %v10581 = vmul.f32 1.0, %v10580
  %v10582 = vrcp.pop %v10570
  %v10583 = vmul.f32 1.0, %v10582
  %v10584 = vrcp.pop %v10571
  %v10585 = vmul.f32 1.0, %v10584
  %v10586 = vrcp.pop %v10572
  %v10587 = vmul.f32 1.0, %v10586
  %v10588 = vrcp.pop %v10573
  %v10589 = vmul.f32 1.0, %v10588
  %v10590 = vrcp.pop %v10574
  %v10591 = vmul.f32 1.0, %v10590
  %v10592 = vrcp.pop %v10575
  %v10593 = vmul.f32 1.0, %v10592
  %v10594 = vrcp.pop %v10576
  %v10595 = vmul.f32 1.0, %v10594
  %v10596 = vrcp.pop %v10577
  %v10597 = vmul.f32 1.0, %v10596
  %v10598 = vtanh.pop %v10458
  %v10599 = vtanh.pop %v10459
  %v10600 = vtanh.pop %v10460
  %v10601 = vtanh.pop %v10461
  %v10602 = vtanh.pop %v10462
  %v10603 = vtanh.pop %v10463
  %v10604 = vtanh.pop %v10464
  %v10605 = vtanh.pop %v10465
  %v10606 = vtanh.pop %v10466
  %v10607 = vtanh.pop %v10467
  %v10608 = vxor.u32 %v10468, 2147483648
  %v10609 = vxor.u32 %v10469, 2147483648
  %v10610 = vxor.u32 %v10470, 2147483648
  %v10611 = vxor.u32 %v10471, 2147483648
  %v10612 = vxor.u32 %v10472, 2147483648
  %v10613 = vxor.u32 %v10473, 2147483648
  %v10614 = vxor.u32 %v10474, 2147483648
  %v10615 = vxor.u32 %v10475, 2147483648
  %v10616 = vxor.u32 %v10476, 2147483648
  %v10617 = vxor.u32 %v10477, 2147483648
  %v10618 = vmul.f32 %v10608, 1.442695
  %v10619 = vpow.pop %v10618
  %v10620 = vmul.f32 %v10609, 1.442695
  %v10621 = vpow.pop %v10620
  %v10622 = vmul.f32 %v10610, 1.442695
  %v10623 = vpow.pop %v10622
  %v10624 = vmul.f32 %v10611, 1.442695
  %v10625 = vpow.pop %v10624
  %v10626 = vmul.f32 %v10612, 1.442695
  %v10627 = vpow.pop %v10626
  %v10628 = vmul.f32 %v10613, 1.442695
  %v10629 = vpow.pop %v10628
  %v10630 = vmul.f32 %v10614, 1.442695
  %v10631 = vpow.pop %v10630
  %v10632 = vmul.f32 %v10615, 1.442695
  %v10633 = vpow.pop %v10632
  %v10634 = vmul.f32 %v10616, 1.442695
  %v10635 = vpow.pop %v10634
  %v10636 = vmul.f32 %v10617, 1.442695
  %v10637 = vpow.pop %v10636
  %v10638 = vadd.f32 %v10619, 1.0
  %v10639 = vadd.f32 %v10621, 1.0
  %v10640 = vadd.f32 %v10623, 1.0
  %v10641 = vadd.f32 %v10625, 1.0
  %v10642 = vadd.f32 %v10627, 1.0
  %v10643 = vadd.f32 %v10629, 1.0
  %v10644 = vadd.f32 %v10631, 1.0
  %v10645 = vadd.f32 %v10633, 1.0
  %v10646 = vadd.f32 %v10635, 1.0
  %v10647 = vadd.f32 %v10637, 1.0
  %v10648 = vrcp.pop %v10638
  %v10649 = vmul.f32 1.0, %v10648
  %v10650 = vrcp.pop %v10639
  %v10651 = vmul.f32 1.0, %v10650
  %v10652 = vrcp.pop %v10640
  %v10653 = vmul.f32 1.0, %v10652
  %v10654 = vrcp.pop %v10641
  %v10655 = vmul.f32 1.0, %v10654
  %v10656 = vrcp.pop %v10642
  %v10657 = vmul.f32 1.0, %v10656
  %v10658 = vrcp.pop %v10643
  %v10659 = vmul.f32 1.0, %v10658
  %v10660 = vrcp.pop %v10644
  %v10661 = vmul.f32 1.0, %v10660
  %v10662 = vrcp.pop %v10645
  %v10663 = vmul.f32 1.0, %v10662
  %v10664 = vrcp.pop %v10646
  %v10665 = vmul.f32 1.0, %v10664
  %v10666 = vrcp.pop %v10647
  %v10667 = vmul.f32 1.0, %v10666
  %10678 = vrot.lane.b32.xlu0 %v9783, 1
  %v10679 = vpop.permute.xlu0 %10678
  %10680 = vrot.lane.b32.xlu0 %v9784, 1
  %v10681 = vpop.permute.xlu0 %10680
  %10682 = vrot.lane.b32.xlu0 %v9785, 1
  %v10683 = vpop.permute.xlu0 %10682
  %10684 = vrot.lane.b32.xlu0 %v9786, 1
  %v10685 = vpop.permute.xlu0 %10684
  %10686 = vrot.lane.b32.xlu0 %v9787, 1
  %v10687 = vpop.permute.xlu0 %10686
  %10688 = vrot.lane.b32.xlu0 %v9788, 1
  %v10689 = vpop.permute.xlu0 %10688
  %10690 = vrot.lane.b32.xlu0 %v9789, 1
  %v10691 = vpop.permute.xlu0 %10690
  %10692 = vrot.lane.b32.xlu0 %v9790, 1
  %v10693 = vpop.permute.xlu0 %10692
  %10694 = vrot.lane.b32.xlu0 %v9791, 1
  %v10695 = vpop.permute.xlu0 %10694
  %10696 = vrot.lane.b32.xlu0 %v9792, 1
  %v10697 = vpop.permute.xlu0 %10696
  %v10708 = vmul.f32 %v10579, %v10679
  %v10709 = vmul.f32 %v10581, %v10681
  %v10710 = vmul.f32 %v10583, %v10683
  %v10711 = vmul.f32 %v10585, %v10685
  %v10712 = vmul.f32 %v10587, %v10687
  %v10713 = vmul.f32 %v10589, %v10689
  %v10714 = vmul.f32 %v10591, %v10691
  %v10715 = vmul.f32 %v10593, %v10693
  %v10716 = vmul.f32 %v10595, %v10695
  %v10717 = vmul.f32 %v10597, %v10697
  %v10718 = vmul.f32 %v10519, %v10598
  %v10719 = vmul.f32 %v10521, %v10599
  %v10720 = vmul.f32 %v10523, %v10600
  %v10721 = vmul.f32 %v10525, %v10601
  %v10722 = vmul.f32 %v10527, %v10602
  %v10723 = vmul.f32 %v10529, %v10603
  %v10724 = vmul.f32 %v10531, %v10604
  %v10725 = vmul.f32 %v10533, %v10605
  %v10726 = vmul.f32 %v10535, %v10606
  %v10727 = vmul.f32 %v10537, %v10607
  %v10728 = vadd.f32 %v10708, %v10718
  %v10729 = vadd.f32 %v10709, %v10719
  %v10730 = vadd.f32 %v10710, %v10720
  %v10731 = vadd.f32 %v10711, %v10721
  %v10732 = vadd.f32 %v10712, %v10722
  %v10733 = vadd.f32 %v10713, %v10723
  %v10734 = vadd.f32 %v10714, %v10724
  %v10735 = vadd.f32 %v10715, %v10725
  %v10736 = vadd.f32 %v10716, %v10726
  %v10737 = vadd.f32 %v10717, %v10727
  %v10738 = vtanh.pop %v10728
  %v10739 = vtanh.pop %v10729
  %v10740 = vtanh.pop %v10730
  %v10741 = vtanh.pop %v10731
  %v10742 = vtanh.pop %v10732
  %v10743 = vtanh.pop %v10733
  %v10744 = vtanh.pop %v10734
  %v10745 = vtanh.pop %v10735
  %v10746 = vtanh.pop %v10736
  %v10747 = vtanh.pop %v10737
  %v10748 = vmul.f32 %v10649, %v10738
  %v10749 = vmul.f32 %v10651, %v10739
  %v10750 = vmul.f32 %v10653, %v10740
  %v10751 = vmul.f32 %v10655, %v10741
  %v10752 = vmul.f32 %v10657, %v10742
  %v10753 = vmul.f32 %v10659, %v10743
  %v10754 = vmul.f32 %v10661, %v10744
  %v10755 = vmul.f32 %v10663, %v10745
  %v10756 = vmul.f32 %v10665, %v10746
  %v10757 = vmul.f32 %v10667, %v10747
  %10768 = vrot.lane.b32.xlu0 %v10748, 127
  %v10769 = vpop.permute.xlu0 %10768
  %10770 = vrot.lane.b32.xlu0 %v10749, 127
  %v10771 = vpop.permute.xlu0 %10770
  %10772 = vrot.lane.b32.xlu0 %v10750, 127
  %v10773 = vpop.permute.xlu0 %10772
  %10774 = vrot.lane.b32.xlu0 %v10751, 127
  %v10775 = vpop.permute.xlu0 %10774
  %10776 = vrot.lane.b32.xlu0 %v10752, 127
  %v10777 = vpop.permute.xlu0 %10776
  %10778 = vrot.lane.b32.xlu0 %v10753, 127
  %v10779 = vpop.permute.xlu0 %10778
  %10780 = vrot.lane.b32.xlu0 %v10754, 127
  %v10781 = vpop.permute.xlu0 %10780
  %10782 = vrot.lane.b32.xlu0 %v10755, 127
  %v10783 = vpop.permute.xlu0 %10782
  %10784 = vrot.lane.b32.xlu0 %v10756, 127
  %v10785 = vpop.permute.xlu0 %10784
  %10786 = vrot.lane.b32.xlu0 %v10757, 127
  %v10787 = vpop.permute.xlu0 %10786
  %10798 = vmatprep.subr.mxu0 0.0
  %10799 = vmatpush1.msra.mxu0 0.0
  %10800 = vmatprep.subr.mxu0 0.0
  %10801 = vmatpush1.msra.mxu0 0.0
  %10802 = vmatprep.subr.mxu0 0.0
  %10803 = vmatpush1.msra.mxu0 0.0
  %10804 = vmatprep.subr.mxu0 0.0
  %10805 = vmatpush1.msra.mxu0 0.0
  %10806 = vmatprep.subr.mxu0 0.0
  %10807 = vmatpush1.msra.mxu0 0.0
  %10808 = vmatprep.subr.mxu0 0.0
  %10809 = vmatpush1.msra.mxu0 0.0
  %10810 = vmatprep.subr.mxu0 0.0
  %10811 = vmatpush1.msra.mxu0 %v10787
  %10812 = vmatprep.subr.mxu0 0.0
  %10813 = vmatpush1.msra.mxu0 %v10785
  %10814 = vmatprep.subr.mxu0 0.0
  %10815 = vmatpush1.msra.mxu0 %v10783
  %10816 = vmatprep.subr.mxu0 0.0
  %10817 = vmatpush1.msra.mxu0 %v10781
  %10818 = vmatprep.subr.mxu0 0.0
  %10819 = vmatpush1.msra.mxu0 %v10779
  %10820 = vmatprep.subr.mxu0 0.0
  %10821 = vmatpush1.msra.mxu0 %v10777
  %10822 = vmatprep.subr.mxu0 0.0
  %10823 = vmatpush1.msra.mxu0 %v10775
  %10824 = vmatprep.subr.mxu0 0.0
  %10825 = vmatpush1.msra.mxu0 %v10773
  %10826 = vmatprep.subr.mxu0 0.0
  %10827 = vmatpush1.msra.mxu0 %v10771
  %10828 = vmatprep.subr.mxu0 0.0
  %10829 = vmatpush1.msra.mxu0 %v10769
  %10830 = vmatprep.subr.mxu0 0.0
  %10831 = vmatpush2.msra.mxu0 0.0
  %10832 = vmatprep.subr.mxu0 0.0
  %10833 = vmatpush2.msra.mxu0 0.0
  %10834 = vmatprep.subr.mxu0 0.0
  %10835 = vmatpush2.msra.mxu0 0.0
  %10836 = vmatprep.subr.mxu0 0.0
  %10837 = vmatpush2.msra.mxu0 0.0
  %10838 = vmatprep.subr.mxu0 0.0
  %10839 = vmatpush2.msra.mxu0 0.0
  %10840 = vmatprep.subr.mxu0 0.0
  %10841 = vmatpush2.msra.mxu0 0.0
  %10842 = vmatprep.subr.mxu0 0.0
  %10843 = vmatpush2.msra.mxu0 0.0
  %10844 = vmatprep.subr.mxu0 0.0
  %10845 = vmatpush2.msra.mxu0 0.0
  %10846 = vmatprep.subr.mxu0 0.0
  %10847 = vmatpush2.msra.mxu0 0.0
  %10848 = vmatprep.subr.mxu0 0.0
  %10849 = vmatpush2.msra.mxu0 0.0
  %10850 = vmatprep.subr.mxu0 0.0
  %10851 = vmatpush2.msra.mxu0 0.0
  %10852 = vmatprep.subr.mxu0 0.0
  %10853 = vmatpush2.msra.mxu0 0.0
  %10854 = vmatprep.subr.mxu0 0.0
  %10855 = vmatpush2.msra.mxu0 0.0
  %10856 = vmatprep.subr.mxu0 0.0
  %10857 = vmatpush2.msra.mxu0 0.0
  %10858 = vmatprep.subr.mxu0 0.0
  %10859 = vmatpush2.msra.mxu0 0.0
  %10860 = vmatprep.subr.mxu0 0.0
  %10861 = vmatpush2.msra.mxu0 0.0
  %10862 = vmatprep.mubr.f32.mxu0 0.0
  %10863 = vmatmul.mubr.f32.gmra.mxu0 %v9069
  %v10864 = vpop.f32.mrf.mxu0
  %v10865 = vadd.f32 0.0, %v10864
  %v10866 = vpop.f32.mrf.mxu0
  %10867 = vmatprep.mubr.f32.mxu0 0.0
  %10868 = vmatmul.mubr.f32.gmra.mxu0 %v9072
  %v10869 = vpop.f32.mrf.mxu0
  %v10870 = vadd.f32 0.0, %v10869
  %v10871 = vpop.f32.mrf.mxu0
  %10872 = vmatprep.mubr.f32.mxu0 0.0
  %10873 = vmatmul.mubr.f32.gmra.mxu0 %v9075
  %v10874 = vpop.f32.mrf.mxu0
  %v10875 = vadd.f32 0.0, %v10874
  %v10876 = vpop.f32.mrf.mxu0
  %10877 = vmatprep.mubr.f32.mxu0 0.0
  %10878 = vmatmul.mubr.f32.gmra.mxu0 %v9078
  %v10879 = vpop.f32.mrf.mxu0
  %v10880 = vadd.f32 0.0, %v10879
  %v10881 = vpop.f32.mrf.mxu0
  %10882 = vmatprep.mubr.f32.mxu0 0.0
  %10883 = vmatmul.mubr.f32.gmra.mxu0 %v9081
  %v10884 = vpop.f32.mrf.mxu0
  %v10885 = vadd.f32 0.0, %v10884
  %v10886 = vpop.f32.mrf.mxu0
  %10887 = vmatprep.mubr.f32.mxu0 0.0
  %10888 = vmatmul.mubr.f32.gmra.mxu0 %v9084
  %v10889 = vpop.f32.mrf.mxu0
  %v10890 = vadd.f32 0.0, %v10889
  %v10891 = vpop.f32.mrf.mxu0
  %10892 = vmatprep.mubr.f32.mxu0 0.0
  %10893 = vmatmul.mubr.f32.gmra.mxu0 %v9087
  %v10894 = vpop.f32.mrf.mxu0
  %v10895 = vadd.f32 0.0, %v10894
  %v10896 = vpop.f32.mrf.mxu0
  %10897 = vmatprep.mubr.f32.mxu0 0.0
  %10898 = vmatmul.mubr.f32.gmra.mxu0 %v9090
  %v10899 = vpop.f32.mrf.mxu0
  %v10900 = vadd.f32 0.0, %v10899
  %v10901 = vpop.f32.mrf.mxu0
  %10902 = vmatprep.mubr.f32.mxu0 0.0
  %10903 = vmatmul.mubr.f32.gmra.mxu0 %v9093
  %v10904 = vpop.f32.mrf.mxu0
  %v10905 = vadd.f32 0.0, %v10904
  %v10906 = vpop.f32.mrf.mxu0
  %10907 = vmatprep.mubr.f32.mxu0 0.0
  %10908 = vmatmul.mubr.f32.gmra.mxu0 %v9096
  %v10909 = vpop.f32.mrf.mxu0
  %v10910 = vadd.f32 0.0, %v10909
  %v10911 = vpop.f32.mrf.mxu0
  %10912 = vmatprep.mubr.f32.mxu0 0.0
  %10913 = vmatmul.mubr.f32.gmra.mxu0 %v9099
  %v10914 = vpop.f32.mrf.mxu0
  %v10915 = vadd.f32 0.0, %v10914
  %v10916 = vpop.f32.mrf.mxu0
  %10917 = vmatprep.mubr.f32.mxu0 0.0
  %10918 = vmatmul.mubr.f32.gmra.mxu0 %v9102
  %v10919 = vpop.f32.mrf.mxu0
  %v10920 = vadd.f32 0.0, %v10919
  %v10921 = vpop.f32.mrf.mxu0
  %10922 = vmatprep.mubr.f32.mxu0 0.0
  %10923 = vmatmul.mubr.f32.gmra.mxu0 %v9105
  %v10924 = vpop.f32.mrf.mxu0
  %v10925 = vadd.f32 0.0, %v10924
  %v10926 = vpop.f32.mrf.mxu0
  %10927 = vmatprep.mubr.f32.mxu0 0.0
  %10928 = vmatmul.mubr.f32.gmra.mxu0 %v9108
  %v10929 = vpop.f32.mrf.mxu0
  %v10930 = vadd.f32 0.0, %v10929
  %v10931 = vpop.f32.mrf.mxu0
  %10932 = vmatprep.mubr.f32.mxu0 0.0
  %10933 = vmatmul.mubr.f32.gmra.mxu0 %v9111
  %v10934 = vpop.f32.mrf.mxu0
  %v10935 = vadd.f32 0.0, %v10934
  %v10936 = vpop.f32.mrf.mxu0
  %10937 = vmatprep.mubr.f32.mxu0 0.0
  %10938 = vmatmul.mubr.f32.gmra.mxu0 %v9114
  %v10939 = vpop.f32.mrf.mxu0
  %v10940 = vadd.f32 0.0, %v10939
  %v10941 = vpop.f32.mrf.mxu0
  %10942 = vmatprep.mubr.f32.mxu0 0.0
  %10943 = vmatmul.mubr.f32.gmra.mxu0 %v9117
  %v10944 = vpop.f32.mrf.mxu0
  %v10945 = vadd.f32 0.0, %v10944
  %v10946 = vpop.f32.mrf.mxu0
  %10947 = vmatprep.mubr.f32.mxu0 0.0
  %10948 = vmatmul.mubr.f32.gmra.mxu0 %v9120
  %v10949 = vpop.f32.mrf.mxu0
  %v10950 = vadd.f32 0.0, %v10949
  %v10951 = vpop.f32.mrf.mxu0
  %10952 = vmatprep.mubr.f32.mxu0 0.0
  %10953 = vmatmul.mubr.f32.gmra.mxu0 %v9123
  %v10954 = vpop.f32.mrf.mxu0
  %v10955 = vadd.f32 0.0, %v10954
  %v10956 = vpop.f32.mrf.mxu0
  %10957 = vmatprep.mubr.f32.mxu0 0.0
  %10958 = vmatmul.mubr.f32.gmra.mxu0 %v9126
  %v10959 = vpop.f32.mrf.mxu0
  %v10960 = vadd.f32 0.0, %v10959
  %v10961 = vpop.f32.mrf.mxu0
  %10962 = vmatprep.mubr.f32.mxu0 0.0
  %10963 = vmatmul.mubr.f32.gmra.mxu0 %v9129
  %v10964 = vpop.f32.mrf.mxu0
  %v10965 = vadd.f32 0.0, %v10964
  %v10966 = vpop.f32.mrf.mxu0
  %10967 = vmatprep.mubr.f32.mxu0 0.0
  %10968 = vmatmul.mubr.f32.gmra.mxu0 %v9132
  %v10969 = vpop.f32.mrf.mxu0
  %v10970 = vadd.f32 0.0, %v10969
  %v10971 = vpop.f32.mrf.mxu0
  %10972 = vmatprep.mubr.f32.mxu0 0.0
  %10973 = vmatmul.mubr.f32.gmra.mxu0 %v9135
  %v10974 = vpop.f32.mrf.mxu0
  %v10975 = vadd.f32 0.0, %v10974
  %v10976 = vpop.f32.mrf.mxu0
  %10977 = vmatprep.mubr.f32.mxu0 0.0
  %10978 = vmatmul.mubr.f32.gmra.mxu0 %v9138
  %v10979 = vpop.f32.mrf.mxu0
  %v10980 = vadd.f32 0.0, %v10979
  %v10981 = vpop.f32.mrf.mxu0
  %10982 = vmatprep.mubr.f32.mxu0 0.0
  %10983 = vmatmul.mubr.f32.gmra.mxu0 %v9141
  %v10984 = vpop.f32.mrf.mxu0
  %v10985 = vadd.f32 0.0, %v10984
  %v10986 = vpop.f32.mrf.mxu0
  %10987 = vmatprep.mubr.f32.mxu0 0.0
  %10988 = vmatmul.mubr.f32.gmra.mxu0 %v9144
  %v10989 = vpop.f32.mrf.mxu0
  %v10990 = vadd.f32 0.0, %v10989
  %v10991 = vpop.f32.mrf.mxu0
  %10992 = vmatprep.mubr.f32.mxu0 0.0
  %10993 = vmatmul.mubr.f32.gmra.mxu0 %v9147
  %v10994 = vpop.f32.mrf.mxu0
  %v10995 = vadd.f32 0.0, %v10994
  %v10996 = vpop.f32.mrf.mxu0
  %10997 = vmatprep.mubr.f32.mxu0 0.0
  %10998 = vmatmul.mubr.f32.gmra.mxu0 %v9150
  %v10999 = vpop.f32.mrf.mxu0
  %v11000 = vadd.f32 0.0, %v10999
  %v11001 = vpop.f32.mrf.mxu0
  %11002 = vmatprep.mubr.f32.mxu0 0.0
  %11003 = vmatmul.mubr.f32.gmra.mxu0 %v9153
  %v11004 = vpop.f32.mrf.mxu0
  %v11005 = vadd.f32 0.0, %v11004
  %v11006 = vpop.f32.mrf.mxu0
  %11007 = vmatprep.mubr.f32.mxu0 0.0
  %11008 = vmatmul.mubr.f32.gmra.mxu0 %v9156
  %v11009 = vpop.f32.mrf.mxu0
  %v11010 = vadd.f32 0.0, %v11009
  %v11011 = vpop.f32.mrf.mxu0
  %11012 = vmatprep.mubr.f32.mxu0 0.0
  %11013 = vmatmul.mubr.f32.gmra.mxu0 %v9159
  %v11014 = vpop.f32.mrf.mxu0
  %v11015 = vadd.f32 0.0, %v11014
  %v11016 = vpop.f32.mrf.mxu0
  %11017 = vmatprep.mubr.f32.mxu0 0.0
  %11018 = vmatmul.mubr.f32.gmra.mxu0 %v9162
  %v11019 = vpop.f32.mrf.mxu0
  %v11020 = vadd.f32 0.0, %v11019
  %v11021 = vpop.f32.mrf.mxu0
  %11022 = vmatprep.mubr.f32.mxu0 0.0
  %11023 = vmatmul.mubr.f32.gmra.mxu0 %v9165
  %v11024 = vpop.f32.mrf.mxu0
  %v11025 = vadd.f32 0.0, %v11024
  %v11026 = vpop.f32.mrf.mxu0
  %11027 = vmatprep.mubr.f32.mxu0 0.0
  %11028 = vmatmul.mubr.f32.gmra.mxu0 %v9168
  %v11029 = vpop.f32.mrf.mxu0
  %v11030 = vadd.f32 0.0, %v11029
  %v11031 = vpop.f32.mrf.mxu0
  %11032 = vmatprep.mubr.f32.mxu0 0.0
  %11033 = vmatmul.mubr.f32.gmra.mxu0 %v9171
  %v11034 = vpop.f32.mrf.mxu0
  %v11035 = vadd.f32 0.0, %v11034
  %v11036 = vpop.f32.mrf.mxu0
  %11037 = vmatprep.mubr.f32.mxu0 0.0
  %11038 = vmatmul.mubr.f32.gmra.mxu0 %v9174
  %v11039 = vpop.f32.mrf.mxu0
  %v11040 = vadd.f32 0.0, %v11039
  %v11041 = vpop.f32.mrf.mxu0
  %11042 = vmatprep.mubr.f32.mxu0 0.0
  %11043 = vmatmul.mubr.f32.gmra.mxu0 %v9177
  %v11044 = vpop.f32.mrf.mxu0
  %v11045 = vadd.f32 0.0, %v11044
  %v11046 = vpop.f32.mrf.mxu0
  %11047 = vmatprep.mubr.f32.mxu0 0.0
  %11048 = vmatmul.mubr.f32.gmra.mxu0 %v9180
  %v11049 = vpop.f32.mrf.mxu0
  %v11050 = vadd.f32 0.0, %v11049
  %v11051 = vpop.f32.mrf.mxu0
  %11052 = vmatprep.mubr.f32.mxu0 0.0
  %11053 = vmatmul.mubr.f32.gmra.mxu0 %v9183
  %v11054 = vpop.f32.mrf.mxu0
  %v11055 = vadd.f32 0.0, %v11054
  %v11056 = vpop.f32.mrf.mxu0
  %11057 = vmatprep.mubr.f32.mxu0 0.0
  %11058 = vmatmul.mubr.f32.gmra.mxu0 %v9186
  %v11059 = vpop.f32.mrf.mxu0
  %v11060 = vadd.f32 0.0, %v11059
  %v11061 = vpop.f32.mrf.mxu0
  %11062 = vdwg.mxu0
  %11103 = vrot.lane.b32.xlu0 %v10865, 2
  %v11104 = vpop.permute.xlu0 %11103
  %11105 = vrot.lane.b32.xlu0 %v10870, 2
  %v11106 = vpop.permute.xlu0 %11105
  %11107 = vrot.lane.b32.xlu0 %v10875, 2
  %v11108 = vpop.permute.xlu0 %11107
  %11109 = vrot.lane.b32.xlu0 %v10880, 2
  %v11110 = vpop.permute.xlu0 %11109
  %11111 = vrot.lane.b32.xlu0 %v10885, 2
  %v11112 = vpop.permute.xlu0 %11111
  %11113 = vrot.lane.b32.xlu0 %v10890, 2
  %v11114 = vpop.permute.xlu0 %11113
  %11115 = vrot.lane.b32.xlu0 %v10895, 2
  %v11116 = vpop.permute.xlu0 %11115
  %11117 = vrot.lane.b32.xlu0 %v10900, 2
  %v11118 = vpop.permute.xlu0 %11117
  %11119 = vrot.lane.b32.xlu0 %v10905, 2
  %v11120 = vpop.permute.xlu0 %11119
  %11121 = vrot.lane.b32.xlu0 %v10910, 2
  %v11122 = vpop.permute.xlu0 %11121
  %11123 = vrot.lane.b32.xlu0 %v10915, 2
  %v11124 = vpop.permute.xlu0 %11123
  %11125 = vrot.lane.b32.xlu0 %v10920, 2
  %v11126 = vpop.permute.xlu0 %11125
  %11127 = vrot.lane.b32.xlu0 %v10925, 2
  %v11128 = vpop.permute.xlu0 %11127
  %11129 = vrot.lane.b32.xlu0 %v10930, 2
  %v11130 = vpop.permute.xlu0 %11129
  %11131 = vrot.lane.b32.xlu0 %v10935, 2
  %v11132 = vpop.permute.xlu0 %11131
  %11133 = vrot.lane.b32.xlu0 %v10940, 2
  %v11134 = vpop.permute.xlu0 %11133
  %11135 = vrot.lane.b32.xlu0 %v10945, 2
  %v11136 = vpop.permute.xlu0 %11135
  %11137 = vrot.lane.b32.xlu0 %v10950, 2
  %v11138 = vpop.permute.xlu0 %11137
  %11139 = vrot.lane.b32.xlu0 %v10955, 2
  %v11140 = vpop.permute.xlu0 %11139
  %11141 = vrot.lane.b32.xlu0 %v10960, 2
  %v11142 = vpop.permute.xlu0 %11141
  %11143 = vrot.lane.b32.xlu0 %v10965, 2
  %v11144 = vpop.permute.xlu0 %11143
  %11145 = vrot.lane.b32.xlu0 %v10970, 2
  %v11146 = vpop.permute.xlu0 %11145
  %11147 = vrot.lane.b32.xlu0 %v10975, 2
  %v11148 = vpop.permute.xlu0 %11147
  %11149 = vrot.lane.b32.xlu0 %v10980, 2
  %v11150 = vpop.permute.xlu0 %11149
  %11151 = vrot.lane.b32.xlu0 %v10985, 2
  %v11152 = vpop.permute.xlu0 %11151
  %11153 = vrot.lane.b32.xlu0 %v10990, 2
  %v11154 = vpop.permute.xlu0 %11153
  %11155 = vrot.lane.b32.xlu0 %v10995, 2
  %v11156 = vpop.permute.xlu0 %11155
  %11157 = vrot.lane.b32.xlu0 %v11000, 2
  %v11158 = vpop.permute.xlu0 %11157
  %11159 = vrot.lane.b32.xlu0 %v11005, 2
  %v11160 = vpop.permute.xlu0 %11159
  %11161 = vrot.lane.b32.xlu0 %v11010, 2
  %v11162 = vpop.permute.xlu0 %11161
  %11163 = vrot.lane.b32.xlu0 %v11015, 2
  %v11164 = vpop.permute.xlu0 %11163
  %11165 = vrot.lane.b32.xlu0 %v11020, 2
  %v11166 = vpop.permute.xlu0 %11165
  %11167 = vrot.lane.b32.xlu0 %v11025, 2
  %v11168 = vpop.permute.xlu0 %11167
  %11169 = vrot.lane.b32.xlu0 %v11030, 2
  %v11170 = vpop.permute.xlu0 %11169
  %11171 = vrot.lane.b32.xlu0 %v11035, 2
  %v11172 = vpop.permute.xlu0 %11171
  %11173 = vrot.lane.b32.xlu0 %v11040, 2
  %v11174 = vpop.permute.xlu0 %11173
  %11175 = vrot.lane.b32.xlu0 %v11045, 2
  %v11176 = vpop.permute.xlu0 %11175
  %11177 = vrot.lane.b32.xlu0 %v11050, 2
  %v11178 = vpop.permute.xlu0 %11177
  %11179 = vrot.lane.b32.xlu0 %v11055, 2
  %v11180 = vpop.permute.xlu0 %11179
  %11181 = vrot.lane.b32.xlu0 %v11060, 2
  %v11182 = vpop.permute.xlu0 %11181
  %v11223 = vadd.f32 %v8829, %v11104
  %v11224 = vadd.f32 %v8834, %v11106
  %v11225 = vadd.f32 %v8839, %v11108
  %v11226 = vadd.f32 %v8844, %v11110
  %v11227 = vadd.f32 %v8849, %v11112
  %v11228 = vadd.f32 %v8854, %v11114
  %v11229 = vadd.f32 %v8859, %v11116
  %v11230 = vadd.f32 %v8864, %v11118
  %v11231 = vadd.f32 %v8869, %v11120
  %v11232 = vadd.f32 %v8874, %v11122
  %v11233 = vadd.f32 %v8879, %v11124
  %v11234 = vadd.f32 %v8884, %v11126
  %v11235 = vadd.f32 %v8889, %v11128
  %v11236 = vadd.f32 %v8894, %v11130
  %v11237 = vadd.f32 %v8899, %v11132
  %v11238 = vadd.f32 %v8904, %v11134
  %v11239 = vadd.f32 %v8909, %v11136
  %v11240 = vadd.f32 %v8914, %v11138
  %v11241 = vadd.f32 %v8919, %v11140
  %v11242 = vadd.f32 %v8924, %v11142
  %v11243 = vadd.f32 %v8929, %v11144
  %v11244 = vadd.f32 %v8934, %v11146
  %v11245 = vadd.f32 %v8939, %v11148
  %v11246 = vadd.f32 %v8944, %v11150
  %v11247 = vadd.f32 %v8949, %v11152
  %v11248 = vadd.f32 %v8954, %v11154
  %v11249 = vadd.f32 %v8959, %v11156
  %v11250 = vadd.f32 %v8964, %v11158
  %v11251 = vadd.f32 %v8969, %v11160
  %v11252 = vadd.f32 %v8974, %v11162
  %v11253 = vadd.f32 %v8979, %v11164
  %v11254 = vadd.f32 %v8984, %v11166
  %v11255 = vadd.f32 %v8989, %v11168
  %v11256 = vadd.f32 %v8994, %v11170
  %v11257 = vadd.f32 %v8999, %v11172
  %v11258 = vadd.f32 %v9004, %v11174
  %v11259 = vadd.f32 %v9009, %v11176
  %v11260 = vadd.f32 %v9014, %v11178
  %v11261 = vadd.f32 %v9019, %v11180
  %v11262 = vadd.f32 %v9024, %v11182
  %11263 = vrot.lane.b32.xlu0 %v9493, 2
  %v11264 = vpop.permute.xlu0 %11263
  %11265 = vrot.lane.b32.xlu0 %v9494, 2
  %v11266 = vpop.permute.xlu0 %11265
  %11267 = vrot.lane.b32.xlu0 %v9495, 2
  %v11268 = vpop.permute.xlu0 %11267
  %11269 = vrot.lane.b32.xlu0 %v9496, 2
  %v11270 = vpop.permute.xlu0 %11269
  %11271 = vrot.lane.b32.xlu0 %v9497, 2
  %v11272 = vpop.permute.xlu0 %11271
  %11273 = vrot.lane.b32.xlu0 %v9498, 2
  %v11274 = vpop.permute.xlu0 %11273
  %11275 = vrot.lane.b32.xlu0 %v9499, 2
  %v11276 = vpop.permute.xlu0 %11275
  %11277 = vrot.lane.b32.xlu0 %v9500, 2
  %v11278 = vpop.permute.xlu0 %11277
  %11279 = vrot.lane.b32.xlu0 %v9501, 2
  %v11280 = vpop.permute.xlu0 %11279
  %11281 = vrot.lane.b32.xlu0 %v9502, 2
  %v11282 = vpop.permute.xlu0 %11281
  %11283 = vrot.lane.b32.xlu0 %v9503, 2
  %v11284 = vpop.permute.xlu0 %11283
  %11285 = vrot.lane.b32.xlu0 %v9504, 2
  %v11286 = vpop.permute.xlu0 %11285
  %11287 = vrot.lane.b32.xlu0 %v9505, 2
  %v11288 = vpop.permute.xlu0 %11287
  %11289 = vrot.lane.b32.xlu0 %v9506, 2
  %v11290 = vpop.permute.xlu0 %11289
  %11291 = vrot.lane.b32.xlu0 %v9507, 2
  %v11292 = vpop.permute.xlu0 %11291
  %11293 = vrot.lane.b32.xlu0 %v9508, 2
  %v11294 = vpop.permute.xlu0 %11293
  %11295 = vrot.lane.b32.xlu0 %v9509, 2
  %v11296 = vpop.permute.xlu0 %11295
  %11297 = vrot.lane.b32.xlu0 %v9510, 2
  %v11298 = vpop.permute.xlu0 %11297
  %11299 = vrot.lane.b32.xlu0 %v9511, 2
  %v11300 = vpop.permute.xlu0 %11299
  %11301 = vrot.lane.b32.xlu0 %v9512, 2
  %v11302 = vpop.permute.xlu0 %11301
  %11303 = vrot.lane.b32.xlu0 %v9513, 2
  %v11304 = vpop.permute.xlu0 %11303
  %11305 = vrot.lane.b32.xlu0 %v9514, 2
  %v11306 = vpop.permute.xlu0 %11305
  %11307 = vrot.lane.b32.xlu0 %v9515, 2
  %v11308 = vpop.permute.xlu0 %11307
  %11309 = vrot.lane.b32.xlu0 %v9516, 2
  %v11310 = vpop.permute.xlu0 %11309
  %11311 = vrot.lane.b32.xlu0 %v9517, 2
  %v11312 = vpop.permute.xlu0 %11311
  %11313 = vrot.lane.b32.xlu0 %v9518, 2
  %v11314 = vpop.permute.xlu0 %11313
  %11315 = vrot.lane.b32.xlu0 %v9519, 2
  %v11316 = vpop.permute.xlu0 %11315
  %11317 = vrot.lane.b32.xlu0 %v9520, 2
  %v11318 = vpop.permute.xlu0 %11317
  %11319 = vrot.lane.b32.xlu0 %v9521, 2
  %v11320 = vpop.permute.xlu0 %11319
  %11321 = vrot.lane.b32.xlu0 %v9522, 2
  %v11322 = vpop.permute.xlu0 %11321
  %11323 = vrot.lane.b32.xlu0 %v9523, 2
  %v11324 = vpop.permute.xlu0 %11323
  %11325 = vrot.lane.b32.xlu0 %v9524, 2
  %v11326 = vpop.permute.xlu0 %11325
  %11327 = vrot.lane.b32.xlu0 %v9525, 2
  %v11328 = vpop.permute.xlu0 %11327
  %11329 = vrot.lane.b32.xlu0 %v9526, 2
  %v11330 = vpop.permute.xlu0 %11329
  %11331 = vrot.lane.b32.xlu0 %v9527, 2
  %v11332 = vpop.permute.xlu0 %11331
  %11333 = vrot.lane.b32.xlu0 %v9528, 2
  %v11334 = vpop.permute.xlu0 %11333
  %11335 = vrot.lane.b32.xlu0 %v9529, 2
  %v11336 = vpop.permute.xlu0 %11335
  %11337 = vrot.lane.b32.xlu0 %v9530, 2
  %v11338 = vpop.permute.xlu0 %11337
  %11339 = vrot.lane.b32.xlu0 %v9531, 2
  %v11340 = vpop.permute.xlu0 %11339
  %11341 = vrot.lane.b32.xlu0 %v9532, 2
  %v11342 = vpop.permute.xlu0 %11341
  %v11383 = vadd.f32 %v11223, %v11264
  %v11384 = vadd.f32 %v11224, %v11266
  %v11385 = vadd.f32 %v11225, %v11268
  %v11386 = vadd.f32 %v11226, %v11270
  %v11387 = vadd.f32 %v11227, %v11272
  %v11388 = vadd.f32 %v11228, %v11274
  %v11389 = vadd.f32 %v11229, %v11276
  %v11390 = vadd.f32 %v11230, %v11278
  %v11391 = vadd.f32 %v11231, %v11280
  %v11392 = vadd.f32 %v11232, %v11282
  %v11393 = vadd.f32 %v11233, %v11284
  %v11394 = vadd.f32 %v11234, %v11286
  %v11395 = vadd.f32 %v11235, %v11288
  %v11396 = vadd.f32 %v11236, %v11290
  %v11397 = vadd.f32 %v11237, %v11292
  %v11398 = vadd.f32 %v11238, %v11294
  %v11399 = vadd.f32 %v11239, %v11296
  %v11400 = vadd.f32 %v11240, %v11298
  %v11401 = vadd.f32 %v11241, %v11300
  %v11402 = vadd.f32 %v11242, %v11302
  %v11403 = vadd.f32 %v11243, %v11304
  %v11404 = vadd.f32 %v11244, %v11306
  %v11405 = vadd.f32 %v11245, %v11308
  %v11406 = vadd.f32 %v11246, %v11310
  %v11407 = vadd.f32 %v11247, %v11312
  %v11408 = vadd.f32 %v11248, %v11314
  %v11409 = vadd.f32 %v11249, %v11316
  %v11410 = vadd.f32 %v11250, %v11318
  %v11411 = vadd.f32 %v11251, %v11320
  %v11412 = vadd.f32 %v11252, %v11322
  %v11413 = vadd.f32 %v11253, %v11324
  %v11414 = vadd.f32 %v11254, %v11326
  %v11415 = vadd.f32 %v11255, %v11328
  %v11416 = vadd.f32 %v11256, %v11330
  %v11417 = vadd.f32 %v11257, %v11332
  %v11418 = vadd.f32 %v11258, %v11334
  %v11419 = vadd.f32 %v11259, %v11336
  %v11420 = vadd.f32 %v11260, %v11338
  %v11421 = vadd.f32 %v11261, %v11340
  %v11422 = vadd.f32 %v11262, %v11342
  %v11423 = vxor.u32 %v11383, 2147483648
  %v11424 = vxor.u32 %v11384, 2147483648
  %v11425 = vxor.u32 %v11385, 2147483648
  %v11426 = vxor.u32 %v11386, 2147483648
  %v11427 = vxor.u32 %v11387, 2147483648
  %v11428 = vxor.u32 %v11388, 2147483648
  %v11429 = vxor.u32 %v11389, 2147483648
  %v11430 = vxor.u32 %v11390, 2147483648
  %v11431 = vxor.u32 %v11391, 2147483648
  %v11432 = vxor.u32 %v11392, 2147483648
  %v11433 = vmul.f32 %v11423, 1.442695
  %v11434 = vpow.pop %v11433
  %v11435 = vmul.f32 %v11424, 1.442695
  %v11436 = vpow.pop %v11435
  %v11437 = vmul.f32 %v11425, 1.442695
  %v11438 = vpow.pop %v11437
  %v11439 = vmul.f32 %v11426, 1.442695
  %v11440 = vpow.pop %v11439
  %v11441 = vmul.f32 %v11427, 1.442695
  %v11442 = vpow.pop %v11441
  %v11443 = vmul.f32 %v11428, 1.442695
  %v11444 = vpow.pop %v11443
  %v11445 = vmul.f32 %v11429, 1.442695
  %v11446 = vpow.pop %v11445
  %v11447 = vmul.f32 %v11430, 1.442695
  %v11448 = vpow.pop %v11447
  %v11449 = vmul.f32 %v11431, 1.442695
  %v11450 = vpow.pop %v11449
  %v11451 = vmul.f32 %v11432, 1.442695
  %v11452 = vpow.pop %v11451
  %v11453 = vadd.f32 %v11434, 1.0
  %v11454 = vadd.f32 %v11436, 1.0
  %v11455 = vadd.f32 %v11438, 1.0
  %v11456 = vadd.f32 %v11440, 1.0
  %v11457 = vadd.f32 %v11442, 1.0
  %v11458 = vadd.f32 %v11444, 1.0
  %v11459 = vadd.f32 %v11446, 1.0
  %v11460 = vadd.f32 %v11448, 1.0
  %v11461 = vadd.f32 %v11450, 1.0
  %v11462 = vadd.f32 %v11452, 1.0
  %v11463 = vrcp.pop %v11453
  %v11464 = vmul.f32 1.0, %v11463
  %v11465 = vrcp.pop %v11454
  %v11466 = vmul.f32 1.0, %v11465
  %v11467 = vrcp.pop %v11455
  %v11468 = vmul.f32 1.0, %v11467
  %v11469 = vrcp.pop %v11456
  %v11470 = vmul.f32 1.0, %v11469
  %v11471 = vrcp.pop %v11457
  %v11472 = vmul.f32 1.0, %v11471
  %v11473 = vrcp.pop %v11458
  %v11474 = vmul.f32 1.0, %v11473
  %v11475 = vrcp.pop %v11459
  %v11476 = vmul.f32 1.0, %v11475
  %v11477 = vrcp.pop %v11460
  %v11478 = vmul.f32 1.0, %v11477
  %v11479 = vrcp.pop %v11461
  %v11480 = vmul.f32 1.0, %v11479
  %v11481 = vrcp.pop %v11462
  %v11482 = vmul.f32 1.0, %v11481
  %v11483 = vxor.u32 %v11393, 2147483648
  %v11484 = vxor.u32 %v11394, 2147483648
  %v11485 = vxor.u32 %v11395, 2147483648
  %v11486 = vxor.u32 %v11396, 2147483648
  %v11487 = vxor.u32 %v11397, 2147483648
  %v11488 = vxor.u32 %v11398, 2147483648
  %v11489 = vxor.u32 %v11399, 2147483648
  %v11490 = vxor.u32 %v11400, 2147483648
  %v11491 = vxor.u32 %v11401, 2147483648
  %v11492 = vxor.u32 %v11402, 2147483648
  %v11493 = vmul.f32 %v11483, 1.442695
  %v11494 = vpow.pop %v11493
  %v11495 = vmul.f32 %v11484, 1.442695
  %v11496 = vpow.pop %v11495
  %v11497 = vmul.f32 %v11485, 1.442695
  %v11498 = vpow.pop %v11497
  %v11499 = vmul.f32 %v11486, 1.442695
  %v11500 = vpow.pop %v11499
  %v11501 = vmul.f32 %v11487, 1.442695
  %v11502 = vpow.pop %v11501
  %v11503 = vmul.f32 %v11488, 1.442695
  %v11504 = vpow.pop %v11503
  %v11505 = vmul.f32 %v11489, 1.442695
  %v11506 = vpow.pop %v11505
  %v11507 = vmul.f32 %v11490, 1.442695
  %v11508 = vpow.pop %v11507
  %v11509 = vmul.f32 %v11491, 1.442695
  %v11510 = vpow.pop %v11509
  %v11511 = vmul.f32 %v11492, 1.442695
  %v11512 = vpow.pop %v11511
  %v11513 = vadd.f32 %v11494, 1.0
  %v11514 = vadd.f32 %v11496, 1.0
  %v11515 = vadd.f32 %v11498, 1.0
  %v11516 = vadd.f32 %v11500, 1.0
  %v11517 = vadd.f32 %v11502, 1.0
  %v11518 = vadd.f32 %v11504, 1.0
  %v11519 = vadd.f32 %v11506, 1.0
  %v11520 = vadd.f32 %v11508, 1.0
  %v11521 = vadd.f32 %v11510, 1.0
  %v11522 = vadd.f32 %v11512, 1.0
  %v11523 = vrcp.pop %v11513
  %v11524 = vmul.f32 1.0, %v11523
  %v11525 = vrcp.pop %v11514
  %v11526 = vmul.f32 1.0, %v11525
  %v11527 = vrcp.pop %v11515
  %v11528 = vmul.f32 1.0, %v11527
  %v11529 = vrcp.pop %v11516
  %v11530 = vmul.f32 1.0, %v11529
  %v11531 = vrcp.pop %v11517
  %v11532 = vmul.f32 1.0, %v11531
  %v11533 = vrcp.pop %v11518
  %v11534 = vmul.f32 1.0, %v11533
  %v11535 = vrcp.pop %v11519
  %v11536 = vmul.f32 1.0, %v11535
  %v11537 = vrcp.pop %v11520
  %v11538 = vmul.f32 1.0, %v11537
  %v11539 = vrcp.pop %v11521
  %v11540 = vmul.f32 1.0, %v11539
  %v11541 = vrcp.pop %v11522
  %v11542 = vmul.f32 1.0, %v11541
  %v11543 = vtanh.pop %v11403
  %v11544 = vtanh.pop %v11404
  %v11545 = vtanh.pop %v11405
  %v11546 = vtanh.pop %v11406
  %v11547 = vtanh.pop %v11407
  %v11548 = vtanh.pop %v11408
  %v11549 = vtanh.pop %v11409
  %v11550 = vtanh.pop %v11410
  %v11551 = vtanh.pop %v11411
  %v11552 = vtanh.pop %v11412
  %v11553 = vxor.u32 %v11413, 2147483648
  %v11554 = vxor.u32 %v11414, 2147483648
  %v11555 = vxor.u32 %v11415, 2147483648
  %v11556 = vxor.u32 %v11416, 2147483648
  %v11557 = vxor.u32 %v11417, 2147483648
  %v11558 = vxor.u32 %v11418, 2147483648
  %v11559 = vxor.u32 %v11419, 2147483648
  %v11560 = vxor.u32 %v11420, 2147483648
  %v11561 = vxor.u32 %v11421, 2147483648
  %v11562 = vxor.u32 %v11422, 2147483648
  %v11563 = vmul.f32 %v11553, 1.442695
  %v11564 = vpow.pop %v11563
  %v11565 = vmul.f32 %v11554, 1.442695
  %v11566 = vpow.pop %v11565
  %v11567 = vmul.f32 %v11555, 1.442695
  %v11568 = vpow.pop %v11567
  %v11569 = vmul.f32 %v11556, 1.442695
  %v11570 = vpow.pop %v11569
  %v11571 = vmul.f32 %v11557, 1.442695
  %v11572 = vpow.pop %v11571
  %v11573 = vmul.f32 %v11558, 1.442695
  %v11574 = vpow.pop %v11573
  %v11575 = vmul.f32 %v11559, 1.442695
  %v11576 = vpow.pop %v11575
  %v11577 = vmul.f32 %v11560, 1.442695
  %v11578 = vpow.pop %v11577
  %v11579 = vmul.f32 %v11561, 1.442695
  %v11580 = vpow.pop %v11579
  %v11581 = vmul.f32 %v11562, 1.442695
  %v11582 = vpow.pop %v11581
  %v11583 = vadd.f32 %v11564, 1.0
  %v11584 = vadd.f32 %v11566, 1.0
  %v11585 = vadd.f32 %v11568, 1.0
  %v11586 = vadd.f32 %v11570, 1.0
  %v11587 = vadd.f32 %v11572, 1.0
  %v11588 = vadd.f32 %v11574, 1.0
  %v11589 = vadd.f32 %v11576, 1.0
  %v11590 = vadd.f32 %v11578, 1.0
  %v11591 = vadd.f32 %v11580, 1.0
  %v11592 = vadd.f32 %v11582, 1.0
  %v11593 = vrcp.pop %v11583
  %v11594 = vmul.f32 1.0, %v11593
  %v11595 = vrcp.pop %v11584
  %v11596 = vmul.f32 1.0, %v11595
  %v11597 = vrcp.pop %v11585
  %v11598 = vmul.f32 1.0, %v11597
  %v11599 = vrcp.pop %v11586
  %v11600 = vmul.f32 1.0, %v11599
  %v11601 = vrcp.pop %v11587
  %v11602 = vmul.f32 1.0, %v11601
  %v11603 = vrcp.pop %v11588
  %v11604 = vmul.f32 1.0, %v11603
  %v11605 = vrcp.pop %v11589
  %v11606 = vmul.f32 1.0, %v11605
  %v11607 = vrcp.pop %v11590
  %v11608 = vmul.f32 1.0, %v11607
  %v11609 = vrcp.pop %v11591
  %v11610 = vmul.f32 1.0, %v11609
  %v11611 = vrcp.pop %v11592
  %v11612 = vmul.f32 1.0, %v11611
  %11623 = vrot.lane.b32.xlu0 %v10728, 1
  %v11624 = vpop.permute.xlu0 %11623
  %11625 = vrot.lane.b32.xlu0 %v10729, 1
  %v11626 = vpop.permute.xlu0 %11625
  %11627 = vrot.lane.b32.xlu0 %v10730, 1
  %v11628 = vpop.permute.xlu0 %11627
  %11629 = vrot.lane.b32.xlu0 %v10731, 1
  %v11630 = vpop.permute.xlu0 %11629
  %11631 = vrot.lane.b32.xlu0 %v10732, 1
  %v11632 = vpop.permute.xlu0 %11631
  %11633 = vrot.lane.b32.xlu0 %v10733, 1
  %v11634 = vpop.permute.xlu0 %11633
  %11635 = vrot.lane.b32.xlu0 %v10734, 1
  %v11636 = vpop.permute.xlu0 %11635
  %11637 = vrot.lane.b32.xlu0 %v10735, 1
  %v11638 = vpop.permute.xlu0 %11637
  %11639 = vrot.lane.b32.xlu0 %v10736, 1
  %v11640 = vpop.permute.xlu0 %11639
  %11641 = vrot.lane.b32.xlu0 %v10737, 1
  %v11642 = vpop.permute.xlu0 %11641
  %v11653 = vmul.f32 %v11524, %v11624
  %v11654 = vmul.f32 %v11526, %v11626
  %v11655 = vmul.f32 %v11528, %v11628
  %v11656 = vmul.f32 %v11530, %v11630
  %v11657 = vmul.f32 %v11532, %v11632
  %v11658 = vmul.f32 %v11534, %v11634
  %v11659 = vmul.f32 %v11536, %v11636
  %v11660 = vmul.f32 %v11538, %v11638
  %v11661 = vmul.f32 %v11540, %v11640
  %v11662 = vmul.f32 %v11542, %v11642
  %v11663 = vmul.f32 %v11464, %v11543
  %v11664 = vmul.f32 %v11466, %v11544
  %v11665 = vmul.f32 %v11468, %v11545
  %v11666 = vmul.f32 %v11470, %v11546
  %v11667 = vmul.f32 %v11472, %v11547
  %v11668 = vmul.f32 %v11474, %v11548
  %v11669 = vmul.f32 %v11476, %v11549
  %v11670 = vmul.f32 %v11478, %v11550
  %v11671 = vmul.f32 %v11480, %v11551
  %v11672 = vmul.f32 %v11482, %v11552
  %v11673 = vadd.f32 %v11653, %v11663
  %v11674 = vadd.f32 %v11654, %v11664
  %v11675 = vadd.f32 %v11655, %v11665
  %v11676 = vadd.f32 %v11656, %v11666
  %v11677 = vadd.f32 %v11657, %v11667
  %v11678 = vadd.f32 %v11658, %v11668
  %v11679 = vadd.f32 %v11659, %v11669
  %v11680 = vadd.f32 %v11660, %v11670
  %v11681 = vadd.f32 %v11661, %v11671
  %v11682 = vadd.f32 %v11662, %v11672
  %v11683 = vtanh.pop %v11673
  %v11684 = vtanh.pop %v11674
  %v11685 = vtanh.pop %v11675
  %v11686 = vtanh.pop %v11676
  %v11687 = vtanh.pop %v11677
  %v11688 = vtanh.pop %v11678
  %v11689 = vtanh.pop %v11679
  %v11690 = vtanh.pop %v11680
  %v11691 = vtanh.pop %v11681
  %v11692 = vtanh.pop %v11682
  %v11693 = vmul.f32 %v11594, %v11683
  %v11694 = vmul.f32 %v11596, %v11684
  %v11695 = vmul.f32 %v11598, %v11685
  %v11696 = vmul.f32 %v11600, %v11686
  %v11697 = vmul.f32 %v11602, %v11687
  %v11698 = vmul.f32 %v11604, %v11688
  %v11699 = vmul.f32 %v11606, %v11689
  %v11700 = vmul.f32 %v11608, %v11690
  %v11701 = vmul.f32 %v11610, %v11691
  %v11702 = vmul.f32 %v11612, %v11692
  %v11703 = vld [vmem:[%s14] sm:$0xff]
  %v11704 = vld [vmem:[%s14 + $0x8] sm:$0xff]
  %v11705 = vld [vmem:[%s15] sm:$0xff]
  %v11706 = vld [vmem:[%s15 + $0x8] sm:$0xff]
  %11717 = vrot.lane.b32.xlu0 %v11693, 126
  %v11718 = vpop.permute.xlu0 %11717
  %11719 = vrot.lane.b32.xlu0 %v11694, 126
  %v11720 = vpop.permute.xlu0 %11719
  %11721 = vrot.lane.b32.xlu0 %v11695, 126
  %v11722 = vpop.permute.xlu0 %11721
  %11723 = vrot.lane.b32.xlu0 %v11696, 126
  %v11724 = vpop.permute.xlu0 %11723
  %11725 = vrot.lane.b32.xlu0 %v11697, 126
  %v11726 = vpop.permute.xlu0 %11725
  %11727 = vrot.lane.b32.xlu0 %v11698, 126
  %v11728 = vpop.permute.xlu0 %11727
  %11729 = vrot.lane.b32.xlu0 %v11699, 126
  %v11730 = vpop.permute.xlu0 %11729
  %11731 = vrot.lane.b32.xlu0 %v11700, 126
  %v11732 = vpop.permute.xlu0 %11731
  %11733 = vrot.lane.b32.xlu0 %v11701, 126
  %v11734 = vpop.permute.xlu0 %11733
  %11735 = vrot.lane.b32.xlu0 %v11702, 126
  %v11736 = vpop.permute.xlu0 %11735
  %v11748 = vsel %vm9067, %v11703, 0
  %v11751 = vsel %vm9067, %v11704, 0
  %11753 = vmatprep.subr.mxu0 0.0
  %11754 = vmatpush1.msra.mxu0 0.0
  %11755 = vmatprep.subr.mxu0 0.0
  %11756 = vmatpush1.msra.mxu0 0.0
  %11757 = vmatprep.subr.mxu0 0.0
  %11758 = vmatpush1.msra.mxu0 0.0
  %11759 = vmatprep.subr.mxu0 0.0
  %11760 = vmatpush1.msra.mxu0 0.0
  %11761 = vmatprep.subr.mxu0 0.0
  %11762 = vmatpush1.msra.mxu0 0.0
  %11763 = vmatprep.subr.mxu0 0.0
  %11764 = vmatpush1.msra.mxu0 0.0
  %11765 = vmatprep.subr.mxu0 0.0
  %11766 = vmatpush1.msra.mxu0 %v11736
  %11767 = vmatprep.subr.mxu0 0.0
  %11768 = vmatpush1.msra.mxu0 %v11734
  %11769 = vmatprep.subr.mxu0 0.0
  %11770 = vmatpush1.msra.mxu0 %v11732
  %11771 = vmatprep.subr.mxu0 0.0
  %11772 = vmatpush1.msra.mxu0 %v11730
  %11773 = vmatprep.subr.mxu0 0.0
  %11774 = vmatpush1.msra.mxu0 %v11728
  %11775 = vmatprep.subr.mxu0 0.0
  %11776 = vmatpush1.msra.mxu0 %v11726
  %11777 = vmatprep.subr.mxu0 0.0
  %11778 = vmatpush1.msra.mxu0 %v11724
  %11779 = vmatprep.subr.mxu0 0.0
  %11780 = vmatpush1.msra.mxu0 %v11722
  %11781 = vmatprep.subr.mxu0 0.0
  %11782 = vmatpush1.msra.mxu0 %v11720
  %11783 = vmatprep.subr.mxu0 0.0
  %11784 = vmatpush1.msra.mxu0 %v11718
  %11785 = vmatprep.subr.mxu0 0.0
  %11786 = vmatpush2.msra.mxu0 0.0
  %11787 = vmatprep.subr.mxu0 0.0
  %11788 = vmatpush2.msra.mxu0 0.0
  %11789 = vmatprep.subr.mxu0 0.0
  %11790 = vmatpush2.msra.mxu0 0.0
  %11791 = vmatprep.subr.mxu0 0.0
  %11792 = vmatpush2.msra.mxu0 0.0
  %11793 = vmatprep.subr.mxu0 0.0
  %11794 = vmatpush2.msra.mxu0 0.0
  %11795 = vmatprep.subr.mxu0 0.0
  %11796 = vmatpush2.msra.mxu0 0.0
  %11797 = vmatprep.subr.mxu0 0.0
  %11798 = vmatpush2.msra.mxu0 0.0
  %11799 = vmatprep.subr.mxu0 0.0
  %11800 = vmatpush2.msra.mxu0 0.0
  %11801 = vmatprep.subr.mxu0 0.0
  %11802 = vmatpush2.msra.mxu0 0.0
  %11803 = vmatprep.subr.mxu0 0.0
  %11804 = vmatpush2.msra.mxu0 0.0
  %11805 = vmatprep.subr.mxu0 0.0
  %11806 = vmatpush2.msra.mxu0 0.0
  %11807 = vmatprep.subr.mxu0 0.0
  %11808 = vmatpush2.msra.mxu0 0.0
  %11809 = vmatprep.subr.mxu0 0.0
  %11810 = vmatpush2.msra.mxu0 0.0
  %11811 = vmatprep.subr.mxu0 0.0
  %11812 = vmatpush2.msra.mxu0 0.0
  %11813 = vmatprep.subr.mxu0 0.0
  %11814 = vmatpush2.msra.mxu0 0.0
  %11815 = vmatprep.subr.mxu0 0.0
  %11816 = vmatpush2.msra.mxu0 0.0
  %11817 = vmatprep.mubr.f32.mxu0 0.0
  %11818 = vmatmul.mubr.f32.gmra.mxu0 %v11748
  %v11819 = vpop.f32.mrf.mxu0
  %v11820 = vadd.f32 %v11705, %v11819
  %v11821 = vpop.f32.mrf.mxu0
  %11822 = vmatprep.mubr.f32.mxu0 0.0
  %11823 = vmatmul.mubr.f32.gmra.mxu0 %v11751
  %v11824 = vpop.f32.mrf.mxu0
  %v11825 = vadd.f32 %v11706, %v11824
  %v11826 = vpop.f32.mrf.mxu0
  %11827 = vdwg.mxu0
  %vm11828 = vcmask 7168
  %11829 = vst.msk [vmem:[%s16] sm:$0xff] %vm11828, %v11820
  %11830 = vst.msk [vmem:[%s16 + $0x8] sm:$0xff] %vm11828, %v11825
  // Predicated region
  $region66: #{tpu_custom_call.1} parent=0 // pred_check
    _
  $region67: #{tpu_custom_call.1} parent=0 // pred_check_branch
    %11832 = sbr.rel (0) target = $region69
  $region68: #{tpu_custom_call.1} parent=0 // pred_region
    _
  $region69: #{tpu_custom_call.1} parent=0 // pred_fallthru
    _
  // Predicated region
  $region70: #{tpu_custom_call.1} parent=0 // pred_check
    _
  $region71: #{tpu_custom_call.1} parent=0 // pred_check_branch
    %11834 = sbr.rel (0) target = $region73
  $region72: #{tpu_custom_call.1} parent=0 // pred_region
    _
  $region73: #{tpu_custom_call.1} parent=0 // pred_fallthru
    _

</llo_original>
